<compile_context>
chip_gen: v5e
topology: v5e:2x2
jax: 0.10.0
libtpu: 0.0.40
codegen_flags: <defaults>
</compile_context>

<pallas_src>
import functools

import jax
import jax.numpy as jnp
from jax.experimental import pallas as pl
from jax.experimental.pallas import tpu as pltpu

LANE = 128                    # TPU lane width: target >= 128 output lanes per store
GROUP_TM = 256                # row tile for grouped pointwise matmuls (2 parallel
                              # steps on the 512-row layers -> both v7x TCs busy)
MIN_PALLAS_PIXELS = 128       # below this a pallas_call launch costs more than XLA
COMPUTE_DTYPE = jnp.bfloat16  # MXU operand / activation storage dtype (accum is f32)


# ----------------------------------------------------------------------------
# Pallas kernels
# ----------------------------------------------------------------------------
def _gpw_kernel(x_ref, w_ref, b_ref, o_ref, *, relu):
    """Grouped 1x1 conv: out = x @ w_bd + b (+ReLU); output is lane-dense (>=128)."""
    acc = jnp.dot(x_ref[...], w_ref[...], preferred_element_type=jnp.float32)
    acc = acc + b_ref[...]
    if relu:
        acc = jnp.maximum(acc, 0.0)
    o_ref[...] = acc.astype(o_ref.dtype)


def _multi_gpw_kernel(*refs, n, relu):
    """n independent grouped 1x1 convs fused into one call (all head_super layers)."""
    xs = refs[0:n]
    ws = refs[n:2 * n]
    bs = refs[2 * n:3 * n]
    outs = refs[3 * n:4 * n]
    for x_ref, w_ref, b_ref, o_ref in zip(xs, ws, bs, outs):
        acc = jnp.dot(x_ref[...], w_ref[...], preferred_element_type=jnp.float32)
        acc = acc + b_ref[...]
        if relu:
            acc = jnp.maximum(acc, 0.0)
        o_ref[...] = acc.astype(o_ref.dtype)


def _head_tail_kernel(x1_ref, x2_ref, w1_ref, b1_ref, t_ref, b2_ref,
                      ah_ref, bw_ref, o_ref, xh_ref, *, KH, H, pad_lo):
    """classifier1 on (p2_2 + p3) -> 15x15 conv (banded Toeplitz) -> bilinear up.

    x1/x2 : (1, H, W*Cin)   pixel rows, lane-dense
    w1    : (W*Cin, W*C)    block-diagonal classifier1 weight
    t     : (KH, W*C, W*C)  block-Toeplitz classifier2 weight (width taps folded)
    ah    : (HO, H) f32     height interp matrix
    bw    : (W*C, WO*C) f32 width interp matrix (channel-expanded)
    o     : (1, HO, WO*C)   f32 pre-softmax logits, lane-dense
    xh    : (rows, W*C)     bf16 VMEM scratch: height-padded classifier1 output
    """
    ph = KH // 2
    wc = t_ref.shape[-1]
    # classifier1 on (p2_2 + p3): linear, so apply the block-diag weight to each input
    cls = jnp.dot(x1_ref[0], w1_ref[...], preferred_element_type=jnp.float32)
    cls = cls + jnp.dot(x2_ref[0], w1_ref[...], preferred_element_type=jnp.float32)
    cls = cls + b1_ref[...]
    # height-padded copy in VMEM (tile-aligned store at row pad_lo)
    xh_ref[...] = jnp.zeros(xh_ref.shape, xh_ref.dtype)
    xh_ref[pad_lo:pad_lo + H, :] = cls.astype(xh_ref.dtype)
    # KH banded matmuls; bands are re-read from the scratch ref per tap so no
    # register-level sublane-shift relayouts are needed.
    off = pad_lo - ph
    acc = jnp.zeros((H, wc), jnp.float32)
    for kh in range(KH):
        acc = acc + jnp.dot(xh_ref[kh + off:kh + off + H, :], t_ref[kh],
                            preferred_element_type=jnp.float32)
    acc = acc + b2_ref[...]
    # bilinear upsample (align_corners=False) as two small f32 matmuls
    y = jnp.dot(ah_ref[...], acc, preferred_element_type=jnp.float32)
    o_ref[0] = jnp.dot(y, bw_ref[...], preferred_element_type=jnp.float32)


# ----------------------------------------------------------------------------
# Kernel wrappers
# ----------------------------------------------------------------------------
def _grouped_pw_pallas(xg, w_bd, b_t, relu):
    R, Kin = xg.shape
    Kout = w_bd.shape[1]
    tm = R if R <= GROUP_TM else GROUP_TM
    Rp = pl.cdiv(R, tm) * tm
    if Rp != R:
        xg = jnp.pad(xg, ((0, Rp - R), (0, 0)))
    out = pl.pallas_call(
        functools.partial(_gpw_kernel, relu=relu),
        out_shape=jax.ShapeDtypeStruct((Rp, Kout), COMPUTE_DTYPE),
        grid=(Rp // tm,),
        in_specs=[
            pl.BlockSpec((tm, Kin), lambda i: (i, 0)),
            pl.BlockSpec((Kin, Kout), lambda i: (0, 0)),
            pl.BlockSpec((1, Kout), lambda i: (0, 0)),
        ],
        out_specs=pl.BlockSpec((tm, Kout), lambda i: (i, 0)),
        compiler_params=pltpu.CompilerParams(dimension_semantics=("parallel",)),
    )(xg, w_bd, b_t)
    return out[:R] if Rp != R else out


def pointwise_conv(x, lyr, relu=False):
    """1x1 conv.  Grouped lane-dense Pallas path for >=128 pixels, XLA below."""
    N, H, W, Cin = x.shape
    Cout = lyr['b'].shape[0]
    M = N * H * W
    if 'w_bd' in lyr and M >= MIN_PALLAS_PIXELS:
        G = lyr['w_bd'].shape[0] // Cin
        if M % G == 0:
            xg = x.reshape(M // G, G * Cin).astype(COMPUTE_DTYPE)
            out = _grouped_pw_pallas(xg, lyr['w_bd'], lyr['b_t'], relu)
            return out.reshape(N, H, W, Cout)
    acc = jnp.dot(x.reshape(M, Cin).astype(jnp.float32), lyr['w']) + lyr['b']
    if relu:
        acc = jnp.maximum(acc, 0.0)
    return acc.astype(COMPUTE_DTYPE).reshape(N, H, W, Cout)


def fused_concat_conv(x1, x2, lyr, relu=True):
    """conv1x1(concat([x1, x2], channel)) without a concatenated intermediate.

    Only used on the 4x4 / 8x8 neck layers (< 128 pixels) -> plain XLA matmuls.
    """
    N, H, W, C1 = x1.shape
    C2 = x2.shape[-1]
    w, b = lyr['w'], lyr['b']
    Cout = b.shape[0]
    acc = (jnp.dot(x1.reshape(-1, C1).astype(jnp.float32), w[:C1])
           + jnp.dot(x2.reshape(-1, C2).astype(jnp.float32), w[C1:]) + b)
    if relu:
        acc = jnp.maximum(acc, 0.0)
    return acc.astype(COMPUTE_DTYPE).reshape(N, H, W, Cout)


def head_super_fused(ps, layers):
    """All five head_super 1x1 convs (C -> num_class) in ONE pallas_call."""
    n = len(ps)
    xgs, couts = [], []
    for p, lyr in zip(ps, layers):
        N, H, W, Cin = p.shape
        G = lyr['w_bd'].shape[0] // Cin
        xgs.append(p.reshape(N * H * W // G, G * Cin).astype(COMPUTE_DTYPE))
        couts.append(lyr['b'].shape[0])
    out_shapes = tuple(
        jax.ShapeDtypeStruct((xg.shape[0], lyr['w_bd'].shape[1]), COMPUTE_DTYPE)
        for xg, lyr in zip(xgs, layers))
    outs = pl.pallas_call(
        functools.partial(_multi_gpw_kernel, n=n, relu=False),
        out_shape=out_shapes,
    )(*xgs, *(lyr['w_bd'] for lyr in layers), *(lyr['b_t'] for lyr in layers))
    res = []
    for o, p, cout in zip(outs, ps, couts):
        N, H, W, _ = p.shape
        res.append(o.reshape(N, H, W, cout))
    return res


def head_tail_fused(x1, x2, ht):
    """classifier1(x1 + x2) -> 15x15 conv -> bilinear upsample, one pallas_call.

    Returns pre-softmax logits at (N, HO, WO, C); softmax is applied in XLA
    (exact f32 normalization of a tiny tensor).
    """
    N, Hc, Wc, Cin = x1.shape
    C = ht['b1_t'].shape[-1] // Wc
    WCc = Wc * C
    KH = ht['t'].shape[0]
    ph = KH // 2
    pad_lo = -(-ph // 16) * 16                    # tile-aligned bf16 scratch offset
    rows = -(-(pad_lo + Hc + ph) // 16) * 16
    HO = ht['ah'].shape[0]
    WOC = ht['bw'].shape[-1]
    WO = WOC // C
    x1f = x1.reshape(N, Hc, Wc * Cin).astype(COMPUTE_DTYPE)
    x2f = x2.reshape(N, Hc, Wc * Cin).astype(COMPUTE_DTYPE)
    out = pl.pallas_call(
        functools.partial(_head_tail_kernel, KH=KH, H=Hc, pad_lo=pad_lo),
        out_shape=jax.ShapeDtypeStruct((N, HO, WOC), jnp.float32),
        grid=(N,),
        in_specs=[
            pl.BlockSpec((1, Hc, Wc * Cin), lambda n: (n, 0, 0)),
            pl.BlockSpec((1, Hc, Wc * Cin), lambda n: (n, 0, 0)),
            pl.BlockSpec((Wc * Cin, WCc), lambda n: (0, 0)),
            pl.BlockSpec((1, WCc), lambda n: (0, 0)),
            pl.BlockSpec((KH, WCc, WCc), lambda n: (0, 0, 0)),
            pl.BlockSpec((1, WCc), lambda n: (0, 0)),
            pl.BlockSpec((HO, Hc), lambda n: (0, 0)),
            pl.BlockSpec((WCc, WOC), lambda n: (0, 0)),
        ],
        out_specs=pl.BlockSpec((1, HO, WOC), lambda n: (n, 0, 0)),
        scratch_shapes=[pltpu.VMEM((rows, WCc), COMPUTE_DTYPE)],
        compiler_params=pltpu.CompilerParams(dimension_semantics=("parallel",)),
    )(x1f, x2f, ht['w1_bd'], ht['b1_t'], ht['t'], ht['b2_t'], ht['ah'], ht['bw'])
    return out.reshape(N, HO, WO, C)


# ----------------------------------------------------------------------------
# Plain-JAX glue
# ----------------------------------------------------------------------------
def _interp_matrix(out_size, in_size):
    """Row-stochastic bilinear matrix, matches F.interpolate(align_corners=False)."""
    if out_size == in_size:
        return jnp.eye(out_size, dtype=jnp.float32)
    scale = in_size / out_size
    i = jnp.arange(out_size, dtype=jnp.float32)
    src = jnp.maximum((i + 0.5) * scale - 0.5, 0.0)
    i0 = jnp.minimum(jnp.floor(src).astype(jnp.int32), in_size - 1)
    i1 = jnp.minimum(i0 + 1, in_size - 1)
    lam = src - i0.astype(jnp.float32)
    return (jax.nn.one_hot(i0, in_size) * (1.0 - lam)[:, None]
            + jax.nn.one_hot(i1, in_size) * lam[:, None])


def upsample_bilinear(x, size):
    """F.interpolate(mode='bilinear', align_corners=False).  XLA glue (tiny tensors)."""
    Hout, Wout = int(size[0]), int(size[1])
    N, H, W, C = x.shape
    if (H, W) == (Hout, Wout):
        return x
    Ah = _interp_matrix(Hout, H)
    Aw = _interp_matrix(Wout, W)
    y = jnp.einsum('oh,nhwc->nowc', Ah, x.astype(jnp.float32))
    y = jnp.einsum('pw,nowc->nopc', Aw, y)
    return y.astype(x.dtype)


def avgpool2x2(x):
    N, H, W, C = x.shape
    return x.reshape(N, H // 2, 2, W // 2, 2, C).mean(axis=(2, 4))


# ----------------------------------------------------------------------------
# Parameters (deterministic, synthetic) and the precomputed forward plan
# ----------------------------------------------------------------------------
def _conv_params(key, cin, cout, kh=1, kw=1, scale=0.05):
    k1, k2 = jax.random.split(key)
    if kh == 1 and kw == 1:
        w = jax.random.normal(k1, (cin, cout), jnp.float32) * scale
    else:
        w = jax.random.normal(k1, (kh, kw, cin, cout), jnp.float32) * scale
    b = jax.random.normal(k2, (cout,), jnp.float32) * scale
    return w, b


def init_params(key, in_chans, layer_chan, C, num_class):
    keys = iter(jax.random.split(key, 128))
    params = {}
    # TODO(synk): cspdarknet53 backbone (external build_backbone/timm) is not available;
    # substituted a deterministic avg-pool + 1x1-conv pyramid with matching strides/channels.
    bk, prev = [], in_chans
    for ch in layer_chan:
        bk.append(_conv_params(next(keys), prev, ch))
        prev = ch
    params['bk'] = bk
    params['dsn'] = [_conv_params(next(keys), ci, C) for ci in layer_chan]
    params['cat'] = [_conv_params(next(keys), 2 * C, C) for _ in range(15)]
    params['neck_super'] = [_conv_params(next(keys), C, 1) for _ in range(5)]   # unused in fwd
    params['head_super'] = [_conv_params(next(keys), C, num_class) for _ in range(5)]
    params['conv1'] = _conv_params(next(keys), C * 5, C)                        # unused in fwd
    params['classifier1'] = _conv_params(next(keys), C, num_class)
    params['classifier2'] = _conv_params(next(keys), num_class, num_class, 15, 15)
    return params


def _toeplitz_weight(w, W):
    """T[kh, wi*Cin+ci, wo*Cout+co] = w[kh, wi-wo+pw, ci, co] (zero outside support)."""
    KH, KW, Cin, Cout = w.shape
    pw = KW // 2
    zeros = jnp.zeros((KH, Cin, Cout), w.dtype)
    cols = []
    for wo in range(W):
        rows = []
        for wi in range(W):
            kw = wi - wo + pw
            rows.append(w[:, kw] if 0 <= kw < KW else zeros)
        cols.append(jnp.stack(rows, axis=1))          # (KH, W, Cin, Cout)
    t = jnp.stack(cols, axis=3)                       # (KH, W, Cin, W, Cout)
    return t.reshape(KH, W * Cin, W * Cout)


def build_plan(params, in_hw):
    """One-time packing of everything the forward needs: bf16 casts, block-diagonal
    1x1 weights, the block-Toeplitz 15x15 weight, tiled biases and interp matrices.
    No weight-prep ops remain in the per-step graph."""
    def pack_pw(w_, b_):
        cin, cout = w_.shape
        lyr = {'w': w_, 'b': b_}
        if cout <= LANE and LANE % cout == 0:
            G = LANE // cout
            lyr['w_bd'] = jnp.kron(jnp.eye(G, dtype=jnp.float32), w_).astype(COMPUTE_DTYPE)
            lyr['b_t'] = jnp.tile(b_, G).reshape(1, G * cout).astype(jnp.float32)
        return lyr

    plan = {
        'bk': [pack_pw(w_, b_) for (w_, b_) in params['bk']],
        'dsn': [pack_pw(w_, b_) for (w_, b_) in params['dsn']],
        'cat': [{'w': w_, 'b': b_} for (w_, b_) in params['cat']],
        'head_super': [pack_pw(w_, b_) for (w_, b_) in params['head_super']],
    }
    # backbone pyramid sizes (each stage halves H and W)
    h, w = in_hw
    sizes = []
    for _ in params['bk']:
        h, w = h // 2, w // 2
        sizes.append((h, w))
    Hc, Wc = sizes[1]          # classifier resolution (p3 / p2_2)
    HO, WO = sizes[0]          # output resolution (p5)
    w1, b1 = params['classifier1']
    w2, b2 = params['classifier2']
    C = w2.shape[-1]
    aw = _interp_matrix(WO, Wc)
    plan['head_tail'] = {
        'w1_bd': jnp.kron(jnp.eye(Wc, dtype=jnp.float32), w1).astype(COMPUTE_DTYPE),
        'b1_t': jnp.tile(b1, Wc).reshape(1, Wc * C).astype(jnp.float32),
        't': _toeplitz_weight(w2, Wc).astype(COMPUTE_DTYPE),
        'b2_t': jnp.tile(b2, Wc).reshape(1, Wc * C).astype(jnp.float32),
        'ah': _interp_matrix(HO, Hc),
        'bw': jnp.kron(aw.T, jnp.eye(C, dtype=jnp.float32)),
    }
    return plan


# ----------------------------------------------------------------------------
# Forward passes (neckNet / headNet / Csp_LSN)
# ----------------------------------------------------------------------------
# TODO(synk): the NAS `Cell` module definition is not provided in the source; using
# an identity pass-through for fuse_cell / ucells (shape- and channel-consistent).
def _cell(x):
    return x


def neck_forward(plan, feats):
    c1, c2, c3, c4, c5 = feats
    d5 = pointwise_conv(c1, plan['dsn'][0])
    d4 = pointwise_conv(c2, plan['dsn'][1])
    d3 = pointwise_conv(c3, plan['dsn'][2])
    d2 = pointwise_conv(c4, plan['dsn'][3])
    d1 = pointwise_conv(c5, plan['dsn'][4])
    p1 = upsample_bilinear(_cell(d1), d2.shape[1:3])
    d2_u = upsample_bilinear(d2, p1.shape[1:3])
    d2_2 = fused_concat_conv(p1, d2_u, plan['cat'][0], relu=True)
    p2 = upsample_bilinear(_cell(d2_2), d3.shape[1:3])
    d3_u = upsample_bilinear(d3, p2.shape[1:3])
    d3_2 = fused_concat_conv(p2, d3_u, plan['cat'][1], relu=True)
    p3 = upsample_bilinear(_cell(d3_2), d4.shape[1:3])
    p4 = upsample_bilinear(_cell(d4), d5.shape[1:3])
    p5 = _cell(d5)
    return p1, p2, p3, p4, p5


def head_forward(plan, ps):
    p1, p2, p3, p4, p5 = ps
    h, w = p5.shape[1], p5.shape[2]
    p2_2 = upsample_bilinear(p2, p3.shape[1:3])
    # fuse_cell(identity) + classifier1 + classifier2 (15x15) + upsample: ONE kernel
    logits = head_tail_fused(p2_2, p3, plan['head_tail'])
    p_out = jax.nn.softmax(logits, axis=-1)          # exact f32 channel softmax
    sides = head_super_fused(list(ps), plan['head_super'])
    out_side = [upsample_bilinear(s, (h, w)) for s in sides]
    return p_out, out_side


def csp_lsn_forward(plan, x_nhwc):
    feats, cur = [], x_nhwc
    for lyr in plan['bk']:
        cur = avgpool2x2(cur)
        cur = pointwise_conv(cur, lyr, relu=True)
        feats.append(cur)
    ps = neck_forward(plan, feats)
    out_cls, out_side = head_forward(plan, ps)
    return {'cls': out_cls, 'side': out_side,
            'bk_side': list(feats), 'nk_side': list(ps)}


# ----------------------------------------------------------------------------
if __name__ == "__main__":
    key = jax.random.PRNGKey(0)
    kx, kp = jax.random.split(key)

    in_chans = 3
    num_classes = 8
    C_hid = 64
    layer_chan = [16, 32, 64, 128, 128]        # small stand-in for cspdarknet53 stages

    # NHWC input; NCHW equivalent is (1, 3, 64, 64)
    x = jax.random.normal(kx, (1, 64, 64, in_chans), jnp.float32)
    params = init_params(kp, in_chans, layer_chan, C_hid, num_classes)
    plan = build_plan(params, (64, 64))        # one-time weight packing (outside jit)

    out = jax.jit(csp_lsn_forward)(plan, x)
    jax.block_until_ready(out)

    # out_cls is at c1 resolution (input/2) with num_classes channels, softmaxed (f32).
    assert out['cls'].shape == (1, 32, 32, num_classes)
    assert jnp.allclose(out['cls'].sum(-1), 1.0, atol=1e-4)
    assert len(out['side']) == 5 and all(o.shape == (1, 32, 32, num_classes) for o in out['side'])
    print("KERNEL_OK")
</pallas_src>

<mosaic_0001>
module attributes {stable_mosaic.version = 11 : i64} {
  func.func @_gpw_kernel(%arg0: i32, %arg1: memref<128x24xbf16, #tpu.memory_space<vmem>>, %arg2: memref<24x128xbf16, #tpu.memory_space<vmem>>, %arg3: memref<1x128xf32, #tpu.memory_space<vmem>>, %arg4: memref<128x128xbf16, #tpu.memory_space<vmem>>) attributes {dimension_semantics = [#tpu.dimension_semantics<parallel>], iteration_bounds = array<i64: 1>, scalar_prefetch = 0 : i64, scratch_operands = 0 : i64, tpu.core_type = #tpu.core_type<tc>, window_params = [{transform_indices = @transform_0, window_bounds = array<i64: 128, 24>}, {pipeline_mode = #tpu.pipeline_mode<synchronous>, transform_indices = @transform_1, window_bounds = array<i64: 24, 128>}, {pipeline_mode = #tpu.pipeline_mode<synchronous>, transform_indices = @transform_2, window_bounds = array<i64: 1, 128>}, {transform_indices = @transform_3, window_bounds = array<i64: 128, 128>}]} {
    %c0 = arith.constant 0 : index
    %c0_0 = arith.constant 0 : index
    %0 = vector.load %arg1[%c0, %c0_0] : memref<128x24xbf16, #tpu.memory_space<vmem>>, vector<128x24xbf16>
    %c0_1 = arith.constant 0 : index
    %c0_2 = arith.constant 0 : index
    %1 = vector.load %arg2[%c0_1, %c0_2] : memref<24x128xbf16, #tpu.memory_space<vmem>>, vector<24x128xbf16>
    %cst = arith.constant dense<0.000000e+00> : vector<128x128xf32>
    %2 = tpu.matmul %0, %1, %cst {dimension_numbers = #tpu.dot_dimension_numbers<[1], [0], [0], [1], [0, 0, 1, 1], [], []>} : vector<128x24xbf16>, vector<24x128xbf16>, vector<128x128xf32> -> vector<128x128xf32>
    %c0_3 = arith.constant 0 : index
    %c0_4 = arith.constant 0 : index
    %3 = vector.load %arg3[%c0_3, %c0_4] : memref<1x128xf32, #tpu.memory_space<vmem>>, vector<1x128xf32>
    %4 = vector.broadcast %3 : vector<1x128xf32> to vector<128x128xf32>
    %5 = arith.addf %2, %4 : vector<128x128xf32>
    %cst_5 = arith.constant 0.000000e+00 : f32
    %6 = vector.broadcast %cst_5 : f32 to vector<128x128xf32>
    %7 = arith.maximumf %5, %6 : vector<128x128xf32>
    %8 = arith.truncf %7 : vector<128x128xf32> to vector<128x128xbf16>
    %c0_6 = arith.constant 0 : index
    %c0_7 = arith.constant 0 : index
    %9 = vector.load %arg4[%c0_6, %c0_7] : memref<128x128xbf16, #tpu.memory_space<vmem>>, vector<128x128xbf16>
    tpu.vector_store %arg4[%c0_6, %c0_7], %8 {strides = array<i32>} : memref<128x128xbf16, #tpu.memory_space<vmem>>, vector<128x128xbf16>,
    return
  }
  func.func @transform_0(%arg0: i32) -> (i32, i32) {
    %c0_i32 = arith.constant 0 : i32
    %c0_i32_0 = arith.constant 0 : i32
    return %arg0, %c0_i32 : i32, i32
  }
  func.func @transform_1(%arg0: i32) -> (i32, i32) {
    %c0_i32 = arith.constant 0 : i32
    %c0_i32_0 = arith.constant 0 : i32
    %c0_i32_1 = arith.constant 0 : i32
    return %c0_i32, %c0_i32_0 : i32, i32
  }
  func.func @transform_2(%arg0: i32) -> (i32, i32) {
    %c0_i32 = arith.constant 0 : i32
    %c0_i32_0 = arith.constant 0 : i32
    %c0_i32_1 = arith.constant 0 : i32
    return %c0_i32, %c0_i32_0 : i32, i32
  }
  func.func @transform_3(%arg0: i32) -> (i32, i32) {
    %c0_i32 = arith.constant 0 : i32
    %c0_i32_0 = arith.constant 0 : i32
    return %arg0, %c0_i32 : i32, i32
  }
}

module attributes {stable_mosaic.version = 11 : i64} {
  func.func @_gpw_kernel(%arg0: i32, %arg1: memref<64x64xbf16, #tpu.memory_space<vmem>>, %arg2: memref<64x128xbf16, #tpu.memory_space<vmem>>, %arg3: memref<1x128xf32, #tpu.memory_space<vmem>>, %arg4: memref<64x128xbf16, #tpu.memory_space<vmem>>) attributes {dimension_semantics = [#tpu.dimension_semantics<parallel>], iteration_bounds = array<i64: 1>, scalar_prefetch = 0 : i64, scratch_operands = 0 : i64, tpu.core_type = #tpu.core_type<tc>, window_params = [{transform_indices = @transform_0, window_bounds = array<i64: 64, 64>}, {pipeline_mode = #tpu.pipeline_mode<synchronous>, transform_indices = @transform_1, window_bounds = array<i64: 64, 128>}, {pipeline_mode = #tpu.pipeline_mode<synchronous>, transform_indices = @transform_2, window_bounds = array<i64: 1, 128>}, {transform_indices = @transform_3, window_bounds = array<i64: 64, 128>}]} {
    %c0 = arith.constant 0 : index
    %c0_0 = arith.constant 0 : index
    %0 = vector.load %arg1[%c0, %c0_0] : memref<64x64xbf16, #tpu.memory_space<vmem>>, vector<64x64xbf16>
    %c0_1 = arith.constant 0 : index
    %c0_2 = arith.constant 0 : index
    %1 = vector.load %arg2[%c0_1, %c0_2] : memref<64x128xbf16, #tpu.memory_space<vmem>>, vector<64x128xbf16>
    %cst = arith.constant dense<0.000000e+00> : vector<64x128xf32>
    %2 = tpu.matmul %0, %1, %cst {dimension_numbers = #tpu.dot_dimension_numbers<[1], [0], [0], [1], [0, 0, 1, 1], [], []>} : vector<64x64xbf16>, vector<64x128xbf16>, vector<64x128xf32> -> vector<64x128xf32>
    %c0_3 = arith.constant 0 : index
    %c0_4 = arith.constant 0 : index
    %3 = vector.load %arg3[%c0_3, %c0_4] : memref<1x128xf32, #tpu.memory_space<vmem>>, vector<1x128xf32>
    %4 = vector.broadcast %3 : vector<1x128xf32> to vector<64x128xf32>
    %5 = arith.addf %2, %4 : vector<64x128xf32>
    %cst_5 = arith.constant 0.000000e+00 : f32
    %6 = vector.broadcast %cst_5 : f32 to vector<64x128xf32>
    %7 = arith.maximumf %5, %6 : vector<64x128xf32>
    %8 = arith.truncf %7 : vector<64x128xf32> to vector<64x128xbf16>
    %c0_6 = arith.constant 0 : index
    %c0_7 = arith.constant 0 : index
    %9 = vector.load %arg4[%c0_6, %c0_7] : memref<64x128xbf16, #tpu.memory_space<vmem>>, vector<64x128xbf16>
    tpu.vector_store %arg4[%c0_6, %c0_7], %8 {strides = array<i32>} : memref<64x128xbf16, #tpu.memory_space<vmem>>, vector<64x128xbf16>,
    return
  }
  func.func @transform_0(%arg0: i32) -> (i32, i32) {
    %c0_i32 = arith.constant 0 : i32
    %c0_i32_0 = arith.constant 0 : i32
    return %arg0, %c0_i32 : i32, i32
  }
  func.func @transform_1(%arg0: i32) -> (i32, i32) {
    %c0_i32 = arith.constant 0 : i32
    %c0_i32_0 = arith.constant 0 : i32
    %c0_i32_1 = arith.constant 0 : i32
    return %c0_i32, %c0_i32_0 : i32, i32
  }
  func.func @transform_2(%arg0: i32) -> (i32, i32) {
    %c0_i32 = arith.constant 0 : i32
    %c0_i32_0 = arith.constant 0 : i32
    %c0_i32_1 = arith.constant 0 : i32
    return %c0_i32, %c0_i32_0 : i32, i32
  }
  func.func @transform_3(%arg0: i32) -> (i32, i32) {
    %c0_i32 = arith.constant 0 : i32
    %c0_i32_0 = arith.constant 0 : i32
    return %arg0, %c0_i32 : i32, i32
  }
}

module attributes {stable_mosaic.version = 11 : i64} {
  func.func @_gpw_kernel(%arg0: i32, %arg1: memref<128x64xbf16, #tpu.memory_space<vmem>>, %arg2: memref<64x128xbf16, #tpu.memory_space<vmem>>, %arg3: memref<1x128xf32, #tpu.memory_space<vmem>>, %arg4: memref<128x128xbf16, #tpu.memory_space<vmem>>) attributes {dimension_semantics = [#tpu.dimension_semantics<parallel>], iteration_bounds = array<i64: 1>, scalar_prefetch = 0 : i64, scratch_operands = 0 : i64, tpu.core_type = #tpu.core_type<tc>, window_params = [{transform_indices = @transform_0, window_bounds = array<i64: 128, 64>}, {pipeline_mode = #tpu.pipeline_mode<synchronous>, transform_indices = @transform_1, window_bounds = array<i64: 64, 128>}, {pipeline_mode = #tpu.pipeline_mode<synchronous>, transform_indices = @transform_2, window_bounds = array<i64: 1, 128>}, {transform_indices = @transform_3, window_bounds = array<i64: 128, 128>}]} {
    %c0 = arith.constant 0 : index
    %c0_0 = arith.constant 0 : index
    %0 = vector.load %arg1[%c0, %c0_0] : memref<128x64xbf16, #tpu.memory_space<vmem>>, vector<128x64xbf16>
    %c0_1 = arith.constant 0 : index
    %c0_2 = arith.constant 0 : index
    %1 = vector.load %arg2[%c0_1, %c0_2] : memref<64x128xbf16, #tpu.memory_space<vmem>>, vector<64x128xbf16>
    %cst = arith.constant dense<0.000000e+00> : vector<128x128xf32>
    %2 = tpu.matmul %0, %1, %cst {dimension_numbers = #tpu.dot_dimension_numbers<[1], [0], [0], [1], [0, 0, 1, 1], [], []>} : vector<128x64xbf16>, vector<64x128xbf16>, vector<128x128xf32> -> vector<128x128xf32>
    %c0_3 = arith.constant 0 : index
    %c0_4 = arith.constant 0 : index
    %3 = vector.load %arg3[%c0_3, %c0_4] : memref<1x128xf32, #tpu.memory_space<vmem>>, vector<1x128xf32>
    %4 = vector.broadcast %3 : vector<1x128xf32> to vector<128x128xf32>
    %5 = arith.addf %2, %4 : vector<128x128xf32>
    %6 = arith.truncf %5 : vector<128x128xf32> to vector<128x128xbf16>
    %c0_5 = arith.constant 0 : index
    %c0_6 = arith.constant 0 : index
    %7 = vector.load %arg4[%c0_5, %c0_6] : memref<128x128xbf16, #tpu.memory_space<vmem>>, vector<128x128xbf16>
    tpu.vector_store %arg4[%c0_5, %c0_6], %6 {strides = array<i32>} : memref<128x128xbf16, #tpu.memory_space<vmem>>, vector<128x128xbf16>,
    return
  }
  func.func @transform_0(%arg0: i32) -> (i32, i32) {
    %c0_i32 = arith.constant 0 : i32
    %c0_i32_0 = arith.constant 0 : i32
    return %arg0, %c0_i32 : i32, i32
  }
  func.func @transform_1(%arg0: i32) -> (i32, i32) {
    %c0_i32 = arith.constant 0 : i32
    %c0_i32_0 = arith.constant 0 : i32
    %c0_i32_1 = arith.constant 0 : i32
    return %c0_i32, %c0_i32_0 : i32, i32
  }
  func.func @transform_2(%arg0: i32) -> (i32, i32) {
    %c0_i32 = arith.constant 0 : i32
    %c0_i32_0 = arith.constant 0 : i32
    %c0_i32_1 = arith.constant 0 : i32
    return %c0_i32, %c0_i32_0 : i32, i32
  }
  func.func @transform_3(%arg0: i32) -> (i32, i32) {
    %c0_i32 = arith.constant 0 : i32
    %c0_i32_0 = arith.constant 0 : i32
    return %arg0, %c0_i32 : i32, i32
  }
}

module attributes {stable_mosaic.version = 11 : i64} {
  func.func @_gpw_kernel(%arg0: i32, %arg1: memref<256x32xbf16, #tpu.memory_space<vmem>>, %arg2: memref<32x128xbf16, #tpu.memory_space<vmem>>, %arg3: memref<1x128xf32, #tpu.memory_space<vmem>>, %arg4: memref<256x128xbf16, #tpu.memory_space<vmem>>) attributes {dimension_semantics = [#tpu.dimension_semantics<parallel>], iteration_bounds = array<i64: 2>, scalar_prefetch = 0 : i64, scratch_operands = 0 : i64, tpu.core_type = #tpu.core_type<tc>, window_params = [{transform_indices = @transform_0, window_bounds = array<i64: 256, 32>}, {pipeline_mode = #tpu.pipeline_mode<synchronous>, transform_indices = @transform_1, window_bounds = array<i64: 32, 128>}, {pipeline_mode = #tpu.pipeline_mode<synchronous>, transform_indices = @transform_2, window_bounds = array<i64: 1, 128>}, {transform_indices = @transform_3, window_bounds = array<i64: 256, 128>}]} {
    %c0 = arith.constant 0 : index
    %c0_0 = arith.constant 0 : index
    %0 = vector.load %arg1[%c0, %c0_0] : memref<256x32xbf16, #tpu.memory_space<vmem>>, vector<256x32xbf16>
    %c0_1 = arith.constant 0 : index
    %c0_2 = arith.constant 0 : index
    %1 = vector.load %arg2[%c0_1, %c0_2] : memref<32x128xbf16, #tpu.memory_space<vmem>>, vector<32x128xbf16>
    %cst = arith.constant dense<0.000000e+00> : vector<256x128xf32>
    %2 = tpu.matmul %0, %1, %cst {dimension_numbers = #tpu.dot_dimension_numbers<[1], [0], [0], [1], [0, 0, 1, 1], [], []>} : vector<256x32xbf16>, vector<32x128xbf16>, vector<256x128xf32> -> vector<256x128xf32>
    %c0_3 = arith.constant 0 : index
    %c0_4 = arith.constant 0 : index
    %3 = vector.load %arg3[%c0_3, %c0_4] : memref<1x128xf32, #tpu.memory_space<vmem>>, vector<1x128xf32>
    %4 = vector.broadcast %3 : vector<1x128xf32> to vector<256x128xf32>
    %5 = arith.addf %2, %4 : vector<256x128xf32>
    %6 = arith.truncf %5 : vector<256x128xf32> to vector<256x128xbf16>
    %c0_5 = arith.constant 0 : index
    %c0_6 = arith.constant 0 : index
    %7 = vector.load %arg4[%c0_5, %c0_6] : memref<256x128xbf16, #tpu.memory_space<vmem>>, vector<256x128xbf16>
    tpu.vector_store %arg4[%c0_5, %c0_6], %6 {strides = array<i32>} : memref<256x128xbf16, #tpu.memory_space<vmem>>, vector<256x128xbf16>,
    return
  }
  func.func @transform_0(%arg0: i32) -> (i32, i32) {
    %c0_i32 = arith.constant 0 : i32
    %c0_i32_0 = arith.constant 0 : i32
    return %arg0, %c0_i32 : i32, i32
  }
  func.func @transform_1(%arg0: i32) -> (i32, i32) {
    %c0_i32 = arith.constant 0 : i32
    %c0_i32_0 = arith.constant 0 : i32
    %c0_i32_1 = arith.constant 0 : i32
    return %c0_i32, %c0_i32_0 : i32, i32
  }
  func.func @transform_2(%arg0: i32) -> (i32, i32) {
    %c0_i32 = arith.constant 0 : i32
    %c0_i32_0 = arith.constant 0 : i32
    %c0_i32_1 = arith.constant 0 : i32
    return %c0_i32, %c0_i32_0 : i32, i32
  }
  func.func @transform_3(%arg0: i32) -> (i32, i32) {
    %c0_i32 = arith.constant 0 : i32
    %c0_i32_0 = arith.constant 0 : i32
    return %arg0, %c0_i32 : i32, i32
  }
}

module attributes {stable_mosaic.version = 11 : i64} {
  func.func @_multi_gpw_kernel(%arg0: memref<1x1024xbf16, #tpu.memory_space<vmem>>, %arg1: memref<4x1024xbf16, #tpu.memory_space<vmem>>, %arg2: memref<16x1024xbf16, #tpu.memory_space<vmem>>, %arg3: memref<64x1024xbf16, #tpu.memory_space<vmem>>, %arg4: memref<64x1024xbf16, #tpu.memory_space<vmem>>, %arg5: memref<1024x128xbf16, #tpu.memory_space<vmem>>, %arg6: memref<1024x128xbf16, #tpu.memory_space<vmem>>, %arg7: memref<1024x128xbf16, #tpu.memory_space<vmem>>, %arg8: memref<1024x128xbf16, #tpu.memory_space<vmem>>, %arg9: memref<1024x128xbf16, #tpu.memory_space<vmem>>, %arg10: memref<1x128xf32, #tpu.memory_space<vmem>>, %arg11: memref<1x128xf32, #tpu.memory_space<vmem>>, %arg12: memref<1x128xf32, #tpu.memory_space<vmem>>, %arg13: memref<1x128xf32, #tpu.memory_space<vmem>>, %arg14: memref<1x128xf32, #tpu.memory_space<vmem>>, %arg15: memref<1x128xbf16, #tpu.memory_space<vmem>>, %arg16: memref<4x128xbf16, #tpu.memory_space<vmem>>, %arg17: memref<16x128xbf16, #tpu.memory_space<vmem>>, %arg18: memref<64x128xbf16, #tpu.memory_space<vmem>>, %arg19: memref<64x128xbf16, #tpu.memory_space<vmem>>) attributes {dimension_semantics = [], scalar_prefetch = 0 : i64, scratch_operands = 0 : i64, tpu.core_type = #tpu.core_type<tc>} {
    %c0 = arith.constant 0 : index
    %c0_0 = arith.constant 0 : index
    %0 = vector.load %arg0[%c0, %c0_0] : memref<1x1024xbf16, #tpu.memory_space<vmem>>, vector<1x1024xbf16>
    %c0_1 = arith.constant 0 : index
    %c0_2 = arith.constant 0 : index
    %1 = vector.load %arg5[%c0_1, %c0_2] : memref<1024x128xbf16, #tpu.memory_space<vmem>>, vector<1024x128xbf16>
    %cst = arith.constant dense<0.000000e+00> : vector<1x128xf32>
    %2 = tpu.matmul %0, %1, %cst {dimension_numbers = #tpu.dot_dimension_numbers<[1], [0], [0], [1], [0, 0, 1, 1], [], []>} : vector<1x1024xbf16>, vector<1024x128xbf16>, vector<1x128xf32> -> vector<1x128xf32>
    %c0_3 = arith.constant 0 : index
    %c0_4 = arith.constant 0 : index
    %3 = vector.load %arg10[%c0_3, %c0_4] : memref<1x128xf32, #tpu.memory_space<vmem>>, vector<1x128xf32>
    %4 = arith.addf %2, %3 : vector<1x128xf32>
    %5 = arith.truncf %4 : vector<1x128xf32> to vector<1x128xbf16>
    %c0_5 = arith.constant 0 : index
    %c0_6 = arith.constant 0 : index
    %6 = vector.load %arg15[%c0_5, %c0_6] : memref<1x128xbf16, #tpu.memory_space<vmem>>, vector<1x128xbf16>
    tpu.vector_store %arg15[%c0_5, %c0_6], %5 {strides = array<i32>} : memref<1x128xbf16, #tpu.memory_space<vmem>>, vector<1x128xbf16>,
    %c0_7 = arith.constant 0 : index
    %c0_8 = arith.constant 0 : index
    %7 = vector.load %arg1[%c0_7, %c0_8] : memref<4x1024xbf16, #tpu.memory_space<vmem>>, vector<4x1024xbf16>
    %c0_9 = arith.constant 0 : index
    %c0_10 = arith.constant 0 : index
    %8 = vector.load %arg6[%c0_9, %c0_10] : memref<1024x128xbf16, #tpu.memory_space<vmem>>, vector<1024x128xbf16>
    %cst_11 = arith.constant dense<0.000000e+00> : vector<4x128xf32>
    %9 = tpu.matmul %7, %8, %cst_11 {dimension_numbers = #tpu.dot_dimension_numbers<[1], [0], [0], [1], [0, 0, 1, 1], [], []>} : vector<4x1024xbf16>, vector<1024x128xbf16>, vector<4x128xf32> -> vector<4x128xf32>
    %c0_12 = arith.constant 0 : index
    %c0_13 = arith.constant 0 : index
    %10 = vector.load %arg11[%c0_12, %c0_13] : memref<1x128xf32, #tpu.memory_space<vmem>>, vector<1x128xf32>
    %11 = vector.broadcast %10 : vector<1x128xf32> to vector<4x128xf32>
    %12 = arith.addf %9, %11 : vector<4x128xf32>
    %13 = arith.truncf %12 : vector<4x128xf32> to vector<4x128xbf16>
    %c0_14 = arith.constant 0 : index
    %c0_15 = arith.constant 0 : index
    %14 = vector.load %arg16[%c0_14, %c0_15] : memref<4x128xbf16, #tpu.memory_space<vmem>>, vector<4x128xbf16>
    tpu.vector_store %arg16[%c0_14, %c0_15], %13 {strides = array<i32>} : memref<4x128xbf16, #tpu.memory_space<vmem>>, vector<4x128xbf16>,
    %c0_16 = arith.constant 0 : index
    %c0_17 = arith.constant 0 : index
    %15 = vector.load %arg2[%c0_16, %c0_17] : memref<16x1024xbf16, #tpu.memory_space<vmem>>, vector<16x1024xbf16>
    %c0_18 = arith.constant 0 : index
    %c0_19 = arith.constant 0 : index
    %16 = vector.load %arg7[%c0_18, %c0_19] : memref<1024x128xbf16, #tpu.memory_space<vmem>>, vector<1024x128xbf16>
    %cst_20 = arith.constant dense<0.000000e+00> : vector<16x128xf32>
    %17 = tpu.matmul %15, %16, %cst_20 {dimension_numbers = #tpu.dot_dimension_numbers<[1], [0], [0], [1], [0, 0, 1, 1], [], []>} : vector<16x1024xbf16>, vector<1024x128xbf16>, vector<16x128xf32> -> vector<16x128xf32>
    %c0_21 = arith.constant 0 : index
    %c0_22 = arith.constant 0 : index
    %18 = vector.load %arg12[%c0_21, %c0_22] : memref<1x128xf32, #tpu.memory_space<vmem>>, vector<1x128xf32>
    %19 = vector.broadcast %18 : vector<1x128xf32> to vector<16x128xf32>
    %20 = arith.addf %17, %19 : vector<16x128xf32>
    %21 = arith.truncf %20 : vector<16x128xf32> to vector<16x128xbf16>
    %c0_23 = arith.constant 0 : index
    %c0_24 = arith.constant 0 : index
    %22 = vector.load %arg17[%c0_23, %c0_24] : memref<16x128xbf16, #tpu.memory_space<vmem>>, vector<16x128xbf16>
    tpu.vector_store %arg17[%c0_23, %c0_24], %21 {strides = array<i32>} : memref<16x128xbf16, #tpu.memory_space<vmem>>, vector<16x128xbf16>,
    %c0_25 = arith.constant 0 : index
    %c0_26 = arith.constant 0 : index
    %23 = vector.load %arg3[%c0_25, %c0_26] : memref<64x1024xbf16, #tpu.memory_space<vmem>>, vector<64x1024xbf16>
    %c0_27 = arith.constant 0 : index
    %c0_28 = arith.constant 0 : index
    %24 = vector.load %arg8[%c0_27, %c0_28] : memref<1024x128xbf16, #tpu.memory_space<vmem>>, vector<1024x128xbf16>
    %cst_29 = arith.constant dense<0.000000e+00> : vector<64x128xf32>
    %25 = tpu.matmul %23, %24, %cst_29 {dimension_numbers = #tpu.dot_dimension_numbers<[1], [0], [0], [1], [0, 0, 1, 1], [], []>} : vector<64x1024xbf16>, vector<1024x128xbf16>, vector<64x128xf32> -> vector<64x128xf32>
    %c0_30 = arith.constant 0 : index
    %c0_31 = arith.constant 0 : index
    %26 = vector.load %arg13[%c0_30, %c0_31] : memref<1x128xf32, #tpu.memory_space<vmem>>, vector<1x128xf32>
    %27 = vector.broadcast %26 : vector<1x128xf32> to vector<64x128xf32>
    %28 = arith.addf %25, %27 : vector<64x128xf32>
    %29 = arith.truncf %28 : vector<64x128xf32> to vector<64x128xbf16>
    %c0_32 = arith.constant 0 : index
    %c0_33 = arith.constant 0 : index
    %30 = vector.load %arg18[%c0_32, %c0_33] : memref<64x128xbf16, #tpu.memory_space<vmem>>, vector<64x128xbf16>
    tpu.vector_store %arg18[%c0_32, %c0_33], %29 {strides = array<i32>} : memref<64x128xbf16, #tpu.memory_space<vmem>>, vector<64x128xbf16>,
    %c0_34 = arith.constant 0 : index
    %c0_35 = arith.constant 0 : index
    %31 = vector.load %arg4[%c0_34, %c0_35] : memref<64x1024xbf16, #tpu.memory_space<vmem>>, vector<64x1024xbf16>
    %c0_36 = arith.constant 0 : index
    %c0_37 = arith.constant 0 : index
    %32 = vector.load %arg9[%c0_36, %c0_37] : memref<1024x128xbf16, #tpu.memory_space<vmem>>, vector<1024x128xbf16>
    %cst_38 = arith.constant dense<0.000000e+00> : vector<64x128xf32>
    %33 = tpu.matmul %31, %32, %cst_38 {dimension_numbers = #tpu.dot_dimension_numbers<[1], [0], [0], [1], [0, 0, 1, 1], [], []>} : vector<64x1024xbf16>, vector<1024x128xbf16>, vector<64x128xf32> -> vector<64x128xf32>
    %c0_39 = arith.constant 0 : index
    %c0_40 = arith.constant 0 : index
    %34 = vector.load %arg14[%c0_39, %c0_40] : memref<1x128xf32, #tpu.memory_space<vmem>>, vector<1x128xf32>
    %35 = vector.broadcast %34 : vector<1x128xf32> to vector<64x128xf32>
    %36 = arith.addf %33, %35 : vector<64x128xf32>
    %37 = arith.truncf %36 : vector<64x128xf32> to vector<64x128xbf16>
    %c0_41 = arith.constant 0 : index
    %c0_42 = arith.constant 0 : index
    %38 = vector.load %arg19[%c0_41, %c0_42] : memref<64x128xbf16, #tpu.memory_space<vmem>>, vector<64x128xbf16>
    tpu.vector_store %arg19[%c0_41, %c0_42], %37 {strides = array<i32>} : memref<64x128xbf16, #tpu.memory_space<vmem>>, vector<64x128xbf16>,
    return
  }
}

module attributes {stable_mosaic.version = 11 : i64} {
  func.func @_head_tail_kernel(%arg0: i32, %arg1: memref<1x16x1024xbf16, #tpu.memory_space<vmem>>, %arg2: memref<1x16x1024xbf16, #tpu.memory_space<vmem>>, %arg3: memref<1024x128xbf16, #tpu.memory_space<vmem>>, %arg4: memref<1x128xf32, #tpu.memory_space<vmem>>, %arg5: memref<15x128x128xbf16, #tpu.memory_space<vmem>>, %arg6: memref<1x128xf32, #tpu.memory_space<vmem>>, %arg7: memref<32x16xf32, #tpu.memory_space<vmem>>, %arg8: memref<128x256xf32, #tpu.memory_space<vmem>>, %arg9: memref<1x32x256xf32, #tpu.memory_space<vmem>>, %arg10: memref<48x128xbf16, #tpu.memory_space<vmem>>) attributes {dimension_semantics = [#tpu.dimension_semantics<parallel>], iteration_bounds = array<i64: 1>, scalar_prefetch = 0 : i64, scratch_operands = 1 : i64, tpu.core_type = #tpu.core_type<tc>, window_params = [{transform_indices = @transform_0, window_bounds = array<i64: 1, 16, 1024>}, {transform_indices = @transform_1, window_bounds = array<i64: 1, 16, 1024>}, {pipeline_mode = #tpu.pipeline_mode<synchronous>, transform_indices = @transform_2, window_bounds = array<i64: 1024, 128>}, {pipeline_mode = #tpu.pipeline_mode<synchronous>, transform_indices = @transform_3, window_bounds = array<i64: 1, 128>}, {pipeline_mode = #tpu.pipeline_mode<synchronous>, transform_indices = @transform_4, window_bounds = array<i64: 15, 128, 128>}, {pipeline_mode = #tpu.pipeline_mode<synchronous>, transform_indices = @transform_5, window_bounds = array<i64: 1, 128>}, {pipeline_mode = #tpu.pipeline_mode<synchronous>, transform_indices = @transform_6, window_bounds = array<i64: 32, 16>}, {pipeline_mode = #tpu.pipeline_mode<synchronous>, transform_indices = @transform_7, window_bounds = array<i64: 128, 256>}, {transform_indices = @transform_8, window_bounds = array<i64: 1, 32, 256>}]} {
    %c0 = arith.constant 0 : index
    %c0_0 = arith.constant 0 : index
    %c0_1 = arith.constant 0 : index
    %0 = vector.load %arg1[%c0, %c0_0, %c0_1] : memref<1x16x1024xbf16, #tpu.memory_space<vmem>>, vector<1x16x1024xbf16>
    %1 = vector.shape_cast %0 : vector<1x16x1024xbf16> to vector<16x1024xbf16>
    %c0_2 = arith.constant 0 : index
    %c0_3 = arith.constant 0 : index
    %2 = vector.load %arg3[%c0_2, %c0_3] : memref<1024x128xbf16, #tpu.memory_space<vmem>>, vector<1024x128xbf16>
    %cst = arith.constant dense<0.000000e+00> : vector<16x128xf32>
    %3 = tpu.matmul %1, %2, %cst {dimension_numbers = #tpu.dot_dimension_numbers<[1], [0], [0], [1], [0, 0, 1, 1], [], []>} : vector<16x1024xbf16>, vector<1024x128xbf16>, vector<16x128xf32> -> vector<16x128xf32>
    %c0_4 = arith.constant 0 : index
    %c0_5 = arith.constant 0 : index
    %c0_6 = arith.constant 0 : index
    %4 = vector.load %arg2[%c0_4, %c0_5, %c0_6] : memref<1x16x1024xbf16, #tpu.memory_space<vmem>>, vector<1x16x1024xbf16>
    %5 = vector.shape_cast %4 : vector<1x16x1024xbf16> to vector<16x1024xbf16>
    %c0_7 = arith.constant 0 : index
    %c0_8 = arith.constant 0 : index
    %6 = vector.load %arg3[%c0_7, %c0_8] : memref<1024x128xbf16, #tpu.memory_space<vmem>>, vector<1024x128xbf16>
    %cst_9 = arith.constant dense<0.000000e+00> : vector<16x128xf32>
    %7 = tpu.matmul %5, %6, %cst_9 {dimension_numbers = #tpu.dot_dimension_numbers<[1], [0], [0], [1], [0, 0, 1, 1], [], []>} : vector<16x1024xbf16>, vector<1024x128xbf16>, vector<16x128xf32> -> vector<16x128xf32>
    %8 = arith.addf %3, %7 : vector<16x128xf32>
    %c0_10 = arith.constant 0 : index
    %c0_11 = arith.constant 0 : index
    %9 = vector.load %arg4[%c0_10, %c0_11] : memref<1x128xf32, #tpu.memory_space<vmem>>, vector<1x128xf32>
    %10 = vector.broadcast %9 : vector<1x128xf32> to vector<16x128xf32>
    %11 = arith.addf %8, %10 : vector<16x128xf32>
    %cst_12 = arith.constant 0.000000e+00 : bf16
    %12 = vector.broadcast %cst_12 : bf16 to vector<48x128xbf16>
    %c0_13 = arith.constant 0 : index
    %c0_14 = arith.constant 0 : index
    %13 = vector.load %arg10[%c0_13, %c0_14] : memref<48x128xbf16, #tpu.memory_space<vmem>>, vector<48x128xbf16>
    tpu.vector_store %arg10[%c0_13, %c0_14], %12 {strides = array<i32>} : memref<48x128xbf16, #tpu.memory_space<vmem>>, vector<48x128xbf16>,
    %14 = arith.truncf %11 : vector<16x128xf32> to vector<16x128xbf16>
    %c16 = arith.constant 16 : index
    %c0_15 = arith.constant 0 : index
    %15 = vector.load %arg10[%c16, %c0_15] : memref<48x128xbf16, #tpu.memory_space<vmem>>, vector<16x128xbf16>
    tpu.vector_store %arg10[%c16, %c0_15], %14 {strides = array<i32>} : memref<48x128xbf16, #tpu.memory_space<vmem>>, vector<16x128xbf16>,
    %cst_16 = arith.constant 0.000000e+00 : f32
    %16 = vector.broadcast %cst_16 : f32 to vector<16x128xf32>
    %c9 = arith.constant 9 : index
    %c0_17 = arith.constant 0 : index
    %17 = vector.load %arg10[%c9, %c0_17] : memref<48x128xbf16, #tpu.memory_space<vmem>>, vector<16x128xbf16>
    %c0_18 = arith.constant 0 : index
    %c0_19 = arith.constant 0 : index
    %c0_20 = arith.constant 0 : index
    %18 = vector.load %arg5[%c0_18, %c0_19, %c0_20] : memref<15x128x128xbf16, #tpu.memory_space<vmem>>, vector<1x128x128xbf16>
    %19 = vector.shape_cast %18 : vector<1x128x128xbf16> to vector<128x128xbf16>
    %cst_21 = arith.constant dense<0.000000e+00> : vector<16x128xf32>
    %20 = tpu.matmul %17, %19, %cst_21 {dimension_numbers = #tpu.dot_dimension_numbers<[1], [0], [0], [1], [0, 0, 1, 1], [], []>} : vector<16x128xbf16>, vector<128x128xbf16>, vector<16x128xf32> -> vector<16x128xf32>
    %21 = arith.addf %16, %20 : vector<16x128xf32>
    %c10 = arith.constant 10 : index
    %c0_22 = arith.constant 0 : index
    %22 = vector.load %arg10[%c10, %c0_22] : memref<48x128xbf16, #tpu.memory_space<vmem>>, vector<16x128xbf16>
    %c1 = arith.constant 1 : index
    %c0_23 = arith.constant 0 : index
    %c0_24 = arith.constant 0 : index
    %23 = vector.load %arg5[%c1, %c0_23, %c0_24] : memref<15x128x128xbf16, #tpu.memory_space<vmem>>, vector<1x128x128xbf16>
    %24 = vector.shape_cast %23 : vector<1x128x128xbf16> to vector<128x128xbf16>
    %cst_25 = arith.constant dense<0.000000e+00> : vector<16x128xf32>
    %25 = tpu.matmul %22, %24, %cst_25 {dimension_numbers = #tpu.dot_dimension_numbers<[1], [0], [0], [1], [0, 0, 1, 1], [], []>} : vector<16x128xbf16>, vector<128x128xbf16>, vector<16x128xf32> -> vector<16x128xf32>
    %26 = arith.addf %21, %25 : vector<16x128xf32>
    %c11 = arith.constant 11 : index
    %c0_26 = arith.constant 0 : index
    %27 = vector.load %arg10[%c11, %c0_26] : memref<48x128xbf16, #tpu.memory_space<vmem>>, vector<16x128xbf16>
    %c2 = arith.constant 2 : index
    %c0_27 = arith.constant 0 : index
    %c0_28 = arith.constant 0 : index
    %28 = vector.load %arg5[%c2, %c0_27, %c0_28] : memref<15x128x128xbf16, #tpu.memory_space<vmem>>, vector<1x128x128xbf16>
    %29 = vector.shape_cast %28 : vector<1x128x128xbf16> to vector<128x128xbf16>
    %cst_29 = arith.constant dense<0.000000e+00> : vector<16x128xf32>
    %30 = tpu.matmul %27, %29, %cst_29 {dimension_numbers = #tpu.dot_dimension_numbers<[1], [0], [0], [1], [0, 0, 1, 1], [], []>} : vector<16x128xbf16>, vector<128x128xbf16>, vector<16x128xf32> -> vector<16x128xf32>
    %31 = arith.addf %26, %30 : vector<16x128xf32>
    %c12 = arith.constant 12 : index
    %c0_30 = arith.constant 0 : index
    %32 = vector.load %arg10[%c12, %c0_30] : memref<48x128xbf16, #tpu.memory_space<vmem>>, vector<16x128xbf16>
    %c3 = arith.constant 3 : index
    %c0_31 = arith.constant 0 : index
    %c0_32 = arith.constant 0 : index
    %33 = vector.load %arg5[%c3, %c0_31, %c0_32] : memref<15x128x128xbf16, #tpu.memory_space<vmem>>, vector<1x128x128xbf16>
    %34 = vector.shape_cast %33 : vector<1x128x128xbf16> to vector<128x128xbf16>
    %cst_33 = arith.constant dense<0.000000e+00> : vector<16x128xf32>
    %35 = tpu.matmul %32, %34, %cst_33 {dimension_numbers = #tpu.dot_dimension_numbers<[1], [0], [0], [1], [0, 0, 1, 1], [], []>} : vector<16x128xbf16>, vector<128x128xbf16>, vector<16x128xf32> -> vector<16x128xf32>
    %36 = arith.addf %31, %35 : vector<16x128xf32>
    %c13 = arith.constant 13 : index
    %c0_34 = arith.constant 0 : index
    %37 = vector.load %arg10[%c13, %c0_34] : memref<48x128xbf16, #tpu.memory_space<vmem>>, vector<16x128xbf16>
    %c4 = arith.constant 4 : index
    %c0_35 = arith.constant 0 : index
    %c0_36 = arith.constant 0 : index
    %38 = vector.load %arg5[%c4, %c0_35, %c0_36] : memref<15x128x128xbf16, #tpu.memory_space<vmem>>, vector<1x128x128xbf16>
    %39 = vector.shape_cast %38 : vector<1x128x128xbf16> to vector<128x128xbf16>
    %cst_37 = arith.constant dense<0.000000e+00> : vector<16x128xf32>
    %40 = tpu.matmul %37, %39, %cst_37 {dimension_numbers = #tpu.dot_dimension_numbers<[1], [0], [0], [1], [0, 0, 1, 1], [], []>} : vector<16x128xbf16>, vector<128x128xbf16>, vector<16x128xf32> -> vector<16x128xf32>
    %41 = arith.addf %36, %40 : vector<16x128xf32>
    %c14 = arith.constant 14 : index
    %c0_38 = arith.constant 0 : index
    %42 = vector.load %arg10[%c14, %c0_38] : memref<48x128xbf16, #tpu.memory_space<vmem>>, vector<16x128xbf16>
    %c5 = arith.constant 5 : index
    %c0_39 = arith.constant 0 : index
    %c0_40 = arith.constant 0 : index
    %43 = vector.load %arg5[%c5, %c0_39, %c0_40] : memref<15x128x128xbf16, #tpu.memory_space<vmem>>, vector<1x128x128xbf16>
    %44 = vector.shape_cast %43 : vector<1x128x128xbf16> to vector<128x128xbf16>
    %cst_41 = arith.constant dense<0.000000e+00> : vector<16x128xf32>
    %45 = tpu.matmul %42, %44, %cst_41 {dimension_numbers = #tpu.dot_dimension_numbers<[1], [0], [0], [1], [0, 0, 1, 1], [], []>} : vector<16x128xbf16>, vector<128x128xbf16>, vector<16x128xf32> -> vector<16x128xf32>
    %46 = arith.addf %41, %45 : vector<16x128xf32>
    %c15 = arith.constant 15 : index
    %c0_42 = arith.constant 0 : index
    %47 = vector.load %arg10[%c15, %c0_42] : memref<48x128xbf16, #tpu.memory_space<vmem>>, vector<16x128xbf16>
    %c6 = arith.constant 6 : index
    %c0_43 = arith.constant 0 : index
    %c0_44 = arith.constant 0 : index
    %48 = vector.load %arg5[%c6, %c0_43, %c0_44] : memref<15x128x128xbf16, #tpu.memory_space<vmem>>, vector<1x128x128xbf16>
    %49 = vector.shape_cast %48 : vector<1x128x128xbf16> to vector<128x128xbf16>
    %cst_45 = arith.constant dense<0.000000e+00> : vector<16x128xf32>
    %50 = tpu.matmul %47, %49, %cst_45 {dimension_numbers = #tpu.dot_dimension_numbers<[1], [0], [0], [1], [0, 0, 1, 1], [], []>} : vector<16x128xbf16>, vector<128x128xbf16>, vector<16x128xf32> -> vector<16x128xf32>
    %51 = arith.addf %46, %50 : vector<16x128xf32>
    %c16_46 = arith.constant 16 : index
    %c0_47 = arith.constant 0 : index
    %52 = vector.load %arg10[%c16_46, %c0_47] : memref<48x128xbf16, #tpu.memory_space<vmem>>, vector<16x128xbf16>
    %c7 = arith.constant 7 : index
    %c0_48 = arith.constant 0 : index
    %c0_49 = arith.constant 0 : index
    %53 = vector.load %arg5[%c7, %c0_48, %c0_49] : memref<15x128x128xbf16, #tpu.memory_space<vmem>>, vector<1x128x128xbf16>
    %54 = vector.shape_cast %53 : vector<1x128x128xbf16> to vector<128x128xbf16>
    %cst_50 = arith.constant dense<0.000000e+00> : vector<16x128xf32>
    %55 = tpu.matmul %52, %54, %cst_50 {dimension_numbers = #tpu.dot_dimension_numbers<[1], [0], [0], [1], [0, 0, 1, 1], [], []>} : vector<16x128xbf16>, vector<128x128xbf16>, vector<16x128xf32> -> vector<16x128xf32>
    %56 = arith.addf %51, %55 : vector<16x128xf32>
    %c17 = arith.constant 17 : index
    %c0_51 = arith.constant 0 : index
    %57 = vector.load %arg10[%c17, %c0_51] : memref<48x128xbf16, #tpu.memory_space<vmem>>, vector<16x128xbf16>
    %c8 = arith.constant 8 : index
    %c0_52 = arith.constant 0 : index
    %c0_53 = arith.constant 0 : index
    %58 = vector.load %arg5[%c8, %c0_52, %c0_53] : memref<15x128x128xbf16, #tpu.memory_space<vmem>>, vector<1x128x128xbf16>
    %59 = vector.shape_cast %58 : vector<1x128x128xbf16> to vector<128x128xbf16>
    %cst_54 = arith.constant dense<0.000000e+00> : vector<16x128xf32>
    %60 = tpu.matmul %57, %59, %cst_54 {dimension_numbers = #tpu.dot_dimension_numbers<[1], [0], [0], [1], [0, 0, 1, 1], [], []>} : vector<16x128xbf16>, vector<128x128xbf16>, vector<16x128xf32> -> vector<16x128xf32>
    %61 = arith.addf %56, %60 : vector<16x128xf32>
    %c18 = arith.constant 18 : index
    %c0_55 = arith.constant 0 : index
    %62 = vector.load %arg10[%c18, %c0_55] : memref<48x128xbf16, #tpu.memory_space<vmem>>, vector<16x128xbf16>
    %c9_56 = arith.constant 9 : index
    %c0_57 = arith.constant 0 : index
    %c0_58 = arith.constant 0 : index
    %63 = vector.load %arg5[%c9_56, %c0_57, %c0_58] : memref<15x128x128xbf16, #tpu.memory_space<vmem>>, vector<1x128x128xbf16>
    %64 = vector.shape_cast %63 : vector<1x128x128xbf16> to vector<128x128xbf16>
    %cst_59 = arith.constant dense<0.000000e+00> : vector<16x128xf32>
    %65 = tpu.matmul %62, %64, %cst_59 {dimension_numbers = #tpu.dot_dimension_numbers<[1], [0], [0], [1], [0, 0, 1, 1], [], []>} : vector<16x128xbf16>, vector<128x128xbf16>, vector<16x128xf32> -> vector<16x128xf32>
    %66 = arith.addf %61, %65 : vector<16x128xf32>
    %c19 = arith.constant 19 : index
    %c0_60 = arith.constant 0 : index
    %67 = vector.load %arg10[%c19, %c0_60] : memref<48x128xbf16, #tpu.memory_space<vmem>>, vector<16x128xbf16>
    %c10_61 = arith.constant 10 : index
    %c0_62 = arith.constant 0 : index
    %c0_63 = arith.constant 0 : index
    %68 = vector.load %arg5[%c10_61, %c0_62, %c0_63] : memref<15x128x128xbf16, #tpu.memory_space<vmem>>, vector<1x128x128xbf16>
    %69 = vector.shape_cast %68 : vector<1x128x128xbf16> to vector<128x128xbf16>
    %cst_64 = arith.constant dense<0.000000e+00> : vector<16x128xf32>
    %70 = tpu.matmul %67, %69, %cst_64 {dimension_numbers = #tpu.dot_dimension_numbers<[1], [0], [0], [1], [0, 0, 1, 1], [], []>} : vector<16x128xbf16>, vector<128x128xbf16>, vector<16x128xf32> -> vector<16x128xf32>
    %71 = arith.addf %66, %70 : vector<16x128xf32>
    %c20 = arith.constant 20 : index
    %c0_65 = arith.constant 0 : index
    %72 = vector.load %arg10[%c20, %c0_65] : memref<48x128xbf16, #tpu.memory_space<vmem>>, vector<16x128xbf16>
    %c11_66 = arith.constant 11 : index
    %c0_67 = arith.constant 0 : index
    %c0_68 = arith.constant 0 : index
    %73 = vector.load %arg5[%c11_66, %c0_67, %c0_68] : memref<15x128x128xbf16, #tpu.memory_space<vmem>>, vector<1x128x128xbf16>
    %74 = vector.shape_cast %73 : vector<1x128x128xbf16> to vector<128x128xbf16>
    %cst_69 = arith.constant dense<0.000000e+00> : vector<16x128xf32>
    %75 = tpu.matmul %72, %74, %cst_69 {dimension_numbers = #tpu.dot_dimension_numbers<[1], [0], [0], [1], [0, 0, 1, 1], [], []>} : vector<16x128xbf16>, vector<128x128xbf16>, vector<16x128xf32> -> vector<16x128xf32>
    %76 = arith.addf %71, %75 : vector<16x128xf32>
    %c21 = arith.constant 21 : index
    %c0_70 = arith.constant 0 : index
    %77 = vector.load %arg10[%c21, %c0_70] : memref<48x128xbf16, #tpu.memory_space<vmem>>, vector<16x128xbf16>
    %c12_71 = arith.constant 12 : index
    %c0_72 = arith.constant 0 : index
    %c0_73 = arith.constant 0 : index
    %78 = vector.load %arg5[%c12_71, %c0_72, %c0_73] : memref<15x128x128xbf16, #tpu.memory_space<vmem>>, vector<1x128x128xbf16>
    %79 = vector.shape_cast %78 : vector<1x128x128xbf16> to vector<128x128xbf16>
    %cst_74 = arith.constant dense<0.000000e+00> : vector<16x128xf32>
    %80 = tpu.matmul %77, %79, %cst_74 {dimension_numbers = #tpu.dot_dimension_numbers<[1], [0], [0], [1], [0, 0, 1, 1], [], []>} : vector<16x128xbf16>, vector<128x128xbf16>, vector<16x128xf32> -> vector<16x128xf32>
    %81 = arith.addf %76, %80 : vector<16x128xf32>
    %c22 = arith.constant 22 : index
    %c0_75 = arith.constant 0 : index
    %82 = vector.load %arg10[%c22, %c0_75] : memref<48x128xbf16, #tpu.memory_space<vmem>>, vector<16x128xbf16>
    %c13_76 = arith.constant 13 : index
    %c0_77 = arith.constant 0 : index
    %c0_78 = arith.constant 0 : index
    %83 = vector.load %arg5[%c13_76, %c0_77, %c0_78] : memref<15x128x128xbf16, #tpu.memory_space<vmem>>, vector<1x128x128xbf16>
    %84 = vector.shape_cast %83 : vector<1x128x128xbf16> to vector<128x128xbf16>
    %cst_79 = arith.constant dense<0.000000e+00> : vector<16x128xf32>
    %85 = tpu.matmul %82, %84, %cst_79 {dimension_numbers = #tpu.dot_dimension_numbers<[1], [0], [0], [1], [0, 0, 1, 1], [], []>} : vector<16x128xbf16>, vector<128x128xbf16>, vector<16x128xf32> -> vector<16x128xf32>
    %86 = arith.addf %81, %85 : vector<16x128xf32>
    %c23 = arith.constant 23 : index
    %c0_80 = arith.constant 0 : index
    %87 = vector.load %arg10[%c23, %c0_80] : memref<48x128xbf16, #tpu.memory_space<vmem>>, vector<16x128xbf16>
    %c14_81 = arith.constant 14 : index
    %c0_82 = arith.constant 0 : index
    %c0_83 = arith.constant 0 : index
    %88 = vector.load %arg5[%c14_81, %c0_82, %c0_83] : memref<15x128x128xbf16, #tpu.memory_space<vmem>>, vector<1x128x128xbf16>
    %89 = vector.shape_cast %88 : vector<1x128x128xbf16> to vector<128x128xbf16>
    %cst_84 = arith.constant dense<0.000000e+00> : vector<16x128xf32>
    %90 = tpu.matmul %87, %89, %cst_84 {dimension_numbers = #tpu.dot_dimension_numbers<[1], [0], [0], [1], [0, 0, 1, 1], [], []>} : vector<16x128xbf16>, vector<128x128xbf16>, vector<16x128xf32> -> vector<16x128xf32>
    %91 = arith.addf %86, %90 : vector<16x128xf32>
    %c0_85 = arith.constant 0 : index
    %c0_86 = arith.constant 0 : index
    %92 = vector.load %arg6[%c0_85, %c0_86] : memref<1x128xf32, #tpu.memory_space<vmem>>, vector<1x128xf32>
    %93 = vector.broadcast %92 : vector<1x128xf32> to vector<16x128xf32>
    %94 = arith.addf %91, %93 : vector<16x128xf32>
    %c0_87 = arith.constant 0 : index
    %c0_88 = arith.constant 0 : index
    %95 = vector.load %arg7[%c0_87, %c0_88] : memref<32x16xf32, #tpu.memory_space<vmem>>, vector<32x16xf32>
    %cst_89 = arith.constant dense<0.000000e+00> : vector<32x128xf32>
    %96 = tpu.matmul %95, %94, %cst_89 {dimension_numbers = #tpu.dot_dimension_numbers<[1], [0], [0], [1], [0, 0, 1, 1], [], []>} : vector<32x16xf32>, vector<16x128xf32>, vector<32x128xf32> -> vector<32x128xf32>
    %c0_90 = arith.constant 0 : index
    %c0_91 = arith.constant 0 : index
    %97 = vector.load %arg8[%c0_90, %c0_91] : memref<128x256xf32, #tpu.memory_space<vmem>>, vector<128x256xf32>
    %cst_92 = arith.constant dense<0.000000e+00> : vector<32x256xf32>
    %98 = tpu.matmul %96, %97, %cst_92 {dimension_numbers = #tpu.dot_dimension_numbers<[1], [0], [0], [1], [0, 0, 1, 1], [], []>} : vector<32x128xf32>, vector<128x256xf32>, vector<32x256xf32> -> vector<32x256xf32>
    %c0_93 = arith.constant 0 : index
    %c0_94 = arith.constant 0 : index
    %c0_95 = arith.constant 0 : index
    %99 = vector.load %arg9[%c0_93, %c0_94, %c0_95] : memref<1x32x256xf32, #tpu.memory_space<vmem>>, vector<1x32x256xf32>
    %100 = vector.shape_cast %99 : vector<1x32x256xf32> to vector<32x256xf32>
    %101 = vector.shape_cast %98 : vector<32x256xf32> to vector<1x32x256xf32>
    tpu.vector_store %arg9[%c0_93, %c0_94, %c0_95], %101 {strides = array<i32>} : memref<1x32x256xf32, #tpu.memory_space<vmem>>, vector<1x32x256xf32>,
    return
  }
  func.func @transform_0(%arg0: i32) -> (i32, i32, i32) {
    %c0_i32 = arith.constant 0 : i32
    %c0_i32_0 = arith.constant 0 : i32
    %c0_i32_1 = arith.constant 0 : i32
    return %arg0, %c0_i32, %c0_i32_0 : i32, i32, i32
  }
  func.func @transform_1(%arg0: i32) -> (i32, i32, i32) {
    %c0_i32 = arith.constant 0 : i32
    %c0_i32_0 = arith.constant 0 : i32
    %c0_i32_1 = arith.constant 0 : i32
    return %arg0, %c0_i32, %c0_i32_0 : i32, i32, i32
  }
  func.func @transform_2(%arg0: i32) -> (i32, i32) {
    %c0_i32 = arith.constant 0 : i32
    %c0_i32_0 = arith.constant 0 : i32
    %c0_i32_1 = arith.constant 0 : i32
    return %c0_i32, %c0_i32_0 : i32, i32
  }
  func.func @transform_3(%arg0: i32) -> (i32, i32) {
    %c0_i32 = arith.constant 0 : i32
    %c0_i32_0 = arith.constant 0 : i32
    %c0_i32_1 = arith.constant 0 : i32
    return %c0_i32, %c0_i32_0 : i32, i32
  }
  func.func @transform_4(%arg0: i32) -> (i32, i32, i32) {
    %c0_i32 = arith.constant 0 : i32
    %c0_i32_0 = arith.constant 0 : i32
    %c0_i32_1 = arith.constant 0 : i32
    %c0_i32_2 = arith.constant 0 : i32
    return %c0_i32, %c0_i32_0, %c0_i32_1 : i32, i32, i32
  }
  func.func @transform_5(%arg0: i32) -> (i32, i32) {
    %c0_i32 = arith.constant 0 : i32
    %c0_i32_0 = arith.constant 0 : i32
    %c0_i32_1 = arith.constant 0 : i32
    return %c0_i32, %c0_i32_0 : i32, i32
  }
  func.func @transform_6(%arg0: i32) -> (i32, i32) {
    %c0_i32 = arith.constant 0 : i32
    %c0_i32_0 = arith.constant 0 : i32
    %c0_i32_1 = arith.constant 0 : i32
    return %c0_i32, %c0_i32_0 : i32, i32
  }
  func.func @transform_7(%arg0: i32) -> (i32, i32) {
    %c0_i32 = arith.constant 0 : i32
    %c0_i32_0 = arith.constant 0 : i32
    %c0_i32_1 = arith.constant 0 : i32
    return %c0_i32, %c0_i32_0 : i32, i32
  }
  func.func @transform_8(%arg0: i32) -> (i32, i32, i32) {
    %c0_i32 = arith.constant 0 : i32
    %c0_i32_0 = arith.constant 0 : i32
    %c0_i32_1 = arith.constant 0 : i32
    return %arg0, %c0_i32, %c0_i32_0 : i32, i32, i32
  }
}

</mosaic_0001>

<llo_original>
// kernel: csp_lsn_forward.6
$region0: #{csp_lsn_forward.6}
  #allocation0 [shape = 'u32[]', space=smem, size = 0x4, offset = 0x4, fixed_abs, tag = 'smem constant byte address 0x4 - core index']
  #allocation1 [shape = 'u32[72,128]{1,0:T(1,128)}', space=vmem, size = 0x9000, scoped, tag = 'internal scratch']
  %s0 = inlined_call_operand.vmem [shape: bf16[128,24], index: 0, kind: input, shape index: {}]
  %s1 = inlined_call_operand.vmem [shape: bf16[24,128], index: 1, kind: input, shape index: {}]
  %s2 = inlined_call_operand.vmem [shape: f32[1,128], index: 2, kind: input, shape index: {}]
  %s3 = inlined_call_operand.vmem [shape: bf16[128,128], index: 3, kind: output, shape index: {}]
  %s4 = sld [smem:[#allocation0]]
  $region22: #{csp_lsn_forward.6} parent=0
    _
  %s6 = ssub.s32 1, %s4
  %s7 = scalar_select 0, %s6, %s4
  // Predicated region
  $region2: #{csp_lsn_forward.6} parent=0 // pred_check
    _
  $region3: #{csp_lsn_forward.6} parent=0 // pred_check_branch
    %9 = sbr.rel (0) target = $region5
  $region4: #{csp_lsn_forward.6} parent=0 // pred_region
    _
  $region5: #{csp_lsn_forward.6} parent=0 // pred_fallthru
    _
  // Predicated region
  $region6: #{csp_lsn_forward.6} parent=0 // pred_check
    _
  $region7: #{csp_lsn_forward.6} parent=0 // pred_check_branch
    %11 = sbr.rel (0) target = $region9
  $region8: #{csp_lsn_forward.6} parent=0 // pred_region
    _
  $region9: #{csp_lsn_forward.6} parent=0 // pred_fallthru
    _
  // Predicated region
  $region10: #{csp_lsn_forward.6} parent=0 // pred_check
    _
  $region11: #{csp_lsn_forward.6} parent=0 // pred_check_branch
    %13 = sbr.rel (0) target = $region13
  $region12: #{csp_lsn_forward.6} parent=0 // pred_region
    _
  $region13: #{csp_lsn_forward.6} parent=0 // pred_fallthru
    _
  %v15 = vld [vmem:[%s0] sm:$0xf]
  %v16 = vld [vmem:[%s0 + $0x4] sm:$0xf]
  %v17 = vld [vmem:[%s0 + $0x8] sm:$0xf]
  %v18 = vld [vmem:[%s0 + $0xc] sm:$0xf]
  %v19 = vld [vmem:[%s0 + $0x10] sm:$0xf]
  %v20 = vld [vmem:[%s0 + $0x14] sm:$0xf]
  %v21 = vld [vmem:[%s0 + $0x18] sm:$0xf]
  %v22 = vld [vmem:[%s0 + $0x1c] sm:$0xf]
  %v23 = vld [vmem:[%s0 + $0x20] sm:$0xf]
  %v24 = vld [vmem:[%s0 + $0x24] sm:$0xf]
  %v25 = vld [vmem:[%s0 + $0x28] sm:$0xf]
  %v26 = vld [vmem:[%s0 + $0x2c] sm:$0xf]
  %v27 = vld [vmem:[%s0 + $0x30] sm:$0xf]
  %v28 = vld [vmem:[%s0 + $0x34] sm:$0xf]
  %v29 = vld [vmem:[%s0 + $0x38] sm:$0xf]
  %v30 = vld [vmem:[%s0 + $0x3c] sm:$0xf]
  %v31 = vld [vmem:[%s1] sm:$0xf]
  %v32 = vld [vmem:[%s1 + $0x4] sm:$0xf]
  %v33 = vld [vmem:[%s1 + $0x8] sm:$0xf]
  %v34 = vld [vmem:[%s2] sm:$0x1]
  %v36 = vperm.slane %v34, 0
  %v54 = vunpack.c.l.b16 %v15
  %v55 = vunpack.c.l.b16 %v16
  %v56 = vunpack.c.l.b16 %v17
  %v57 = vunpack.c.l.b16 %v18
  %v58 = vunpack.c.l.b16 %v19
  %v59 = vunpack.c.l.b16 %v20
  %v60 = vunpack.c.l.b16 %v21
  %v61 = vunpack.c.l.b16 %v22
  %v62 = vunpack.c.l.b16 %v23
  %v63 = vunpack.c.l.b16 %v24
  %v64 = vunpack.c.l.b16 %v25
  %v65 = vunpack.c.l.b16 %v26
  %v66 = vunpack.c.l.b16 %v27
  %v67 = vunpack.c.l.b16 %v28
  %v68 = vunpack.c.l.b16 %v29
  %v69 = vunpack.c.l.b16 %v30
  %v70 = vpack.c.b16 %v55, %v54
  %v71 = vpack.c.b16 %v57, %v56
  %v72 = vpack.c.b16 %v59, %v58
  %v73 = vpack.c.b16 %v61, %v60
  %v74 = vpack.c.b16 %v63, %v62
  %v75 = vpack.c.b16 %v65, %v64
  %v76 = vpack.c.b16 %v67, %v66
  %v77 = vpack.c.b16 %v69, %v68
  %v81 = vunpack.c.l.b16 %v31
  %v82 = vunpack.c.l.b16 %v32
  %v83 = vunpack.c.l.b16 %v33
  %v84 = vpack.c.b16 %v82, %v81
  %v85 = vpack.c.b16 %v83, %v83
  %vm87 = vcmask 195584
  %v89 = vsel %vm87, %v70, 0
  %v92 = vsel %vm87, %v71, 0
  %v95 = vsel %vm87, %v72, 0
  %v98 = vsel %vm87, %v73, 0
  %v101 = vsel %vm87, %v74, 0
  %v104 = vsel %vm87, %v75, 0
  %v107 = vsel %vm87, %v76, 0
  %v110 = vsel %vm87, %v77, 0
  %vm112 = vcmask 1043456
  %v114 = vsel %vm112, %v85, 0
  %116 = vmatpush.bf16.msra.mxu0 0
  %117 = vmatpush.bf16.msra.mxu0 0
  %118 = vmatpush.bf16.msra.mxu0 0
  %119 = vmatpush.bf16.msra.mxu0 0
  %120 = vmatpush.bf16.msra.mxu0 0
  %121 = vmatpush.bf16.msra.mxu0 0
  %122 = vmatpush.bf16.msra.mxu0 %v114
  %123 = vmatpush.bf16.msra.mxu0 %v84
  %124 = vmatmul.bf16.gmra.mxu0 %v89
  %v125 = vpop.f32.mrf.mxu0
  %v126 = vadd.f32 %v36, %v125
  %v127 = vpop.f32.mrf.mxu0
  %v128 = vadd.f32 %v36, %v127
  %129 = vmatmul.bf16.gmra.mxu0 %v92
  %v130 = vpop.f32.mrf.mxu0
  %v131 = vadd.f32 %v36, %v130
  %v132 = vpop.f32.mrf.mxu0
  %v133 = vadd.f32 %v36, %v132
  %134 = vmatmul.bf16.gmra.mxu0 %v95
  %v135 = vpop.f32.mrf.mxu0
  %v136 = vadd.f32 %v36, %v135
  %v137 = vpop.f32.mrf.mxu0
  %v138 = vadd.f32 %v36, %v137
  %139 = vmatmul.bf16.gmra.mxu0 %v98
  %v140 = vpop.f32.mrf.mxu0
  %v141 = vadd.f32 %v36, %v140
  %v142 = vpop.f32.mrf.mxu0
  %v143 = vadd.f32 %v36, %v142
  %144 = vmatmul.bf16.gmra.mxu0 %v101
  %v145 = vpop.f32.mrf.mxu0
  %v146 = vadd.f32 %v36, %v145
  %v147 = vpop.f32.mrf.mxu0
  %v148 = vadd.f32 %v36, %v147
  %149 = vmatmul.bf16.gmra.mxu0 %v104
  %v150 = vpop.f32.mrf.mxu0
  %v151 = vadd.f32 %v36, %v150
  %v152 = vpop.f32.mrf.mxu0
  %v153 = vadd.f32 %v36, %v152
  %154 = vmatmul.bf16.gmra.mxu0 %v107
  %v155 = vpop.f32.mrf.mxu0
  %v156 = vadd.f32 %v36, %v155
  %v157 = vpop.f32.mrf.mxu0
  %v158 = vadd.f32 %v36, %v157
  %159 = vmatmul.bf16.gmra.mxu0 %v110
  %v160 = vpop.f32.mrf.mxu0
  %v161 = vadd.f32 %v36, %v160
  %v162 = vpop.f32.mrf.mxu0
  %v163 = vadd.f32 %v36, %v162
  %164 = vdwg.mxu0
  %v165 = vmax.f32 %v126, 0.0
  %v166 = vmax.f32 %v128, 0.0
  %v167 = vmax.f32 %v131, 0.0
  %v168 = vmax.f32 %v133, 0.0
  %v169 = vmax.f32 %v136, 0.0
  %v170 = vmax.f32 %v138, 0.0
  %v171 = vmax.f32 %v141, 0.0
  %v172 = vmax.f32 %v143, 0.0
  %v173 = vmax.f32 %v146, 0.0
  %v174 = vmax.f32 %v148, 0.0
  %v175 = vmax.f32 %v151, 0.0
  %v176 = vmax.f32 %v153, 0.0
  %v177 = vmax.f32 %v156, 0.0
  %v178 = vmax.f32 %v158, 0.0
  %v179 = vmax.f32 %v161, 0.0
  %v180 = vmax.f32 %v163, 0.0
  %v181 = vpack.c.bf16 %v165, %v165
  %v182 = vpack.c.bf16 %v166, %v166
  %v183 = vpack.c.bf16 %v167, %v167
  %v184 = vpack.c.bf16 %v168, %v168
  %v185 = vpack.c.bf16 %v169, %v169
  %v186 = vpack.c.bf16 %v170, %v170
  %v187 = vpack.c.bf16 %v171, %v171
  %v188 = vpack.c.bf16 %v172, %v172
  %v189 = vpack.c.bf16 %v173, %v173
  %v190 = vpack.c.bf16 %v174, %v174
  %v191 = vpack.c.bf16 %v175, %v175
  %v192 = vpack.c.bf16 %v176, %v176
  %v193 = vpack.c.bf16 %v177, %v177
  %v194 = vpack.c.bf16 %v178, %v178
  %v195 = vpack.c.bf16 %v179, %v179
  %v196 = vpack.c.bf16 %v180, %v180
  %197 = vst [vmem:[%s3] sm:$0xf] %v181
  %198 = vst [vmem:[%s3 + $0x4] sm:$0xf] %v182
  %199 = vst [vmem:[%s3 + $0x8] sm:$0xf] %v183
  %200 = vst [vmem:[%s3 + $0xc] sm:$0xf] %v184
  %201 = vst [vmem:[%s3 + $0x10] sm:$0xf] %v185
  %202 = vst [vmem:[%s3 + $0x14] sm:$0xf] %v186
  %203 = vst [vmem:[%s3 + $0x18] sm:$0xf] %v187
  %204 = vst [vmem:[%s3 + $0x1c] sm:$0xf] %v188
  %205 = vst [vmem:[%s3 + $0x20] sm:$0xf] %v189
  %206 = vst [vmem:[%s3 + $0x24] sm:$0xf] %v190
  %207 = vst [vmem:[%s3 + $0x28] sm:$0xf] %v191
  %208 = vst [vmem:[%s3 + $0x2c] sm:$0xf] %v192
  %209 = vst [vmem:[%s3 + $0x30] sm:$0xf] %v193
  %210 = vst [vmem:[%s3 + $0x34] sm:$0xf] %v194
  %211 = vst [vmem:[%s3 + $0x38] sm:$0xf] %v195
  %212 = vst [vmem:[%s3 + $0x3c] sm:$0xf] %v196
  // Predicated region
  $region14: #{csp_lsn_forward.6} parent=0 // pred_check
    _
  $region15: #{csp_lsn_forward.6} parent=0 // pred_check_branch
    %214 = sbr.rel (0) target = $region17
  $region16: #{csp_lsn_forward.6} parent=0 // pred_region
    _
  $region17: #{csp_lsn_forward.6} parent=0 // pred_fallthru
    _
  // Predicated region
  $region18: #{csp_lsn_forward.6} parent=0 // pred_check
    _
  $region19: #{csp_lsn_forward.6} parent=0 // pred_check_branch
    %216 = sbr.rel (0) target = $region21
  $region20: #{csp_lsn_forward.6} parent=0 // pred_region
    _
  $region21: #{csp_lsn_forward.6} parent=0 // pred_fallthru
    _

// kernel: csp_lsn_forward.7
$region0: #{csp_lsn_forward.7}
  #allocation0 [shape = 'u32[]', space=smem, size = 0x4, offset = 0x4, fixed_abs, tag = 'smem constant byte address 0x4 - core index']
  #allocation1 [shape = 'u32[72,128]{1,0:T(1,128)}', space=vmem, size = 0x9000, scoped, tag = 'internal scratch']
  %s0 = inlined_call_operand.vmem [shape: bf16[64,64], index: 0, kind: input, shape index: {}]
  %s1 = inlined_call_operand.vmem [shape: bf16[64,128], index: 1, kind: input, shape index: {}]
  %s2 = inlined_call_operand.vmem [shape: f32[1,128], index: 2, kind: input, shape index: {}]
  %s3 = inlined_call_operand.vmem [shape: bf16[64,128], index: 3, kind: output, shape index: {}]
  %s4 = sld [smem:[#allocation0]]
  $region22: #{csp_lsn_forward.7} parent=0
    _
  %s6 = ssub.s32 1, %s4
  %s7 = scalar_select 0, %s6, %s4
  // Predicated region
  $region2: #{csp_lsn_forward.7} parent=0 // pred_check
    _
  $region3: #{csp_lsn_forward.7} parent=0 // pred_check_branch
    %9 = sbr.rel (0) target = $region5
  $region4: #{csp_lsn_forward.7} parent=0 // pred_region
    _
  $region5: #{csp_lsn_forward.7} parent=0 // pred_fallthru
    _
  // Predicated region
  $region6: #{csp_lsn_forward.7} parent=0 // pred_check
    _
  $region7: #{csp_lsn_forward.7} parent=0 // pred_check_branch
    %11 = sbr.rel (0) target = $region9
  $region8: #{csp_lsn_forward.7} parent=0 // pred_region
    _
  $region9: #{csp_lsn_forward.7} parent=0 // pred_fallthru
    _
  // Predicated region
  $region10: #{csp_lsn_forward.7} parent=0 // pred_check
    _
  $region11: #{csp_lsn_forward.7} parent=0 // pred_check_branch
    %13 = sbr.rel (0) target = $region13
  $region12: #{csp_lsn_forward.7} parent=0 // pred_region
    _
  $region13: #{csp_lsn_forward.7} parent=0 // pred_fallthru
    _
  %v15 = vld [vmem:[%s0] sm:$0xf]
  %v16 = vld [vmem:[%s0 + $0x4] sm:$0xf]
  %v17 = vld [vmem:[%s0 + $0x8] sm:$0xf]
  %v18 = vld [vmem:[%s0 + $0xc] sm:$0xf]
  %v19 = vld [vmem:[%s0 + $0x10] sm:$0xf]
  %v20 = vld [vmem:[%s0 + $0x14] sm:$0xf]
  %v21 = vld [vmem:[%s0 + $0x18] sm:$0xf]
  %v22 = vld [vmem:[%s0 + $0x1c] sm:$0xf]
  %v23 = vld [vmem:[%s1] sm:$0xf]
  %v24 = vld [vmem:[%s1 + $0x4] sm:$0xf]
  %v25 = vld [vmem:[%s1 + $0x8] sm:$0xf]
  %v26 = vld [vmem:[%s1 + $0xc] sm:$0xf]
  %v27 = vld [vmem:[%s1 + $0x10] sm:$0xf]
  %v28 = vld [vmem:[%s1 + $0x14] sm:$0xf]
  %v29 = vld [vmem:[%s1 + $0x18] sm:$0xf]
  %v30 = vld [vmem:[%s1 + $0x1c] sm:$0xf]
  %v31 = vld [vmem:[%s2] sm:$0x1]
  %v33 = vperm.slane %v31, 0
  %v43 = vunpack.c.l.b16 %v15
  %v44 = vunpack.c.l.b16 %v16
  %v45 = vunpack.c.l.b16 %v17
  %v46 = vunpack.c.l.b16 %v18
  %v47 = vunpack.c.l.b16 %v19
  %v48 = vunpack.c.l.b16 %v20
  %v49 = vunpack.c.l.b16 %v21
  %v50 = vunpack.c.l.b16 %v22
  %v51 = vpack.c.b16 %v44, %v43
  %v52 = vpack.c.b16 %v46, %v45
  %v53 = vpack.c.b16 %v48, %v47
  %v54 = vpack.c.b16 %v50, %v49
  %v63 = vunpack.c.l.b16 %v23
  %v64 = vunpack.c.l.b16 %v24
  %v65 = vunpack.c.l.b16 %v25
  %v66 = vunpack.c.l.b16 %v26
  %v67 = vunpack.c.l.b16 %v27
  %v68 = vunpack.c.l.b16 %v28
  %v69 = vunpack.c.l.b16 %v29
  %v70 = vunpack.c.l.b16 %v30
  %v71 = vpack.c.b16 %v64, %v63
  %v72 = vpack.c.b16 %v66, %v65
  %v73 = vpack.c.b16 %v68, %v67
  %v74 = vpack.c.b16 %v70, %v69
  %vm79 = vcmask 523264
  %v81 = vsel %vm79, %v51, 0
  %v84 = vsel %vm79, %v52, 0
  %v87 = vsel %vm79, %v53, 0
  %v90 = vsel %vm79, %v54, 0
  %92 = vmatpush.bf16.msra.mxu0 0
  %93 = vmatpush.bf16.msra.mxu0 0
  %94 = vmatpush.bf16.msra.mxu0 0
  %95 = vmatpush.bf16.msra.mxu0 0
  %96 = vmatpush.bf16.msra.mxu0 %v74
  %97 = vmatpush.bf16.msra.mxu0 %v73
  %98 = vmatpush.bf16.msra.mxu0 %v72
  %99 = vmatpush.bf16.msra.mxu0 %v71
  %100 = vmatmul.bf16.gmra.mxu0 %v81
  %v101 = vpop.f32.mrf.mxu0
  %v102 = vadd.f32 %v33, %v101
  %v103 = vpop.f32.mrf.mxu0
  %v104 = vadd.f32 %v33, %v103
  %105 = vmatmul.bf16.gmra.mxu0 %v84
  %v106 = vpop.f32.mrf.mxu0
  %v107 = vadd.f32 %v33, %v106
  %v108 = vpop.f32.mrf.mxu0
  %v109 = vadd.f32 %v33, %v108
  %110 = vmatmul.bf16.gmra.mxu0 %v87
  %v111 = vpop.f32.mrf.mxu0
  %v112 = vadd.f32 %v33, %v111
  %v113 = vpop.f32.mrf.mxu0
  %v114 = vadd.f32 %v33, %v113
  %115 = vmatmul.bf16.gmra.mxu0 %v90
  %v116 = vpop.f32.mrf.mxu0
  %v117 = vadd.f32 %v33, %v116
  %v118 = vpop.f32.mrf.mxu0
  %v119 = vadd.f32 %v33, %v118
  %120 = vdwg.mxu0
  %v121 = vmax.f32 %v102, 0.0
  %v122 = vmax.f32 %v104, 0.0
  %v123 = vmax.f32 %v107, 0.0
  %v124 = vmax.f32 %v109, 0.0
  %v125 = vmax.f32 %v112, 0.0
  %v126 = vmax.f32 %v114, 0.0
  %v127 = vmax.f32 %v117, 0.0
  %v128 = vmax.f32 %v119, 0.0
  %v129 = vpack.c.bf16 %v121, %v121
  %v130 = vpack.c.bf16 %v122, %v122
  %v131 = vpack.c.bf16 %v123, %v123
  %v132 = vpack.c.bf16 %v124, %v124
  %v133 = vpack.c.bf16 %v125, %v125
  %v134 = vpack.c.bf16 %v126, %v126
  %v135 = vpack.c.bf16 %v127, %v127
  %v136 = vpack.c.bf16 %v128, %v128
  %137 = vst [vmem:[%s3] sm:$0xf] %v129
  %138 = vst [vmem:[%s3 + $0x4] sm:$0xf] %v130
  %139 = vst [vmem:[%s3 + $0x8] sm:$0xf] %v131
  %140 = vst [vmem:[%s3 + $0xc] sm:$0xf] %v132
  %141 = vst [vmem:[%s3 + $0x10] sm:$0xf] %v133
  %142 = vst [vmem:[%s3 + $0x14] sm:$0xf] %v134
  %143 = vst [vmem:[%s3 + $0x18] sm:$0xf] %v135
  %144 = vst [vmem:[%s3 + $0x1c] sm:$0xf] %v136
  // Predicated region
  $region14: #{csp_lsn_forward.7} parent=0 // pred_check
    _
  $region15: #{csp_lsn_forward.7} parent=0 // pred_check_branch
    %146 = sbr.rel (0) target = $region17
  $region16: #{csp_lsn_forward.7} parent=0 // pred_region
    _
  $region17: #{csp_lsn_forward.7} parent=0 // pred_fallthru
    _
  // Predicated region
  $region18: #{csp_lsn_forward.7} parent=0 // pred_check
    _
  $region19: #{csp_lsn_forward.7} parent=0 // pred_check_branch
    %148 = sbr.rel (0) target = $region21
  $region20: #{csp_lsn_forward.7} parent=0 // pred_region
    _
  $region21: #{csp_lsn_forward.7} parent=0 // pred_fallthru
    _

// kernel: csp_lsn_forward.9
$region0: #{csp_lsn_forward.9}
  #allocation0 [shape = 'u32[]', space=smem, size = 0x4, offset = 0x4, fixed_abs, tag = 'smem constant byte address 0x4 - core index']
  #allocation1 [shape = 'u32[72,128]{1,0:T(1,128)}', space=vmem, size = 0x9000, scoped, tag = 'internal scratch']
  %s0 = inlined_call_operand.vmem [shape: bf16[128,64], index: 0, kind: input, shape index: {}]
  %s1 = inlined_call_operand.vmem [shape: bf16[64,128], index: 1, kind: input, shape index: {}]
  %s2 = inlined_call_operand.vmem [shape: f32[1,128], index: 2, kind: input, shape index: {}]
  %s3 = inlined_call_operand.vmem [shape: bf16[128,128], index: 3, kind: output, shape index: {}]
  %s4 = sld [smem:[#allocation0]]
  $region22: #{csp_lsn_forward.9} parent=0
    _
  %s6 = ssub.s32 1, %s4
  %s7 = scalar_select 0, %s6, %s4
  // Predicated region
  $region2: #{csp_lsn_forward.9} parent=0 // pred_check
    _
  $region3: #{csp_lsn_forward.9} parent=0 // pred_check_branch
    %9 = sbr.rel (0) target = $region5
  $region4: #{csp_lsn_forward.9} parent=0 // pred_region
    _
  $region5: #{csp_lsn_forward.9} parent=0 // pred_fallthru
    _
  // Predicated region
  $region6: #{csp_lsn_forward.9} parent=0 // pred_check
    _
  $region7: #{csp_lsn_forward.9} parent=0 // pred_check_branch
    %11 = sbr.rel (0) target = $region9
  $region8: #{csp_lsn_forward.9} parent=0 // pred_region
    _
  $region9: #{csp_lsn_forward.9} parent=0 // pred_fallthru
    _
  // Predicated region
  $region10: #{csp_lsn_forward.9} parent=0 // pred_check
    _
  $region11: #{csp_lsn_forward.9} parent=0 // pred_check_branch
    %13 = sbr.rel (0) target = $region13
  $region12: #{csp_lsn_forward.9} parent=0 // pred_region
    _
  $region13: #{csp_lsn_forward.9} parent=0 // pred_fallthru
    _
  %v15 = vld [vmem:[%s0] sm:$0xf]
  %v16 = vld [vmem:[%s0 + $0x4] sm:$0xf]
  %v17 = vld [vmem:[%s0 + $0x8] sm:$0xf]
  %v18 = vld [vmem:[%s0 + $0xc] sm:$0xf]
  %v19 = vld [vmem:[%s0 + $0x10] sm:$0xf]
  %v20 = vld [vmem:[%s0 + $0x14] sm:$0xf]
  %v21 = vld [vmem:[%s0 + $0x18] sm:$0xf]
  %v22 = vld [vmem:[%s0 + $0x1c] sm:$0xf]
  %v23 = vld [vmem:[%s0 + $0x20] sm:$0xf]
  %v24 = vld [vmem:[%s0 + $0x24] sm:$0xf]
  %v25 = vld [vmem:[%s0 + $0x28] sm:$0xf]
  %v26 = vld [vmem:[%s0 + $0x2c] sm:$0xf]
  %v27 = vld [vmem:[%s0 + $0x30] sm:$0xf]
  %v28 = vld [vmem:[%s0 + $0x34] sm:$0xf]
  %v29 = vld [vmem:[%s0 + $0x38] sm:$0xf]
  %v30 = vld [vmem:[%s0 + $0x3c] sm:$0xf]
  %v31 = vld [vmem:[%s1] sm:$0xf]
  %v32 = vld [vmem:[%s1 + $0x4] sm:$0xf]
  %v33 = vld [vmem:[%s1 + $0x8] sm:$0xf]
  %v34 = vld [vmem:[%s1 + $0xc] sm:$0xf]
  %v35 = vld [vmem:[%s1 + $0x10] sm:$0xf]
  %v36 = vld [vmem:[%s1 + $0x14] sm:$0xf]
  %v37 = vld [vmem:[%s1 + $0x18] sm:$0xf]
  %v38 = vld [vmem:[%s1 + $0x1c] sm:$0xf]
  %v39 = vld [vmem:[%s2] sm:$0x1]
  %v41 = vperm.slane %v39, 0
  %v59 = vunpack.c.l.b16 %v15
  %v60 = vunpack.c.l.b16 %v16
  %v61 = vunpack.c.l.b16 %v17
  %v62 = vunpack.c.l.b16 %v18
  %v63 = vunpack.c.l.b16 %v19
  %v64 = vunpack.c.l.b16 %v20
  %v65 = vunpack.c.l.b16 %v21
  %v66 = vunpack.c.l.b16 %v22
  %v67 = vunpack.c.l.b16 %v23
  %v68 = vunpack.c.l.b16 %v24
  %v69 = vunpack.c.l.b16 %v25
  %v70 = vunpack.c.l.b16 %v26
  %v71 = vunpack.c.l.b16 %v27
  %v72 = vunpack.c.l.b16 %v28
  %v73 = vunpack.c.l.b16 %v29
  %v74 = vunpack.c.l.b16 %v30
  %v75 = vpack.c.b16 %v60, %v59
  %v76 = vpack.c.b16 %v62, %v61
  %v77 = vpack.c.b16 %v64, %v63
  %v78 = vpack.c.b16 %v66, %v65
  %v79 = vpack.c.b16 %v68, %v67
  %v80 = vpack.c.b16 %v70, %v69
  %v81 = vpack.c.b16 %v72, %v71
  %v82 = vpack.c.b16 %v74, %v73
  %v91 = vunpack.c.l.b16 %v31
  %v92 = vunpack.c.l.b16 %v32
  %v93 = vunpack.c.l.b16 %v33
  %v94 = vunpack.c.l.b16 %v34
  %v95 = vunpack.c.l.b16 %v35
  %v96 = vunpack.c.l.b16 %v36
  %v97 = vunpack.c.l.b16 %v37
  %v98 = vunpack.c.l.b16 %v38
  %v99 = vpack.c.b16 %v92, %v91
  %v100 = vpack.c.b16 %v94, %v93
  %v101 = vpack.c.b16 %v96, %v95
  %v102 = vpack.c.b16 %v98, %v97
  %vm107 = vcmask 523264
  %v109 = vsel %vm107, %v75, 0
  %v112 = vsel %vm107, %v76, 0
  %v115 = vsel %vm107, %v77, 0
  %v118 = vsel %vm107, %v78, 0
  %v121 = vsel %vm107, %v79, 0
  %v124 = vsel %vm107, %v80, 0
  %v127 = vsel %vm107, %v81, 0
  %v130 = vsel %vm107, %v82, 0
  %132 = vmatpush.bf16.msra.mxu0 0
  %133 = vmatpush.bf16.msra.mxu0 0
  %134 = vmatpush.bf16.msra.mxu0 0
  %135 = vmatpush.bf16.msra.mxu0 0
  %136 = vmatpush.bf16.msra.mxu0 %v102
  %137 = vmatpush.bf16.msra.mxu0 %v101
  %138 = vmatpush.bf16.msra.mxu0 %v100
  %139 = vmatpush.bf16.msra.mxu0 %v99
  %140 = vmatmul.bf16.gmra.mxu0 %v109
  %v141 = vpop.f32.mrf.mxu0
  %v142 = vadd.f32 %v41, %v141
  %v143 = vpop.f32.mrf.mxu0
  %v144 = vadd.f32 %v41, %v143
  %145 = vmatmul.bf16.gmra.mxu0 %v112
  %v146 = vpop.f32.mrf.mxu0
  %v147 = vadd.f32 %v41, %v146
  %v148 = vpop.f32.mrf.mxu0
  %v149 = vadd.f32 %v41, %v148
  %150 = vmatmul.bf16.gmra.mxu0 %v115
  %v151 = vpop.f32.mrf.mxu0
  %v152 = vadd.f32 %v41, %v151
  %v153 = vpop.f32.mrf.mxu0
  %v154 = vadd.f32 %v41, %v153
  %155 = vmatmul.bf16.gmra.mxu0 %v118
  %v156 = vpop.f32.mrf.mxu0
  %v157 = vadd.f32 %v41, %v156
  %v158 = vpop.f32.mrf.mxu0
  %v159 = vadd.f32 %v41, %v158
  %160 = vmatmul.bf16.gmra.mxu0 %v121
  %v161 = vpop.f32.mrf.mxu0
  %v162 = vadd.f32 %v41, %v161
  %v163 = vpop.f32.mrf.mxu0
  %v164 = vadd.f32 %v41, %v163
  %165 = vmatmul.bf16.gmra.mxu0 %v124
  %v166 = vpop.f32.mrf.mxu0
  %v167 = vadd.f32 %v41, %v166
  %v168 = vpop.f32.mrf.mxu0
  %v169 = vadd.f32 %v41, %v168
  %170 = vmatmul.bf16.gmra.mxu0 %v127
  %v171 = vpop.f32.mrf.mxu0
  %v172 = vadd.f32 %v41, %v171
  %v173 = vpop.f32.mrf.mxu0
  %v174 = vadd.f32 %v41, %v173
  %175 = vmatmul.bf16.gmra.mxu0 %v130
  %v176 = vpop.f32.mrf.mxu0
  %v177 = vadd.f32 %v41, %v176
  %v178 = vpop.f32.mrf.mxu0
  %v179 = vadd.f32 %v41, %v178
  %180 = vdwg.mxu0
  %v181 = vpack.c.bf16 %v142, %v142
  %v182 = vpack.c.bf16 %v144, %v144
  %v183 = vpack.c.bf16 %v147, %v147
  %v184 = vpack.c.bf16 %v149, %v149
  %v185 = vpack.c.bf16 %v152, %v152
  %v186 = vpack.c.bf16 %v154, %v154
  %v187 = vpack.c.bf16 %v157, %v157
  %v188 = vpack.c.bf16 %v159, %v159
  %v189 = vpack.c.bf16 %v162, %v162
  %v190 = vpack.c.bf16 %v164, %v164
  %v191 = vpack.c.bf16 %v167, %v167
  %v192 = vpack.c.bf16 %v169, %v169
  %v193 = vpack.c.bf16 %v172, %v172
  %v194 = vpack.c.bf16 %v174, %v174
  %v195 = vpack.c.bf16 %v177, %v177
  %v196 = vpack.c.bf16 %v179, %v179
  %197 = vst [vmem:[%s3] sm:$0xf] %v181
  %198 = vst [vmem:[%s3 + $0x4] sm:$0xf] %v182
  %199 = vst [vmem:[%s3 + $0x8] sm:$0xf] %v183
  %200 = vst [vmem:[%s3 + $0xc] sm:$0xf] %v184
  %201 = vst [vmem:[%s3 + $0x10] sm:$0xf] %v185
  %202 = vst [vmem:[%s3 + $0x14] sm:$0xf] %v186
  %203 = vst [vmem:[%s3 + $0x18] sm:$0xf] %v187
  %204 = vst [vmem:[%s3 + $0x1c] sm:$0xf] %v188
  %205 = vst [vmem:[%s3 + $0x20] sm:$0xf] %v189
  %206 = vst [vmem:[%s3 + $0x24] sm:$0xf] %v190
  %207 = vst [vmem:[%s3 + $0x28] sm:$0xf] %v191
  %208 = vst [vmem:[%s3 + $0x2c] sm:$0xf] %v192
  %209 = vst [vmem:[%s3 + $0x30] sm:$0xf] %v193
  %210 = vst [vmem:[%s3 + $0x34] sm:$0xf] %v194
  %211 = vst [vmem:[%s3 + $0x38] sm:$0xf] %v195
  %212 = vst [vmem:[%s3 + $0x3c] sm:$0xf] %v196
  // Predicated region
  $region14: #{csp_lsn_forward.9} parent=0 // pred_check
    _
  $region15: #{csp_lsn_forward.9} parent=0 // pred_check_branch
    %214 = sbr.rel (0) target = $region17
  $region16: #{csp_lsn_forward.9} parent=0 // pred_region
    _
  $region17: #{csp_lsn_forward.9} parent=0 // pred_fallthru
    _
  // Predicated region
  $region18: #{csp_lsn_forward.9} parent=0 // pred_check
    _
  $region19: #{csp_lsn_forward.9} parent=0 // pred_check_branch
    %216 = sbr.rel (0) target = $region21
  $region20: #{csp_lsn_forward.9} parent=0 // pred_region
    _
  $region21: #{csp_lsn_forward.9} parent=0 // pred_fallthru
    _

// kernel: csp_lsn_forward.8
$region0: #{csp_lsn_forward.8}
  #allocation0 [shape = 'u32[]', space=smem, size = 0x4, offset = 0x4, fixed_abs, tag = 'smem constant byte address 0x4 - core index']
  #allocation1 [shape = 'u32[72,128]{1,0:T(1,128)}', space=vmem, size = 0x9000, scoped, tag = 'internal scratch']
  %s0 = inlined_call_operand.vmem [shape: bf16[512,32], index: 0, kind: input, shape index: {}]
  %s1 = inlined_call_operand.vmem [shape: bf16[32,128], index: 1, kind: input, shape index: {}]
  %s2 = inlined_call_operand.vmem [shape: f32[1,128], index: 2, kind: input, shape index: {}]
  %s3 = inlined_call_operand.vmem [shape: bf16[512,128], index: 3, kind: output, shape index: {}]
  %s4 = sld [smem:[#allocation0]]
  $region45: #{csp_lsn_forward.8} parent=0
    _
  %s6 = ssub.s32 1, %s4
  %s7 = scalar_select 0, %s6, %s4
  loop: start=0, step=1, limit=4
  $region2: #{csp_lsn_forward.8} parent=0 // loop_pre_header
    _
  $region3: #{csp_lsn_forward.8} parent=0 // loop_header
    %s9 = sphi 0, %s13
    %p10 = scmp.ge.s32.totalorder %s9, 4
    %s19 = sphi 0, %s21
    %s22 = sphi 0, %s19
    %s23 = sphi 0, %s22
    %s39 = sphi 0, %s23
    %s43 = sphi 0, %s43
    %s45 = sphi 0, %s43
    %s46 = sphi 0, %s45
    %s60 = sphi 0, %s46
    %s64 = sphi 0, %s64
    %s66 = sphi 0, %s64
    %s67 = sphi 0, %s66
    %s81 = sphi 0, %s67
    %s87 = sphi 0, %s89
    %s90 = sphi 0, %s87
    %s91 = sphi 0, %s90
    %s107 = sphi 0, %s91
  $region4: #{csp_lsn_forward.8} parent=0 // loop_header_branch
    %12 = sbr.rel (%p10) target = $region8
  $region5: #{csp_lsn_forward.8} parent=0 // loop_body
    %s14 = ssub.s32 %s9, 1
    %s15 = ssub.s32 %s9, 2
    %s16 = sadd.s32 %s9, 1
    %s17 = ssub.s32 %s9, %s16
    %p18 = scmp.eq.s32.totalorder %s17, 0
    %s20 = sadd.s32 %s19, 1
    %s21 = scalar_select %p18, %s19, %s20
    %p24 = pneg %p18
    %p25 = scmp.eq.s32.totalorder %s9, 1
    %p26 = por %p24, %p25
    %p27 = scmp.ne.s32.totalorder %s19, %s22
    %p28 = scmp.eq.s32.totalorder %s9, 0
    %p29 = por %p27, %p28
    %p30 = scmp.ne.s32.totalorder %s19, %s22
    %p31 = scmp.eq.s32.totalorder %s14, 1
    %p32 = por %p30, %p31
    %p33 = scmp.ne.s32.totalorder %s22, %s23
    %p34 = scmp.eq.s32.totalorder %s14, 0
    %p35 = por %p33, %p34
    %p36 = scmp.ne.s32.totalorder %s22, %s23
    %p37 = scmp.eq.s32.totalorder %s15, 1
    %p38 = por %p36, %p37
    %p40 = scmp.ne.s32.totalorder %s23, %s39
    %p41 = scmp.eq.s32.totalorder %s15, 0
    %p42 = por %p40, %p41
    %s44 = sadd.s32 %s43, 1
    %p47 = scmp.eq.s32.totalorder %s9, 1
    %p48 = scmp.ne.s32.totalorder %s43, %s45
    %p49 = scmp.eq.s32.totalorder %s9, 0
    %p50 = por %p48, %p49
    %p51 = scmp.ne.s32.totalorder %s43, %s45
    %p52 = scmp.eq.s32.totalorder %s14, 1
    %p53 = por %p51, %p52
    %p54 = scmp.ne.s32.totalorder %s45, %s46
    %p55 = scmp.eq.s32.totalorder %s14, 0
    %p56 = por %p54, %p55
    %p57 = scmp.ne.s32.totalorder %s45, %s46
    %p58 = scmp.eq.s32.totalorder %s15, 1
    %p59 = por %p57, %p58
    %p61 = scmp.ne.s32.totalorder %s46, %s60
    %p62 = scmp.eq.s32.totalorder %s15, 0
    %p63 = por %p61, %p62
    %s65 = sadd.s32 %s64, 1
    %p68 = scmp.eq.s32.totalorder %s9, 1
    %p69 = scmp.ne.s32.totalorder %s64, %s66
    %p70 = scmp.eq.s32.totalorder %s9, 0
    %p71 = por %p69, %p70
    %p72 = scmp.ne.s32.totalorder %s64, %s66
    %p73 = scmp.eq.s32.totalorder %s14, 1
    %p74 = por %p72, %p73
    %p75 = scmp.ne.s32.totalorder %s66, %s67
    %p76 = scmp.eq.s32.totalorder %s14, 0
    %p77 = por %p75, %p76
    %p78 = scmp.ne.s32.totalorder %s66, %s67
    %p79 = scmp.eq.s32.totalorder %s15, 1
    %p80 = por %p78, %p79
    %p82 = scmp.ne.s32.totalorder %s67, %s81
    %p83 = scmp.eq.s32.totalorder %s15, 0
    %p84 = por %p82, %p83
    %s85 = ssub.s32 %s9, %s16
    %p86 = scmp.eq.s32.totalorder %s85, 0
    %s88 = sadd.s32 %s87, 1
    %s89 = scalar_select %p86, %s87, %s88
    %p92 = pneg %p86
    %p93 = scmp.eq.s32.totalorder %s9, 1
    %p94 = por %p92, %p93
    %p95 = scmp.ne.s32.totalorder %s87, %s90
    %p96 = scmp.eq.s32.totalorder %s9, 0
    %p97 = por %p95, %p96
    %p98 = scmp.ne.s32.totalorder %s87, %s90
    %p99 = scmp.eq.s32.totalorder %s14, 1
    %p100 = por %p98, %p99
    %p101 = scmp.ne.s32.totalorder %s90, %s91
    %p102 = scmp.eq.s32.totalorder %s14, 0
    %p103 = por %p101, %p102
    %p104 = scmp.ne.s32.totalorder %s90, %s91
    %p105 = scmp.eq.s32.totalorder %s15, 1
    %p106 = por %p104, %p105
    %p108 = scmp.ne.s32.totalorder %s91, %s107
    %p109 = scmp.eq.s32.totalorder %s15, 0
    %p110 = por %p108, %p109
    %p111 = scmp.le.s32.totalorder 1, %s9
    %p112 = scmp.lt.s32.totalorder %s9, 3
    %p113 = pnand %p111, %p112
    %p114 = pneg %p113
    // Predicated region
    $region9: #{csp_lsn_forward.8} parent=5 // pred_check
      _
    $region10: #{csp_lsn_forward.8} parent=5 // pred_check_branch
      %116 = sbr.rel (%p113) target = $region12
    $region11: #{csp_lsn_forward.8} parent=5 // pred_region
      %s117 = ssub.s32 %s9, 1
      // Predicated region
      $region13: #{csp_lsn_forward.8} parent=11 // pred_check
        %p118 = pneg %p56
      $region14: #{csp_lsn_forward.8} parent=11 // pred_check_branch
        %120 = sbr.rel (%p118) target = $region16
      $region15: #{csp_lsn_forward.8} parent=11 // pred_region
        _
      $region16: #{csp_lsn_forward.8} parent=11 // pred_fallthru
        _
      // Predicated region
      $region17: #{csp_lsn_forward.8} parent=11 // pred_check
        %p121 = pneg %p77
      $region18: #{csp_lsn_forward.8} parent=11 // pred_check_branch
        %123 = sbr.rel (%p121) target = $region20
      $region19: #{csp_lsn_forward.8} parent=11 // pred_region
        _
      $region20: #{csp_lsn_forward.8} parent=11 // pred_fallthru
        _
    $region12: #{csp_lsn_forward.8} parent=5 // pred_fallthru
      _
    %p124 = scmp.lt.s32.totalorder %s9, 2
    // Predicated region
    $region21: #{csp_lsn_forward.8} parent=5 // pred_check
      %p125 = pneg %p124
    $region22: #{csp_lsn_forward.8} parent=5 // pred_check_branch
      %127 = sbr.rel (%p125) target = $region24
    $region23: #{csp_lsn_forward.8} parent=5 // pred_region
      // Predicated region
      $region25: #{csp_lsn_forward.8} parent=23 // pred_check
        %p128 = pneg %p29
      $region26: #{csp_lsn_forward.8} parent=23 // pred_check_branch
        %130 = sbr.rel (%p128) target = $region28
      $region27: #{csp_lsn_forward.8} parent=23 // pred_region
        %s131 = smul.u32 32, %s9
        %p132 = scmp.lt.s32.totalorder %s131, 63
        %s133 = scalar_select %p132, %s131, 63
        %s134 = smul.addr %s133, 4
        %s135 = scalar_lea.vmem %s0, %s134
        %s136 = smul.u32 32, %s9
      $region28: #{csp_lsn_forward.8} parent=23 // pred_fallthru
        _
    $region24: #{csp_lsn_forward.8} parent=5 // pred_fallthru
      _
    %p137 = scmp.le.s32.totalorder 1, %s9
    %p138 = scmp.lt.s32.totalorder %s9, 3
    %p139 = pnand %p137, %p138
    %p140 = pneg %p139
    // Predicated region
    $region29: #{csp_lsn_forward.8} parent=5 // pred_check
      _
    $region30: #{csp_lsn_forward.8} parent=5 // pred_check_branch
      %142 = sbr.rel (%p139) target = $region32
    $region31: #{csp_lsn_forward.8} parent=5 // pred_region
      %s143 = ssub.s32 %s9, 1
      %s144 = smul.u32 32, %s14
      %p145 = scmp.lt.s32.totalorder %s144, 63
      %s146 = scalar_select %p145, %s144, 63
      %s147 = smul.addr %s146, 4
      %s148 = scalar_lea.vmem %s0, %s147
      %p149 = pneg %p35
      %p150 = pneg %p32
      %p151 = pneg %p56
      %p152 = pneg %p53
      %p153 = pneg %p77
      %p154 = pneg %p74
      %p155 = pneg %p103
      %p156 = pneg %p100
      %s157 = smul.u32 32, %s14
      %p158 = scmp.lt.s32.totalorder %s157, 63
      %s159 = scalar_select %p158, %s157, 63
      %s160 = smul.addr %s159, 4
      %s161 = scalar_lea.vmem %s3, %s160
      %s162 = smul.u32 32, %s14
      %p163 = scmp.lt.s32.totalorder %s162, 63
      %s164 = scalar_select %p163, %s162, 63
      %s165 = smul.addr %s164, 4
      %s166 = scalar_lea.vmem %s0, %s165
      %s167 = smul.u32 32, %s14
      %s168 = smul.u32 32, %s14
      %p169 = scmp.lt.s32.totalorder %s168, 63
      %s170 = scalar_select %p169, %s168, 63
      %s171 = smul.addr %s170, 4
      %s172 = scalar_lea.vmem %s3, %s171
      %s173 = smul.u32 32, %s14
      %v175 = vld [vmem:[%s166] sm:$0xf]
      %v176 = vld [vmem:[%s166 + $0x4] sm:$0xf]
      %v177 = vld [vmem:[%s166 + $0x8] sm:$0xf]
      %v178 = vld [vmem:[%s166 + $0xc] sm:$0xf]
      %v179 = vld [vmem:[%s166 + $0x10] sm:$0xf]
      %v180 = vld [vmem:[%s166 + $0x14] sm:$0xf]
      %v181 = vld [vmem:[%s166 + $0x18] sm:$0xf]
      %v182 = vld [vmem:[%s166 + $0x1c] sm:$0xf]
      %v183 = vld [vmem:[%s166 + $0x20] sm:$0xf]
      %v184 = vld [vmem:[%s166 + $0x24] sm:$0xf]
      %v185 = vld [vmem:[%s166 + $0x28] sm:$0xf]
      %v186 = vld [vmem:[%s166 + $0x2c] sm:$0xf]
      %v187 = vld [vmem:[%s166 + $0x30] sm:$0xf]
      %v188 = vld [vmem:[%s166 + $0x34] sm:$0xf]
      %v189 = vld [vmem:[%s166 + $0x38] sm:$0xf]
      %v190 = vld [vmem:[%s166 + $0x3c] sm:$0xf]
      %v191 = vld [vmem:[%s166 + $0x40] sm:$0xf]
      %v192 = vld [vmem:[%s166 + $0x44] sm:$0xf]
      %v193 = vld [vmem:[%s166 + $0x48] sm:$0xf]
      %v194 = vld [vmem:[%s166 + $0x4c] sm:$0xf]
      %v195 = vld [vmem:[%s166 + $0x50] sm:$0xf]
      %v196 = vld [vmem:[%s166 + $0x54] sm:$0xf]
      %v197 = vld [vmem:[%s166 + $0x58] sm:$0xf]
      %v198 = vld [vmem:[%s166 + $0x5c] sm:$0xf]
      %v199 = vld [vmem:[%s166 + $0x60] sm:$0xf]
      %v200 = vld [vmem:[%s166 + $0x64] sm:$0xf]
      %v201 = vld [vmem:[%s166 + $0x68] sm:$0xf]
      %v202 = vld [vmem:[%s166 + $0x6c] sm:$0xf]
      %v203 = vld [vmem:[%s166 + $0x70] sm:$0xf]
      %v204 = vld [vmem:[%s166 + $0x74] sm:$0xf]
      %v205 = vld [vmem:[%s166 + $0x78] sm:$0xf]
      %v206 = vld [vmem:[%s166 + $0x7c] sm:$0xf]
      %v207 = vld [vmem:[%s1] sm:$0xf]
      %v208 = vld [vmem:[%s1 + $0x4] sm:$0xf]
      %v209 = vld [vmem:[%s1 + $0x8] sm:$0xf]
      %v210 = vld [vmem:[%s1 + $0xc] sm:$0xf]
      %v211 = vld [vmem:[%s2] sm:$0x1]
      %v213 = vperm.slane %v211, 0
      %v247 = vunpack.c.l.b16 %v175
      %v248 = vunpack.c.l.b16 %v176
      %v249 = vunpack.c.l.b16 %v177
      %v250 = vunpack.c.l.b16 %v178
      %v251 = vunpack.c.l.b16 %v179
      %v252 = vunpack.c.l.b16 %v180
      %v253 = vunpack.c.l.b16 %v181
      %v254 = vunpack.c.l.b16 %v182
      %v255 = vunpack.c.l.b16 %v183
      %v256 = vunpack.c.l.b16 %v184
      %v257 = vunpack.c.l.b16 %v185
      %v258 = vunpack.c.l.b16 %v186
      %v259 = vunpack.c.l.b16 %v187
      %v260 = vunpack.c.l.b16 %v188
      %v261 = vunpack.c.l.b16 %v189
      %v262 = vunpack.c.l.b16 %v190
      %v263 = vunpack.c.l.b16 %v191
      %v264 = vunpack.c.l.b16 %v192
      %v265 = vunpack.c.l.b16 %v193
      %v266 = vunpack.c.l.b16 %v194
      %v267 = vunpack.c.l.b16 %v195
      %v268 = vunpack.c.l.b16 %v196
      %v269 = vunpack.c.l.b16 %v197
      %v270 = vunpack.c.l.b16 %v198
      %v271 = vunpack.c.l.b16 %v199
      %v272 = vunpack.c.l.b16 %v200
      %v273 = vunpack.c.l.b16 %v201
      %v274 = vunpack.c.l.b16 %v202
      %v275 = vunpack.c.l.b16 %v203
      %v276 = vunpack.c.l.b16 %v204
      %v277 = vunpack.c.l.b16 %v205
      %v278 = vunpack.c.l.b16 %v206
      %v279 = vpack.c.b16 %v248, %v247
      %v280 = vpack.c.b16 %v250, %v249
      %v281 = vpack.c.b16 %v252, %v251
      %v282 = vpack.c.b16 %v254, %v253
      %v283 = vpack.c.b16 %v256, %v255
      %v284 = vpack.c.b16 %v258, %v257
      %v285 = vpack.c.b16 %v260, %v259
      %v286 = vpack.c.b16 %v262, %v261
      %v287 = vpack.c.b16 %v264, %v263
      %v288 = vpack.c.b16 %v266, %v265
      %v289 = vpack.c.b16 %v268, %v267
      %v290 = vpack.c.b16 %v270, %v269
      %v291 = vpack.c.b16 %v272, %v271
      %v292 = vpack.c.b16 %v274, %v273
      %v293 = vpack.c.b16 %v276, %v275
      %v294 = vpack.c.b16 %v278, %v277
      %v299 = vunpack.c.l.b16 %v207
      %v300 = vunpack.c.l.b16 %v208
      %v301 = vunpack.c.l.b16 %v209
      %v302 = vunpack.c.l.b16 %v210
      %v303 = vpack.c.b16 %v300, %v299
      %v304 = vpack.c.b16 %v302, %v301
      %vm307 = vcmask 261120
      %v309 = vsel %vm307, %v279, 0
      %v312 = vsel %vm307, %v280, 0
      %v315 = vsel %vm307, %v281, 0
      %v318 = vsel %vm307, %v282, 0
      %v321 = vsel %vm307, %v283, 0
      %v324 = vsel %vm307, %v284, 0
      %v327 = vsel %vm307, %v285, 0
      %v330 = vsel %vm307, %v286, 0
      %v333 = vsel %vm307, %v287, 0
      %v336 = vsel %vm307, %v288, 0
      %v339 = vsel %vm307, %v289, 0
      %v342 = vsel %vm307, %v290, 0
      %v345 = vsel %vm307, %v291, 0
      %v348 = vsel %vm307, %v292, 0
      %v351 = vsel %vm307, %v293, 0
      %v354 = vsel %vm307, %v294, 0
      %356 = vmatpush.bf16.msra.mxu0 0
      %357 = vmatpush.bf16.msra.mxu0 0
      %358 = vmatpush.bf16.msra.mxu0 0
      %359 = vmatpush.bf16.msra.mxu0 0
      %360 = vmatpush.bf16.msra.mxu0 0
      %361 = vmatpush.bf16.msra.mxu0 0
      %362 = vmatpush.bf16.msra.mxu0 %v304
      %363 = vmatpush.bf16.msra.mxu0 %v303
      %364 = vmatmul.bf16.gmra.mxu0 %v309
      %v365 = vpop.f32.mrf.mxu0
      %v366 = vadd.f32 %v213, %v365
      %v367 = vpop.f32.mrf.mxu0
      %v368 = vadd.f32 %v213, %v367
      %369 = vmatmul.bf16.gmra.mxu0 %v312
      %v370 = vpop.f32.mrf.mxu0
      %v371 = vadd.f32 %v213, %v370
      %v372 = vpop.f32.mrf.mxu0
      %v373 = vadd.f32 %v213, %v372
      %374 = vmatmul.bf16.gmra.mxu0 %v315
      %v375 = vpop.f32.mrf.mxu0
      %v376 = vadd.f32 %v213, %v375
      %v377 = vpop.f32.mrf.mxu0
      %v378 = vadd.f32 %v213, %v377
      %379 = vmatmul.bf16.gmra.mxu0 %v318
      %v380 = vpop.f32.mrf.mxu0
      %v381 = vadd.f32 %v213, %v380
      %v382 = vpop.f32.mrf.mxu0
      %v383 = vadd.f32 %v213, %v382
      %384 = vmatmul.bf16.gmra.mxu0 %v321
      %v385 = vpop.f32.mrf.mxu0
      %v386 = vadd.f32 %v213, %v385
      %v387 = vpop.f32.mrf.mxu0
      %v388 = vadd.f32 %v213, %v387
      %389 = vmatmul.bf16.gmra.mxu0 %v324
      %v390 = vpop.f32.mrf.mxu0
      %v391 = vadd.f32 %v213, %v390
      %v392 = vpop.f32.mrf.mxu0
      %v393 = vadd.f32 %v213, %v392
      %394 = vmatmul.bf16.gmra.mxu0 %v327
      %v395 = vpop.f32.mrf.mxu0
      %v396 = vadd.f32 %v213, %v395
      %v397 = vpop.f32.mrf.mxu0
      %v398 = vadd.f32 %v213, %v397
      %399 = vmatmul.bf16.gmra.mxu0 %v330
      %v400 = vpop.f32.mrf.mxu0
      %v401 = vadd.f32 %v213, %v400
      %v402 = vpop.f32.mrf.mxu0
      %v403 = vadd.f32 %v213, %v402
      %404 = vmatmul.bf16.gmra.mxu0 %v333
      %v405 = vpop.f32.mrf.mxu0
      %v406 = vadd.f32 %v213, %v405
      %v407 = vpop.f32.mrf.mxu0
      %v408 = vadd.f32 %v213, %v407
      %409 = vmatmul.bf16.gmra.mxu0 %v336
      %v410 = vpop.f32.mrf.mxu0
      %v411 = vadd.f32 %v213, %v410
      %v412 = vpop.f32.mrf.mxu0
      %v413 = vadd.f32 %v213, %v412
      %414 = vmatmul.bf16.gmra.mxu0 %v339
      %v415 = vpop.f32.mrf.mxu0
      %v416 = vadd.f32 %v213, %v415
      %v417 = vpop.f32.mrf.mxu0
      %v418 = vadd.f32 %v213, %v417
      %419 = vmatmul.bf16.gmra.mxu0 %v342
      %v420 = vpop.f32.mrf.mxu0
      %v421 = vadd.f32 %v213, %v420
      %v422 = vpop.f32.mrf.mxu0
      %v423 = vadd.f32 %v213, %v422
      %424 = vmatmul.bf16.gmra.mxu0 %v345
      %v425 = vpop.f32.mrf.mxu0
      %v426 = vadd.f32 %v213, %v425
      %v427 = vpop.f32.mrf.mxu0
      %v428 = vadd.f32 %v213, %v427
      %429 = vmatmul.bf16.gmra.mxu0 %v348
      %v430 = vpop.f32.mrf.mxu0
      %v431 = vadd.f32 %v213, %v430
      %v432 = vpop.f32.mrf.mxu0
      %v433 = vadd.f32 %v213, %v432
      %434 = vmatmul.bf16.gmra.mxu0 %v351
      %v435 = vpop.f32.mrf.mxu0
      %v436 = vadd.f32 %v213, %v435
      %v437 = vpop.f32.mrf.mxu0
      %v438 = vadd.f32 %v213, %v437
      %439 = vmatmul.bf16.gmra.mxu0 %v354
      %v440 = vpop.f32.mrf.mxu0
      %v441 = vadd.f32 %v213, %v440
      %v442 = vpop.f32.mrf.mxu0
      %v443 = vadd.f32 %v213, %v442
      %444 = vdwg.mxu0
      %v445 = vpack.c.bf16 %v366, %v366
      %v446 = vpack.c.bf16 %v368, %v368
      %v447 = vpack.c.bf16 %v371, %v371
      %v448 = vpack.c.bf16 %v373, %v373
      %v449 = vpack.c.bf16 %v376, %v376
      %v450 = vpack.c.bf16 %v378, %v378
      %v451 = vpack.c.bf16 %v381, %v381
      %v452 = vpack.c.bf16 %v383, %v383
      %v453 = vpack.c.bf16 %v386, %v386
      %v454 = vpack.c.bf16 %v388, %v388
      %v455 = vpack.c.bf16 %v391, %v391
      %v456 = vpack.c.bf16 %v393, %v393
      %v457 = vpack.c.bf16 %v396, %v396
      %v458 = vpack.c.bf16 %v398, %v398
      %v459 = vpack.c.bf16 %v401, %v401
      %v460 = vpack.c.bf16 %v403, %v403
      %v461 = vpack.c.bf16 %v406, %v406
      %v462 = vpack.c.bf16 %v408, %v408
      %v463 = vpack.c.bf16 %v411, %v411
      %v464 = vpack.c.bf16 %v413, %v413
      %v465 = vpack.c.bf16 %v416, %v416
      %v466 = vpack.c.bf16 %v418, %v418
      %v467 = vpack.c.bf16 %v421, %v421
      %v468 = vpack.c.bf16 %v423, %v423
      %v469 = vpack.c.bf16 %v426, %v426
      %v470 = vpack.c.bf16 %v428, %v428
      %v471 = vpack.c.bf16 %v431, %v431
      %v472 = vpack.c.bf16 %v433, %v433
      %v473 = vpack.c.bf16 %v436, %v436
      %v474 = vpack.c.bf16 %v438, %v438
      %v475 = vpack.c.bf16 %v441, %v441
      %v476 = vpack.c.bf16 %v443, %v443
      %477 = vst [vmem:[%s172] sm:$0xf] %v445
      %478 = vst [vmem:[%s172 + $0x4] sm:$0xf] %v446
      %479 = vst [vmem:[%s172 + $0x8] sm:$0xf] %v447
      %480 = vst [vmem:[%s172 + $0xc] sm:$0xf] %v448
      %481 = vst [vmem:[%s172 + $0x10] sm:$0xf] %v449
      %482 = vst [vmem:[%s172 + $0x14] sm:$0xf] %v450
      %483 = vst [vmem:[%s172 + $0x18] sm:$0xf] %v451
      %484 = vst [vmem:[%s172 + $0x1c] sm:$0xf] %v452
      %485 = vst [vmem:[%s172 + $0x20] sm:$0xf] %v453
      %486 = vst [vmem:[%s172 + $0x24] sm:$0xf] %v454
      %487 = vst [vmem:[%s172 + $0x28] sm:$0xf] %v455
      %488 = vst [vmem:[%s172 + $0x2c] sm:$0xf] %v456
      %489 = vst [vmem:[%s172 + $0x30] sm:$0xf] %v457
      %490 = vst [vmem:[%s172 + $0x34] sm:$0xf] %v458
      %491 = vst [vmem:[%s172 + $0x38] sm:$0xf] %v459
      %492 = vst [vmem:[%s172 + $0x3c] sm:$0xf] %v460
      %493 = vst [vmem:[%s172 + $0x40] sm:$0xf] %v461
      %494 = vst [vmem:[%s172 + $0x44] sm:$0xf] %v462
      %495 = vst [vmem:[%s172 + $0x48] sm:$0xf] %v463
      %496 = vst [vmem:[%s172 + $0x4c] sm:$0xf] %v464
      %497 = vst [vmem:[%s172 + $0x50] sm:$0xf] %v465
      %498 = vst [vmem:[%s172 + $0x54] sm:$0xf] %v466
      %499 = vst [vmem:[%s172 + $0x58] sm:$0xf] %v467
      %500 = vst [vmem:[%s172 + $0x5c] sm:$0xf] %v468
      %501 = vst [vmem:[%s172 + $0x60] sm:$0xf] %v469
      %502 = vst [vmem:[%s172 + $0x64] sm:$0xf] %v470
      %503 = vst [vmem:[%s172 + $0x68] sm:$0xf] %v471
      %504 = vst [vmem:[%s172 + $0x6c] sm:$0xf] %v472
      %505 = vst [vmem:[%s172 + $0x70] sm:$0xf] %v473
      %506 = vst [vmem:[%s172 + $0x74] sm:$0xf] %v474
      %507 = vst [vmem:[%s172 + $0x78] sm:$0xf] %v475
      %508 = vst [vmem:[%s172 + $0x7c] sm:$0xf] %v476
      %s509 = smul.u32 32, %s14
      %p510 = scmp.lt.s32.totalorder %s509, 63
      %s511 = scalar_select %p510, %s509, 63
      %s512 = smul.addr %s511, 4
      %s513 = scalar_lea.vmem %s3, %s512
      // Predicated region
      $region33: #{csp_lsn_forward.8} parent=31 // pred_check
        %p514 = pneg %p100
      $region34: #{csp_lsn_forward.8} parent=31 // pred_check_branch
        %516 = sbr.rel (%p514) target = $region36
      $region35: #{csp_lsn_forward.8} parent=31 // pred_region
        %s517 = smul.u32 32, %s14
      $region36: #{csp_lsn_forward.8} parent=31 // pred_fallthru
        _
    $region32: #{csp_lsn_forward.8} parent=5 // pred_fallthru
      _
    %p518 = scmp.le.s32.totalorder 2, %s9
    // Predicated region
    $region37: #{csp_lsn_forward.8} parent=5 // pred_check
      %p519 = pneg %p518
    $region38: #{csp_lsn_forward.8} parent=5 // pred_check_branch
      %521 = sbr.rel (%p519) target = $region40
    $region39: #{csp_lsn_forward.8} parent=5 // pred_region
      %s522 = ssub.s32 %s9, 2
      // Predicated region
      $region41: #{csp_lsn_forward.8} parent=39 // pred_check
        %p523 = pneg %p106
      $region42: #{csp_lsn_forward.8} parent=39 // pred_check_branch
        %525 = sbr.rel (%p523) target = $region44
      $region43: #{csp_lsn_forward.8} parent=39 // pred_region
        %s526 = smul.u32 32, %s15
        %p527 = scmp.lt.s32.totalorder %s526, 63
        %s528 = scalar_select %p527, %s526, 63
        %s529 = smul.addr %s528, 4
        %s530 = scalar_lea.vmem %s3, %s529
      $region44: #{csp_lsn_forward.8} parent=39 // pred_fallthru
        _
    $region40: #{csp_lsn_forward.8} parent=5 // pred_fallthru
      _
  $region6: #{csp_lsn_forward.8} parent=0 // loop_footer
    %s13 = sadd.s32 1, %s9
  $region7: #{csp_lsn_forward.8} parent=0 // loop_footer_branch
    %8 = sbr.rel target = $region3
  $region8: #{csp_lsn_forward.8} parent=0 // loop_exit
    _

// kernel: csp_lsn_forward.10
$region0: #{csp_lsn_forward.10}
  #allocation0 [shape = 'u32[]', space=smem, size = 0x4, offset = 0x4, fixed_abs, tag = 'smem constant byte address 0x4 - core index']
  #allocation1 [shape = 'u32[72,128]{1,0:T(1,128)}', space=vmem, size = 0x9000, scoped, tag = 'internal scratch']
  #allocation2 [shape = 'bf16[48,128]{1,0:T(8,128)(2,1)}', space=vmem, size = 0x3000, scoped, tag = 'scratch operand']
  %s0 = inlined_call_operand.vmem [shape: bf16[1,16,1024], index: 0, kind: input, shape index: {}]
  %s1 = inlined_call_operand.vmem [shape: bf16[1,16,1024], index: 1, kind: input, shape index: {}]
  %s2 = inlined_call_operand.vmem [shape: bf16[1024,128], index: 2, kind: input, shape index: {}]
  %s3 = inlined_call_operand.vmem [shape: f32[1,128], index: 3, kind: input, shape index: {}]
  %s4 = inlined_call_operand.vmem [shape: bf16[15,128,128], index: 4, kind: input, shape index: {}]
  %s5 = inlined_call_operand.vmem [shape: f32[1,128], index: 5, kind: input, shape index: {}]
  %s6 = inlined_call_operand.vmem [shape: f32[32,16], index: 6, kind: input, shape index: {}]
  %s7 = inlined_call_operand.vmem [shape: f32[128,256], index: 7, kind: input, shape index: {}]
  %s8 = inlined_call_operand.vmem [shape: f32[1,32,256], index: 8, kind: output, shape index: {}]
  %s9 = sld [smem:[#allocation0]]
  $region42: #{csp_lsn_forward.10} parent=0
    _
  %s11 = ssub.s32 1, %s9
  %s12 = scalar_select 0, %s11, %s9
  // Predicated region
  $region2: #{csp_lsn_forward.10} parent=0 // pred_check
    _
  $region3: #{csp_lsn_forward.10} parent=0 // pred_check_branch
    %14 = sbr.rel (0) target = $region5
  $region4: #{csp_lsn_forward.10} parent=0 // pred_region
    _
  $region5: #{csp_lsn_forward.10} parent=0 // pred_fallthru
    _
  // Predicated region
  $region6: #{csp_lsn_forward.10} parent=0 // pred_check
    _
  $region7: #{csp_lsn_forward.10} parent=0 // pred_check_branch
    %16 = sbr.rel (0) target = $region9
  $region8: #{csp_lsn_forward.10} parent=0 // pred_region
    _
  $region9: #{csp_lsn_forward.10} parent=0 // pred_fallthru
    _
  // Predicated region
  $region10: #{csp_lsn_forward.10} parent=0 // pred_check
    _
  $region11: #{csp_lsn_forward.10} parent=0 // pred_check_branch
    %18 = sbr.rel (0) target = $region13
  $region12: #{csp_lsn_forward.10} parent=0 // pred_region
    _
  $region13: #{csp_lsn_forward.10} parent=0 // pred_fallthru
    _
  // Predicated region
  $region14: #{csp_lsn_forward.10} parent=0 // pred_check
    _
  $region15: #{csp_lsn_forward.10} parent=0 // pred_check_branch
    %20 = sbr.rel (0) target = $region17
  $region16: #{csp_lsn_forward.10} parent=0 // pred_region
    _
  $region17: #{csp_lsn_forward.10} parent=0 // pred_fallthru
    _
  // Predicated region
  $region18: #{csp_lsn_forward.10} parent=0 // pred_check
    _
  $region19: #{csp_lsn_forward.10} parent=0 // pred_check_branch
    %22 = sbr.rel (0) target = $region21
  $region20: #{csp_lsn_forward.10} parent=0 // pred_region
    _
  $region21: #{csp_lsn_forward.10} parent=0 // pred_fallthru
    _
  // Predicated region
  $region22: #{csp_lsn_forward.10} parent=0 // pred_check
    _
  $region23: #{csp_lsn_forward.10} parent=0 // pred_check_branch
    %24 = sbr.rel (0) target = $region25
  $region24: #{csp_lsn_forward.10} parent=0 // pred_region
    _
  $region25: #{csp_lsn_forward.10} parent=0 // pred_fallthru
    _
  // Predicated region
  $region26: #{csp_lsn_forward.10} parent=0 // pred_check
    _
  $region27: #{csp_lsn_forward.10} parent=0 // pred_check_branch
    %26 = sbr.rel (0) target = $region29
  $region28: #{csp_lsn_forward.10} parent=0 // pred_region
    _
  $region29: #{csp_lsn_forward.10} parent=0 // pred_fallthru
    _
  // Predicated region
  $region30: #{csp_lsn_forward.10} parent=0 // pred_check
    _
  $region31: #{csp_lsn_forward.10} parent=0 // pred_check_branch
    %28 = sbr.rel (0) target = $region33
  $region32: #{csp_lsn_forward.10} parent=0 // pred_region
    _
  $region33: #{csp_lsn_forward.10} parent=0 // pred_fallthru
    _
  %v30 = vld [vmem:[%s0] sm:$0xff]
  %v31 = vld [vmem:[%s0 + $0x8] sm:$0xff]
  %v32 = vld [vmem:[%s0 + $0x10] sm:$0xff]
  %v33 = vld [vmem:[%s0 + $0x18] sm:$0xff]
  %v34 = vld [vmem:[%s0 + $0x20] sm:$0xff]
  %v35 = vld [vmem:[%s0 + $0x28] sm:$0xff]
  %v36 = vld [vmem:[%s0 + $0x30] sm:$0xff]
  %v37 = vld [vmem:[%s0 + $0x38] sm:$0xff]
  %v38 = vld [vmem:[%s2] sm:$0xf]
  %v39 = vld [vmem:[%s2 + $0x4] sm:$0xf]
  %v40 = vld [vmem:[%s2 + $0x8] sm:$0xf]
  %v41 = vld [vmem:[%s2 + $0xc] sm:$0xf]
  %v42 = vld [vmem:[%s2 + $0x10] sm:$0xf]
  %v43 = vld [vmem:[%s2 + $0x14] sm:$0xf]
  %v44 = vld [vmem:[%s2 + $0x18] sm:$0xf]
  %v45 = vld [vmem:[%s2 + $0x1c] sm:$0xf]
  %v46 = vld [vmem:[%s2 + $0x20] sm:$0xf]
  %v47 = vld [vmem:[%s2 + $0x24] sm:$0xf]
  %v48 = vld [vmem:[%s2 + $0x28] sm:$0xf]
  %v49 = vld [vmem:[%s2 + $0x2c] sm:$0xf]
  %v50 = vld [vmem:[%s2 + $0x30] sm:$0xf]
  %v51 = vld [vmem:[%s2 + $0x34] sm:$0xf]
  %v52 = vld [vmem:[%s2 + $0x38] sm:$0xf]
  %v53 = vld [vmem:[%s2 + $0x3c] sm:$0xf]
  %v54 = vld [vmem:[%s2 + $0x40] sm:$0xf]
  %v55 = vld [vmem:[%s2 + $0x44] sm:$0xf]
  %v56 = vld [vmem:[%s2 + $0x48] sm:$0xf]
  %v57 = vld [vmem:[%s2 + $0x4c] sm:$0xf]
  %v58 = vld [vmem:[%s2 + $0x50] sm:$0xf]
  %v59 = vld [vmem:[%s2 + $0x54] sm:$0xf]
  %v60 = vld [vmem:[%s2 + $0x58] sm:$0xf]
  %v61 = vld [vmem:[%s2 + $0x5c] sm:$0xf]
  %v62 = vld [vmem:[%s2 + $0x60] sm:$0xf]
  %v63 = vld [vmem:[%s2 + $0x64] sm:$0xf]
  %v64 = vld [vmem:[%s2 + $0x68] sm:$0xf]
  %v65 = vld [vmem:[%s2 + $0x6c] sm:$0xf]
  %v66 = vld [vmem:[%s2 + $0x70] sm:$0xf]
  %v67 = vld [vmem:[%s2 + $0x74] sm:$0xf]
  %v68 = vld [vmem:[%s2 + $0x78] sm:$0xf]
  %v69 = vld [vmem:[%s2 + $0x7c] sm:$0xf]
  %v70 = vld [vmem:[%s2 + $0x80] sm:$0xf]
  %v71 = vld [vmem:[%s2 + $0x84] sm:$0xf]
  %v72 = vld [vmem:[%s2 + $0x88] sm:$0xf]
  %v73 = vld [vmem:[%s2 + $0x8c] sm:$0xf]
  %v74 = vld [vmem:[%s2 + $0x90] sm:$0xf]
  %v75 = vld [vmem:[%s2 + $0x94] sm:$0xf]
  %v76 = vld [vmem:[%s2 + $0x98] sm:$0xf]
  %v77 = vld [vmem:[%s2 + $0x9c] sm:$0xf]
  %v78 = vld [vmem:[%s2 + $0xa0] sm:$0xf]
  %v79 = vld [vmem:[%s2 + $0xa4] sm:$0xf]
  %v80 = vld [vmem:[%s2 + $0xa8] sm:$0xf]
  %v81 = vld [vmem:[%s2 + $0xac] sm:$0xf]
  %v82 = vld [vmem:[%s2 + $0xb0] sm:$0xf]
  %v83 = vld [vmem:[%s2 + $0xb4] sm:$0xf]
  %v84 = vld [vmem:[%s2 + $0xb8] sm:$0xf]
  %v85 = vld [vmem:[%s2 + $0xbc] sm:$0xf]
  %v86 = vld [vmem:[%s2 + $0xc0] sm:$0xf]
  %v87 = vld [vmem:[%s2 + $0xc4] sm:$0xf]
  %v88 = vld [vmem:[%s2 + $0xc8] sm:$0xf]
  %v89 = vld [vmem:[%s2 + $0xcc] sm:$0xf]
  %v90 = vld [vmem:[%s2 + $0xd0] sm:$0xf]
  %v91 = vld [vmem:[%s2 + $0xd4] sm:$0xf]
  %v92 = vld [vmem:[%s2 + $0xd8] sm:$0xf]
  %v93 = vld [vmem:[%s2 + $0xdc] sm:$0xf]
  %v94 = vld [vmem:[%s2 + $0xe0] sm:$0xf]
  %v95 = vld [vmem:[%s2 + $0xe4] sm:$0xf]
  %v96 = vld [vmem:[%s2 + $0xe8] sm:$0xf]
  %v97 = vld [vmem:[%s2 + $0xec] sm:$0xf]
  %v98 = vld [vmem:[%s2 + $0xf0] sm:$0xf]
  %v99 = vld [vmem:[%s2 + $0xf4] sm:$0xf]
  %v100 = vld [vmem:[%s2 + $0xf8] sm:$0xf]
  %v101 = vld [vmem:[%s2 + $0xfc] sm:$0xf]
  %v102 = vld [vmem:[%s2 + $0x100] sm:$0xf]
  %v103 = vld [vmem:[%s2 + $0x104] sm:$0xf]
  %v104 = vld [vmem:[%s2 + $0x108] sm:$0xf]
  %v105 = vld [vmem:[%s2 + $0x10c] sm:$0xf]
  %v106 = vld [vmem:[%s2 + $0x110] sm:$0xf]
  %v107 = vld [vmem:[%s2 + $0x114] sm:$0xf]
  %v108 = vld [vmem:[%s2 + $0x118] sm:$0xf]
  %v109 = vld [vmem:[%s2 + $0x11c] sm:$0xf]
  %v110 = vld [vmem:[%s2 + $0x120] sm:$0xf]
  %v111 = vld [vmem:[%s2 + $0x124] sm:$0xf]
  %v112 = vld [vmem:[%s2 + $0x128] sm:$0xf]
  %v113 = vld [vmem:[%s2 + $0x12c] sm:$0xf]
  %v114 = vld [vmem:[%s2 + $0x130] sm:$0xf]
  %v115 = vld [vmem:[%s2 + $0x134] sm:$0xf]
  %v116 = vld [vmem:[%s2 + $0x138] sm:$0xf]
  %v117 = vld [vmem:[%s2 + $0x13c] sm:$0xf]
  %v118 = vld [vmem:[%s2 + $0x140] sm:$0xf]
  %v119 = vld [vmem:[%s2 + $0x144] sm:$0xf]
  %v120 = vld [vmem:[%s2 + $0x148] sm:$0xf]
  %v121 = vld [vmem:[%s2 + $0x14c] sm:$0xf]
  %v122 = vld [vmem:[%s2 + $0x150] sm:$0xf]
  %v123 = vld [vmem:[%s2 + $0x154] sm:$0xf]
  %v124 = vld [vmem:[%s2 + $0x158] sm:$0xf]
  %v125 = vld [vmem:[%s2 + $0x15c] sm:$0xf]
  %v126 = vld [vmem:[%s2 + $0x160] sm:$0xf]
  %v127 = vld [vmem:[%s2 + $0x164] sm:$0xf]
  %v128 = vld [vmem:[%s2 + $0x168] sm:$0xf]
  %v129 = vld [vmem:[%s2 + $0x16c] sm:$0xf]
  %v130 = vld [vmem:[%s2 + $0x170] sm:$0xf]
  %v131 = vld [vmem:[%s2 + $0x174] sm:$0xf]
  %v132 = vld [vmem:[%s2 + $0x178] sm:$0xf]
  %v133 = vld [vmem:[%s2 + $0x17c] sm:$0xf]
  %v134 = vld [vmem:[%s2 + $0x180] sm:$0xf]
  %v135 = vld [vmem:[%s2 + $0x184] sm:$0xf]
  %v136 = vld [vmem:[%s2 + $0x188] sm:$0xf]
  %v137 = vld [vmem:[%s2 + $0x18c] sm:$0xf]
  %v138 = vld [vmem:[%s2 + $0x190] sm:$0xf]
  %v139 = vld [vmem:[%s2 + $0x194] sm:$0xf]
  %v140 = vld [vmem:[%s2 + $0x198] sm:$0xf]
  %v141 = vld [vmem:[%s2 + $0x19c] sm:$0xf]
  %v142 = vld [vmem:[%s2 + $0x1a0] sm:$0xf]
  %v143 = vld [vmem:[%s2 + $0x1a4] sm:$0xf]
  %v144 = vld [vmem:[%s2 + $0x1a8] sm:$0xf]
  %v145 = vld [vmem:[%s2 + $0x1ac] sm:$0xf]
  %v146 = vld [vmem:[%s2 + $0x1b0] sm:$0xf]
  %v147 = vld [vmem:[%s2 + $0x1b4] sm:$0xf]
  %v148 = vld [vmem:[%s2 + $0x1b8] sm:$0xf]
  %v149 = vld [vmem:[%s2 + $0x1bc] sm:$0xf]
  %v150 = vld [vmem:[%s2 + $0x1c0] sm:$0xf]
  %v151 = vld [vmem:[%s2 + $0x1c4] sm:$0xf]
  %v152 = vld [vmem:[%s2 + $0x1c8] sm:$0xf]
  %v153 = vld [vmem:[%s2 + $0x1cc] sm:$0xf]
  %v154 = vld [vmem:[%s2 + $0x1d0] sm:$0xf]
  %v155 = vld [vmem:[%s2 + $0x1d4] sm:$0xf]
  %v156 = vld [vmem:[%s2 + $0x1d8] sm:$0xf]
  %v157 = vld [vmem:[%s2 + $0x1dc] sm:$0xf]
  %v158 = vld [vmem:[%s2 + $0x1e0] sm:$0xf]
  %v159 = vld [vmem:[%s2 + $0x1e4] sm:$0xf]
  %v160 = vld [vmem:[%s2 + $0x1e8] sm:$0xf]
  %v161 = vld [vmem:[%s2 + $0x1ec] sm:$0xf]
  %v162 = vld [vmem:[%s2 + $0x1f0] sm:$0xf]
  %v163 = vld [vmem:[%s2 + $0x1f4] sm:$0xf]
  %v164 = vld [vmem:[%s2 + $0x1f8] sm:$0xf]
  %v165 = vld [vmem:[%s2 + $0x1fc] sm:$0xf]
  %v166 = vld [vmem:[%s1] sm:$0xff]
  %v167 = vld [vmem:[%s1 + $0x8] sm:$0xff]
  %v168 = vld [vmem:[%s1 + $0x10] sm:$0xff]
  %v169 = vld [vmem:[%s1 + $0x18] sm:$0xff]
  %v170 = vld [vmem:[%s1 + $0x20] sm:$0xff]
  %v171 = vld [vmem:[%s1 + $0x28] sm:$0xff]
  %v172 = vld [vmem:[%s1 + $0x30] sm:$0xff]
  %v173 = vld [vmem:[%s1 + $0x38] sm:$0xff]
  %v182 = vunpack.c.l.b16 %v166
  %v183 = vunpack.c.h.b16 %v166
  %v184 = vunpack.c.l.b16 %v167
  %v185 = vunpack.c.h.b16 %v167
  %v186 = vunpack.c.l.b16 %v168
  %v187 = vunpack.c.h.b16 %v168
  %v188 = vunpack.c.l.b16 %v169
  %v189 = vunpack.c.h.b16 %v169
  %v190 = vunpack.c.l.b16 %v170
  %v191 = vunpack.c.h.b16 %v170
  %v192 = vunpack.c.l.b16 %v171
  %v193 = vunpack.c.h.b16 %v171
  %v194 = vunpack.c.l.b16 %v172
  %v195 = vunpack.c.h.b16 %v172
  %v196 = vunpack.c.l.b16 %v173
  %v197 = vunpack.c.h.b16 %v173
  %v198 = vpack.c.b16 %v190, %v182
  %v199 = vpack.c.b16 %v191, %v183
  %v200 = vpack.c.b16 %v192, %v184
  %v201 = vpack.c.b16 %v193, %v185
  %v202 = vpack.c.b16 %v194, %v186
  %v203 = vpack.c.b16 %v195, %v187
  %v204 = vpack.c.b16 %v196, %v188
  %v205 = vpack.c.b16 %v197, %v189
  %v342 = vunpack.c.l.b16 %v38
  %v343 = vunpack.c.l.b16 %v39
  %v344 = vunpack.c.l.b16 %v40
  %v345 = vunpack.c.l.b16 %v41
  %v346 = vunpack.c.l.b16 %v42
  %v347 = vunpack.c.l.b16 %v43
  %v348 = vunpack.c.l.b16 %v44
  %v349 = vunpack.c.l.b16 %v45
  %v350 = vunpack.c.l.b16 %v46
  %v351 = vunpack.c.l.b16 %v47
  %v352 = vunpack.c.l.b16 %v48
  %v353 = vunpack.c.l.b16 %v49
  %v354 = vunpack.c.l.b16 %v50
  %v355 = vunpack.c.l.b16 %v51
  %v356 = vunpack.c.l.b16 %v52
  %v357 = vunpack.c.l.b16 %v53
  %v358 = vunpack.c.l.b16 %v54
  %v359 = vunpack.c.l.b16 %v55
  %v360 = vunpack.c.l.b16 %v56
  %v361 = vunpack.c.l.b16 %v57
  %v362 = vunpack.c.l.b16 %v58
  %v363 = vunpack.c.l.b16 %v59
  %v364 = vunpack.c.l.b16 %v60
  %v365 = vunpack.c.l.b16 %v61
  %v366 = vunpack.c.l.b16 %v62
  %v367 = vunpack.c.l.b16 %v63
  %v368 = vunpack.c.l.b16 %v64
  %v369 = vunpack.c.l.b16 %v65
  %v370 = vunpack.c.l.b16 %v66
  %v371 = vunpack.c.l.b16 %v67
  %v372 = vunpack.c.l.b16 %v68
  %v373 = vunpack.c.l.b16 %v69
  %v374 = vunpack.c.l.b16 %v70
  %v375 = vunpack.c.l.b16 %v71
  %v376 = vunpack.c.l.b16 %v72
  %v377 = vunpack.c.l.b16 %v73
  %v378 = vunpack.c.l.b16 %v74
  %v379 = vunpack.c.l.b16 %v75
  %v380 = vunpack.c.l.b16 %v76
  %v381 = vunpack.c.l.b16 %v77
  %v382 = vunpack.c.l.b16 %v78
  %v383 = vunpack.c.l.b16 %v79
  %v384 = vunpack.c.l.b16 %v80
  %v385 = vunpack.c.l.b16 %v81
  %v386 = vunpack.c.l.b16 %v82
  %v387 = vunpack.c.l.b16 %v83
  %v388 = vunpack.c.l.b16 %v84
  %v389 = vunpack.c.l.b16 %v85
  %v390 = vunpack.c.l.b16 %v86
  %v391 = vunpack.c.l.b16 %v87
  %v392 = vunpack.c.l.b16 %v88
  %v393 = vunpack.c.l.b16 %v89
  %v394 = vunpack.c.l.b16 %v90
  %v395 = vunpack.c.l.b16 %v91
  %v396 = vunpack.c.l.b16 %v92
  %v397 = vunpack.c.l.b16 %v93
  %v398 = vunpack.c.l.b16 %v94
  %v399 = vunpack.c.l.b16 %v95
  %v400 = vunpack.c.l.b16 %v96
  %v401 = vunpack.c.l.b16 %v97
  %v402 = vunpack.c.l.b16 %v98
  %v403 = vunpack.c.l.b16 %v99
  %v404 = vunpack.c.l.b16 %v100
  %v405 = vunpack.c.l.b16 %v101
  %v406 = vunpack.c.l.b16 %v102
  %v407 = vunpack.c.l.b16 %v103
  %v408 = vunpack.c.l.b16 %v104
  %v409 = vunpack.c.l.b16 %v105
  %v410 = vunpack.c.l.b16 %v106
  %v411 = vunpack.c.l.b16 %v107
  %v412 = vunpack.c.l.b16 %v108
  %v413 = vunpack.c.l.b16 %v109
  %v414 = vunpack.c.l.b16 %v110
  %v415 = vunpack.c.l.b16 %v111
  %v416 = vunpack.c.l.b16 %v112
  %v417 = vunpack.c.l.b16 %v113
  %v418 = vunpack.c.l.b16 %v114
  %v419 = vunpack.c.l.b16 %v115
  %v420 = vunpack.c.l.b16 %v116
  %v421 = vunpack.c.l.b16 %v117
  %v422 = vunpack.c.l.b16 %v118
  %v423 = vunpack.c.l.b16 %v119
  %v424 = vunpack.c.l.b16 %v120
  %v425 = vunpack.c.l.b16 %v121
  %v426 = vunpack.c.l.b16 %v122
  %v427 = vunpack.c.l.b16 %v123
  %v428 = vunpack.c.l.b16 %v124
  %v429 = vunpack.c.l.b16 %v125
  %v430 = vunpack.c.l.b16 %v126
  %v431 = vunpack.c.l.b16 %v127
  %v432 = vunpack.c.l.b16 %v128
  %v433 = vunpack.c.l.b16 %v129
  %v434 = vunpack.c.l.b16 %v130
  %v435 = vunpack.c.l.b16 %v131
  %v436 = vunpack.c.l.b16 %v132
  %v437 = vunpack.c.l.b16 %v133
  %v438 = vunpack.c.l.b16 %v134
  %v439 = vunpack.c.l.b16 %v135
  %v440 = vunpack.c.l.b16 %v136
  %v441 = vunpack.c.l.b16 %v137
  %v442 = vunpack.c.l.b16 %v138
  %v443 = vunpack.c.l.b16 %v139
  %v444 = vunpack.c.l.b16 %v140
  %v445 = vunpack.c.l.b16 %v141
  %v446 = vunpack.c.l.b16 %v142
  %v447 = vunpack.c.l.b16 %v143
  %v448 = vunpack.c.l.b16 %v144
  %v449 = vunpack.c.l.b16 %v145
  %v450 = vunpack.c.l.b16 %v146
  %v451 = vunpack.c.l.b16 %v147
  %v452 = vunpack.c.l.b16 %v148
  %v453 = vunpack.c.l.b16 %v149
  %v454 = vunpack.c.l.b16 %v150
  %v455 = vunpack.c.l.b16 %v151
  %v456 = vunpack.c.l.b16 %v152
  %v457 = vunpack.c.l.b16 %v153
  %v458 = vunpack.c.l.b16 %v154
  %v459 = vunpack.c.l.b16 %v155
  %v460 = vunpack.c.l.b16 %v156
  %v461 = vunpack.c.l.b16 %v157
  %v462 = vunpack.c.l.b16 %v158
  %v463 = vunpack.c.l.b16 %v159
  %v464 = vunpack.c.l.b16 %v160
  %v465 = vunpack.c.l.b16 %v161
  %v466 = vunpack.c.l.b16 %v162
  %v467 = vunpack.c.l.b16 %v163
  %v468 = vunpack.c.l.b16 %v164
  %v469 = vunpack.c.l.b16 %v165
  %v470 = vpack.c.b16 %v343, %v342
  %v471 = vpack.c.b16 %v345, %v344
  %v472 = vpack.c.b16 %v347, %v346
  %v473 = vpack.c.b16 %v349, %v348
  %v474 = vpack.c.b16 %v351, %v350
  %v475 = vpack.c.b16 %v353, %v352
  %v476 = vpack.c.b16 %v355, %v354
  %v477 = vpack.c.b16 %v357, %v356
  %v478 = vpack.c.b16 %v359, %v358
  %v479 = vpack.c.b16 %v361, %v360
  %v480 = vpack.c.b16 %v363, %v362
  %v481 = vpack.c.b16 %v365, %v364
  %v482 = vpack.c.b16 %v367, %v366
  %v483 = vpack.c.b16 %v369, %v368
  %v484 = vpack.c.b16 %v371, %v370
  %v485 = vpack.c.b16 %v373, %v372
  %v486 = vpack.c.b16 %v375, %v374
  %v487 = vpack.c.b16 %v377, %v376
  %v488 = vpack.c.b16 %v379, %v378
  %v489 = vpack.c.b16 %v381, %v380
  %v490 = vpack.c.b16 %v383, %v382
  %v491 = vpack.c.b16 %v385, %v384
  %v492 = vpack.c.b16 %v387, %v386
  %v493 = vpack.c.b16 %v389, %v388
  %v494 = vpack.c.b16 %v391, %v390
  %v495 = vpack.c.b16 %v393, %v392
  %v496 = vpack.c.b16 %v395, %v394
  %v497 = vpack.c.b16 %v397, %v396
  %v498 = vpack.c.b16 %v399, %v398
  %v499 = vpack.c.b16 %v401, %v400
  %v500 = vpack.c.b16 %v403, %v402
  %v501 = vpack.c.b16 %v405, %v404
  %v502 = vpack.c.b16 %v407, %v406
  %v503 = vpack.c.b16 %v409, %v408
  %v504 = vpack.c.b16 %v411, %v410
  %v505 = vpack.c.b16 %v413, %v412
  %v506 = vpack.c.b16 %v415, %v414
  %v507 = vpack.c.b16 %v417, %v416
  %v508 = vpack.c.b16 %v419, %v418
  %v509 = vpack.c.b16 %v421, %v420
  %v510 = vpack.c.b16 %v423, %v422
  %v511 = vpack.c.b16 %v425, %v424
  %v512 = vpack.c.b16 %v427, %v426
  %v513 = vpack.c.b16 %v429, %v428
  %v514 = vpack.c.b16 %v431, %v430
  %v515 = vpack.c.b16 %v433, %v432
  %v516 = vpack.c.b16 %v435, %v434
  %v517 = vpack.c.b16 %v437, %v436
  %v518 = vpack.c.b16 %v439, %v438
  %v519 = vpack.c.b16 %v441, %v440
  %v520 = vpack.c.b16 %v443, %v442
  %v521 = vpack.c.b16 %v445, %v444
  %v522 = vpack.c.b16 %v447, %v446
  %v523 = vpack.c.b16 %v449, %v448
  %v524 = vpack.c.b16 %v451, %v450
  %v525 = vpack.c.b16 %v453, %v452
  %v526 = vpack.c.b16 %v455, %v454
  %v527 = vpack.c.b16 %v457, %v456
  %v528 = vpack.c.b16 %v459, %v458
  %v529 = vpack.c.b16 %v461, %v460
  %v530 = vpack.c.b16 %v463, %v462
  %v531 = vpack.c.b16 %v465, %v464
  %v532 = vpack.c.b16 %v467, %v466
  %v533 = vpack.c.b16 %v469, %v468
  %598 = vmatpush.bf16.msra.mxu0 %v477
  %599 = vmatpush.bf16.msra.mxu0 %v476
  %600 = vmatpush.bf16.msra.mxu0 %v475
  %601 = vmatpush.bf16.msra.mxu0 %v474
  %602 = vmatpush.bf16.msra.mxu0 %v473
  %603 = vmatpush.bf16.msra.mxu0 %v472
  %604 = vmatpush.bf16.msra.mxu0 %v471
  %605 = vmatpush.bf16.msra.mxu0 %v470
  %606 = vmatmul.bf16.gmra.mxu0 %v198
  %v607 = vpop.f32.mrf.mxu0
  %v608 = vadd.f32 0.0, %v607
  %v609 = vpop.f32.mrf.mxu0
  %v610 = vadd.f32 0.0, %v609
  %611 = vdwg.mxu0
  %612 = vmatpush.bf16.msra.mxu0 %v485
  %613 = vmatpush.bf16.msra.mxu0 %v484
  %614 = vmatpush.bf16.msra.mxu0 %v483
  %615 = vmatpush.bf16.msra.mxu0 %v482
  %616 = vmatpush.bf16.msra.mxu0 %v481
  %617 = vmatpush.bf16.msra.mxu0 %v480
  %618 = vmatpush.bf16.msra.mxu0 %v479
  %619 = vmatpush.bf16.msra.mxu0 %v478
  %620 = vmatmul.bf16.gmra.mxu0 %v199
  %v621 = vpop.f32.mrf.mxu0
  %v622 = vadd.f32 %v608, %v621
  %v623 = vpop.f32.mrf.mxu0
  %v624 = vadd.f32 %v610, %v623
  %625 = vdwg.mxu0
  %626 = vmatpush.bf16.msra.mxu0 %v493
  %627 = vmatpush.bf16.msra.mxu0 %v492
  %628 = vmatpush.bf16.msra.mxu0 %v491
  %629 = vmatpush.bf16.msra.mxu0 %v490
  %630 = vmatpush.bf16.msra.mxu0 %v489
  %631 = vmatpush.bf16.msra.mxu0 %v488
  %632 = vmatpush.bf16.msra.mxu0 %v487
  %633 = vmatpush.bf16.msra.mxu0 %v486
  %634 = vmatmul.bf16.gmra.mxu0 %v200
  %v635 = vpop.f32.mrf.mxu0
  %v636 = vadd.f32 %v622, %v635
  %v637 = vpop.f32.mrf.mxu0
  %v638 = vadd.f32 %v624, %v637
  %639 = vdwg.mxu0
  %640 = vmatpush.bf16.msra.mxu0 %v501
  %641 = vmatpush.bf16.msra.mxu0 %v500
  %642 = vmatpush.bf16.msra.mxu0 %v499
  %643 = vmatpush.bf16.msra.mxu0 %v498
  %644 = vmatpush.bf16.msra.mxu0 %v497
  %645 = vmatpush.bf16.msra.mxu0 %v496
  %646 = vmatpush.bf16.msra.mxu0 %v495
  %647 = vmatpush.bf16.msra.mxu0 %v494
  %648 = vmatmul.bf16.gmra.mxu0 %v201
  %v649 = vpop.f32.mrf.mxu0
  %v650 = vadd.f32 %v636, %v649
  %v651 = vpop.f32.mrf.mxu0
  %v652 = vadd.f32 %v638, %v651
  %653 = vdwg.mxu0
  %654 = vmatpush.bf16.msra.mxu0 %v509
  %655 = vmatpush.bf16.msra.mxu0 %v508
  %656 = vmatpush.bf16.msra.mxu0 %v507
  %657 = vmatpush.bf16.msra.mxu0 %v506
  %658 = vmatpush.bf16.msra.mxu0 %v505
  %659 = vmatpush.bf16.msra.mxu0 %v504
  %660 = vmatpush.bf16.msra.mxu0 %v503
  %661 = vmatpush.bf16.msra.mxu0 %v502
  %662 = vmatmul.bf16.gmra.mxu0 %v202
  %v663 = vpop.f32.mrf.mxu0
  %v664 = vadd.f32 %v650, %v663
  %v665 = vpop.f32.mrf.mxu0
  %v666 = vadd.f32 %v652, %v665
  %667 = vdwg.mxu0
  %668 = vmatpush.bf16.msra.mxu0 %v517
  %669 = vmatpush.bf16.msra.mxu0 %v516
  %670 = vmatpush.bf16.msra.mxu0 %v515
  %671 = vmatpush.bf16.msra.mxu0 %v514
  %672 = vmatpush.bf16.msra.mxu0 %v513
  %673 = vmatpush.bf16.msra.mxu0 %v512
  %674 = vmatpush.bf16.msra.mxu0 %v511
  %675 = vmatpush.bf16.msra.mxu0 %v510
  %676 = vmatmul.bf16.gmra.mxu0 %v203
  %v677 = vpop.f32.mrf.mxu0
  %v678 = vadd.f32 %v664, %v677
  %v679 = vpop.f32.mrf.mxu0
  %v680 = vadd.f32 %v666, %v679
  %681 = vdwg.mxu0
  %682 = vmatpush.bf16.msra.mxu0 %v525
  %683 = vmatpush.bf16.msra.mxu0 %v524
  %684 = vmatpush.bf16.msra.mxu0 %v523
  %685 = vmatpush.bf16.msra.mxu0 %v522
  %686 = vmatpush.bf16.msra.mxu0 %v521
  %687 = vmatpush.bf16.msra.mxu0 %v520
  %688 = vmatpush.bf16.msra.mxu0 %v519
  %689 = vmatpush.bf16.msra.mxu0 %v518
  %690 = vmatmul.bf16.gmra.mxu0 %v204
  %v691 = vpop.f32.mrf.mxu0
  %v692 = vadd.f32 %v678, %v691
  %v693 = vpop.f32.mrf.mxu0
  %v694 = vadd.f32 %v680, %v693
  %695 = vdwg.mxu0
  %696 = vmatpush.bf16.msra.mxu0 %v533
  %697 = vmatpush.bf16.msra.mxu0 %v532
  %698 = vmatpush.bf16.msra.mxu0 %v531
  %699 = vmatpush.bf16.msra.mxu0 %v530
  %700 = vmatpush.bf16.msra.mxu0 %v529
  %701 = vmatpush.bf16.msra.mxu0 %v528
  %702 = vmatpush.bf16.msra.mxu0 %v527
  %703 = vmatpush.bf16.msra.mxu0 %v526
  %704 = vmatmul.bf16.gmra.mxu0 %v205
  %v705 = vpop.f32.mrf.mxu0
  %v706 = vadd.f32 %v692, %v705
  %v707 = vpop.f32.mrf.mxu0
  %v708 = vadd.f32 %v694, %v707
  %709 = vdwg.mxu0
  %v718 = vunpack.c.l.b16 %v30
  %v719 = vunpack.c.h.b16 %v30
  %v720 = vunpack.c.l.b16 %v31
  %v721 = vunpack.c.h.b16 %v31
  %v722 = vunpack.c.l.b16 %v32
  %v723 = vunpack.c.h.b16 %v32
  %v724 = vunpack.c.l.b16 %v33
  %v725 = vunpack.c.h.b16 %v33
  %v726 = vunpack.c.l.b16 %v34
  %v727 = vunpack.c.h.b16 %v34
  %v728 = vunpack.c.l.b16 %v35
  %v729 = vunpack.c.h.b16 %v35
  %v730 = vunpack.c.l.b16 %v36
  %v731 = vunpack.c.h.b16 %v36
  %v732 = vunpack.c.l.b16 %v37
  %v733 = vunpack.c.h.b16 %v37
  %v734 = vpack.c.b16 %v726, %v718
  %v735 = vpack.c.b16 %v727, %v719
  %v736 = vpack.c.b16 %v728, %v720
  %v737 = vpack.c.b16 %v729, %v721
  %v738 = vpack.c.b16 %v730, %v722
  %v739 = vpack.c.b16 %v731, %v723
  %v740 = vpack.c.b16 %v732, %v724
  %v741 = vpack.c.b16 %v733, %v725
  %750 = vmatpush.bf16.msra.mxu0 %v477
  %751 = vmatpush.bf16.msra.mxu0 %v476
  %752 = vmatpush.bf16.msra.mxu0 %v475
  %753 = vmatpush.bf16.msra.mxu0 %v474
  %754 = vmatpush.bf16.msra.mxu0 %v473
  %755 = vmatpush.bf16.msra.mxu0 %v472
  %756 = vmatpush.bf16.msra.mxu0 %v471
  %757 = vmatpush.bf16.msra.mxu0 %v470
  %758 = vmatmul.bf16.gmra.mxu0 %v734
  %v759 = vpop.f32.mrf.mxu0
  %v760 = vadd.f32 %v706, %v759
  %v761 = vpop.f32.mrf.mxu0
  %v762 = vadd.f32 %v708, %v761
  %763 = vdwg.mxu0
  %764 = vmatpush.bf16.msra.mxu0 %v485
  %765 = vmatpush.bf16.msra.mxu0 %v484
  %766 = vmatpush.bf16.msra.mxu0 %v483
  %767 = vmatpush.bf16.msra.mxu0 %v482
  %768 = vmatpush.bf16.msra.mxu0 %v481
  %769 = vmatpush.bf16.msra.mxu0 %v480
  %770 = vmatpush.bf16.msra.mxu0 %v479
  %771 = vmatpush.bf16.msra.mxu0 %v478
  %772 = vmatmul.bf16.gmra.mxu0 %v735
  %v773 = vpop.f32.mrf.mxu0
  %v774 = vadd.f32 %v760, %v773
  %v775 = vpop.f32.mrf.mxu0
  %v776 = vadd.f32 %v762, %v775
  %777 = vdwg.mxu0
  %778 = vmatpush.bf16.msra.mxu0 %v493
  %779 = vmatpush.bf16.msra.mxu0 %v492
  %780 = vmatpush.bf16.msra.mxu0 %v491
  %781 = vmatpush.bf16.msra.mxu0 %v490
  %782 = vmatpush.bf16.msra.mxu0 %v489
  %783 = vmatpush.bf16.msra.mxu0 %v488
  %784 = vmatpush.bf16.msra.mxu0 %v487
  %785 = vmatpush.bf16.msra.mxu0 %v486
  %786 = vmatmul.bf16.gmra.mxu0 %v736
  %v787 = vpop.f32.mrf.mxu0
  %v788 = vadd.f32 %v774, %v787
  %v789 = vpop.f32.mrf.mxu0
  %v790 = vadd.f32 %v776, %v789
  %791 = vdwg.mxu0
  %792 = vmatpush.bf16.msra.mxu0 %v501
  %793 = vmatpush.bf16.msra.mxu0 %v500
  %794 = vmatpush.bf16.msra.mxu0 %v499
  %795 = vmatpush.bf16.msra.mxu0 %v498
  %796 = vmatpush.bf16.msra.mxu0 %v497
  %797 = vmatpush.bf16.msra.mxu0 %v496
  %798 = vmatpush.bf16.msra.mxu0 %v495
  %799 = vmatpush.bf16.msra.mxu0 %v494
  %800 = vmatmul.bf16.gmra.mxu0 %v737
  %v801 = vpop.f32.mrf.mxu0
  %v802 = vadd.f32 %v788, %v801
  %v803 = vpop.f32.mrf.mxu0
  %v804 = vadd.f32 %v790, %v803
  %805 = vdwg.mxu0
  %806 = vmatpush.bf16.msra.mxu0 %v509
  %807 = vmatpush.bf16.msra.mxu0 %v508
  %808 = vmatpush.bf16.msra.mxu0 %v507
  %809 = vmatpush.bf16.msra.mxu0 %v506
  %810 = vmatpush.bf16.msra.mxu0 %v505
  %811 = vmatpush.bf16.msra.mxu0 %v504
  %812 = vmatpush.bf16.msra.mxu0 %v503
  %813 = vmatpush.bf16.msra.mxu0 %v502
  %814 = vmatmul.bf16.gmra.mxu0 %v738
  %v815 = vpop.f32.mrf.mxu0
  %v816 = vadd.f32 %v802, %v815
  %v817 = vpop.f32.mrf.mxu0
  %v818 = vadd.f32 %v804, %v817
  %819 = vdwg.mxu0
  %820 = vmatpush.bf16.msra.mxu0 %v517
  %821 = vmatpush.bf16.msra.mxu0 %v516
  %822 = vmatpush.bf16.msra.mxu0 %v515
  %823 = vmatpush.bf16.msra.mxu0 %v514
  %824 = vmatpush.bf16.msra.mxu0 %v513
  %825 = vmatpush.bf16.msra.mxu0 %v512
  %826 = vmatpush.bf16.msra.mxu0 %v511
  %827 = vmatpush.bf16.msra.mxu0 %v510
  %828 = vmatmul.bf16.gmra.mxu0 %v739
  %v829 = vpop.f32.mrf.mxu0
  %v830 = vadd.f32 %v816, %v829
  %v831 = vpop.f32.mrf.mxu0
  %v832 = vadd.f32 %v818, %v831
  %833 = vdwg.mxu0
  %834 = vmatpush.bf16.msra.mxu0 %v525
  %835 = vmatpush.bf16.msra.mxu0 %v524
  %836 = vmatpush.bf16.msra.mxu0 %v523
  %837 = vmatpush.bf16.msra.mxu0 %v522
  %838 = vmatpush.bf16.msra.mxu0 %v521
  %839 = vmatpush.bf16.msra.mxu0 %v520
  %840 = vmatpush.bf16.msra.mxu0 %v519
  %841 = vmatpush.bf16.msra.mxu0 %v518
  %842 = vmatmul.bf16.gmra.mxu0 %v740
  %v843 = vpop.f32.mrf.mxu0
  %v844 = vadd.f32 %v830, %v843
  %v845 = vpop.f32.mrf.mxu0
  %v846 = vadd.f32 %v832, %v845
  %847 = vdwg.mxu0
  %848 = vmatpush.bf16.msra.mxu0 %v533
  %849 = vmatpush.bf16.msra.mxu0 %v532
  %850 = vmatpush.bf16.msra.mxu0 %v531
  %851 = vmatpush.bf16.msra.mxu0 %v530
  %852 = vmatpush.bf16.msra.mxu0 %v529
  %853 = vmatpush.bf16.msra.mxu0 %v528
  %854 = vmatpush.bf16.msra.mxu0 %v527
  %855 = vmatpush.bf16.msra.mxu0 %v526
  %856 = vmatmul.bf16.gmra.mxu0 %v741
  %v857 = vpop.f32.mrf.mxu0
  %v858 = vadd.f32 %v844, %v857
  %v859 = vpop.f32.mrf.mxu0
  %v860 = vadd.f32 %v846, %v859
  %861 = vdwg.mxu0
  %v862 = vld [vmem:[%s3] sm:$0x1]
  %v864 = vperm.slane %v862, 0
  %v866 = vadd.f32 %v858, %v864
  %v867 = vadd.f32 %v860, %v864
  %868 = vst [vmem:[#allocation2] sm:$0xf] 0
  %869 = vst [vmem:[#allocation2 + $0x4] sm:$0xf] 0
  %870 = vst [vmem:[#allocation2 + $0x8] sm:$0xf] 0
  %871 = vst [vmem:[#allocation2 + $0xc] sm:$0xf] 0
  %872 = vst [vmem:[#allocation2 + $0x10] sm:$0xf] 0
  %873 = vst [vmem:[#allocation2 + $0x14] sm:$0xf] 0
  %v874 = vpack.c.bf16 %v866, %v866
  %v875 = vpack.c.bf16 %v867, %v867
  %876 = vst [vmem:[#allocation2 + $0x8] sm:$0xf] %v874
  %877 = vst [vmem:[#allocation2 + $0xc] sm:$0xf] %v875
  %v878 = vld [vmem:[#allocation2 + $0x4] sm:$0xf]
  %v879 = vld [vmem:[#allocation2 + $0x8] sm:$0xf]
  %v880 = vld [vmem:[#allocation2 + $0xc] sm:$0x1]
  %v881 = vld [vmem:[%s4] sm:$0xf]
  %v882 = vld [vmem:[%s4 + $0x4] sm:$0xf]
  %v883 = vld [vmem:[%s4 + $0x8] sm:$0xf]
  %v884 = vld [vmem:[%s4 + $0xc] sm:$0xf]
  %v885 = vld [vmem:[%s4 + $0x10] sm:$0xf]
  %v886 = vld [vmem:[%s4 + $0x14] sm:$0xf]
  %v887 = vld [vmem:[%s4 + $0x18] sm:$0xf]
  %v888 = vld [vmem:[%s4 + $0x1c] sm:$0xf]
  %v889 = vld [vmem:[%s4 + $0x20] sm:$0xf]
  %v890 = vld [vmem:[%s4 + $0x24] sm:$0xf]
  %v891 = vld [vmem:[%s4 + $0x28] sm:$0xf]
  %v892 = vld [vmem:[%s4 + $0x2c] sm:$0xf]
  %v893 = vld [vmem:[%s4 + $0x30] sm:$0xf]
  %v894 = vld [vmem:[%s4 + $0x34] sm:$0xf]
  %v895 = vld [vmem:[%s4 + $0x38] sm:$0xf]
  %v896 = vld [vmem:[%s4 + $0x3c] sm:$0xf]
  %v897 = vld [vmem:[#allocation2 + $0x4] sm:$0xe]
  %s898 = scalar_lea.vmem %s4, 64
  %v899 = vld [vmem:[%s898] sm:$0xf]
  %v900 = vld [vmem:[%s898 + $0x4] sm:$0xf]
  %v901 = vld [vmem:[%s898 + $0x8] sm:$0xf]
  %v902 = vld [vmem:[%s898 + $0xc] sm:$0xf]
  %v903 = vld [vmem:[%s898 + $0x10] sm:$0xf]
  %v904 = vld [vmem:[%s898 + $0x14] sm:$0xf]
  %v905 = vld [vmem:[%s898 + $0x18] sm:$0xf]
  %v906 = vld [vmem:[%s898 + $0x1c] sm:$0xf]
  %v907 = vld [vmem:[%s898 + $0x20] sm:$0xf]
  %v908 = vld [vmem:[%s898 + $0x24] sm:$0xf]
  %v909 = vld [vmem:[%s898 + $0x28] sm:$0xf]
  %v910 = vld [vmem:[%s898 + $0x2c] sm:$0xf]
  %v911 = vld [vmem:[%s898 + $0x30] sm:$0xf]
  %v912 = vld [vmem:[%s898 + $0x34] sm:$0xf]
  %v913 = vld [vmem:[%s898 + $0x38] sm:$0xf]
  %v914 = vld [vmem:[%s898 + $0x3c] sm:$0xf]
  %v918 = vunpack.c.l.b16 %v897
  %v919 = vunpack.c.l.b16 %v879
  %v920 = vunpack.c.l.b16 %v880
  %v921 = vpack.c.b16 %v919, %v918
  %v922 = vpack.c.b16 %v920, %v920
  %vm923 = vcmask 1046528
  %v924 = vrot.slane %v921, 1
  %v925 = vrot.slane %v922, 1
  %v926 = vsel %vm923, %v924, %v925
  %v944 = vunpack.c.l.b16 %v899
  %v945 = vunpack.c.l.b16 %v900
  %v946 = vunpack.c.l.b16 %v901
  %v947 = vunpack.c.l.b16 %v902
  %v948 = vunpack.c.l.b16 %v903
  %v949 = vunpack.c.l.b16 %v904
  %v950 = vunpack.c.l.b16 %v905
  %v951 = vunpack.c.l.b16 %v906
  %v952 = vunpack.c.l.b16 %v907
  %v953 = vunpack.c.l.b16 %v908
  %v954 = vunpack.c.l.b16 %v909
  %v955 = vunpack.c.l.b16 %v910
  %v956 = vunpack.c.l.b16 %v911
  %v957 = vunpack.c.l.b16 %v912
  %v958 = vunpack.c.l.b16 %v913
  %v959 = vunpack.c.l.b16 %v914
  %v960 = vpack.c.b16 %v945, %v944
  %v961 = vpack.c.b16 %v947, %v946
  %v962 = vpack.c.b16 %v949, %v948
  %v963 = vpack.c.b16 %v951, %v950
  %v964 = vpack.c.b16 %v953, %v952
  %v965 = vpack.c.b16 %v955, %v954
  %v966 = vpack.c.b16 %v957, %v956
  %v967 = vpack.c.b16 %v959, %v958
  %976 = vmatpush.bf16.msra.mxu0 %v967
  %977 = vmatpush.bf16.msra.mxu0 %v966
  %978 = vmatpush.bf16.msra.mxu0 %v965
  %979 = vmatpush.bf16.msra.mxu0 %v964
  %980 = vmatpush.bf16.msra.mxu0 %v963
  %981 = vmatpush.bf16.msra.mxu0 %v962
  %982 = vmatpush.bf16.msra.mxu0 %v961
  %983 = vmatpush.bf16.msra.mxu0 %v960
  %984 = vmatmul.bf16.gmra.mxu0 %v926
  %v985 = vpop.f32.mrf.mxu0
  %v986 = vadd.f32 0.0, %v985
  %v987 = vpop.f32.mrf.mxu0
  %v988 = vadd.f32 0.0, %v987
  %989 = vdwg.mxu0
  %v991 = vunpack.c.l.b16 %v878
  %v992 = vpack.c.b16 %v919, %v991
  %vm993 = vsmask.f32 7424
  %v995 = vshrl.u32 %v992, 16
  %v997 = vshll.u32 %v992, 16
  %v999 = vrot.slane %v997, 1
  %v1000 = vor.u32 %v995, %v999
  %v1002 = vshll.u32 %v922, 16
  %v1004 = vrot.slane %v1002, 1
  %v1005 = vsel %vm993, %v1000, %v1004
  %v1023 = vunpack.c.l.b16 %v881
  %v1024 = vunpack.c.l.b16 %v882
  %v1025 = vunpack.c.l.b16 %v883
  %v1026 = vunpack.c.l.b16 %v884
  %v1027 = vunpack.c.l.b16 %v885
  %v1028 = vunpack.c.l.b16 %v886
  %v1029 = vunpack.c.l.b16 %v887
  %v1030 = vunpack.c.l.b16 %v888
  %v1031 = vunpack.c.l.b16 %v889
  %v1032 = vunpack.c.l.b16 %v890
  %v1033 = vunpack.c.l.b16 %v891
  %v1034 = vunpack.c.l.b16 %v892
  %v1035 = vunpack.c.l.b16 %v893
  %v1036 = vunpack.c.l.b16 %v894
  %v1037 = vunpack.c.l.b16 %v895
  %v1038 = vunpack.c.l.b16 %v896
  %v1039 = vpack.c.b16 %v1024, %v1023
  %v1040 = vpack.c.b16 %v1026, %v1025
  %v1041 = vpack.c.b16 %v1028, %v1027
  %v1042 = vpack.c.b16 %v1030, %v1029
  %v1043 = vpack.c.b16 %v1032, %v1031
  %v1044 = vpack.c.b16 %v1034, %v1033
  %v1045 = vpack.c.b16 %v1036, %v1035
  %v1046 = vpack.c.b16 %v1038, %v1037
  %1055 = vmatpush.bf16.msra.mxu0 %v1046
  %1056 = vmatpush.bf16.msra.mxu0 %v1045
  %1057 = vmatpush.bf16.msra.mxu0 %v1044
  %1058 = vmatpush.bf16.msra.mxu0 %v1043
  %1059 = vmatpush.bf16.msra.mxu0 %v1042
  %1060 = vmatpush.bf16.msra.mxu0 %v1041
  %1061 = vmatpush.bf16.msra.mxu0 %v1040
  %1062 = vmatpush.bf16.msra.mxu0 %v1039
  %1063 = vmatmul.bf16.gmra.mxu0 %v1005
  %v1064 = vpop.f32.mrf.mxu0
  %v1065 = vadd.f32 %v986, %v1064
  %v1066 = vpop.f32.mrf.mxu0
  %v1067 = vadd.f32 %v988, %v1066
  %1068 = vdwg.mxu0
  %v1069 = vld [vmem:[#allocation2 + $0xc] sm:$0x3]
  %s1070 = scalar_lea.vmem %s4, 128
  %v1071 = vld [vmem:[%s1070] sm:$0xf]
  %v1072 = vld [vmem:[%s1070 + $0x4] sm:$0xf]
  %v1073 = vld [vmem:[%s1070 + $0x8] sm:$0xf]
  %v1074 = vld [vmem:[%s1070 + $0xc] sm:$0xf]
  %v1075 = vld [vmem:[%s1070 + $0x10] sm:$0xf]
  %v1076 = vld [vmem:[%s1070 + $0x14] sm:$0xf]
  %v1077 = vld [vmem:[%s1070 + $0x18] sm:$0xf]
  %v1078 = vld [vmem:[%s1070 + $0x1c] sm:$0xf]
  %v1079 = vld [vmem:[%s1070 + $0x20] sm:$0xf]
  %v1080 = vld [vmem:[%s1070 + $0x24] sm:$0xf]
  %v1081 = vld [vmem:[%s1070 + $0x28] sm:$0xf]
  %v1082 = vld [vmem:[%s1070 + $0x2c] sm:$0xf]
  %v1083 = vld [vmem:[%s1070 + $0x30] sm:$0xf]
  %v1084 = vld [vmem:[%s1070 + $0x34] sm:$0xf]
  %v1085 = vld [vmem:[%s1070 + $0x38] sm:$0xf]
  %v1086 = vld [vmem:[%s1070 + $0x3c] sm:$0xf]
  %v1088 = vunpack.c.l.b16 %v1069
  %v1089 = vpack.c.b16 %v1088, %v1088
  %vm1090 = vsmask.f32 6400
  %v1092 = vshrl.u32 %v921, 16
  %v1094 = vrot.slane %v1092, 1
  %v1095 = vshll.u32 %v921, 16
  %v1097 = vrot.slane %v1095, 2
  %v1098 = vor.u32 %v1094, %v1097
  %v1100 = vshrl.u32 %v1089, 16
  %v1102 = vrot.slane %v1100, 1
  %v1103 = vshll.u32 %v1089, 16
  %v1105 = vrot.slane %v1103, 2
  %v1106 = vor.u32 %v1102, %v1105
  %v1107 = vsel %vm1090, %v1098, %v1106
  %v1125 = vunpack.c.l.b16 %v1071
  %v1126 = vunpack.c.l.b16 %v1072
  %v1127 = vunpack.c.l.b16 %v1073
  %v1128 = vunpack.c.l.b16 %v1074
  %v1129 = vunpack.c.l.b16 %v1075
  %v1130 = vunpack.c.l.b16 %v1076
  %v1131 = vunpack.c.l.b16 %v1077
  %v1132 = vunpack.c.l.b16 %v1078
  %v1133 = vunpack.c.l.b16 %v1079
  %v1134 = vunpack.c.l.b16 %v1080
  %v1135 = vunpack.c.l.b16 %v1081
  %v1136 = vunpack.c.l.b16 %v1082
  %v1137 = vunpack.c.l.b16 %v1083
  %v1138 = vunpack.c.l.b16 %v1084
  %v1139 = vunpack.c.l.b16 %v1085
  %v1140 = vunpack.c.l.b16 %v1086
  %v1141 = vpack.c.b16 %v1126, %v1125
  %v1142 = vpack.c.b16 %v1128, %v1127
  %v1143 = vpack.c.b16 %v1130, %v1129
  %v1144 = vpack.c.b16 %v1132, %v1131
  %v1145 = vpack.c.b16 %v1134, %v1133
  %v1146 = vpack.c.b16 %v1136, %v1135
  %v1147 = vpack.c.b16 %v1138, %v1137
  %v1148 = vpack.c.b16 %v1140, %v1139
  %1157 = vmatpush.bf16.msra.mxu0 %v1148
  %1158 = vmatpush.bf16.msra.mxu0 %v1147
  %1159 = vmatpush.bf16.msra.mxu0 %v1146
  %1160 = vmatpush.bf16.msra.mxu0 %v1145
  %1161 = vmatpush.bf16.msra.mxu0 %v1144
  %1162 = vmatpush.bf16.msra.mxu0 %v1143
  %1163 = vmatpush.bf16.msra.mxu0 %v1142
  %1164 = vmatpush.bf16.msra.mxu0 %v1141
  %1165 = vmatmul.bf16.gmra.mxu0 %v1107
  %v1166 = vpop.f32.mrf.mxu0
  %v1167 = vadd.f32 0.0, %v1166
  %v1168 = vpop.f32.mrf.mxu0
  %v1169 = vadd.f32 0.0, %v1168
  %1170 = vdwg.mxu0
  %v1171 = vadd.f32 %v1065, %v1167
  %v1172 = vadd.f32 %v1067, %v1169
  %v1173 = vld [vmem:[#allocation2 + $0x4] sm:$0xc]
  %s1174 = scalar_lea.vmem %s4, 192
  %v1175 = vld [vmem:[%s1174] sm:$0xf]
  %v1176 = vld [vmem:[%s1174 + $0x4] sm:$0xf]
  %v1177 = vld [vmem:[%s1174 + $0x8] sm:$0xf]
  %v1178 = vld [vmem:[%s1174 + $0xc] sm:$0xf]
  %v1179 = vld [vmem:[%s1174 + $0x10] sm:$0xf]
  %v1180 = vld [vmem:[%s1174 + $0x14] sm:$0xf]
  %v1181 = vld [vmem:[%s1174 + $0x18] sm:$0xf]
  %v1182 = vld [vmem:[%s1174 + $0x1c] sm:$0xf]
  %v1183 = vld [vmem:[%s1174 + $0x20] sm:$0xf]
  %v1184 = vld [vmem:[%s1174 + $0x24] sm:$0xf]
  %v1185 = vld [vmem:[%s1174 + $0x28] sm:$0xf]
  %v1186 = vld [vmem:[%s1174 + $0x2c] sm:$0xf]
  %v1187 = vld [vmem:[%s1174 + $0x30] sm:$0xf]
  %v1188 = vld [vmem:[%s1174 + $0x34] sm:$0xf]
  %v1189 = vld [vmem:[%s1174 + $0x38] sm:$0xf]
  %v1190 = vld [vmem:[%s1174 + $0x3c] sm:$0xf]
  %v1192 = vunpack.c.l.b16 %v1173
  %v1193 = vpack.c.b16 %v919, %v1192
  %vm1194 = vcmask 1045504
  %v1195 = vrot.slane %v1193, 2
  %v1196 = vrot.slane %v1089, 2
  %v1197 = vsel %vm1194, %v1195, %v1196
  %v1215 = vunpack.c.l.b16 %v1175
  %v1216 = vunpack.c.l.b16 %v1176
  %v1217 = vunpack.c.l.b16 %v1177
  %v1218 = vunpack.c.l.b16 %v1178
  %v1219 = vunpack.c.l.b16 %v1179
  %v1220 = vunpack.c.l.b16 %v1180
  %v1221 = vunpack.c.l.b16 %v1181
  %v1222 = vunpack.c.l.b16 %v1182
  %v1223 = vunpack.c.l.b16 %v1183
  %v1224 = vunpack.c.l.b16 %v1184
  %v1225 = vunpack.c.l.b16 %v1185
  %v1226 = vunpack.c.l.b16 %v1186
  %v1227 = vunpack.c.l.b16 %v1187
  %v1228 = vunpack.c.l.b16 %v1188
  %v1229 = vunpack.c.l.b16 %v1189
  %v1230 = vunpack.c.l.b16 %v1190
  %v1231 = vpack.c.b16 %v1216, %v1215
  %v1232 = vpack.c.b16 %v1218, %v1217
  %v1233 = vpack.c.b16 %v1220, %v1219
  %v1234 = vpack.c.b16 %v1222, %v1221
  %v1235 = vpack.c.b16 %v1224, %v1223
  %v1236 = vpack.c.b16 %v1226, %v1225
  %v1237 = vpack.c.b16 %v1228, %v1227
  %v1238 = vpack.c.b16 %v1230, %v1229
  %1247 = vmatpush.bf16.msra.mxu0 %v1238
  %1248 = vmatpush.bf16.msra.mxu0 %v1237
  %1249 = vmatpush.bf16.msra.mxu0 %v1236
  %1250 = vmatpush.bf16.msra.mxu0 %v1235
  %1251 = vmatpush.bf16.msra.mxu0 %v1234
  %1252 = vmatpush.bf16.msra.mxu0 %v1233
  %1253 = vmatpush.bf16.msra.mxu0 %v1232
  %1254 = vmatpush.bf16.msra.mxu0 %v1231
  %1255 = vmatmul.bf16.gmra.mxu0 %v1197
  %v1256 = vpop.f32.mrf.mxu0
  %v1257 = vadd.f32 0.0, %v1256
  %v1258 = vpop.f32.mrf.mxu0
  %v1259 = vadd.f32 0.0, %v1258
  %1260 = vdwg.mxu0
  %v1261 = vadd.f32 %v1171, %v1257
  %v1262 = vadd.f32 %v1172, %v1259
  %v1263 = vld [vmem:[#allocation2 + $0xc] sm:$0x7]
  %s1264 = scalar_lea.vmem %s4, 256
  %v1265 = vld [vmem:[%s1264] sm:$0xf]
  %v1266 = vld [vmem:[%s1264 + $0x4] sm:$0xf]
  %v1267 = vld [vmem:[%s1264 + $0x8] sm:$0xf]
  %v1268 = vld [vmem:[%s1264 + $0xc] sm:$0xf]
  %v1269 = vld [vmem:[%s1264 + $0x10] sm:$0xf]
  %v1270 = vld [vmem:[%s1264 + $0x14] sm:$0xf]
  %v1271 = vld [vmem:[%s1264 + $0x18] sm:$0xf]
  %v1272 = vld [vmem:[%s1264 + $0x1c] sm:$0xf]
  %v1273 = vld [vmem:[%s1264 + $0x20] sm:$0xf]
  %v1274 = vld [vmem:[%s1264 + $0x24] sm:$0xf]
  %v1275 = vld [vmem:[%s1264 + $0x28] sm:$0xf]
  %v1276 = vld [vmem:[%s1264 + $0x2c] sm:$0xf]
  %v1277 = vld [vmem:[%s1264 + $0x30] sm:$0xf]
  %v1278 = vld [vmem:[%s1264 + $0x34] sm:$0xf]
  %v1279 = vld [vmem:[%s1264 + $0x38] sm:$0xf]
  %v1280 = vld [vmem:[%s1264 + $0x3c] sm:$0xf]
  %v1282 = vunpack.c.l.b16 %v1263
  %v1283 = vpack.c.b16 %v1282, %v1282
  %vm1284 = vsmask.f32 5376
  %v1286 = vshrl.u32 %v1193, 16
  %v1288 = vrot.slane %v1286, 2
  %v1289 = vshll.u32 %v1193, 16
  %v1291 = vrot.slane %v1289, 3
  %v1292 = vor.u32 %v1288, %v1291
  %v1294 = vshrl.u32 %v1283, 16
  %v1296 = vrot.slane %v1294, 2
  %v1297 = vshll.u32 %v1283, 16
  %v1299 = vrot.slane %v1297, 3
  %v1300 = vor.u32 %v1296, %v1299
  %v1301 = vsel %vm1284, %v1292, %v1300
  %v1319 = vunpack.c.l.b16 %v1265
  %v1320 = vunpack.c.l.b16 %v1266
  %v1321 = vunpack.c.l.b16 %v1267
  %v1322 = vunpack.c.l.b16 %v1268
  %v1323 = vunpack.c.l.b16 %v1269
  %v1324 = vunpack.c.l.b16 %v1270
  %v1325 = vunpack.c.l.b16 %v1271
  %v1326 = vunpack.c.l.b16 %v1272
  %v1327 = vunpack.c.l.b16 %v1273
  %v1328 = vunpack.c.l.b16 %v1274
  %v1329 = vunpack.c.l.b16 %v1275
  %v1330 = vunpack.c.l.b16 %v1276
  %v1331 = vunpack.c.l.b16 %v1277
  %v1332 = vunpack.c.l.b16 %v1278
  %v1333 = vunpack.c.l.b16 %v1279
  %v1334 = vunpack.c.l.b16 %v1280
  %v1335 = vpack.c.b16 %v1320, %v1319
  %v1336 = vpack.c.b16 %v1322, %v1321
  %v1337 = vpack.c.b16 %v1324, %v1323
  %v1338 = vpack.c.b16 %v1326, %v1325
  %v1339 = vpack.c.b16 %v1328, %v1327
  %v1340 = vpack.c.b16 %v1330, %v1329
  %v1341 = vpack.c.b16 %v1332, %v1331
  %v1342 = vpack.c.b16 %v1334, %v1333
  %1351 = vmatpush.bf16.msra.mxu0 %v1342
  %1352 = vmatpush.bf16.msra.mxu0 %v1341
  %1353 = vmatpush.bf16.msra.mxu0 %v1340
  %1354 = vmatpush.bf16.msra.mxu0 %v1339
  %1355 = vmatpush.bf16.msra.mxu0 %v1338
  %1356 = vmatpush.bf16.msra.mxu0 %v1337
  %1357 = vmatpush.bf16.msra.mxu0 %v1336
  %1358 = vmatpush.bf16.msra.mxu0 %v1335
  %1359 = vmatmul.bf16.gmra.mxu0 %v1301
  %v1360 = vpop.f32.mrf.mxu0
  %v1361 = vadd.f32 0.0, %v1360
  %v1362 = vpop.f32.mrf.mxu0
  %v1363 = vadd.f32 0.0, %v1362
  %1364 = vdwg.mxu0
  %v1365 = vadd.f32 %v1261, %v1361
  %v1366 = vadd.f32 %v1262, %v1363
  %v1367 = vld [vmem:[#allocation2 + $0x4] sm:$0x8]
  %s1368 = scalar_lea.vmem %s4, 320
  %v1369 = vld [vmem:[%s1368] sm:$0xf]
  %v1370 = vld [vmem:[%s1368 + $0x4] sm:$0xf]
  %v1371 = vld [vmem:[%s1368 + $0x8] sm:$0xf]
  %v1372 = vld [vmem:[%s1368 + $0xc] sm:$0xf]
  %v1373 = vld [vmem:[%s1368 + $0x10] sm:$0xf]
  %v1374 = vld [vmem:[%s1368 + $0x14] sm:$0xf]
  %v1375 = vld [vmem:[%s1368 + $0x18] sm:$0xf]
  %v1376 = vld [vmem:[%s1368 + $0x1c] sm:$0xf]
  %v1377 = vld [vmem:[%s1368 + $0x20] sm:$0xf]
  %v1378 = vld [vmem:[%s1368 + $0x24] sm:$0xf]
  %v1379 = vld [vmem:[%s1368 + $0x28] sm:$0xf]
  %v1380 = vld [vmem:[%s1368 + $0x2c] sm:$0xf]
  %v1381 = vld [vmem:[%s1368 + $0x30] sm:$0xf]
  %v1382 = vld [vmem:[%s1368 + $0x34] sm:$0xf]
  %v1383 = vld [vmem:[%s1368 + $0x38] sm:$0xf]
  %v1384 = vld [vmem:[%s1368 + $0x3c] sm:$0xf]
  %v1386 = vunpack.c.l.b16 %v1367
  %v1387 = vpack.c.b16 %v919, %v1386
  %vm1388 = vcmask 1044480
  %v1389 = vrot.slane %v1387, 3
  %v1390 = vrot.slane %v1283, 3
  %v1391 = vsel %vm1388, %v1389, %v1390
  %v1409 = vunpack.c.l.b16 %v1369
  %v1410 = vunpack.c.l.b16 %v1370
  %v1411 = vunpack.c.l.b16 %v1371
  %v1412 = vunpack.c.l.b16 %v1372
  %v1413 = vunpack.c.l.b16 %v1373
  %v1414 = vunpack.c.l.b16 %v1374
  %v1415 = vunpack.c.l.b16 %v1375
  %v1416 = vunpack.c.l.b16 %v1376
  %v1417 = vunpack.c.l.b16 %v1377
  %v1418 = vunpack.c.l.b16 %v1378
  %v1419 = vunpack.c.l.b16 %v1379
  %v1420 = vunpack.c.l.b16 %v1380
  %v1421 = vunpack.c.l.b16 %v1381
  %v1422 = vunpack.c.l.b16 %v1382
  %v1423 = vunpack.c.l.b16 %v1383
  %v1424 = vunpack.c.l.b16 %v1384
  %v1425 = vpack.c.b16 %v1410, %v1409
  %v1426 = vpack.c.b16 %v1412, %v1411
  %v1427 = vpack.c.b16 %v1414, %v1413
  %v1428 = vpack.c.b16 %v1416, %v1415
  %v1429 = vpack.c.b16 %v1418, %v1417
  %v1430 = vpack.c.b16 %v1420, %v1419
  %v1431 = vpack.c.b16 %v1422, %v1421
  %v1432 = vpack.c.b16 %v1424, %v1423
  %1441 = vmatpush.bf16.msra.mxu0 %v1432
  %1442 = vmatpush.bf16.msra.mxu0 %v1431
  %1443 = vmatpush.bf16.msra.mxu0 %v1430
  %1444 = vmatpush.bf16.msra.mxu0 %v1429
  %1445 = vmatpush.bf16.msra.mxu0 %v1428
  %1446 = vmatpush.bf16.msra.mxu0 %v1427
  %1447 = vmatpush.bf16.msra.mxu0 %v1426
  %1448 = vmatpush.bf16.msra.mxu0 %v1425
  %1449 = vmatmul.bf16.gmra.mxu0 %v1391
  %v1450 = vpop.f32.mrf.mxu0
  %v1451 = vadd.f32 0.0, %v1450
  %v1452 = vpop.f32.mrf.mxu0
  %v1453 = vadd.f32 0.0, %v1452
  %1454 = vdwg.mxu0
  %v1455 = vadd.f32 %v1365, %v1451
  %v1456 = vadd.f32 %v1366, %v1453
  %v1457 = vld [vmem:[#allocation2 + $0xc] sm:$0xf]
  %s1458 = scalar_lea.vmem %s4, 384
  %v1459 = vld [vmem:[%s1458] sm:$0xf]
  %v1460 = vld [vmem:[%s1458 + $0x4] sm:$0xf]
  %v1461 = vld [vmem:[%s1458 + $0x8] sm:$0xf]
  %v1462 = vld [vmem:[%s1458 + $0xc] sm:$0xf]
  %v1463 = vld [vmem:[%s1458 + $0x10] sm:$0xf]
  %v1464 = vld [vmem:[%s1458 + $0x14] sm:$0xf]
  %v1465 = vld [vmem:[%s1458 + $0x18] sm:$0xf]
  %v1466 = vld [vmem:[%s1458 + $0x1c] sm:$0xf]
  %v1467 = vld [vmem:[%s1458 + $0x20] sm:$0xf]
  %v1468 = vld [vmem:[%s1458 + $0x24] sm:$0xf]
  %v1469 = vld [vmem:[%s1458 + $0x28] sm:$0xf]
  %v1470 = vld [vmem:[%s1458 + $0x2c] sm:$0xf]
  %v1471 = vld [vmem:[%s1458 + $0x30] sm:$0xf]
  %v1472 = vld [vmem:[%s1458 + $0x34] sm:$0xf]
  %v1473 = vld [vmem:[%s1458 + $0x38] sm:$0xf]
  %v1474 = vld [vmem:[%s1458 + $0x3c] sm:$0xf]
  %v1476 = vunpack.c.l.b16 %v1457
  %v1477 = vpack.c.b16 %v1476, %v1476
  %vm1478 = vsmask.f32 4352
  %v1480 = vshrl.u32 %v1387, 16
  %v1482 = vrot.slane %v1480, 3
  %v1483 = vshll.u32 %v1387, 16
  %v1485 = vrot.slane %v1483, 4
  %v1486 = vor.u32 %v1482, %v1485
  %v1488 = vshrl.u32 %v1477, 16
  %v1490 = vrot.slane %v1488, 3
  %v1491 = vshll.u32 %v1477, 16
  %v1493 = vrot.slane %v1491, 4
  %v1494 = vor.u32 %v1490, %v1493
  %v1495 = vsel %vm1478, %v1486, %v1494
  %v1513 = vunpack.c.l.b16 %v1459
  %v1514 = vunpack.c.l.b16 %v1460
  %v1515 = vunpack.c.l.b16 %v1461
  %v1516 = vunpack.c.l.b16 %v1462
  %v1517 = vunpack.c.l.b16 %v1463
  %v1518 = vunpack.c.l.b16 %v1464
  %v1519 = vunpack.c.l.b16 %v1465
  %v1520 = vunpack.c.l.b16 %v1466
  %v1521 = vunpack.c.l.b16 %v1467
  %v1522 = vunpack.c.l.b16 %v1468
  %v1523 = vunpack.c.l.b16 %v1469
  %v1524 = vunpack.c.l.b16 %v1470
  %v1525 = vunpack.c.l.b16 %v1471
  %v1526 = vunpack.c.l.b16 %v1472
  %v1527 = vunpack.c.l.b16 %v1473
  %v1528 = vunpack.c.l.b16 %v1474
  %v1529 = vpack.c.b16 %v1514, %v1513
  %v1530 = vpack.c.b16 %v1516, %v1515
  %v1531 = vpack.c.b16 %v1518, %v1517
  %v1532 = vpack.c.b16 %v1520, %v1519
  %v1533 = vpack.c.b16 %v1522, %v1521
  %v1534 = vpack.c.b16 %v1524, %v1523
  %v1535 = vpack.c.b16 %v1526, %v1525
  %v1536 = vpack.c.b16 %v1528, %v1527
  %1545 = vmatpush.bf16.msra.mxu0 %v1536
  %1546 = vmatpush.bf16.msra.mxu0 %v1535
  %1547 = vmatpush.bf16.msra.mxu0 %v1534
  %1548 = vmatpush.bf16.msra.mxu0 %v1533
  %1549 = vmatpush.bf16.msra.mxu0 %v1532
  %1550 = vmatpush.bf16.msra.mxu0 %v1531
  %1551 = vmatpush.bf16.msra.mxu0 %v1530
  %1552 = vmatpush.bf16.msra.mxu0 %v1529
  %1553 = vmatmul.bf16.gmra.mxu0 %v1495
  %v1554 = vpop.f32.mrf.mxu0
  %v1555 = vadd.f32 0.0, %v1554
  %v1556 = vpop.f32.mrf.mxu0
  %v1557 = vadd.f32 0.0, %v1556
  %1558 = vdwg.mxu0
  %v1559 = vadd.f32 %v1455, %v1555
  %v1560 = vadd.f32 %v1456, %v1557
  %s1561 = scalar_lea.vmem %s4, 448
  %v1562 = vld [vmem:[%s1561] sm:$0xf]
  %v1563 = vld [vmem:[%s1561 + $0x4] sm:$0xf]
  %v1564 = vld [vmem:[%s1561 + $0x8] sm:$0xf]
  %v1565 = vld [vmem:[%s1561 + $0xc] sm:$0xf]
  %v1566 = vld [vmem:[%s1561 + $0x10] sm:$0xf]
  %v1567 = vld [vmem:[%s1561 + $0x14] sm:$0xf]
  %v1568 = vld [vmem:[%s1561 + $0x18] sm:$0xf]
  %v1569 = vld [vmem:[%s1561 + $0x1c] sm:$0xf]
  %v1570 = vld [vmem:[%s1561 + $0x20] sm:$0xf]
  %v1571 = vld [vmem:[%s1561 + $0x24] sm:$0xf]
  %v1572 = vld [vmem:[%s1561 + $0x28] sm:$0xf]
  %v1573 = vld [vmem:[%s1561 + $0x2c] sm:$0xf]
  %v1574 = vld [vmem:[%s1561 + $0x30] sm:$0xf]
  %v1575 = vld [vmem:[%s1561 + $0x34] sm:$0xf]
  %v1576 = vld [vmem:[%s1561 + $0x38] sm:$0xf]
  %v1577 = vld [vmem:[%s1561 + $0x3c] sm:$0xf]
  %v1578 = vpack.c.b16 %v1476, %v919
  %v1596 = vunpack.c.l.b16 %v1562
  %v1597 = vunpack.c.l.b16 %v1563
  %v1598 = vunpack.c.l.b16 %v1564
  %v1599 = vunpack.c.l.b16 %v1565
  %v1600 = vunpack.c.l.b16 %v1566
  %v1601 = vunpack.c.l.b16 %v1567
  %v1602 = vunpack.c.l.b16 %v1568
  %v1603 = vunpack.c.l.b16 %v1569
  %v1604 = vunpack.c.l.b16 %v1570
  %v1605 = vunpack.c.l.b16 %v1571
  %v1606 = vunpack.c.l.b16 %v1572
  %v1607 = vunpack.c.l.b16 %v1573
  %v1608 = vunpack.c.l.b16 %v1574
  %v1609 = vunpack.c.l.b16 %v1575
  %v1610 = vunpack.c.l.b16 %v1576
  %v1611 = vunpack.c.l.b16 %v1577
  %v1612 = vpack.c.b16 %v1597, %v1596
  %v1613 = vpack.c.b16 %v1599, %v1598
  %v1614 = vpack.c.b16 %v1601, %v1600
  %v1615 = vpack.c.b16 %v1603, %v1602
  %v1616 = vpack.c.b16 %v1605, %v1604
  %v1617 = vpack.c.b16 %v1607, %v1606
  %v1618 = vpack.c.b16 %v1609, %v1608
  %v1619 = vpack.c.b16 %v1611, %v1610
  %1628 = vmatpush.bf16.msra.mxu0 %v1619
  %1629 = vmatpush.bf16.msra.mxu0 %v1618
  %1630 = vmatpush.bf16.msra.mxu0 %v1617
  %1631 = vmatpush.bf16.msra.mxu0 %v1616
  %1632 = vmatpush.bf16.msra.mxu0 %v1615
  %1633 = vmatpush.bf16.msra.mxu0 %v1614
  %1634 = vmatpush.bf16.msra.mxu0 %v1613
  %1635 = vmatpush.bf16.msra.mxu0 %v1612
  %1636 = vmatmul.bf16.gmra.mxu0 %v1578
  %v1637 = vpop.f32.mrf.mxu0
  %v1638 = vadd.f32 0.0, %v1637
  %v1639 = vpop.f32.mrf.mxu0
  %v1640 = vadd.f32 0.0, %v1639
  %1641 = vdwg.mxu0
  %v1642 = vadd.f32 %v1559, %v1638
  %v1643 = vadd.f32 %v1560, %v1640
  %v1644 = vld [vmem:[#allocation2 + $0x8] sm:$0xf]
  %v1645 = vld [vmem:[#allocation2 + $0xc] sm:$0xf]
  %v1646 = vld [vmem:[#allocation2 + $0x10] sm:$0x1]
  %s1647 = scalar_lea.vmem %s4, 512
  %v1648 = vld [vmem:[%s1647] sm:$0xf]
  %v1649 = vld [vmem:[%s1647 + $0x4] sm:$0xf]
  %v1650 = vld [vmem:[%s1647 + $0x8] sm:$0xf]
  %v1651 = vld [vmem:[%s1647 + $0xc] sm:$0xf]
  %v1652 = vld [vmem:[%s1647 + $0x10] sm:$0xf]
  %v1653 = vld [vmem:[%s1647 + $0x14] sm:$0xf]
  %v1654 = vld [vmem:[%s1647 + $0x18] sm:$0xf]
  %v1655 = vld [vmem:[%s1647 + $0x1c] sm:$0xf]
  %v1656 = vld [vmem:[%s1647 + $0x20] sm:$0xf]
  %v1657 = vld [vmem:[%s1647 + $0x24] sm:$0xf]
  %v1658 = vld [vmem:[%s1647 + $0x28] sm:$0xf]
  %v1659 = vld [vmem:[%s1647 + $0x2c] sm:$0xf]
  %v1660 = vld [vmem:[%s1647 + $0x30] sm:$0xf]
  %v1661 = vld [vmem:[%s1647 + $0x34] sm:$0xf]
  %v1662 = vld [vmem:[%s1647 + $0x38] sm:$0xf]
  %v1663 = vld [vmem:[%s1647 + $0x3c] sm:$0xf]
  %v1667 = vunpack.c.l.b16 %v1644
  %v1668 = vunpack.c.l.b16 %v1645
  %v1669 = vunpack.c.l.b16 %v1646
  %v1670 = vpack.c.b16 %v1668, %v1667
  %v1671 = vpack.c.b16 %v1669, %v1669
  %v1673 = vshrl.u32 %v1670, 16
  %v1675 = vshll.u32 %v1670, 16
  %v1677 = vrot.slane %v1675, 1
  %v1678 = vor.u32 %v1673, %v1677
  %v1680 = vshll.u32 %v1671, 16
  %v1682 = vrot.slane %v1680, 1
  %v1683 = vsel %vm993, %v1678, %v1682
  %v1701 = vunpack.c.l.b16 %v1648
  %v1702 = vunpack.c.l.b16 %v1649
  %v1703 = vunpack.c.l.b16 %v1650
  %v1704 = vunpack.c.l.b16 %v1651
  %v1705 = vunpack.c.l.b16 %v1652
  %v1706 = vunpack.c.l.b16 %v1653
  %v1707 = vunpack.c.l.b16 %v1654
  %v1708 = vunpack.c.l.b16 %v1655
  %v1709 = vunpack.c.l.b16 %v1656
  %v1710 = vunpack.c.l.b16 %v1657
  %v1711 = vunpack.c.l.b16 %v1658
  %v1712 = vunpack.c.l.b16 %v1659
  %v1713 = vunpack.c.l.b16 %v1660
  %v1714 = vunpack.c.l.b16 %v1661
  %v1715 = vunpack.c.l.b16 %v1662
  %v1716 = vunpack.c.l.b16 %v1663
  %v1717 = vpack.c.b16 %v1702, %v1701
  %v1718 = vpack.c.b16 %v1704, %v1703
  %v1719 = vpack.c.b16 %v1706, %v1705
  %v1720 = vpack.c.b16 %v1708, %v1707
  %v1721 = vpack.c.b16 %v1710, %v1709
  %v1722 = vpack.c.b16 %v1712, %v1711
  %v1723 = vpack.c.b16 %v1714, %v1713
  %v1724 = vpack.c.b16 %v1716, %v1715
  %1733 = vmatpush.bf16.msra.mxu0 %v1724
  %1734 = vmatpush.bf16.msra.mxu0 %v1723
  %1735 = vmatpush.bf16.msra.mxu0 %v1722
  %1736 = vmatpush.bf16.msra.mxu0 %v1721
  %1737 = vmatpush.bf16.msra.mxu0 %v1720
  %1738 = vmatpush.bf16.msra.mxu0 %v1719
  %1739 = vmatpush.bf16.msra.mxu0 %v1718
  %1740 = vmatpush.bf16.msra.mxu0 %v1717
  %1741 = vmatmul.bf16.gmra.mxu0 %v1683
  %v1742 = vpop.f32.mrf.mxu0
  %v1743 = vadd.f32 0.0, %v1742
  %v1744 = vpop.f32.mrf.mxu0
  %v1745 = vadd.f32 0.0, %v1744
  %1746 = vdwg.mxu0
  %v1747 = vadd.f32 %v1642, %v1743
  %v1748 = vadd.f32 %v1643, %v1745
  %v1749 = vld [vmem:[#allocation2 + $0x8] sm:$0xe]
  %s1750 = scalar_lea.vmem %s4, 576
  %v1751 = vld [vmem:[%s1750] sm:$0xf]
  %v1752 = vld [vmem:[%s1750 + $0x4] sm:$0xf]
  %v1753 = vld [vmem:[%s1750 + $0x8] sm:$0xf]
  %v1754 = vld [vmem:[%s1750 + $0xc] sm:$0xf]
  %v1755 = vld [vmem:[%s1750 + $0x10] sm:$0xf]
  %v1756 = vld [vmem:[%s1750 + $0x14] sm:$0xf]
  %v1757 = vld [vmem:[%s1750 + $0x18] sm:$0xf]
  %v1758 = vld [vmem:[%s1750 + $0x1c] sm:$0xf]
  %v1759 = vld [vmem:[%s1750 + $0x20] sm:$0xf]
  %v1760 = vld [vmem:[%s1750 + $0x24] sm:$0xf]
  %v1761 = vld [vmem:[%s1750 + $0x28] sm:$0xf]
  %v1762 = vld [vmem:[%s1750 + $0x2c] sm:$0xf]
  %v1763 = vld [vmem:[%s1750 + $0x30] sm:$0xf]
  %v1764 = vld [vmem:[%s1750 + $0x34] sm:$0xf]
  %v1765 = vld [vmem:[%s1750 + $0x38] sm:$0xf]
  %v1766 = vld [vmem:[%s1750 + $0x3c] sm:$0xf]
  %v1768 = vunpack.c.l.b16 %v1749
  %v1769 = vpack.c.b16 %v1668, %v1768
  %v1770 = vrot.slane %v1769, 1
  %v1771 = vrot.slane %v1671, 1
  %v1772 = vsel %vm923, %v1770, %v1771
  %v1790 = vunpack.c.l.b16 %v1751
  %v1791 = vunpack.c.l.b16 %v1752
  %v1792 = vunpack.c.l.b16 %v1753
  %v1793 = vunpack.c.l.b16 %v1754
  %v1794 = vunpack.c.l.b16 %v1755
  %v1795 = vunpack.c.l.b16 %v1756
  %v1796 = vunpack.c.l.b16 %v1757
  %v1797 = vunpack.c.l.b16 %v1758
  %v1798 = vunpack.c.l.b16 %v1759
  %v1799 = vunpack.c.l.b16 %v1760
  %v1800 = vunpack.c.l.b16 %v1761
  %v1801 = vunpack.c.l.b16 %v1762
  %v1802 = vunpack.c.l.b16 %v1763
  %v1803 = vunpack.c.l.b16 %v1764
  %v1804 = vunpack.c.l.b16 %v1765
  %v1805 = vunpack.c.l.b16 %v1766
  %v1806 = vpack.c.b16 %v1791, %v1790
  %v1807 = vpack.c.b16 %v1793, %v1792
  %v1808 = vpack.c.b16 %v1795, %v1794
  %v1809 = vpack.c.b16 %v1797, %v1796
  %v1810 = vpack.c.b16 %v1799, %v1798
  %v1811 = vpack.c.b16 %v1801, %v1800
  %v1812 = vpack.c.b16 %v1803, %v1802
  %v1813 = vpack.c.b16 %v1805, %v1804
  %1822 = vmatpush.bf16.msra.mxu0 %v1813
  %1823 = vmatpush.bf16.msra.mxu0 %v1812
  %1824 = vmatpush.bf16.msra.mxu0 %v1811
  %1825 = vmatpush.bf16.msra.mxu0 %v1810
  %1826 = vmatpush.bf16.msra.mxu0 %v1809
  %1827 = vmatpush.bf16.msra.mxu0 %v1808
  %1828 = vmatpush.bf16.msra.mxu0 %v1807
  %1829 = vmatpush.bf16.msra.mxu0 %v1806
  %1830 = vmatmul.bf16.gmra.mxu0 %v1772
  %v1831 = vpop.f32.mrf.mxu0
  %v1832 = vadd.f32 0.0, %v1831
  %v1833 = vpop.f32.mrf.mxu0
  %v1834 = vadd.f32 0.0, %v1833
  %1835 = vdwg.mxu0
  %v1836 = vadd.f32 %v1747, %v1832
  %v1837 = vadd.f32 %v1748, %v1834
  %v1838 = vld [vmem:[#allocation2 + $0x10] sm:$0x3]
  %s1839 = scalar_lea.vmem %s4, 640
  %v1840 = vld [vmem:[%s1839] sm:$0xf]
  %v1841 = vld [vmem:[%s1839 + $0x4] sm:$0xf]
  %v1842 = vld [vmem:[%s1839 + $0x8] sm:$0xf]
  %v1843 = vld [vmem:[%s1839 + $0xc] sm:$0xf]
  %v1844 = vld [vmem:[%s1839 + $0x10] sm:$0xf]
  %v1845 = vld [vmem:[%s1839 + $0x14] sm:$0xf]
  %v1846 = vld [vmem:[%s1839 + $0x18] sm:$0xf]
  %v1847 = vld [vmem:[%s1839 + $0x1c] sm:$0xf]
  %v1848 = vld [vmem:[%s1839 + $0x20] sm:$0xf]
  %v1849 = vld [vmem:[%s1839 + $0x24] sm:$0xf]
  %v1850 = vld [vmem:[%s1839 + $0x28] sm:$0xf]
  %v1851 = vld [vmem:[%s1839 + $0x2c] sm:$0xf]
  %v1852 = vld [vmem:[%s1839 + $0x30] sm:$0xf]
  %v1853 = vld [vmem:[%s1839 + $0x34] sm:$0xf]
  %v1854 = vld [vmem:[%s1839 + $0x38] sm:$0xf]
  %v1855 = vld [vmem:[%s1839 + $0x3c] sm:$0xf]
  %v1857 = vunpack.c.l.b16 %v1838
  %v1858 = vpack.c.b16 %v1857, %v1857
  %v1860 = vshrl.u32 %v1769, 16
  %v1862 = vrot.slane %v1860, 1
  %v1863 = vshll.u32 %v1769, 16
  %v1865 = vrot.slane %v1863, 2
  %v1866 = vor.u32 %v1862, %v1865
  %v1868 = vshrl.u32 %v1858, 16
  %v1870 = vrot.slane %v1868, 1
  %v1871 = vshll.u32 %v1858, 16
  %v1873 = vrot.slane %v1871, 2
  %v1874 = vor.u32 %v1870, %v1873
  %v1875 = vsel %vm1090, %v1866, %v1874
  %v1893 = vunpack.c.l.b16 %v1840
  %v1894 = vunpack.c.l.b16 %v1841
  %v1895 = vunpack.c.l.b16 %v1842
  %v1896 = vunpack.c.l.b16 %v1843
  %v1897 = vunpack.c.l.b16 %v1844
  %v1898 = vunpack.c.l.b16 %v1845
  %v1899 = vunpack.c.l.b16 %v1846
  %v1900 = vunpack.c.l.b16 %v1847
  %v1901 = vunpack.c.l.b16 %v1848
  %v1902 = vunpack.c.l.b16 %v1849
  %v1903 = vunpack.c.l.b16 %v1850
  %v1904 = vunpack.c.l.b16 %v1851
  %v1905 = vunpack.c.l.b16 %v1852
  %v1906 = vunpack.c.l.b16 %v1853
  %v1907 = vunpack.c.l.b16 %v1854
  %v1908 = vunpack.c.l.b16 %v1855
  %v1909 = vpack.c.b16 %v1894, %v1893
  %v1910 = vpack.c.b16 %v1896, %v1895
  %v1911 = vpack.c.b16 %v1898, %v1897
  %v1912 = vpack.c.b16 %v1900, %v1899
  %v1913 = vpack.c.b16 %v1902, %v1901
  %v1914 = vpack.c.b16 %v1904, %v1903
  %v1915 = vpack.c.b16 %v1906, %v1905
  %v1916 = vpack.c.b16 %v1908, %v1907
  %1925 = vmatpush.bf16.msra.mxu0 %v1916
  %1926 = vmatpush.bf16.msra.mxu0 %v1915
  %1927 = vmatpush.bf16.msra.mxu0 %v1914
  %1928 = vmatpush.bf16.msra.mxu0 %v1913
  %1929 = vmatpush.bf16.msra.mxu0 %v1912
  %1930 = vmatpush.bf16.msra.mxu0 %v1911
  %1931 = vmatpush.bf16.msra.mxu0 %v1910
  %1932 = vmatpush.bf16.msra.mxu0 %v1909
  %1933 = vmatmul.bf16.gmra.mxu0 %v1875
  %v1934 = vpop.f32.mrf.mxu0
  %v1935 = vadd.f32 0.0, %v1934
  %v1936 = vpop.f32.mrf.mxu0
  %v1937 = vadd.f32 0.0, %v1936
  %1938 = vdwg.mxu0
  %v1939 = vadd.f32 %v1836, %v1935
  %v1940 = vadd.f32 %v1837, %v1937
  %v1941 = vld [vmem:[#allocation2 + $0x8] sm:$0xc]
  %s1942 = scalar_lea.vmem %s4, 704
  %v1943 = vld [vmem:[%s1942] sm:$0xf]
  %v1944 = vld [vmem:[%s1942 + $0x4] sm:$0xf]
  %v1945 = vld [vmem:[%s1942 + $0x8] sm:$0xf]
  %v1946 = vld [vmem:[%s1942 + $0xc] sm:$0xf]
  %v1947 = vld [vmem:[%s1942 + $0x10] sm:$0xf]
  %v1948 = vld [vmem:[%s1942 + $0x14] sm:$0xf]
  %v1949 = vld [vmem:[%s1942 + $0x18] sm:$0xf]
  %v1950 = vld [vmem:[%s1942 + $0x1c] sm:$0xf]
  %v1951 = vld [vmem:[%s1942 + $0x20] sm:$0xf]
  %v1952 = vld [vmem:[%s1942 + $0x24] sm:$0xf]
  %v1953 = vld [vmem:[%s1942 + $0x28] sm:$0xf]
  %v1954 = vld [vmem:[%s1942 + $0x2c] sm:$0xf]
  %v1955 = vld [vmem:[%s1942 + $0x30] sm:$0xf]
  %v1956 = vld [vmem:[%s1942 + $0x34] sm:$0xf]
  %v1957 = vld [vmem:[%s1942 + $0x38] sm:$0xf]
  %v1958 = vld [vmem:[%s1942 + $0x3c] sm:$0xf]
  %v1960 = vunpack.c.l.b16 %v1941
  %v1961 = vpack.c.b16 %v1668, %v1960
  %v1962 = vrot.slane %v1961, 2
  %v1963 = vrot.slane %v1858, 2
  %v1964 = vsel %vm1194, %v1962, %v1963
  %v1982 = vunpack.c.l.b16 %v1943
  %v1983 = vunpack.c.l.b16 %v1944
  %v1984 = vunpack.c.l.b16 %v1945
  %v1985 = vunpack.c.l.b16 %v1946
  %v1986 = vunpack.c.l.b16 %v1947
  %v1987 = vunpack.c.l.b16 %v1948
  %v1988 = vunpack.c.l.b16 %v1949
  %v1989 = vunpack.c.l.b16 %v1950
  %v1990 = vunpack.c.l.b16 %v1951
  %v1991 = vunpack.c.l.b16 %v1952
  %v1992 = vunpack.c.l.b16 %v1953
  %v1993 = vunpack.c.l.b16 %v1954
  %v1994 = vunpack.c.l.b16 %v1955
  %v1995 = vunpack.c.l.b16 %v1956
  %v1996 = vunpack.c.l.b16 %v1957
  %v1997 = vunpack.c.l.b16 %v1958
  %v1998 = vpack.c.b16 %v1983, %v1982
  %v1999 = vpack.c.b16 %v1985, %v1984
  %v2000 = vpack.c.b16 %v1987, %v1986
  %v2001 = vpack.c.b16 %v1989, %v1988
  %v2002 = vpack.c.b16 %v1991, %v1990
  %v2003 = vpack.c.b16 %v1993, %v1992
  %v2004 = vpack.c.b16 %v1995, %v1994
  %v2005 = vpack.c.b16 %v1997, %v1996
  %2014 = vmatpush.bf16.msra.mxu0 %v2005
  %2015 = vmatpush.bf16.msra.mxu0 %v2004
  %2016 = vmatpush.bf16.msra.mxu0 %v2003
  %2017 = vmatpush.bf16.msra.mxu0 %v2002
  %2018 = vmatpush.bf16.msra.mxu0 %v2001
  %2019 = vmatpush.bf16.msra.mxu0 %v2000
  %2020 = vmatpush.bf16.msra.mxu0 %v1999
  %2021 = vmatpush.bf16.msra.mxu0 %v1998
  %2022 = vmatmul.bf16.gmra.mxu0 %v1964
  %v2023 = vpop.f32.mrf.mxu0
  %v2024 = vadd.f32 0.0, %v2023
  %v2025 = vpop.f32.mrf.mxu0
  %v2026 = vadd.f32 0.0, %v2025
  %2027 = vdwg.mxu0
  %v2028 = vadd.f32 %v1939, %v2024
  %v2029 = vadd.f32 %v1940, %v2026
  %v2030 = vld [vmem:[#allocation2 + $0x10] sm:$0x7]
  %s2031 = scalar_lea.vmem %s4, 768
  %v2032 = vld [vmem:[%s2031] sm:$0xf]
  %v2033 = vld [vmem:[%s2031 + $0x4] sm:$0xf]
  %v2034 = vld [vmem:[%s2031 + $0x8] sm:$0xf]
  %v2035 = vld [vmem:[%s2031 + $0xc] sm:$0xf]
  %v2036 = vld [vmem:[%s2031 + $0x10] sm:$0xf]
  %v2037 = vld [vmem:[%s2031 + $0x14] sm:$0xf]
  %v2038 = vld [vmem:[%s2031 + $0x18] sm:$0xf]
  %v2039 = vld [vmem:[%s2031 + $0x1c] sm:$0xf]
  %v2040 = vld [vmem:[%s2031 + $0x20] sm:$0xf]
  %v2041 = vld [vmem:[%s2031 + $0x24] sm:$0xf]
  %v2042 = vld [vmem:[%s2031 + $0x28] sm:$0xf]
  %v2043 = vld [vmem:[%s2031 + $0x2c] sm:$0xf]
  %v2044 = vld [vmem:[%s2031 + $0x30] sm:$0xf]
  %v2045 = vld [vmem:[%s2031 + $0x34] sm:$0xf]
  %v2046 = vld [vmem:[%s2031 + $0x38] sm:$0xf]
  %v2047 = vld [vmem:[%s2031 + $0x3c] sm:$0xf]
  %v2049 = vunpack.c.l.b16 %v2030
  %v2050 = vpack.c.b16 %v2049, %v2049
  %v2052 = vshrl.u32 %v1961, 16
  %v2054 = vrot.slane %v2052, 2
  %v2055 = vshll.u32 %v1961, 16
  %v2057 = vrot.slane %v2055, 3
  %v2058 = vor.u32 %v2054, %v2057
  %v2060 = vshrl.u32 %v2050, 16
  %v2062 = vrot.slane %v2060, 2
  %v2063 = vshll.u32 %v2050, 16
  %v2065 = vrot.slane %v2063, 3
  %v2066 = vor.u32 %v2062, %v2065
  %v2067 = vsel %vm1284, %v2058, %v2066
  %v2085 = vunpack.c.l.b16 %v2032
  %v2086 = vunpack.c.l.b16 %v2033
  %v2087 = vunpack.c.l.b16 %v2034
  %v2088 = vunpack.c.l.b16 %v2035
  %v2089 = vunpack.c.l.b16 %v2036
  %v2090 = vunpack.c.l.b16 %v2037
  %v2091 = vunpack.c.l.b16 %v2038
  %v2092 = vunpack.c.l.b16 %v2039
  %v2093 = vunpack.c.l.b16 %v2040
  %v2094 = vunpack.c.l.b16 %v2041
  %v2095 = vunpack.c.l.b16 %v2042
  %v2096 = vunpack.c.l.b16 %v2043
  %v2097 = vunpack.c.l.b16 %v2044
  %v2098 = vunpack.c.l.b16 %v2045
  %v2099 = vunpack.c.l.b16 %v2046
  %v2100 = vunpack.c.l.b16 %v2047
  %v2101 = vpack.c.b16 %v2086, %v2085
  %v2102 = vpack.c.b16 %v2088, %v2087
  %v2103 = vpack.c.b16 %v2090, %v2089
  %v2104 = vpack.c.b16 %v2092, %v2091
  %v2105 = vpack.c.b16 %v2094, %v2093
  %v2106 = vpack.c.b16 %v2096, %v2095
  %v2107 = vpack.c.b16 %v2098, %v2097
  %v2108 = vpack.c.b16 %v2100, %v2099
  %2117 = vmatpush.bf16.msra.mxu0 %v2108
  %2118 = vmatpush.bf16.msra.mxu0 %v2107
  %2119 = vmatpush.bf16.msra.mxu0 %v2106
  %2120 = vmatpush.bf16.msra.mxu0 %v2105
  %2121 = vmatpush.bf16.msra.mxu0 %v2104
  %2122 = vmatpush.bf16.msra.mxu0 %v2103
  %2123 = vmatpush.bf16.msra.mxu0 %v2102
  %2124 = vmatpush.bf16.msra.mxu0 %v2101
  %2125 = vmatmul.bf16.gmra.mxu0 %v2067
  %v2126 = vpop.f32.mrf.mxu0
  %v2127 = vadd.f32 0.0, %v2126
  %v2128 = vpop.f32.mrf.mxu0
  %v2129 = vadd.f32 0.0, %v2128
  %2130 = vdwg.mxu0
  %v2131 = vadd.f32 %v2028, %v2127
  %v2132 = vadd.f32 %v2029, %v2129
  %v2133 = vld [vmem:[#allocation2 + $0x8] sm:$0x8]
  %s2134 = scalar_lea.vmem %s4, 832
  %v2135 = vld [vmem:[%s2134] sm:$0xf]
  %v2136 = vld [vmem:[%s2134 + $0x4] sm:$0xf]
  %v2137 = vld [vmem:[%s2134 + $0x8] sm:$0xf]
  %v2138 = vld [vmem:[%s2134 + $0xc] sm:$0xf]
  %v2139 = vld [vmem:[%s2134 + $0x10] sm:$0xf]
  %v2140 = vld [vmem:[%s2134 + $0x14] sm:$0xf]
  %v2141 = vld [vmem:[%s2134 + $0x18] sm:$0xf]
  %v2142 = vld [vmem:[%s2134 + $0x1c] sm:$0xf]
  %v2143 = vld [vmem:[%s2134 + $0x20] sm:$0xf]
  %v2144 = vld [vmem:[%s2134 + $0x24] sm:$0xf]
  %v2145 = vld [vmem:[%s2134 + $0x28] sm:$0xf]
  %v2146 = vld [vmem:[%s2134 + $0x2c] sm:$0xf]
  %v2147 = vld [vmem:[%s2134 + $0x30] sm:$0xf]
  %v2148 = vld [vmem:[%s2134 + $0x34] sm:$0xf]
  %v2149 = vld [vmem:[%s2134 + $0x38] sm:$0xf]
  %v2150 = vld [vmem:[%s2134 + $0x3c] sm:$0xf]
  %v2152 = vunpack.c.l.b16 %v2133
  %v2153 = vpack.c.b16 %v1668, %v2152
  %v2154 = vrot.slane %v2153, 3
  %v2155 = vrot.slane %v2050, 3
  %v2156 = vsel %vm1388, %v2154, %v2155
  %v2174 = vunpack.c.l.b16 %v2135
  %v2175 = vunpack.c.l.b16 %v2136
  %v2176 = vunpack.c.l.b16 %v2137
  %v2177 = vunpack.c.l.b16 %v2138
  %v2178 = vunpack.c.l.b16 %v2139
  %v2179 = vunpack.c.l.b16 %v2140
  %v2180 = vunpack.c.l.b16 %v2141
  %v2181 = vunpack.c.l.b16 %v2142
  %v2182 = vunpack.c.l.b16 %v2143
  %v2183 = vunpack.c.l.b16 %v2144
  %v2184 = vunpack.c.l.b16 %v2145
  %v2185 = vunpack.c.l.b16 %v2146
  %v2186 = vunpack.c.l.b16 %v2147
  %v2187 = vunpack.c.l.b16 %v2148
  %v2188 = vunpack.c.l.b16 %v2149
  %v2189 = vunpack.c.l.b16 %v2150
  %v2190 = vpack.c.b16 %v2175, %v2174
  %v2191 = vpack.c.b16 %v2177, %v2176
  %v2192 = vpack.c.b16 %v2179, %v2178
  %v2193 = vpack.c.b16 %v2181, %v2180
  %v2194 = vpack.c.b16 %v2183, %v2182
  %v2195 = vpack.c.b16 %v2185, %v2184
  %v2196 = vpack.c.b16 %v2187, %v2186
  %v2197 = vpack.c.b16 %v2189, %v2188
  %2206 = vmatpush.bf16.msra.mxu0 %v2197
  %2207 = vmatpush.bf16.msra.mxu0 %v2196
  %2208 = vmatpush.bf16.msra.mxu0 %v2195
  %2209 = vmatpush.bf16.msra.mxu0 %v2194
  %2210 = vmatpush.bf16.msra.mxu0 %v2193
  %2211 = vmatpush.bf16.msra.mxu0 %v2192
  %2212 = vmatpush.bf16.msra.mxu0 %v2191
  %2213 = vmatpush.bf16.msra.mxu0 %v2190
  %2214 = vmatmul.bf16.gmra.mxu0 %v2156
  %v2215 = vpop.f32.mrf.mxu0
  %v2216 = vadd.f32 0.0, %v2215
  %v2217 = vpop.f32.mrf.mxu0
  %v2218 = vadd.f32 0.0, %v2217
  %2219 = vdwg.mxu0
  %v2220 = vadd.f32 %v2131, %v2216
  %v2221 = vadd.f32 %v2132, %v2218
  %v2222 = vld [vmem:[#allocation2 + $0x10] sm:$0xf]
  %s2223 = scalar_lea.vmem %s4, 896
  %v2224 = vld [vmem:[%s2223] sm:$0xf]
  %v2225 = vld [vmem:[%s2223 + $0x4] sm:$0xf]
  %v2226 = vld [vmem:[%s2223 + $0x8] sm:$0xf]
  %v2227 = vld [vmem:[%s2223 + $0xc] sm:$0xf]
  %v2228 = vld [vmem:[%s2223 + $0x10] sm:$0xf]
  %v2229 = vld [vmem:[%s2223 + $0x14] sm:$0xf]
  %v2230 = vld [vmem:[%s2223 + $0x18] sm:$0xf]
  %v2231 = vld [vmem:[%s2223 + $0x1c] sm:$0xf]
  %v2232 = vld [vmem:[%s2223 + $0x20] sm:$0xf]
  %v2233 = vld [vmem:[%s2223 + $0x24] sm:$0xf]
  %v2234 = vld [vmem:[%s2223 + $0x28] sm:$0xf]
  %v2235 = vld [vmem:[%s2223 + $0x2c] sm:$0xf]
  %v2236 = vld [vmem:[%s2223 + $0x30] sm:$0xf]
  %v2237 = vld [vmem:[%s2223 + $0x34] sm:$0xf]
  %v2238 = vld [vmem:[%s2223 + $0x38] sm:$0xf]
  %v2239 = vld [vmem:[%s2223 + $0x3c] sm:$0xf]
  %v2241 = vunpack.c.l.b16 %v2222
  %v2242 = vpack.c.b16 %v2241, %v2241
  %v2244 = vshrl.u32 %v2153, 16
  %v2246 = vrot.slane %v2244, 3
  %v2247 = vshll.u32 %v2153, 16
  %v2249 = vrot.slane %v2247, 4
  %v2250 = vor.u32 %v2246, %v2249
  %v2252 = vshrl.u32 %v2242, 16
  %v2254 = vrot.slane %v2252, 3
  %v2255 = vshll.u32 %v2242, 16
  %v2257 = vrot.slane %v2255, 4
  %v2258 = vor.u32 %v2254, %v2257
  %v2259 = vsel %vm1478, %v2250, %v2258
  %v2277 = vunpack.c.l.b16 %v2224
  %v2278 = vunpack.c.l.b16 %v2225
  %v2279 = vunpack.c.l.b16 %v2226
  %v2280 = vunpack.c.l.b16 %v2227
  %v2281 = vunpack.c.l.b16 %v2228
  %v2282 = vunpack.c.l.b16 %v2229
  %v2283 = vunpack.c.l.b16 %v2230
  %v2284 = vunpack.c.l.b16 %v2231
  %v2285 = vunpack.c.l.b16 %v2232
  %v2286 = vunpack.c.l.b16 %v2233
  %v2287 = vunpack.c.l.b16 %v2234
  %v2288 = vunpack.c.l.b16 %v2235
  %v2289 = vunpack.c.l.b16 %v2236
  %v2290 = vunpack.c.l.b16 %v2237
  %v2291 = vunpack.c.l.b16 %v2238
  %v2292 = vunpack.c.l.b16 %v2239
  %v2293 = vpack.c.b16 %v2278, %v2277
  %v2294 = vpack.c.b16 %v2280, %v2279
  %v2295 = vpack.c.b16 %v2282, %v2281
  %v2296 = vpack.c.b16 %v2284, %v2283
  %v2297 = vpack.c.b16 %v2286, %v2285
  %v2298 = vpack.c.b16 %v2288, %v2287
  %v2299 = vpack.c.b16 %v2290, %v2289
  %v2300 = vpack.c.b16 %v2292, %v2291
  %2309 = vmatpush.bf16.msra.mxu0 %v2300
  %2310 = vmatpush.bf16.msra.mxu0 %v2299
  %2311 = vmatpush.bf16.msra.mxu0 %v2298
  %2312 = vmatpush.bf16.msra.mxu0 %v2297
  %2313 = vmatpush.bf16.msra.mxu0 %v2296
  %2314 = vmatpush.bf16.msra.mxu0 %v2295
  %2315 = vmatpush.bf16.msra.mxu0 %v2294
  %2316 = vmatpush.bf16.msra.mxu0 %v2293
  %2317 = vmatmul.bf16.gmra.mxu0 %v2259
  %v2318 = vpop.f32.mrf.mxu0
  %v2319 = vadd.f32 0.0, %v2318
  %v2320 = vpop.f32.mrf.mxu0
  %v2321 = vadd.f32 0.0, %v2320
  %2322 = vdwg.mxu0
  %v2323 = vadd.f32 %v2220, %v2319
  %v2324 = vadd.f32 %v2221, %v2321
  %v2325 = vld [vmem:[%s5] sm:$0x1]
  %v2327 = vperm.slane %v2325, 0
  %v2329 = vadd.f32 %v2323, %v2327
  %v2330 = vadd.f32 %v2324, %v2327
  %v2331 = vld [vmem:[%s6] sm:$0xff]
  %v2332 = vld [vmem:[%s6 + $0x8] sm:$0xff]
  %v2333 = vld [vmem:[%s6 + $0x10] sm:$0xff]
  %v2334 = vld [vmem:[%s6 + $0x18] sm:$0xff]
  %vm2335 = vcmask 130048
  %v2337 = vsel %vm2335, %v2331, 0
  %v2340 = vsel %vm2335, %v2332, 0
  %v2343 = vsel %vm2335, %v2333, 0
  %v2346 = vsel %vm2335, %v2334, 0
  %2348 = vmatpush.msra.mxu0 0.0
  %2349 = vmatpush.msra.mxu0 0.0
  %2350 = vmatpush.msra.mxu0 0.0
  %2351 = vmatpush.msra.mxu0 0.0
  %2352 = vmatpush.msra.mxu0 0.0
  %2353 = vmatpush.msra.mxu0 0.0
  %2354 = vmatpush.msra.mxu0 0.0
  %2355 = vmatpush.msra.mxu0 0.0
  %2356 = vmatpush.msra.mxu0 0.0
  %2357 = vmatpush.msra.mxu0 0.0
  %2358 = vmatpush.msra.mxu0 0.0
  %2359 = vmatpush.msra.mxu0 0.0
  %2360 = vmatpush.msra.mxu0 0.0
  %2361 = vmatpush.msra.mxu0 0.0
  %2362 = vmatpush.msra.mxu0 %v2330
  %2363 = vmatpush.msra.mxu0 %v2329
  %2364 = vmatmul.f32.gmra.mxu0 %v2337
  %v2365 = vpop.f32.mrf.mxu0
  %v2366 = vadd.f32 0.0, %v2365
  %2367 = vmatmul.f32.gmra.mxu0 %v2340
  %v2368 = vpop.f32.mrf.mxu0
  %v2369 = vadd.f32 0.0, %v2368
  %2370 = vmatmul.f32.gmra.mxu0 %v2343
  %v2371 = vpop.f32.mrf.mxu0
  %v2372 = vadd.f32 0.0, %v2371
  %2373 = vmatmul.f32.gmra.mxu0 %v2346
  %v2374 = vpop.f32.mrf.mxu0
  %v2375 = vadd.f32 0.0, %v2374
  %2376 = vdwg.mxu0
  %v2377 = vld [vmem:[%s7] sm:$0xff]
  %v2378 = vld [vmem:[%s7 + $0x8] sm:$0xff]
  %v2379 = vld [vmem:[%s7 + $0x10] sm:$0xff]
  %v2380 = vld [vmem:[%s7 + $0x18] sm:$0xff]
  %v2381 = vld [vmem:[%s7 + $0x20] sm:$0xff]
  %v2382 = vld [vmem:[%s7 + $0x28] sm:$0xff]
  %v2383 = vld [vmem:[%s7 + $0x30] sm:$0xff]
  %v2384 = vld [vmem:[%s7 + $0x38] sm:$0xff]
  %v2385 = vld [vmem:[%s7 + $0x40] sm:$0xff]
  %v2386 = vld [vmem:[%s7 + $0x48] sm:$0xff]
  %v2387 = vld [vmem:[%s7 + $0x50] sm:$0xff]
  %v2388 = vld [vmem:[%s7 + $0x58] sm:$0xff]
  %v2389 = vld [vmem:[%s7 + $0x60] sm:$0xff]
  %v2390 = vld [vmem:[%s7 + $0x68] sm:$0xff]
  %v2391 = vld [vmem:[%s7 + $0x70] sm:$0xff]
  %v2392 = vld [vmem:[%s7 + $0x78] sm:$0xff]
  %v2393 = vld [vmem:[%s7 + $0x80] sm:$0xff]
  %v2394 = vld [vmem:[%s7 + $0x88] sm:$0xff]
  %v2395 = vld [vmem:[%s7 + $0x90] sm:$0xff]
  %v2396 = vld [vmem:[%s7 + $0x98] sm:$0xff]
  %v2397 = vld [vmem:[%s7 + $0xa0] sm:$0xff]
  %v2398 = vld [vmem:[%s7 + $0xa8] sm:$0xff]
  %v2399 = vld [vmem:[%s7 + $0xb0] sm:$0xff]
  %v2400 = vld [vmem:[%s7 + $0xb8] sm:$0xff]
  %v2401 = vld [vmem:[%s7 + $0xc0] sm:$0xff]
  %v2402 = vld [vmem:[%s7 + $0xc8] sm:$0xff]
  %v2403 = vld [vmem:[%s7 + $0xd0] sm:$0xff]
  %v2404 = vld [vmem:[%s7 + $0xd8] sm:$0xff]
  %v2405 = vld [vmem:[%s7 + $0xe0] sm:$0xff]
  %v2406 = vld [vmem:[%s7 + $0xe8] sm:$0xff]
  %v2407 = vld [vmem:[%s7 + $0xf0] sm:$0xff]
  %v2408 = vld [vmem:[%s7 + $0xf8] sm:$0xff]
  %2409 = vmatpush.msra.mxu0 %v2407
  %2410 = vmatpush.msra.mxu0 %v2405
  %2411 = vmatpush.msra.mxu0 %v2403
  %2412 = vmatpush.msra.mxu0 %v2401
  %2413 = vmatpush.msra.mxu0 %v2399
  %2414 = vmatpush.msra.mxu0 %v2397
  %2415 = vmatpush.msra.mxu0 %v2395
  %2416 = vmatpush.msra.mxu0 %v2393
  %2417 = vmatpush.msra.mxu0 %v2391
  %2418 = vmatpush.msra.mxu0 %v2389
  %2419 = vmatpush.msra.mxu0 %v2387
  %2420 = vmatpush.msra.mxu0 %v2385
  %2421 = vmatpush.msra.mxu0 %v2383
  %2422 = vmatpush.msra.mxu0 %v2381
  %2423 = vmatpush.msra.mxu0 %v2379
  %2424 = vmatpush.msra.mxu0 %v2377
  %2425 = vmatmul.f32.gmra.mxu0 %v2366
  %v2426 = vpop.f32.mrf.mxu0
  %v2427 = vadd.f32 0.0, %v2426
  %2428 = vmatmul.f32.gmra.mxu0 %v2369
  %v2429 = vpop.f32.mrf.mxu0
  %v2430 = vadd.f32 0.0, %v2429
  %2431 = vmatmul.f32.gmra.mxu0 %v2372
  %v2432 = vpop.f32.mrf.mxu0
  %v2433 = vadd.f32 0.0, %v2432
  %2434 = vmatmul.f32.gmra.mxu0 %v2375
  %v2435 = vpop.f32.mrf.mxu0
  %v2436 = vadd.f32 0.0, %v2435
  %2437 = vdwg.mxu0
  %2438 = vmatpush.msra.mxu0 %v2408
  %2439 = vmatpush.msra.mxu0 %v2406
  %2440 = vmatpush.msra.mxu0 %v2404
  %2441 = vmatpush.msra.mxu0 %v2402
  %2442 = vmatpush.msra.mxu0 %v2400
  %2443 = vmatpush.msra.mxu0 %v2398
  %2444 = vmatpush.msra.mxu0 %v2396
  %2445 = vmatpush.msra.mxu0 %v2394
  %2446 = vmatpush.msra.mxu0 %v2392
  %2447 = vmatpush.msra.mxu0 %v2390
  %2448 = vmatpush.msra.mxu0 %v2388
  %2449 = vmatpush.msra.mxu0 %v2386
  %2450 = vmatpush.msra.mxu0 %v2384
  %2451 = vmatpush.msra.mxu0 %v2382
  %2452 = vmatpush.msra.mxu0 %v2380
  %2453 = vmatpush.msra.mxu0 %v2378
  %2454 = vmatmul.f32.gmra.mxu0 %v2366
  %v2455 = vpop.f32.mrf.mxu0
  %v2456 = vadd.f32 0.0, %v2455
  %2457 = vmatmul.f32.gmra.mxu0 %v2369
  %v2458 = vpop.f32.mrf.mxu0
  %v2459 = vadd.f32 0.0, %v2458
  %2460 = vmatmul.f32.gmra.mxu0 %v2372
  %v2461 = vpop.f32.mrf.mxu0
  %v2462 = vadd.f32 0.0, %v2461
  %2463 = vmatmul.f32.gmra.mxu0 %v2375
  %v2464 = vpop.f32.mrf.mxu0
  %v2465 = vadd.f32 0.0, %v2464
  %2466 = vdwg.mxu0
  %2467 = vst [vmem:[%s8] sm:$0xff] %v2427
  %2468 = vst [vmem:[%s8 + $0x8] sm:$0xff] %v2456
  %2469 = vst [vmem:[%s8 + $0x10] sm:$0xff] %v2430
  %2470 = vst [vmem:[%s8 + $0x18] sm:$0xff] %v2459
  %2471 = vst [vmem:[%s8 + $0x20] sm:$0xff] %v2433
  %2472 = vst [vmem:[%s8 + $0x28] sm:$0xff] %v2462
  %2473 = vst [vmem:[%s8 + $0x30] sm:$0xff] %v2436
  %2474 = vst [vmem:[%s8 + $0x38] sm:$0xff] %v2465
  // Predicated region
  $region34: #{csp_lsn_forward.10} parent=0 // pred_check
    _
  $region35: #{csp_lsn_forward.10} parent=0 // pred_check_branch
    %2476 = sbr.rel (0) target = $region37
  $region36: #{csp_lsn_forward.10} parent=0 // pred_region
    _
  $region37: #{csp_lsn_forward.10} parent=0 // pred_fallthru
    _
  // Predicated region
  $region38: #{csp_lsn_forward.10} parent=0 // pred_check
    _
  $region39: #{csp_lsn_forward.10} parent=0 // pred_check_branch
    %2478 = sbr.rel (0) target = $region41
  $region40: #{csp_lsn_forward.10} parent=0 // pred_region
    _
  $region41: #{csp_lsn_forward.10} parent=0 // pred_fallthru
    _

// kernel: csp_lsn_forward.11
$region0: #{csp_lsn_forward.11}
  #allocation0 [shape = 'u32[]', space=smem, size = 0x4, offset = 0x4, fixed_abs, tag = 'smem constant byte address 0x4 - core index']
  #allocation1 [shape = 'u32[72,128]{1,0:T(1,128)}', space=vmem, size = 0x9000, scoped, tag = 'internal scratch']
  %s0 = inlined_call_operand.vmem [shape: bf16[1,1024], index: 0, kind: input, shape index: {}]
  %s1 = inlined_call_operand.vmem [shape: bf16[4,1024], index: 1, kind: input, shape index: {}]
  %s2 = inlined_call_operand.vmem [shape: bf16[16,1024], index: 2, kind: input, shape index: {}]
  %s3 = inlined_call_operand.vmem [shape: bf16[64,1024], index: 3, kind: input, shape index: {}]
  %s4 = inlined_call_operand.vmem [shape: bf16[64,1024], index: 4, kind: input, shape index: {}]
  %s5 = inlined_call_operand.vmem [shape: bf16[1024,128], index: 5, kind: input, shape index: {}]
  %s6 = inlined_call_operand.vmem [shape: bf16[1024,128], index: 6, kind: input, shape index: {}]
  %s7 = inlined_call_operand.vmem [shape: bf16[1024,128], index: 7, kind: input, shape index: {}]
  %s8 = inlined_call_operand.vmem [shape: bf16[1024,128], index: 8, kind: input, shape index: {}]
  %s9 = inlined_call_operand.vmem [shape: bf16[1024,128], index: 9, kind: input, shape index: {}]
  %s10 = inlined_call_operand.vmem [shape: f32[1,128], index: 10, kind: input, shape index: {}]
  %s11 = inlined_call_operand.vmem [shape: f32[1,128], index: 11, kind: input, shape index: {}]
  %s12 = inlined_call_operand.vmem [shape: f32[1,128], index: 12, kind: input, shape index: {}]
  %s13 = inlined_call_operand.vmem [shape: f32[1,128], index: 13, kind: input, shape index: {}]
  %s14 = inlined_call_operand.vmem [shape: f32[1,128], index: 14, kind: input, shape index: {}]
  %s15 = inlined_call_operand.vmem [shape: bf16[1,128], index: 15, kind: output, shape index: {0}]
  %s16 = inlined_call_operand.vmem [shape: bf16[4,128], index: 16, kind: output, shape index: {1}]
  %s17 = inlined_call_operand.vmem [shape: bf16[16,128], index: 17, kind: output, shape index: {2}]
  %s18 = inlined_call_operand.vmem [shape: bf16[64,128], index: 18, kind: output, shape index: {3}]
  %s19 = inlined_call_operand.vmem [shape: bf16[64,128], index: 19, kind: output, shape index: {4}]
  %20 = xla_tuple %s15, %s16, %s17, %s18, %s19
  %s21 = sld [smem:[#allocation0]]
  $region102: #{csp_lsn_forward.11} parent=0
    _
  %s23 = ssub.s32 1, %s21
  %s24 = scalar_select 0, %s23, %s21
  // Predicated region
  $region2: #{csp_lsn_forward.11} parent=0 // pred_check
    _
  $region3: #{csp_lsn_forward.11} parent=0 // pred_check_branch
    %26 = sbr.rel (0) target = $region5
  $region4: #{csp_lsn_forward.11} parent=0 // pred_region
    _
  $region5: #{csp_lsn_forward.11} parent=0 // pred_fallthru
    _
  // Predicated region
  $region6: #{csp_lsn_forward.11} parent=0 // pred_check
    _
  $region7: #{csp_lsn_forward.11} parent=0 // pred_check_branch
    %28 = sbr.rel (0) target = $region9
  $region8: #{csp_lsn_forward.11} parent=0 // pred_region
    _
  $region9: #{csp_lsn_forward.11} parent=0 // pred_fallthru
    _
  // Predicated region
  $region10: #{csp_lsn_forward.11} parent=0 // pred_check
    _
  $region11: #{csp_lsn_forward.11} parent=0 // pred_check_branch
    %30 = sbr.rel (0) target = $region13
  $region12: #{csp_lsn_forward.11} parent=0 // pred_region
    _
  $region13: #{csp_lsn_forward.11} parent=0 // pred_fallthru
    _
  // Predicated region
  $region14: #{csp_lsn_forward.11} parent=0 // pred_check
    _
  $region15: #{csp_lsn_forward.11} parent=0 // pred_check_branch
    %32 = sbr.rel (0) target = $region17
  $region16: #{csp_lsn_forward.11} parent=0 // pred_region
    _
  $region17: #{csp_lsn_forward.11} parent=0 // pred_fallthru
    _
  // Predicated region
  $region18: #{csp_lsn_forward.11} parent=0 // pred_check
    _
  $region19: #{csp_lsn_forward.11} parent=0 // pred_check_branch
    %34 = sbr.rel (0) target = $region21
  $region20: #{csp_lsn_forward.11} parent=0 // pred_region
    _
  $region21: #{csp_lsn_forward.11} parent=0 // pred_fallthru
    _
  // Predicated region
  $region22: #{csp_lsn_forward.11} parent=0 // pred_check
    _
  $region23: #{csp_lsn_forward.11} parent=0 // pred_check_branch
    %36 = sbr.rel (0) target = $region25
  $region24: #{csp_lsn_forward.11} parent=0 // pred_region
    _
  $region25: #{csp_lsn_forward.11} parent=0 // pred_fallthru
    _
  // Predicated region
  $region26: #{csp_lsn_forward.11} parent=0 // pred_check
    _
  $region27: #{csp_lsn_forward.11} parent=0 // pred_check_branch
    %38 = sbr.rel (0) target = $region29
  $region28: #{csp_lsn_forward.11} parent=0 // pred_region
    _
  $region29: #{csp_lsn_forward.11} parent=0 // pred_fallthru
    _
  // Predicated region
  $region30: #{csp_lsn_forward.11} parent=0 // pred_check
    _
  $region31: #{csp_lsn_forward.11} parent=0 // pred_check_branch
    %40 = sbr.rel (0) target = $region33
  $region32: #{csp_lsn_forward.11} parent=0 // pred_region
    _
  $region33: #{csp_lsn_forward.11} parent=0 // pred_fallthru
    _
  // Predicated region
  $region34: #{csp_lsn_forward.11} parent=0 // pred_check
    _
  $region35: #{csp_lsn_forward.11} parent=0 // pred_check_branch
    %42 = sbr.rel (0) target = $region37
  $region36: #{csp_lsn_forward.11} parent=0 // pred_region
    _
  $region37: #{csp_lsn_forward.11} parent=0 // pred_fallthru
    _
  // Predicated region
  $region38: #{csp_lsn_forward.11} parent=0 // pred_check
    _
  $region39: #{csp_lsn_forward.11} parent=0 // pred_check_branch
    %44 = sbr.rel (0) target = $region41
  $region40: #{csp_lsn_forward.11} parent=0 // pred_region
    _
  $region41: #{csp_lsn_forward.11} parent=0 // pred_fallthru
    _
  // Predicated region
  $region42: #{csp_lsn_forward.11} parent=0 // pred_check
    _
  $region43: #{csp_lsn_forward.11} parent=0 // pred_check_branch
    %46 = sbr.rel (0) target = $region45
  $region44: #{csp_lsn_forward.11} parent=0 // pred_region
    _
  $region45: #{csp_lsn_forward.11} parent=0 // pred_fallthru
    _
  // Predicated region
  $region46: #{csp_lsn_forward.11} parent=0 // pred_check
    _
  $region47: #{csp_lsn_forward.11} parent=0 // pred_check_branch
    %48 = sbr.rel (0) target = $region49
  $region48: #{csp_lsn_forward.11} parent=0 // pred_region
    _
  $region49: #{csp_lsn_forward.11} parent=0 // pred_fallthru
    _
  // Predicated region
  $region50: #{csp_lsn_forward.11} parent=0 // pred_check
    _
  $region51: #{csp_lsn_forward.11} parent=0 // pred_check_branch
    %50 = sbr.rel (0) target = $region53
  $region52: #{csp_lsn_forward.11} parent=0 // pred_region
    _
  $region53: #{csp_lsn_forward.11} parent=0 // pred_fallthru
    _
  // Predicated region
  $region54: #{csp_lsn_forward.11} parent=0 // pred_check
    _
  $region55: #{csp_lsn_forward.11} parent=0 // pred_check_branch
    %52 = sbr.rel (0) target = $region57
  $region56: #{csp_lsn_forward.11} parent=0 // pred_region
    _
  $region57: #{csp_lsn_forward.11} parent=0 // pred_fallthru
    _
  // Predicated region
  $region58: #{csp_lsn_forward.11} parent=0 // pred_check
    _
  $region59: #{csp_lsn_forward.11} parent=0 // pred_check_branch
    %54 = sbr.rel (0) target = $region61
  $region60: #{csp_lsn_forward.11} parent=0 // pred_region
    _
  $region61: #{csp_lsn_forward.11} parent=0 // pred_fallthru
    _
  %v55 = vld [vmem:[%s0] sm:$0xff]
  %v56 = vld [vmem:[%s5] sm:$0xf]
  %v57 = vld [vmem:[%s5 + $0x4] sm:$0xf]
  %v58 = vld [vmem:[%s5 + $0x8] sm:$0xf]
  %v59 = vld [vmem:[%s5 + $0xc] sm:$0xf]
  %v60 = vld [vmem:[%s5 + $0x10] sm:$0xf]
  %v61 = vld [vmem:[%s5 + $0x14] sm:$0xf]
  %v62 = vld [vmem:[%s5 + $0x18] sm:$0xf]
  %v63 = vld [vmem:[%s5 + $0x1c] sm:$0xf]
  %v64 = vld [vmem:[%s5 + $0x20] sm:$0xf]
  %v65 = vld [vmem:[%s5 + $0x24] sm:$0xf]
  %v66 = vld [vmem:[%s5 + $0x28] sm:$0xf]
  %v67 = vld [vmem:[%s5 + $0x2c] sm:$0xf]
  %v68 = vld [vmem:[%s5 + $0x30] sm:$0xf]
  %v69 = vld [vmem:[%s5 + $0x34] sm:$0xf]
  %v70 = vld [vmem:[%s5 + $0x38] sm:$0xf]
  %v71 = vld [vmem:[%s5 + $0x3c] sm:$0xf]
  %v72 = vld [vmem:[%s5 + $0x40] sm:$0xf]
  %v73 = vld [vmem:[%s5 + $0x44] sm:$0xf]
  %v74 = vld [vmem:[%s5 + $0x48] sm:$0xf]
  %v75 = vld [vmem:[%s5 + $0x4c] sm:$0xf]
  %v76 = vld [vmem:[%s5 + $0x50] sm:$0xf]
  %v77 = vld [vmem:[%s5 + $0x54] sm:$0xf]
  %v78 = vld [vmem:[%s5 + $0x58] sm:$0xf]
  %v79 = vld [vmem:[%s5 + $0x5c] sm:$0xf]
  %v80 = vld [vmem:[%s5 + $0x60] sm:$0xf]
  %v81 = vld [vmem:[%s5 + $0x64] sm:$0xf]
  %v82 = vld [vmem:[%s5 + $0x68] sm:$0xf]
  %v83 = vld [vmem:[%s5 + $0x6c] sm:$0xf]
  %v84 = vld [vmem:[%s5 + $0x70] sm:$0xf]
  %v85 = vld [vmem:[%s5 + $0x74] sm:$0xf]
  %v86 = vld [vmem:[%s5 + $0x78] sm:$0xf]
  %v87 = vld [vmem:[%s5 + $0x7c] sm:$0xf]
  %v88 = vld [vmem:[%s5 + $0x80] sm:$0xf]
  %v89 = vld [vmem:[%s5 + $0x84] sm:$0xf]
  %v90 = vld [vmem:[%s5 + $0x88] sm:$0xf]
  %v91 = vld [vmem:[%s5 + $0x8c] sm:$0xf]
  %v92 = vld [vmem:[%s5 + $0x90] sm:$0xf]
  %v93 = vld [vmem:[%s5 + $0x94] sm:$0xf]
  %v94 = vld [vmem:[%s5 + $0x98] sm:$0xf]
  %v95 = vld [vmem:[%s5 + $0x9c] sm:$0xf]
  %v96 = vld [vmem:[%s5 + $0xa0] sm:$0xf]
  %v97 = vld [vmem:[%s5 + $0xa4] sm:$0xf]
  %v98 = vld [vmem:[%s5 + $0xa8] sm:$0xf]
  %v99 = vld [vmem:[%s5 + $0xac] sm:$0xf]
  %v100 = vld [vmem:[%s5 + $0xb0] sm:$0xf]
  %v101 = vld [vmem:[%s5 + $0xb4] sm:$0xf]
  %v102 = vld [vmem:[%s5 + $0xb8] sm:$0xf]
  %v103 = vld [vmem:[%s5 + $0xbc] sm:$0xf]
  %v104 = vld [vmem:[%s5 + $0xc0] sm:$0xf]
  %v105 = vld [vmem:[%s5 + $0xc4] sm:$0xf]
  %v106 = vld [vmem:[%s5 + $0xc8] sm:$0xf]
  %v107 = vld [vmem:[%s5 + $0xcc] sm:$0xf]
  %v108 = vld [vmem:[%s5 + $0xd0] sm:$0xf]
  %v109 = vld [vmem:[%s5 + $0xd4] sm:$0xf]
  %v110 = vld [vmem:[%s5 + $0xd8] sm:$0xf]
  %v111 = vld [vmem:[%s5 + $0xdc] sm:$0xf]
  %v112 = vld [vmem:[%s5 + $0xe0] sm:$0xf]
  %v113 = vld [vmem:[%s5 + $0xe4] sm:$0xf]
  %v114 = vld [vmem:[%s5 + $0xe8] sm:$0xf]
  %v115 = vld [vmem:[%s5 + $0xec] sm:$0xf]
  %v116 = vld [vmem:[%s5 + $0xf0] sm:$0xf]
  %v117 = vld [vmem:[%s5 + $0xf4] sm:$0xf]
  %v118 = vld [vmem:[%s5 + $0xf8] sm:$0xf]
  %v119 = vld [vmem:[%s5 + $0xfc] sm:$0xf]
  %v120 = vld [vmem:[%s5 + $0x100] sm:$0xf]
  %v121 = vld [vmem:[%s5 + $0x104] sm:$0xf]
  %v122 = vld [vmem:[%s5 + $0x108] sm:$0xf]
  %v123 = vld [vmem:[%s5 + $0x10c] sm:$0xf]
  %v124 = vld [vmem:[%s5 + $0x110] sm:$0xf]
  %v125 = vld [vmem:[%s5 + $0x114] sm:$0xf]
  %v126 = vld [vmem:[%s5 + $0x118] sm:$0xf]
  %v127 = vld [vmem:[%s5 + $0x11c] sm:$0xf]
  %v128 = vld [vmem:[%s5 + $0x120] sm:$0xf]
  %v129 = vld [vmem:[%s5 + $0x124] sm:$0xf]
  %v130 = vld [vmem:[%s5 + $0x128] sm:$0xf]
  %v131 = vld [vmem:[%s5 + $0x12c] sm:$0xf]
  %v132 = vld [vmem:[%s5 + $0x130] sm:$0xf]
  %v133 = vld [vmem:[%s5 + $0x134] sm:$0xf]
  %v134 = vld [vmem:[%s5 + $0x138] sm:$0xf]
  %v135 = vld [vmem:[%s5 + $0x13c] sm:$0xf]
  %v136 = vld [vmem:[%s5 + $0x140] sm:$0xf]
  %v137 = vld [vmem:[%s5 + $0x144] sm:$0xf]
  %v138 = vld [vmem:[%s5 + $0x148] sm:$0xf]
  %v139 = vld [vmem:[%s5 + $0x14c] sm:$0xf]
  %v140 = vld [vmem:[%s5 + $0x150] sm:$0xf]
  %v141 = vld [vmem:[%s5 + $0x154] sm:$0xf]
  %v142 = vld [vmem:[%s5 + $0x158] sm:$0xf]
  %v143 = vld [vmem:[%s5 + $0x15c] sm:$0xf]
  %v144 = vld [vmem:[%s5 + $0x160] sm:$0xf]
  %v145 = vld [vmem:[%s5 + $0x164] sm:$0xf]
  %v146 = vld [vmem:[%s5 + $0x168] sm:$0xf]
  %v147 = vld [vmem:[%s5 + $0x16c] sm:$0xf]
  %v148 = vld [vmem:[%s5 + $0x170] sm:$0xf]
  %v149 = vld [vmem:[%s5 + $0x174] sm:$0xf]
  %v150 = vld [vmem:[%s5 + $0x178] sm:$0xf]
  %v151 = vld [vmem:[%s5 + $0x17c] sm:$0xf]
  %v152 = vld [vmem:[%s5 + $0x180] sm:$0xf]
  %v153 = vld [vmem:[%s5 + $0x184] sm:$0xf]
  %v154 = vld [vmem:[%s5 + $0x188] sm:$0xf]
  %v155 = vld [vmem:[%s5 + $0x18c] sm:$0xf]
  %v156 = vld [vmem:[%s5 + $0x190] sm:$0xf]
  %v157 = vld [vmem:[%s5 + $0x194] sm:$0xf]
  %v158 = vld [vmem:[%s5 + $0x198] sm:$0xf]
  %v159 = vld [vmem:[%s5 + $0x19c] sm:$0xf]
  %v160 = vld [vmem:[%s5 + $0x1a0] sm:$0xf]
  %v161 = vld [vmem:[%s5 + $0x1a4] sm:$0xf]
  %v162 = vld [vmem:[%s5 + $0x1a8] sm:$0xf]
  %v163 = vld [vmem:[%s5 + $0x1ac] sm:$0xf]
  %v164 = vld [vmem:[%s5 + $0x1b0] sm:$0xf]
  %v165 = vld [vmem:[%s5 + $0x1b4] sm:$0xf]
  %v166 = vld [vmem:[%s5 + $0x1b8] sm:$0xf]
  %v167 = vld [vmem:[%s5 + $0x1bc] sm:$0xf]
  %v168 = vld [vmem:[%s5 + $0x1c0] sm:$0xf]
  %v169 = vld [vmem:[%s5 + $0x1c4] sm:$0xf]
  %v170 = vld [vmem:[%s5 + $0x1c8] sm:$0xf]
  %v171 = vld [vmem:[%s5 + $0x1cc] sm:$0xf]
  %v172 = vld [vmem:[%s5 + $0x1d0] sm:$0xf]
  %v173 = vld [vmem:[%s5 + $0x1d4] sm:$0xf]
  %v174 = vld [vmem:[%s5 + $0x1d8] sm:$0xf]
  %v175 = vld [vmem:[%s5 + $0x1dc] sm:$0xf]
  %v176 = vld [vmem:[%s5 + $0x1e0] sm:$0xf]
  %v177 = vld [vmem:[%s5 + $0x1e4] sm:$0xf]
  %v178 = vld [vmem:[%s5 + $0x1e8] sm:$0xf]
  %v179 = vld [vmem:[%s5 + $0x1ec] sm:$0xf]
  %v180 = vld [vmem:[%s5 + $0x1f0] sm:$0xf]
  %v181 = vld [vmem:[%s5 + $0x1f4] sm:$0xf]
  %v182 = vld [vmem:[%s5 + $0x1f8] sm:$0xf]
  %v183 = vld [vmem:[%s5 + $0x1fc] sm:$0xf]
  %v184 = vld [vmem:[%s10] sm:$0x1]
  %186 = vst [vmem:[#allocation1] ss:$9 sm:$0xff] %v55
  %v187 = vld [vmem:[#allocation1] sm:$0xff]
  %v188 = vld [vmem:[#allocation1 + $0x9] sm:$0xff]
  %v189 = vld [vmem:[#allocation1 + $0x12] sm:$0xff]
  %v190 = vld [vmem:[#allocation1 + $0x1b] sm:$0xff]
  %v191 = vld [vmem:[#allocation1 + $0x24] sm:$0xff]
  %v192 = vld [vmem:[#allocation1 + $0x2d] sm:$0xff]
  %v193 = vld [vmem:[#allocation1 + $0x36] sm:$0xff]
  %v194 = vld [vmem:[#allocation1 + $0x3f] sm:$0xff]
  %v331 = vunpack.c.l.b16 %v56
  %v332 = vunpack.c.l.b16 %v57
  %v333 = vunpack.c.l.b16 %v58
  %v334 = vunpack.c.l.b16 %v59
  %v335 = vunpack.c.l.b16 %v60
  %v336 = vunpack.c.l.b16 %v61
  %v337 = vunpack.c.l.b16 %v62
  %v338 = vunpack.c.l.b16 %v63
  %v339 = vunpack.c.l.b16 %v64
  %v340 = vunpack.c.l.b16 %v65
  %v341 = vunpack.c.l.b16 %v66
  %v342 = vunpack.c.l.b16 %v67
  %v343 = vunpack.c.l.b16 %v68
  %v344 = vunpack.c.l.b16 %v69
  %v345 = vunpack.c.l.b16 %v70
  %v346 = vunpack.c.l.b16 %v71
  %v347 = vunpack.c.l.b16 %v72
  %v348 = vunpack.c.l.b16 %v73
  %v349 = vunpack.c.l.b16 %v74
  %v350 = vunpack.c.l.b16 %v75
  %v351 = vunpack.c.l.b16 %v76
  %v352 = vunpack.c.l.b16 %v77
  %v353 = vunpack.c.l.b16 %v78
  %v354 = vunpack.c.l.b16 %v79
  %v355 = vunpack.c.l.b16 %v80
  %v356 = vunpack.c.l.b16 %v81
  %v357 = vunpack.c.l.b16 %v82
  %v358 = vunpack.c.l.b16 %v83
  %v359 = vunpack.c.l.b16 %v84
  %v360 = vunpack.c.l.b16 %v85
  %v361 = vunpack.c.l.b16 %v86
  %v362 = vunpack.c.l.b16 %v87
  %v363 = vunpack.c.l.b16 %v88
  %v364 = vunpack.c.l.b16 %v89
  %v365 = vunpack.c.l.b16 %v90
  %v366 = vunpack.c.l.b16 %v91
  %v367 = vunpack.c.l.b16 %v92
  %v368 = vunpack.c.l.b16 %v93
  %v369 = vunpack.c.l.b16 %v94
  %v370 = vunpack.c.l.b16 %v95
  %v371 = vunpack.c.l.b16 %v96
  %v372 = vunpack.c.l.b16 %v97
  %v373 = vunpack.c.l.b16 %v98
  %v374 = vunpack.c.l.b16 %v99
  %v375 = vunpack.c.l.b16 %v100
  %v376 = vunpack.c.l.b16 %v101
  %v377 = vunpack.c.l.b16 %v102
  %v378 = vunpack.c.l.b16 %v103
  %v379 = vunpack.c.l.b16 %v104
  %v380 = vunpack.c.l.b16 %v105
  %v381 = vunpack.c.l.b16 %v106
  %v382 = vunpack.c.l.b16 %v107
  %v383 = vunpack.c.l.b16 %v108
  %v384 = vunpack.c.l.b16 %v109
  %v385 = vunpack.c.l.b16 %v110
  %v386 = vunpack.c.l.b16 %v111
  %v387 = vunpack.c.l.b16 %v112
  %v388 = vunpack.c.l.b16 %v113
  %v389 = vunpack.c.l.b16 %v114
  %v390 = vunpack.c.l.b16 %v115
  %v391 = vunpack.c.l.b16 %v116
  %v392 = vunpack.c.l.b16 %v117
  %v393 = vunpack.c.l.b16 %v118
  %v394 = vunpack.c.l.b16 %v119
  %v395 = vunpack.c.l.b16 %v120
  %v396 = vunpack.c.l.b16 %v121
  %v397 = vunpack.c.l.b16 %v122
  %v398 = vunpack.c.l.b16 %v123
  %v399 = vunpack.c.l.b16 %v124
  %v400 = vunpack.c.l.b16 %v125
  %v401 = vunpack.c.l.b16 %v126
  %v402 = vunpack.c.l.b16 %v127
  %v403 = vunpack.c.l.b16 %v128
  %v404 = vunpack.c.l.b16 %v129
  %v405 = vunpack.c.l.b16 %v130
  %v406 = vunpack.c.l.b16 %v131
  %v407 = vunpack.c.l.b16 %v132
  %v408 = vunpack.c.l.b16 %v133
  %v409 = vunpack.c.l.b16 %v134
  %v410 = vunpack.c.l.b16 %v135
  %v411 = vunpack.c.l.b16 %v136
  %v412 = vunpack.c.l.b16 %v137
  %v413 = vunpack.c.l.b16 %v138
  %v414 = vunpack.c.l.b16 %v139
  %v415 = vunpack.c.l.b16 %v140
  %v416 = vunpack.c.l.b16 %v141
  %v417 = vunpack.c.l.b16 %v142
  %v418 = vunpack.c.l.b16 %v143
  %v419 = vunpack.c.l.b16 %v144
  %v420 = vunpack.c.l.b16 %v145
  %v421 = vunpack.c.l.b16 %v146
  %v422 = vunpack.c.l.b16 %v147
  %v423 = vunpack.c.l.b16 %v148
  %v424 = vunpack.c.l.b16 %v149
  %v425 = vunpack.c.l.b16 %v150
  %v426 = vunpack.c.l.b16 %v151
  %v427 = vunpack.c.l.b16 %v152
  %v428 = vunpack.c.l.b16 %v153
  %v429 = vunpack.c.l.b16 %v154
  %v430 = vunpack.c.l.b16 %v155
  %v431 = vunpack.c.l.b16 %v156
  %v432 = vunpack.c.l.b16 %v157
  %v433 = vunpack.c.l.b16 %v158
  %v434 = vunpack.c.l.b16 %v159
  %v435 = vunpack.c.l.b16 %v160
  %v436 = vunpack.c.l.b16 %v161
  %v437 = vunpack.c.l.b16 %v162
  %v438 = vunpack.c.l.b16 %v163
  %v439 = vunpack.c.l.b16 %v164
  %v440 = vunpack.c.l.b16 %v165
  %v441 = vunpack.c.l.b16 %v166
  %v442 = vunpack.c.l.b16 %v167
  %v443 = vunpack.c.l.b16 %v168
  %v444 = vunpack.c.l.b16 %v169
  %v445 = vunpack.c.l.b16 %v170
  %v446 = vunpack.c.l.b16 %v171
  %v447 = vunpack.c.l.b16 %v172
  %v448 = vunpack.c.l.b16 %v173
  %v449 = vunpack.c.l.b16 %v174
  %v450 = vunpack.c.l.b16 %v175
  %v451 = vunpack.c.l.b16 %v176
  %v452 = vunpack.c.l.b16 %v177
  %v453 = vunpack.c.l.b16 %v178
  %v454 = vunpack.c.l.b16 %v179
  %v455 = vunpack.c.l.b16 %v180
  %v456 = vunpack.c.l.b16 %v181
  %v457 = vunpack.c.l.b16 %v182
  %v458 = vunpack.c.l.b16 %v183
  %v459 = vpack.c.b16 %v332, %v331
  %v460 = vpack.c.b16 %v334, %v333
  %v461 = vpack.c.b16 %v336, %v335
  %v462 = vpack.c.b16 %v338, %v337
  %v463 = vpack.c.b16 %v340, %v339
  %v464 = vpack.c.b16 %v342, %v341
  %v465 = vpack.c.b16 %v344, %v343
  %v466 = vpack.c.b16 %v346, %v345
  %v467 = vpack.c.b16 %v348, %v347
  %v468 = vpack.c.b16 %v350, %v349
  %v469 = vpack.c.b16 %v352, %v351
  %v470 = vpack.c.b16 %v354, %v353
  %v471 = vpack.c.b16 %v356, %v355
  %v472 = vpack.c.b16 %v358, %v357
  %v473 = vpack.c.b16 %v360, %v359
  %v474 = vpack.c.b16 %v362, %v361
  %v475 = vpack.c.b16 %v364, %v363
  %v476 = vpack.c.b16 %v366, %v365
  %v477 = vpack.c.b16 %v368, %v367
  %v478 = vpack.c.b16 %v370, %v369
  %v479 = vpack.c.b16 %v372, %v371
  %v480 = vpack.c.b16 %v374, %v373
  %v481 = vpack.c.b16 %v376, %v375
  %v482 = vpack.c.b16 %v378, %v377
  %v483 = vpack.c.b16 %v380, %v379
  %v484 = vpack.c.b16 %v382, %v381
  %v485 = vpack.c.b16 %v384, %v383
  %v486 = vpack.c.b16 %v386, %v385
  %v487 = vpack.c.b16 %v388, %v387
  %v488 = vpack.c.b16 %v390, %v389
  %v489 = vpack.c.b16 %v392, %v391
  %v490 = vpack.c.b16 %v394, %v393
  %v491 = vpack.c.b16 %v396, %v395
  %v492 = vpack.c.b16 %v398, %v397
  %v493 = vpack.c.b16 %v400, %v399
  %v494 = vpack.c.b16 %v402, %v401
  %v495 = vpack.c.b16 %v404, %v403
  %v496 = vpack.c.b16 %v406, %v405
  %v497 = vpack.c.b16 %v408, %v407
  %v498 = vpack.c.b16 %v410, %v409
  %v499 = vpack.c.b16 %v412, %v411
  %v500 = vpack.c.b16 %v414, %v413
  %v501 = vpack.c.b16 %v416, %v415
  %v502 = vpack.c.b16 %v418, %v417
  %v503 = vpack.c.b16 %v420, %v419
  %v504 = vpack.c.b16 %v422, %v421
  %v505 = vpack.c.b16 %v424, %v423
  %v506 = vpack.c.b16 %v426, %v425
  %v507 = vpack.c.b16 %v428, %v427
  %v508 = vpack.c.b16 %v430, %v429
  %v509 = vpack.c.b16 %v432, %v431
  %v510 = vpack.c.b16 %v434, %v433
  %v511 = vpack.c.b16 %v436, %v435
  %v512 = vpack.c.b16 %v438, %v437
  %v513 = vpack.c.b16 %v440, %v439
  %v514 = vpack.c.b16 %v442, %v441
  %v515 = vpack.c.b16 %v444, %v443
  %v516 = vpack.c.b16 %v446, %v445
  %v517 = vpack.c.b16 %v448, %v447
  %v518 = vpack.c.b16 %v450, %v449
  %v519 = vpack.c.b16 %v452, %v451
  %v520 = vpack.c.b16 %v454, %v453
  %v521 = vpack.c.b16 %v456, %v455
  %v522 = vpack.c.b16 %v458, %v457
  %587 = vmatpush.bf16.msra.mxu0 %v466
  %588 = vmatpush.bf16.msra.mxu0 %v465
  %589 = vmatpush.bf16.msra.mxu0 %v464
  %590 = vmatpush.bf16.msra.mxu0 %v463
  %591 = vmatpush.bf16.msra.mxu0 %v462
  %592 = vmatpush.bf16.msra.mxu0 %v461
  %593 = vmatpush.bf16.msra.mxu0 %v460
  %594 = vmatpush.bf16.msra.mxu0 %v459
  %595 = vmatmul.bf16.gmra.mxu0 %v187
  %v596 = vpop.f32.mrf.mxu0
  %v597 = vadd.f32 %v184, %v596
  %v598 = vpop.f32.mrf.mxu0
  %599 = vdwg.mxu0
  %600 = vmatpush.bf16.msra.mxu0 %v474
  %601 = vmatpush.bf16.msra.mxu0 %v473
  %602 = vmatpush.bf16.msra.mxu0 %v472
  %603 = vmatpush.bf16.msra.mxu0 %v471
  %604 = vmatpush.bf16.msra.mxu0 %v470
  %605 = vmatpush.bf16.msra.mxu0 %v469
  %606 = vmatpush.bf16.msra.mxu0 %v468
  %607 = vmatpush.bf16.msra.mxu0 %v467
  %608 = vmatmul.bf16.gmra.mxu0 %v188
  %v609 = vpop.f32.mrf.mxu0
  %v610 = vadd.f32 %v597, %v609
  %v611 = vpop.f32.mrf.mxu0
  %612 = vdwg.mxu0
  %613 = vmatpush.bf16.msra.mxu0 %v482
  %614 = vmatpush.bf16.msra.mxu0 %v481
  %615 = vmatpush.bf16.msra.mxu0 %v480
  %616 = vmatpush.bf16.msra.mxu0 %v479
  %617 = vmatpush.bf16.msra.mxu0 %v478
  %618 = vmatpush.bf16.msra.mxu0 %v477
  %619 = vmatpush.bf16.msra.mxu0 %v476
  %620 = vmatpush.bf16.msra.mxu0 %v475
  %621 = vmatmul.bf16.gmra.mxu0 %v189
  %v622 = vpop.f32.mrf.mxu0
  %v623 = vadd.f32 %v610, %v622
  %v624 = vpop.f32.mrf.mxu0
  %625 = vdwg.mxu0
  %626 = vmatpush.bf16.msra.mxu0 %v490
  %627 = vmatpush.bf16.msra.mxu0 %v489
  %628 = vmatpush.bf16.msra.mxu0 %v488
  %629 = vmatpush.bf16.msra.mxu0 %v487
  %630 = vmatpush.bf16.msra.mxu0 %v486
  %631 = vmatpush.bf16.msra.mxu0 %v485
  %632 = vmatpush.bf16.msra.mxu0 %v484
  %633 = vmatpush.bf16.msra.mxu0 %v483
  %634 = vmatmul.bf16.gmra.mxu0 %v190
  %v635 = vpop.f32.mrf.mxu0
  %v636 = vadd.f32 %v623, %v635
  %v637 = vpop.f32.mrf.mxu0
  %638 = vdwg.mxu0
  %639 = vmatpush.bf16.msra.mxu0 %v498
  %640 = vmatpush.bf16.msra.mxu0 %v497
  %641 = vmatpush.bf16.msra.mxu0 %v496
  %642 = vmatpush.bf16.msra.mxu0 %v495
  %643 = vmatpush.bf16.msra.mxu0 %v494
  %644 = vmatpush.bf16.msra.mxu0 %v493
  %645 = vmatpush.bf16.msra.mxu0 %v492
  %646 = vmatpush.bf16.msra.mxu0 %v491
  %647 = vmatmul.bf16.gmra.mxu0 %v191
  %v648 = vpop.f32.mrf.mxu0
  %v649 = vadd.f32 %v636, %v648
  %v650 = vpop.f32.mrf.mxu0
  %651 = vdwg.mxu0
  %652 = vmatpush.bf16.msra.mxu0 %v506
  %653 = vmatpush.bf16.msra.mxu0 %v505
  %654 = vmatpush.bf16.msra.mxu0 %v504
  %655 = vmatpush.bf16.msra.mxu0 %v503
  %656 = vmatpush.bf16.msra.mxu0 %v502
  %657 = vmatpush.bf16.msra.mxu0 %v501
  %658 = vmatpush.bf16.msra.mxu0 %v500
  %659 = vmatpush.bf16.msra.mxu0 %v499
  %660 = vmatmul.bf16.gmra.mxu0 %v192
  %v661 = vpop.f32.mrf.mxu0
  %v662 = vadd.f32 %v649, %v661
  %v663 = vpop.f32.mrf.mxu0
  %664 = vdwg.mxu0
  %665 = vmatpush.bf16.msra.mxu0 %v514
  %666 = vmatpush.bf16.msra.mxu0 %v513
  %667 = vmatpush.bf16.msra.mxu0 %v512
  %668 = vmatpush.bf16.msra.mxu0 %v511
  %669 = vmatpush.bf16.msra.mxu0 %v510
  %670 = vmatpush.bf16.msra.mxu0 %v509
  %671 = vmatpush.bf16.msra.mxu0 %v508
  %672 = vmatpush.bf16.msra.mxu0 %v507
  %673 = vmatmul.bf16.gmra.mxu0 %v193
  %v674 = vpop.f32.mrf.mxu0
  %v675 = vadd.f32 %v662, %v674
  %v676 = vpop.f32.mrf.mxu0
  %677 = vdwg.mxu0
  %678 = vmatpush.bf16.msra.mxu0 %v522
  %679 = vmatpush.bf16.msra.mxu0 %v521
  %680 = vmatpush.bf16.msra.mxu0 %v520
  %681 = vmatpush.bf16.msra.mxu0 %v519
  %682 = vmatpush.bf16.msra.mxu0 %v518
  %683 = vmatpush.bf16.msra.mxu0 %v517
  %684 = vmatpush.bf16.msra.mxu0 %v516
  %685 = vmatpush.bf16.msra.mxu0 %v515
  %686 = vmatmul.bf16.gmra.mxu0 %v194
  %v687 = vpop.f32.mrf.mxu0
  %v688 = vadd.f32 %v675, %v687
  %v689 = vpop.f32.mrf.mxu0
  %690 = vdwg.mxu0
  %v691 = vpack.c.bf16 %v688, %v688
  %vm692 = vcmask 1040384
  %vm693 = vsmask.f32 256
  %vm694 = vmand %vm692, %vm693
  %v695 = vld [vmem:[%s15] sm:$0x1]
  %v696 = vsel %vm694, %v691, %v695
  %697 = vst [vmem:[%s15] sm:$0x1] %v696
  %v698 = vld [vmem:[%s1] sm:$0xff]
  %v699 = vld [vmem:[%s1 + $0x8] sm:$0xff]
  %v700 = vld [vmem:[%s6] sm:$0xf]
  %v701 = vld [vmem:[%s6 + $0x4] sm:$0xf]
  %v702 = vld [vmem:[%s6 + $0x8] sm:$0xf]
  %v703 = vld [vmem:[%s6 + $0xc] sm:$0xf]
  %v704 = vld [vmem:[%s6 + $0x10] sm:$0xf]
  %v705 = vld [vmem:[%s6 + $0x14] sm:$0xf]
  %v706 = vld [vmem:[%s6 + $0x18] sm:$0xf]
  %v707 = vld [vmem:[%s6 + $0x1c] sm:$0xf]
  %v708 = vld [vmem:[%s6 + $0x20] sm:$0xf]
  %v709 = vld [vmem:[%s6 + $0x24] sm:$0xf]
  %v710 = vld [vmem:[%s6 + $0x28] sm:$0xf]
  %v711 = vld [vmem:[%s6 + $0x2c] sm:$0xf]
  %v712 = vld [vmem:[%s6 + $0x30] sm:$0xf]
  %v713 = vld [vmem:[%s6 + $0x34] sm:$0xf]
  %v714 = vld [vmem:[%s6 + $0x38] sm:$0xf]
  %v715 = vld [vmem:[%s6 + $0x3c] sm:$0xf]
  %v716 = vld [vmem:[%s6 + $0x40] sm:$0xf]
  %v717 = vld [vmem:[%s6 + $0x44] sm:$0xf]
  %v718 = vld [vmem:[%s6 + $0x48] sm:$0xf]
  %v719 = vld [vmem:[%s6 + $0x4c] sm:$0xf]
  %v720 = vld [vmem:[%s6 + $0x50] sm:$0xf]
  %v721 = vld [vmem:[%s6 + $0x54] sm:$0xf]
  %v722 = vld [vmem:[%s6 + $0x58] sm:$0xf]
  %v723 = vld [vmem:[%s6 + $0x5c] sm:$0xf]
  %v724 = vld [vmem:[%s6 + $0x60] sm:$0xf]
  %v725 = vld [vmem:[%s6 + $0x64] sm:$0xf]
  %v726 = vld [vmem:[%s6 + $0x68] sm:$0xf]
  %v727 = vld [vmem:[%s6 + $0x6c] sm:$0xf]
  %v728 = vld [vmem:[%s6 + $0x70] sm:$0xf]
  %v729 = vld [vmem:[%s6 + $0x74] sm:$0xf]
  %v730 = vld [vmem:[%s6 + $0x78] sm:$0xf]
  %v731 = vld [vmem:[%s6 + $0x7c] sm:$0xf]
  %v732 = vld [vmem:[%s6 + $0x80] sm:$0xf]
  %v733 = vld [vmem:[%s6 + $0x84] sm:$0xf]
  %v734 = vld [vmem:[%s6 + $0x88] sm:$0xf]
  %v735 = vld [vmem:[%s6 + $0x8c] sm:$0xf]
  %v736 = vld [vmem:[%s6 + $0x90] sm:$0xf]
  %v737 = vld [vmem:[%s6 + $0x94] sm:$0xf]
  %v738 = vld [vmem:[%s6 + $0x98] sm:$0xf]
  %v739 = vld [vmem:[%s6 + $0x9c] sm:$0xf]
  %v740 = vld [vmem:[%s6 + $0xa0] sm:$0xf]
  %v741 = vld [vmem:[%s6 + $0xa4] sm:$0xf]
  %v742 = vld [vmem:[%s6 + $0xa8] sm:$0xf]
  %v743 = vld [vmem:[%s6 + $0xac] sm:$0xf]
  %v744 = vld [vmem:[%s6 + $0xb0] sm:$0xf]
  %v745 = vld [vmem:[%s6 + $0xb4] sm:$0xf]
  %v746 = vld [vmem:[%s6 + $0xb8] sm:$0xf]
  %v747 = vld [vmem:[%s6 + $0xbc] sm:$0xf]
  %v748 = vld [vmem:[%s6 + $0xc0] sm:$0xf]
  %v749 = vld [vmem:[%s6 + $0xc4] sm:$0xf]
  %v750 = vld [vmem:[%s6 + $0xc8] sm:$0xf]
  %v751 = vld [vmem:[%s6 + $0xcc] sm:$0xf]
  %v752 = vld [vmem:[%s6 + $0xd0] sm:$0xf]
  %v753 = vld [vmem:[%s6 + $0xd4] sm:$0xf]
  %v754 = vld [vmem:[%s6 + $0xd8] sm:$0xf]
  %v755 = vld [vmem:[%s6 + $0xdc] sm:$0xf]
  %v756 = vld [vmem:[%s6 + $0xe0] sm:$0xf]
  %v757 = vld [vmem:[%s6 + $0xe4] sm:$0xf]
  %v758 = vld [vmem:[%s6 + $0xe8] sm:$0xf]
  %v759 = vld [vmem:[%s6 + $0xec] sm:$0xf]
  %v760 = vld [vmem:[%s6 + $0xf0] sm:$0xf]
  %v761 = vld [vmem:[%s6 + $0xf4] sm:$0xf]
  %v762 = vld [vmem:[%s6 + $0xf8] sm:$0xf]
  %v763 = vld [vmem:[%s6 + $0xfc] sm:$0xf]
  %v764 = vld [vmem:[%s6 + $0x100] sm:$0xf]
  %v765 = vld [vmem:[%s6 + $0x104] sm:$0xf]
  %v766 = vld [vmem:[%s6 + $0x108] sm:$0xf]
  %v767 = vld [vmem:[%s6 + $0x10c] sm:$0xf]
  %v768 = vld [vmem:[%s6 + $0x110] sm:$0xf]
  %v769 = vld [vmem:[%s6 + $0x114] sm:$0xf]
  %v770 = vld [vmem:[%s6 + $0x118] sm:$0xf]
  %v771 = vld [vmem:[%s6 + $0x11c] sm:$0xf]
  %v772 = vld [vmem:[%s6 + $0x120] sm:$0xf]
  %v773 = vld [vmem:[%s6 + $0x124] sm:$0xf]
  %v774 = vld [vmem:[%s6 + $0x128] sm:$0xf]
  %v775 = vld [vmem:[%s6 + $0x12c] sm:$0xf]
  %v776 = vld [vmem:[%s6 + $0x130] sm:$0xf]
  %v777 = vld [vmem:[%s6 + $0x134] sm:$0xf]
  %v778 = vld [vmem:[%s6 + $0x138] sm:$0xf]
  %v779 = vld [vmem:[%s6 + $0x13c] sm:$0xf]
  %v780 = vld [vmem:[%s6 + $0x140] sm:$0xf]
  %v781 = vld [vmem:[%s6 + $0x144] sm:$0xf]
  %v782 = vld [vmem:[%s6 + $0x148] sm:$0xf]
  %v783 = vld [vmem:[%s6 + $0x14c] sm:$0xf]
  %v784 = vld [vmem:[%s6 + $0x150] sm:$0xf]
  %v785 = vld [vmem:[%s6 + $0x154] sm:$0xf]
  %v786 = vld [vmem:[%s6 + $0x158] sm:$0xf]
  %v787 = vld [vmem:[%s6 + $0x15c] sm:$0xf]
  %v788 = vld [vmem:[%s6 + $0x160] sm:$0xf]
  %v789 = vld [vmem:[%s6 + $0x164] sm:$0xf]
  %v790 = vld [vmem:[%s6 + $0x168] sm:$0xf]
  %v791 = vld [vmem:[%s6 + $0x16c] sm:$0xf]
  %v792 = vld [vmem:[%s6 + $0x170] sm:$0xf]
  %v793 = vld [vmem:[%s6 + $0x174] sm:$0xf]
  %v794 = vld [vmem:[%s6 + $0x178] sm:$0xf]
  %v795 = vld [vmem:[%s6 + $0x17c] sm:$0xf]
  %v796 = vld [vmem:[%s6 + $0x180] sm:$0xf]
  %v797 = vld [vmem:[%s6 + $0x184] sm:$0xf]
  %v798 = vld [vmem:[%s6 + $0x188] sm:$0xf]
  %v799 = vld [vmem:[%s6 + $0x18c] sm:$0xf]
  %v800 = vld [vmem:[%s6 + $0x190] sm:$0xf]
  %v801 = vld [vmem:[%s6 + $0x194] sm:$0xf]
  %v802 = vld [vmem:[%s6 + $0x198] sm:$0xf]
  %v803 = vld [vmem:[%s6 + $0x19c] sm:$0xf]
  %v804 = vld [vmem:[%s6 + $0x1a0] sm:$0xf]
  %v805 = vld [vmem:[%s6 + $0x1a4] sm:$0xf]
  %v806 = vld [vmem:[%s6 + $0x1a8] sm:$0xf]
  %v807 = vld [vmem:[%s6 + $0x1ac] sm:$0xf]
  %v808 = vld [vmem:[%s6 + $0x1b0] sm:$0xf]
  %v809 = vld [vmem:[%s6 + $0x1b4] sm:$0xf]
  %v810 = vld [vmem:[%s6 + $0x1b8] sm:$0xf]
  %v811 = vld [vmem:[%s6 + $0x1bc] sm:$0xf]
  %v812 = vld [vmem:[%s6 + $0x1c0] sm:$0xf]
  %v813 = vld [vmem:[%s6 + $0x1c4] sm:$0xf]
  %v814 = vld [vmem:[%s6 + $0x1c8] sm:$0xf]
  %v815 = vld [vmem:[%s6 + $0x1cc] sm:$0xf]
  %v816 = vld [vmem:[%s6 + $0x1d0] sm:$0xf]
  %v817 = vld [vmem:[%s6 + $0x1d4] sm:$0xf]
  %v818 = vld [vmem:[%s6 + $0x1d8] sm:$0xf]
  %v819 = vld [vmem:[%s6 + $0x1dc] sm:$0xf]
  %v820 = vld [vmem:[%s6 + $0x1e0] sm:$0xf]
  %v821 = vld [vmem:[%s6 + $0x1e4] sm:$0xf]
  %v822 = vld [vmem:[%s6 + $0x1e8] sm:$0xf]
  %v823 = vld [vmem:[%s6 + $0x1ec] sm:$0xf]
  %v824 = vld [vmem:[%s6 + $0x1f0] sm:$0xf]
  %v825 = vld [vmem:[%s6 + $0x1f4] sm:$0xf]
  %v826 = vld [vmem:[%s6 + $0x1f8] sm:$0xf]
  %v827 = vld [vmem:[%s6 + $0x1fc] sm:$0xf]
  %v828 = vld [vmem:[%s11] sm:$0x1]
  %v830 = vperm.slane %v828, 0
  %833 = vst [vmem:[#allocation1] ss:$4 sm:$0xff] %v698
  %s835 = scalar_lea.vmem [#allocation1], 32
  %836 = vst [vmem:[%s835] ss:$4 sm:$0xff] %v699
  %v837 = vld.sshfl [vmem:[#allocation1] sm:$0xff pattern:$0x73625140]
  %v838 = vld.sshfl [vmem:[#allocation1 + $0x8] sm:$0xff pattern:$0x73625140]
  %v839 = vld.sshfl [vmem:[#allocation1 + $0x10] sm:$0xff pattern:$0x73625140]
  %v840 = vld.sshfl [vmem:[#allocation1 + $0x18] sm:$0xff pattern:$0x73625140]
  %v841 = vld.sshfl [vmem:[#allocation1 + $0x20] sm:$0xff pattern:$0x73625140]
  %v842 = vld.sshfl [vmem:[#allocation1 + $0x28] sm:$0xff pattern:$0x73625140]
  %v843 = vld.sshfl [vmem:[#allocation1 + $0x30] sm:$0xff pattern:$0x73625140]
  %v844 = vld.sshfl [vmem:[#allocation1 + $0x38] sm:$0xff pattern:$0x73625140]
  %v981 = vunpack.c.l.b16 %v700
  %v982 = vunpack.c.l.b16 %v701
  %v983 = vunpack.c.l.b16 %v702
  %v984 = vunpack.c.l.b16 %v703
  %v985 = vunpack.c.l.b16 %v704
  %v986 = vunpack.c.l.b16 %v705
  %v987 = vunpack.c.l.b16 %v706
  %v988 = vunpack.c.l.b16 %v707
  %v989 = vunpack.c.l.b16 %v708
  %v990 = vunpack.c.l.b16 %v709
  %v991 = vunpack.c.l.b16 %v710
  %v992 = vunpack.c.l.b16 %v711
  %v993 = vunpack.c.l.b16 %v712
  %v994 = vunpack.c.l.b16 %v713
  %v995 = vunpack.c.l.b16 %v714
  %v996 = vunpack.c.l.b16 %v715
  %v997 = vunpack.c.l.b16 %v716
  %v998 = vunpack.c.l.b16 %v717
  %v999 = vunpack.c.l.b16 %v718
  %v1000 = vunpack.c.l.b16 %v719
  %v1001 = vunpack.c.l.b16 %v720
  %v1002 = vunpack.c.l.b16 %v721
  %v1003 = vunpack.c.l.b16 %v722
  %v1004 = vunpack.c.l.b16 %v723
  %v1005 = vunpack.c.l.b16 %v724
  %v1006 = vunpack.c.l.b16 %v725
  %v1007 = vunpack.c.l.b16 %v726
  %v1008 = vunpack.c.l.b16 %v727
  %v1009 = vunpack.c.l.b16 %v728
  %v1010 = vunpack.c.l.b16 %v729
  %v1011 = vunpack.c.l.b16 %v730
  %v1012 = vunpack.c.l.b16 %v731
  %v1013 = vunpack.c.l.b16 %v732
  %v1014 = vunpack.c.l.b16 %v733
  %v1015 = vunpack.c.l.b16 %v734
  %v1016 = vunpack.c.l.b16 %v735
  %v1017 = vunpack.c.l.b16 %v736
  %v1018 = vunpack.c.l.b16 %v737
  %v1019 = vunpack.c.l.b16 %v738
  %v1020 = vunpack.c.l.b16 %v739
  %v1021 = vunpack.c.l.b16 %v740
  %v1022 = vunpack.c.l.b16 %v741
  %v1023 = vunpack.c.l.b16 %v742
  %v1024 = vunpack.c.l.b16 %v743
  %v1025 = vunpack.c.l.b16 %v744
  %v1026 = vunpack.c.l.b16 %v745
  %v1027 = vunpack.c.l.b16 %v746
  %v1028 = vunpack.c.l.b16 %v747
  %v1029 = vunpack.c.l.b16 %v748
  %v1030 = vunpack.c.l.b16 %v749
  %v1031 = vunpack.c.l.b16 %v750
  %v1032 = vunpack.c.l.b16 %v751
  %v1033 = vunpack.c.l.b16 %v752
  %v1034 = vunpack.c.l.b16 %v753
  %v1035 = vunpack.c.l.b16 %v754
  %v1036 = vunpack.c.l.b16 %v755
  %v1037 = vunpack.c.l.b16 %v756
  %v1038 = vunpack.c.l.b16 %v757
  %v1039 = vunpack.c.l.b16 %v758
  %v1040 = vunpack.c.l.b16 %v759
  %v1041 = vunpack.c.l.b16 %v760
  %v1042 = vunpack.c.l.b16 %v761
  %v1043 = vunpack.c.l.b16 %v762
  %v1044 = vunpack.c.l.b16 %v763
  %v1045 = vunpack.c.l.b16 %v764
  %v1046 = vunpack.c.l.b16 %v765
  %v1047 = vunpack.c.l.b16 %v766
  %v1048 = vunpack.c.l.b16 %v767
  %v1049 = vunpack.c.l.b16 %v768
  %v1050 = vunpack.c.l.b16 %v769
  %v1051 = vunpack.c.l.b16 %v770
  %v1052 = vunpack.c.l.b16 %v771
  %v1053 = vunpack.c.l.b16 %v772
  %v1054 = vunpack.c.l.b16 %v773
  %v1055 = vunpack.c.l.b16 %v774
  %v1056 = vunpack.c.l.b16 %v775
  %v1057 = vunpack.c.l.b16 %v776
  %v1058 = vunpack.c.l.b16 %v777
  %v1059 = vunpack.c.l.b16 %v778
  %v1060 = vunpack.c.l.b16 %v779
  %v1061 = vunpack.c.l.b16 %v780
  %v1062 = vunpack.c.l.b16 %v781
  %v1063 = vunpack.c.l.b16 %v782
  %v1064 = vunpack.c.l.b16 %v783
  %v1065 = vunpack.c.l.b16 %v784
  %v1066 = vunpack.c.l.b16 %v785
  %v1067 = vunpack.c.l.b16 %v786
  %v1068 = vunpack.c.l.b16 %v787
  %v1069 = vunpack.c.l.b16 %v788
  %v1070 = vunpack.c.l.b16 %v789
  %v1071 = vunpack.c.l.b16 %v790
  %v1072 = vunpack.c.l.b16 %v791
  %v1073 = vunpack.c.l.b16 %v792
  %v1074 = vunpack.c.l.b16 %v793
  %v1075 = vunpack.c.l.b16 %v794
  %v1076 = vunpack.c.l.b16 %v795
  %v1077 = vunpack.c.l.b16 %v796
  %v1078 = vunpack.c.l.b16 %v797
  %v1079 = vunpack.c.l.b16 %v798
  %v1080 = vunpack.c.l.b16 %v799
  %v1081 = vunpack.c.l.b16 %v800
  %v1082 = vunpack.c.l.b16 %v801
  %v1083 = vunpack.c.l.b16 %v802
  %v1084 = vunpack.c.l.b16 %v803
  %v1085 = vunpack.c.l.b16 %v804
  %v1086 = vunpack.c.l.b16 %v805
  %v1087 = vunpack.c.l.b16 %v806
  %v1088 = vunpack.c.l.b16 %v807
  %v1089 = vunpack.c.l.b16 %v808
  %v1090 = vunpack.c.l.b16 %v809
  %v1091 = vunpack.c.l.b16 %v810
  %v1092 = vunpack.c.l.b16 %v811
  %v1093 = vunpack.c.l.b16 %v812
  %v1094 = vunpack.c.l.b16 %v813
  %v1095 = vunpack.c.l.b16 %v814
  %v1096 = vunpack.c.l.b16 %v815
  %v1097 = vunpack.c.l.b16 %v816
  %v1098 = vunpack.c.l.b16 %v817
  %v1099 = vunpack.c.l.b16 %v818
  %v1100 = vunpack.c.l.b16 %v819
  %v1101 = vunpack.c.l.b16 %v820
  %v1102 = vunpack.c.l.b16 %v821
  %v1103 = vunpack.c.l.b16 %v822
  %v1104 = vunpack.c.l.b16 %v823
  %v1105 = vunpack.c.l.b16 %v824
  %v1106 = vunpack.c.l.b16 %v825
  %v1107 = vunpack.c.l.b16 %v826
  %v1108 = vunpack.c.l.b16 %v827
  %v1109 = vpack.c.b16 %v982, %v981
  %v1110 = vpack.c.b16 %v984, %v983
  %v1111 = vpack.c.b16 %v986, %v985
  %v1112 = vpack.c.b16 %v988, %v987
  %v1113 = vpack.c.b16 %v990, %v989
  %v1114 = vpack.c.b16 %v992, %v991
  %v1115 = vpack.c.b16 %v994, %v993
  %v1116 = vpack.c.b16 %v996, %v995
  %v1117 = vpack.c.b16 %v998, %v997
  %v1118 = vpack.c.b16 %v1000, %v999
  %v1119 = vpack.c.b16 %v1002, %v1001
  %v1120 = vpack.c.b16 %v1004, %v1003
  %v1121 = vpack.c.b16 %v1006, %v1005
  %v1122 = vpack.c.b16 %v1008, %v1007
  %v1123 = vpack.c.b16 %v1010, %v1009
  %v1124 = vpack.c.b16 %v1012, %v1011
  %v1125 = vpack.c.b16 %v1014, %v1013
  %v1126 = vpack.c.b16 %v1016, %v1015
  %v1127 = vpack.c.b16 %v1018, %v1017
  %v1128 = vpack.c.b16 %v1020, %v1019
  %v1129 = vpack.c.b16 %v1022, %v1021
  %v1130 = vpack.c.b16 %v1024, %v1023
  %v1131 = vpack.c.b16 %v1026, %v1025
  %v1132 = vpack.c.b16 %v1028, %v1027
  %v1133 = vpack.c.b16 %v1030, %v1029
  %v1134 = vpack.c.b16 %v1032, %v1031
  %v1135 = vpack.c.b16 %v1034, %v1033
  %v1136 = vpack.c.b16 %v1036, %v1035
  %v1137 = vpack.c.b16 %v1038, %v1037
  %v1138 = vpack.c.b16 %v1040, %v1039
  %v1139 = vpack.c.b16 %v1042, %v1041
  %v1140 = vpack.c.b16 %v1044, %v1043
  %v1141 = vpack.c.b16 %v1046, %v1045
  %v1142 = vpack.c.b16 %v1048, %v1047
  %v1143 = vpack.c.b16 %v1050, %v1049
  %v1144 = vpack.c.b16 %v1052, %v1051
  %v1145 = vpack.c.b16 %v1054, %v1053
  %v1146 = vpack.c.b16 %v1056, %v1055
  %v1147 = vpack.c.b16 %v1058, %v1057
  %v1148 = vpack.c.b16 %v1060, %v1059
  %v1149 = vpack.c.b16 %v1062, %v1061
  %v1150 = vpack.c.b16 %v1064, %v1063
  %v1151 = vpack.c.b16 %v1066, %v1065
  %v1152 = vpack.c.b16 %v1068, %v1067
  %v1153 = vpack.c.b16 %v1070, %v1069
  %v1154 = vpack.c.b16 %v1072, %v1071
  %v1155 = vpack.c.b16 %v1074, %v1073
  %v1156 = vpack.c.b16 %v1076, %v1075
  %v1157 = vpack.c.b16 %v1078, %v1077
  %v1158 = vpack.c.b16 %v1080, %v1079
  %v1159 = vpack.c.b16 %v1082, %v1081
  %v1160 = vpack.c.b16 %v1084, %v1083
  %v1161 = vpack.c.b16 %v1086, %v1085
  %v1162 = vpack.c.b16 %v1088, %v1087
  %v1163 = vpack.c.b16 %v1090, %v1089
  %v1164 = vpack.c.b16 %v1092, %v1091
  %v1165 = vpack.c.b16 %v1094, %v1093
  %v1166 = vpack.c.b16 %v1096, %v1095
  %v1167 = vpack.c.b16 %v1098, %v1097
  %v1168 = vpack.c.b16 %v1100, %v1099
  %v1169 = vpack.c.b16 %v1102, %v1101
  %v1170 = vpack.c.b16 %v1104, %v1103
  %v1171 = vpack.c.b16 %v1106, %v1105
  %v1172 = vpack.c.b16 %v1108, %v1107
  %1237 = vmatpush.bf16.msra.mxu0 %v1116
  %1238 = vmatpush.bf16.msra.mxu0 %v1115
  %1239 = vmatpush.bf16.msra.mxu0 %v1114
  %1240 = vmatpush.bf16.msra.mxu0 %v1113
  %1241 = vmatpush.bf16.msra.mxu0 %v1112
  %1242 = vmatpush.bf16.msra.mxu0 %v1111
  %1243 = vmatpush.bf16.msra.mxu0 %v1110
  %1244 = vmatpush.bf16.msra.mxu0 %v1109
  %1245 = vmatmul.bf16.gmra.mxu0 %v837
  %v1246 = vpop.f32.mrf.mxu0
  %v1247 = vadd.f32 %v830, %v1246
  %v1248 = vpop.f32.mrf.mxu0
  %1249 = vdwg.mxu0
  %1250 = vmatpush.bf16.msra.mxu0 %v1124
  %1251 = vmatpush.bf16.msra.mxu0 %v1123
  %1252 = vmatpush.bf16.msra.mxu0 %v1122
  %1253 = vmatpush.bf16.msra.mxu0 %v1121
  %1254 = vmatpush.bf16.msra.mxu0 %v1120
  %1255 = vmatpush.bf16.msra.mxu0 %v1119
  %1256 = vmatpush.bf16.msra.mxu0 %v1118
  %1257 = vmatpush.bf16.msra.mxu0 %v1117
  %1258 = vmatmul.bf16.gmra.mxu0 %v838
  %v1259 = vpop.f32.mrf.mxu0
  %v1260 = vadd.f32 %v1247, %v1259
  %v1261 = vpop.f32.mrf.mxu0
  %1262 = vdwg.mxu0
  %1263 = vmatpush.bf16.msra.mxu0 %v1132
  %1264 = vmatpush.bf16.msra.mxu0 %v1131
  %1265 = vmatpush.bf16.msra.mxu0 %v1130
  %1266 = vmatpush.bf16.msra.mxu0 %v1129
  %1267 = vmatpush.bf16.msra.mxu0 %v1128
  %1268 = vmatpush.bf16.msra.mxu0 %v1127
  %1269 = vmatpush.bf16.msra.mxu0 %v1126
  %1270 = vmatpush.bf16.msra.mxu0 %v1125
  %1271 = vmatmul.bf16.gmra.mxu0 %v839
  %v1272 = vpop.f32.mrf.mxu0
  %v1273 = vadd.f32 %v1260, %v1272
  %v1274 = vpop.f32.mrf.mxu0
  %1275 = vdwg.mxu0
  %1276 = vmatpush.bf16.msra.mxu0 %v1140
  %1277 = vmatpush.bf16.msra.mxu0 %v1139
  %1278 = vmatpush.bf16.msra.mxu0 %v1138
  %1279 = vmatpush.bf16.msra.mxu0 %v1137
  %1280 = vmatpush.bf16.msra.mxu0 %v1136
  %1281 = vmatpush.bf16.msra.mxu0 %v1135
  %1282 = vmatpush.bf16.msra.mxu0 %v1134
  %1283 = vmatpush.bf16.msra.mxu0 %v1133
  %1284 = vmatmul.bf16.gmra.mxu0 %v840
  %v1285 = vpop.f32.mrf.mxu0
  %v1286 = vadd.f32 %v1273, %v1285
  %v1287 = vpop.f32.mrf.mxu0
  %1288 = vdwg.mxu0
  %1289 = vmatpush.bf16.msra.mxu0 %v1148
  %1290 = vmatpush.bf16.msra.mxu0 %v1147
  %1291 = vmatpush.bf16.msra.mxu0 %v1146
  %1292 = vmatpush.bf16.msra.mxu0 %v1145
  %1293 = vmatpush.bf16.msra.mxu0 %v1144
  %1294 = vmatpush.bf16.msra.mxu0 %v1143
  %1295 = vmatpush.bf16.msra.mxu0 %v1142
  %1296 = vmatpush.bf16.msra.mxu0 %v1141
  %1297 = vmatmul.bf16.gmra.mxu0 %v841
  %v1298 = vpop.f32.mrf.mxu0
  %v1299 = vadd.f32 %v1286, %v1298
  %v1300 = vpop.f32.mrf.mxu0
  %1301 = vdwg.mxu0
  %1302 = vmatpush.bf16.msra.mxu0 %v1156
  %1303 = vmatpush.bf16.msra.mxu0 %v1155
  %1304 = vmatpush.bf16.msra.mxu0 %v1154
  %1305 = vmatpush.bf16.msra.mxu0 %v1153
  %1306 = vmatpush.bf16.msra.mxu0 %v1152
  %1307 = vmatpush.bf16.msra.mxu0 %v1151
  %1308 = vmatpush.bf16.msra.mxu0 %v1150
  %1309 = vmatpush.bf16.msra.mxu0 %v1149
  %1310 = vmatmul.bf16.gmra.mxu0 %v842
  %v1311 = vpop.f32.mrf.mxu0
  %v1312 = vadd.f32 %v1299, %v1311
  %v1313 = vpop.f32.mrf.mxu0
  %1314 = vdwg.mxu0
  %1315 = vmatpush.bf16.msra.mxu0 %v1164
  %1316 = vmatpush.bf16.msra.mxu0 %v1163
  %1317 = vmatpush.bf16.msra.mxu0 %v1162
  %1318 = vmatpush.bf16.msra.mxu0 %v1161
  %1319 = vmatpush.bf16.msra.mxu0 %v1160
  %1320 = vmatpush.bf16.msra.mxu0 %v1159
  %1321 = vmatpush.bf16.msra.mxu0 %v1158
  %1322 = vmatpush.bf16.msra.mxu0 %v1157
  %1323 = vmatmul.bf16.gmra.mxu0 %v843
  %v1324 = vpop.f32.mrf.mxu0
  %v1325 = vadd.f32 %v1312, %v1324
  %v1326 = vpop.f32.mrf.mxu0
  %1327 = vdwg.mxu0
  %1328 = vmatpush.bf16.msra.mxu0 %v1172
  %1329 = vmatpush.bf16.msra.mxu0 %v1171
  %1330 = vmatpush.bf16.msra.mxu0 %v1170
  %1331 = vmatpush.bf16.msra.mxu0 %v1169
  %1332 = vmatpush.bf16.msra.mxu0 %v1168
  %1333 = vmatpush.bf16.msra.mxu0 %v1167
  %1334 = vmatpush.bf16.msra.mxu0 %v1166
  %1335 = vmatpush.bf16.msra.mxu0 %v1165
  %1336 = vmatmul.bf16.gmra.mxu0 %v844
  %v1337 = vpop.f32.mrf.mxu0
  %v1338 = vadd.f32 %v1325, %v1337
  %v1339 = vpop.f32.mrf.mxu0
  %1340 = vdwg.mxu0
  %v1341 = vpack.c.bf16 %v1338, %v1338
  %1342 = vst [vmem:[%s16] sm:$0x3] %v1341
  %v1343 = vld [vmem:[%s2] sm:$0xff]
  %v1344 = vld [vmem:[%s2 + $0x8] sm:$0xff]
  %v1345 = vld [vmem:[%s2 + $0x10] sm:$0xff]
  %v1346 = vld [vmem:[%s2 + $0x18] sm:$0xff]
  %v1347 = vld [vmem:[%s2 + $0x20] sm:$0xff]
  %v1348 = vld [vmem:[%s2 + $0x28] sm:$0xff]
  %v1349 = vld [vmem:[%s2 + $0x30] sm:$0xff]
  %v1350 = vld [vmem:[%s2 + $0x38] sm:$0xff]
  %v1351 = vld [vmem:[%s7] sm:$0xf]
  %v1352 = vld [vmem:[%s7 + $0x4] sm:$0xf]
  %v1353 = vld [vmem:[%s7 + $0x8] sm:$0xf]
  %v1354 = vld [vmem:[%s7 + $0xc] sm:$0xf]
  %v1355 = vld [vmem:[%s7 + $0x10] sm:$0xf]
  %v1356 = vld [vmem:[%s7 + $0x14] sm:$0xf]
  %v1357 = vld [vmem:[%s7 + $0x18] sm:$0xf]
  %v1358 = vld [vmem:[%s7 + $0x1c] sm:$0xf]
  %v1359 = vld [vmem:[%s7 + $0x20] sm:$0xf]
  %v1360 = vld [vmem:[%s7 + $0x24] sm:$0xf]
  %v1361 = vld [vmem:[%s7 + $0x28] sm:$0xf]
  %v1362 = vld [vmem:[%s7 + $0x2c] sm:$0xf]
  %v1363 = vld [vmem:[%s7 + $0x30] sm:$0xf]
  %v1364 = vld [vmem:[%s7 + $0x34] sm:$0xf]
  %v1365 = vld [vmem:[%s7 + $0x38] sm:$0xf]
  %v1366 = vld [vmem:[%s7 + $0x3c] sm:$0xf]
  %v1367 = vld [vmem:[%s7 + $0x40] sm:$0xf]
  %v1368 = vld [vmem:[%s7 + $0x44] sm:$0xf]
  %v1369 = vld [vmem:[%s7 + $0x48] sm:$0xf]
  %v1370 = vld [vmem:[%s7 + $0x4c] sm:$0xf]
  %v1371 = vld [vmem:[%s7 + $0x50] sm:$0xf]
  %v1372 = vld [vmem:[%s7 + $0x54] sm:$0xf]
  %v1373 = vld [vmem:[%s7 + $0x58] sm:$0xf]
  %v1374 = vld [vmem:[%s7 + $0x5c] sm:$0xf]
  %v1375 = vld [vmem:[%s7 + $0x60] sm:$0xf]
  %v1376 = vld [vmem:[%s7 + $0x64] sm:$0xf]
  %v1377 = vld [vmem:[%s7 + $0x68] sm:$0xf]
  %v1378 = vld [vmem:[%s7 + $0x6c] sm:$0xf]
  %v1379 = vld [vmem:[%s7 + $0x70] sm:$0xf]
  %v1380 = vld [vmem:[%s7 + $0x74] sm:$0xf]
  %v1381 = vld [vmem:[%s7 + $0x78] sm:$0xf]
  %v1382 = vld [vmem:[%s7 + $0x7c] sm:$0xf]
  %v1383 = vld [vmem:[%s7 + $0x80] sm:$0xf]
  %v1384 = vld [vmem:[%s7 + $0x84] sm:$0xf]
  %v1385 = vld [vmem:[%s7 + $0x88] sm:$0xf]
  %v1386 = vld [vmem:[%s7 + $0x8c] sm:$0xf]
  %v1387 = vld [vmem:[%s7 + $0x90] sm:$0xf]
  %v1388 = vld [vmem:[%s7 + $0x94] sm:$0xf]
  %v1389 = vld [vmem:[%s7 + $0x98] sm:$0xf]
  %v1390 = vld [vmem:[%s7 + $0x9c] sm:$0xf]
  %v1391 = vld [vmem:[%s7 + $0xa0] sm:$0xf]
  %v1392 = vld [vmem:[%s7 + $0xa4] sm:$0xf]
  %v1393 = vld [vmem:[%s7 + $0xa8] sm:$0xf]
  %v1394 = vld [vmem:[%s7 + $0xac] sm:$0xf]
  %v1395 = vld [vmem:[%s7 + $0xb0] sm:$0xf]
  %v1396 = vld [vmem:[%s7 + $0xb4] sm:$0xf]
  %v1397 = vld [vmem:[%s7 + $0xb8] sm:$0xf]
  %v1398 = vld [vmem:[%s7 + $0xbc] sm:$0xf]
  %v1399 = vld [vmem:[%s7 + $0xc0] sm:$0xf]
  %v1400 = vld [vmem:[%s7 + $0xc4] sm:$0xf]
  %v1401 = vld [vmem:[%s7 + $0xc8] sm:$0xf]
  %v1402 = vld [vmem:[%s7 + $0xcc] sm:$0xf]
  %v1403 = vld [vmem:[%s7 + $0xd0] sm:$0xf]
  %v1404 = vld [vmem:[%s7 + $0xd4] sm:$0xf]
  %v1405 = vld [vmem:[%s7 + $0xd8] sm:$0xf]
  %v1406 = vld [vmem:[%s7 + $0xdc] sm:$0xf]
  %v1407 = vld [vmem:[%s7 + $0xe0] sm:$0xf]
  %v1408 = vld [vmem:[%s7 + $0xe4] sm:$0xf]
  %v1409 = vld [vmem:[%s7 + $0xe8] sm:$0xf]
  %v1410 = vld [vmem:[%s7 + $0xec] sm:$0xf]
  %v1411 = vld [vmem:[%s7 + $0xf0] sm:$0xf]
  %v1412 = vld [vmem:[%s7 + $0xf4] sm:$0xf]
  %v1413 = vld [vmem:[%s7 + $0xf8] sm:$0xf]
  %v1414 = vld [vmem:[%s7 + $0xfc] sm:$0xf]
  %v1415 = vld [vmem:[%s7 + $0x100] sm:$0xf]
  %v1416 = vld [vmem:[%s7 + $0x104] sm:$0xf]
  %v1417 = vld [vmem:[%s7 + $0x108] sm:$0xf]
  %v1418 = vld [vmem:[%s7 + $0x10c] sm:$0xf]
  %v1419 = vld [vmem:[%s7 + $0x110] sm:$0xf]
  %v1420 = vld [vmem:[%s7 + $0x114] sm:$0xf]
  %v1421 = vld [vmem:[%s7 + $0x118] sm:$0xf]
  %v1422 = vld [vmem:[%s7 + $0x11c] sm:$0xf]
  %v1423 = vld [vmem:[%s7 + $0x120] sm:$0xf]
  %v1424 = vld [vmem:[%s7 + $0x124] sm:$0xf]
  %v1425 = vld [vmem:[%s7 + $0x128] sm:$0xf]
  %v1426 = vld [vmem:[%s7 + $0x12c] sm:$0xf]
  %v1427 = vld [vmem:[%s7 + $0x130] sm:$0xf]
  %v1428 = vld [vmem:[%s7 + $0x134] sm:$0xf]
  %v1429 = vld [vmem:[%s7 + $0x138] sm:$0xf]
  %v1430 = vld [vmem:[%s7 + $0x13c] sm:$0xf]
  %v1431 = vld [vmem:[%s7 + $0x140] sm:$0xf]
  %v1432 = vld [vmem:[%s7 + $0x144] sm:$0xf]
  %v1433 = vld [vmem:[%s7 + $0x148] sm:$0xf]
  %v1434 = vld [vmem:[%s7 + $0x14c] sm:$0xf]
  %v1435 = vld [vmem:[%s7 + $0x150] sm:$0xf]
  %v1436 = vld [vmem:[%s7 + $0x154] sm:$0xf]
  %v1437 = vld [vmem:[%s7 + $0x158] sm:$0xf]
  %v1438 = vld [vmem:[%s7 + $0x15c] sm:$0xf]
  %v1439 = vld [vmem:[%s7 + $0x160] sm:$0xf]
  %v1440 = vld [vmem:[%s7 + $0x164] sm:$0xf]
  %v1441 = vld [vmem:[%s7 + $0x168] sm:$0xf]
  %v1442 = vld [vmem:[%s7 + $0x16c] sm:$0xf]
  %v1443 = vld [vmem:[%s7 + $0x170] sm:$0xf]
  %v1444 = vld [vmem:[%s7 + $0x174] sm:$0xf]
  %v1445 = vld [vmem:[%s7 + $0x178] sm:$0xf]
  %v1446 = vld [vmem:[%s7 + $0x17c] sm:$0xf]
  %v1447 = vld [vmem:[%s7 + $0x180] sm:$0xf]
  %v1448 = vld [vmem:[%s7 + $0x184] sm:$0xf]
  %v1449 = vld [vmem:[%s7 + $0x188] sm:$0xf]
  %v1450 = vld [vmem:[%s7 + $0x18c] sm:$0xf]
  %v1451 = vld [vmem:[%s7 + $0x190] sm:$0xf]
  %v1452 = vld [vmem:[%s7 + $0x194] sm:$0xf]
  %v1453 = vld [vmem:[%s7 + $0x198] sm:$0xf]
  %v1454 = vld [vmem:[%s7 + $0x19c] sm:$0xf]
  %v1455 = vld [vmem:[%s7 + $0x1a0] sm:$0xf]
  %v1456 = vld [vmem:[%s7 + $0x1a4] sm:$0xf]
  %v1457 = vld [vmem:[%s7 + $0x1a8] sm:$0xf]
  %v1458 = vld [vmem:[%s7 + $0x1ac] sm:$0xf]
  %v1459 = vld [vmem:[%s7 + $0x1b0] sm:$0xf]
  %v1460 = vld [vmem:[%s7 + $0x1b4] sm:$0xf]
  %v1461 = vld [vmem:[%s7 + $0x1b8] sm:$0xf]
  %v1462 = vld [vmem:[%s7 + $0x1bc] sm:$0xf]
  %v1463 = vld [vmem:[%s7 + $0x1c0] sm:$0xf]
  %v1464 = vld [vmem:[%s7 + $0x1c4] sm:$0xf]
  %v1465 = vld [vmem:[%s7 + $0x1c8] sm:$0xf]
  %v1466 = vld [vmem:[%s7 + $0x1cc] sm:$0xf]
  %v1467 = vld [vmem:[%s7 + $0x1d0] sm:$0xf]
  %v1468 = vld [vmem:[%s7 + $0x1d4] sm:$0xf]
  %v1469 = vld [vmem:[%s7 + $0x1d8] sm:$0xf]
  %v1470 = vld [vmem:[%s7 + $0x1dc] sm:$0xf]
  %v1471 = vld [vmem:[%s7 + $0x1e0] sm:$0xf]
  %v1472 = vld [vmem:[%s7 + $0x1e4] sm:$0xf]
  %v1473 = vld [vmem:[%s7 + $0x1e8] sm:$0xf]
  %v1474 = vld [vmem:[%s7 + $0x1ec] sm:$0xf]
  %v1475 = vld [vmem:[%s7 + $0x1f0] sm:$0xf]
  %v1476 = vld [vmem:[%s7 + $0x1f4] sm:$0xf]
  %v1477 = vld [vmem:[%s7 + $0x1f8] sm:$0xf]
  %v1478 = vld [vmem:[%s7 + $0x1fc] sm:$0xf]
  %v1479 = vld [vmem:[%s12] sm:$0x1]
  %v1481 = vperm.slane %v1479, 0
  %v1491 = vunpack.c.l.b16 %v1343
  %v1492 = vunpack.c.h.b16 %v1343
  %v1493 = vunpack.c.l.b16 %v1344
  %v1494 = vunpack.c.h.b16 %v1344
  %v1495 = vunpack.c.l.b16 %v1345
  %v1496 = vunpack.c.h.b16 %v1345
  %v1497 = vunpack.c.l.b16 %v1346
  %v1498 = vunpack.c.h.b16 %v1346
  %v1499 = vunpack.c.l.b16 %v1347
  %v1500 = vunpack.c.h.b16 %v1347
  %v1501 = vunpack.c.l.b16 %v1348
  %v1502 = vunpack.c.h.b16 %v1348
  %v1503 = vunpack.c.l.b16 %v1349
  %v1504 = vunpack.c.h.b16 %v1349
  %v1505 = vunpack.c.l.b16 %v1350
  %v1506 = vunpack.c.h.b16 %v1350
  %v1507 = vpack.c.b16 %v1499, %v1491
  %v1508 = vpack.c.b16 %v1500, %v1492
  %v1509 = vpack.c.b16 %v1501, %v1493
  %v1510 = vpack.c.b16 %v1502, %v1494
  %v1511 = vpack.c.b16 %v1503, %v1495
  %v1512 = vpack.c.b16 %v1504, %v1496
  %v1513 = vpack.c.b16 %v1505, %v1497
  %v1514 = vpack.c.b16 %v1506, %v1498
  %v1651 = vunpack.c.l.b16 %v1351
  %v1652 = vunpack.c.l.b16 %v1352
  %v1653 = vunpack.c.l.b16 %v1353
  %v1654 = vunpack.c.l.b16 %v1354
  %v1655 = vunpack.c.l.b16 %v1355
  %v1656 = vunpack.c.l.b16 %v1356
  %v1657 = vunpack.c.l.b16 %v1357
  %v1658 = vunpack.c.l.b16 %v1358
  %v1659 = vunpack.c.l.b16 %v1359
  %v1660 = vunpack.c.l.b16 %v1360
  %v1661 = vunpack.c.l.b16 %v1361
  %v1662 = vunpack.c.l.b16 %v1362
  %v1663 = vunpack.c.l.b16 %v1363
  %v1664 = vunpack.c.l.b16 %v1364
  %v1665 = vunpack.c.l.b16 %v1365
  %v1666 = vunpack.c.l.b16 %v1366
  %v1667 = vunpack.c.l.b16 %v1367
  %v1668 = vunpack.c.l.b16 %v1368
  %v1669 = vunpack.c.l.b16 %v1369
  %v1670 = vunpack.c.l.b16 %v1370
  %v1671 = vunpack.c.l.b16 %v1371
  %v1672 = vunpack.c.l.b16 %v1372
  %v1673 = vunpack.c.l.b16 %v1373
  %v1674 = vunpack.c.l.b16 %v1374
  %v1675 = vunpack.c.l.b16 %v1375
  %v1676 = vunpack.c.l.b16 %v1376
  %v1677 = vunpack.c.l.b16 %v1377
  %v1678 = vunpack.c.l.b16 %v1378
  %v1679 = vunpack.c.l.b16 %v1379
  %v1680 = vunpack.c.l.b16 %v1380
  %v1681 = vunpack.c.l.b16 %v1381
  %v1682 = vunpack.c.l.b16 %v1382
  %v1683 = vunpack.c.l.b16 %v1383
  %v1684 = vunpack.c.l.b16 %v1384
  %v1685 = vunpack.c.l.b16 %v1385
  %v1686 = vunpack.c.l.b16 %v1386
  %v1687 = vunpack.c.l.b16 %v1387
  %v1688 = vunpack.c.l.b16 %v1388
  %v1689 = vunpack.c.l.b16 %v1389
  %v1690 = vunpack.c.l.b16 %v1390
  %v1691 = vunpack.c.l.b16 %v1391
  %v1692 = vunpack.c.l.b16 %v1392
  %v1693 = vunpack.c.l.b16 %v1393
  %v1694 = vunpack.c.l.b16 %v1394
  %v1695 = vunpack.c.l.b16 %v1395
  %v1696 = vunpack.c.l.b16 %v1396
  %v1697 = vunpack.c.l.b16 %v1397
  %v1698 = vunpack.c.l.b16 %v1398
  %v1699 = vunpack.c.l.b16 %v1399
  %v1700 = vunpack.c.l.b16 %v1400
  %v1701 = vunpack.c.l.b16 %v1401
  %v1702 = vunpack.c.l.b16 %v1402
  %v1703 = vunpack.c.l.b16 %v1403
  %v1704 = vunpack.c.l.b16 %v1404
  %v1705 = vunpack.c.l.b16 %v1405
  %v1706 = vunpack.c.l.b16 %v1406
  %v1707 = vunpack.c.l.b16 %v1407
  %v1708 = vunpack.c.l.b16 %v1408
  %v1709 = vunpack.c.l.b16 %v1409
  %v1710 = vunpack.c.l.b16 %v1410
  %v1711 = vunpack.c.l.b16 %v1411
  %v1712 = vunpack.c.l.b16 %v1412
  %v1713 = vunpack.c.l.b16 %v1413
  %v1714 = vunpack.c.l.b16 %v1414
  %v1715 = vunpack.c.l.b16 %v1415
  %v1716 = vunpack.c.l.b16 %v1416
  %v1717 = vunpack.c.l.b16 %v1417
  %v1718 = vunpack.c.l.b16 %v1418
  %v1719 = vunpack.c.l.b16 %v1419
  %v1720 = vunpack.c.l.b16 %v1420
  %v1721 = vunpack.c.l.b16 %v1421
  %v1722 = vunpack.c.l.b16 %v1422
  %v1723 = vunpack.c.l.b16 %v1423
  %v1724 = vunpack.c.l.b16 %v1424
  %v1725 = vunpack.c.l.b16 %v1425
  %v1726 = vunpack.c.l.b16 %v1426
  %v1727 = vunpack.c.l.b16 %v1427
  %v1728 = vunpack.c.l.b16 %v1428
  %v1729 = vunpack.c.l.b16 %v1429
  %v1730 = vunpack.c.l.b16 %v1430
  %v1731 = vunpack.c.l.b16 %v1431
  %v1732 = vunpack.c.l.b16 %v1432
  %v1733 = vunpack.c.l.b16 %v1433
  %v1734 = vunpack.c.l.b16 %v1434
  %v1735 = vunpack.c.l.b16 %v1435
  %v1736 = vunpack.c.l.b16 %v1436
  %v1737 = vunpack.c.l.b16 %v1437
  %v1738 = vunpack.c.l.b16 %v1438
  %v1739 = vunpack.c.l.b16 %v1439
  %v1740 = vunpack.c.l.b16 %v1440
  %v1741 = vunpack.c.l.b16 %v1441
  %v1742 = vunpack.c.l.b16 %v1442
  %v1743 = vunpack.c.l.b16 %v1443
  %v1744 = vunpack.c.l.b16 %v1444
  %v1745 = vunpack.c.l.b16 %v1445
  %v1746 = vunpack.c.l.b16 %v1446
  %v1747 = vunpack.c.l.b16 %v1447
  %v1748 = vunpack.c.l.b16 %v1448
  %v1749 = vunpack.c.l.b16 %v1449
  %v1750 = vunpack.c.l.b16 %v1450
  %v1751 = vunpack.c.l.b16 %v1451
  %v1752 = vunpack.c.l.b16 %v1452
  %v1753 = vunpack.c.l.b16 %v1453
  %v1754 = vunpack.c.l.b16 %v1454
  %v1755 = vunpack.c.l.b16 %v1455
  %v1756 = vunpack.c.l.b16 %v1456
  %v1757 = vunpack.c.l.b16 %v1457
  %v1758 = vunpack.c.l.b16 %v1458
  %v1759 = vunpack.c.l.b16 %v1459
  %v1760 = vunpack.c.l.b16 %v1460
  %v1761 = vunpack.c.l.b16 %v1461
  %v1762 = vunpack.c.l.b16 %v1462
  %v1763 = vunpack.c.l.b16 %v1463
  %v1764 = vunpack.c.l.b16 %v1464
  %v1765 = vunpack.c.l.b16 %v1465
  %v1766 = vunpack.c.l.b16 %v1466
  %v1767 = vunpack.c.l.b16 %v1467
  %v1768 = vunpack.c.l.b16 %v1468
  %v1769 = vunpack.c.l.b16 %v1469
  %v1770 = vunpack.c.l.b16 %v1470
  %v1771 = vunpack.c.l.b16 %v1471
  %v1772 = vunpack.c.l.b16 %v1472
  %v1773 = vunpack.c.l.b16 %v1473
  %v1774 = vunpack.c.l.b16 %v1474
  %v1775 = vunpack.c.l.b16 %v1475
  %v1776 = vunpack.c.l.b16 %v1476
  %v1777 = vunpack.c.l.b16 %v1477
  %v1778 = vunpack.c.l.b16 %v1478
  %v1779 = vpack.c.b16 %v1652, %v1651
  %v1780 = vpack.c.b16 %v1654, %v1653
  %v1781 = vpack.c.b16 %v1656, %v1655
  %v1782 = vpack.c.b16 %v1658, %v1657
  %v1783 = vpack.c.b16 %v1660, %v1659
  %v1784 = vpack.c.b16 %v1662, %v1661
  %v1785 = vpack.c.b16 %v1664, %v1663
  %v1786 = vpack.c.b16 %v1666, %v1665
  %v1787 = vpack.c.b16 %v1668, %v1667
  %v1788 = vpack.c.b16 %v1670, %v1669
  %v1789 = vpack.c.b16 %v1672, %v1671
  %v1790 = vpack.c.b16 %v1674, %v1673
  %v1791 = vpack.c.b16 %v1676, %v1675
  %v1792 = vpack.c.b16 %v1678, %v1677
  %v1793 = vpack.c.b16 %v1680, %v1679
  %v1794 = vpack.c.b16 %v1682, %v1681
  %v1795 = vpack.c.b16 %v1684, %v1683
  %v1796 = vpack.c.b16 %v1686, %v1685
  %v1797 = vpack.c.b16 %v1688, %v1687
  %v1798 = vpack.c.b16 %v1690, %v1689
  %v1799 = vpack.c.b16 %v1692, %v1691
  %v1800 = vpack.c.b16 %v1694, %v1693
  %v1801 = vpack.c.b16 %v1696, %v1695
  %v1802 = vpack.c.b16 %v1698, %v1697
  %v1803 = vpack.c.b16 %v1700, %v1699
  %v1804 = vpack.c.b16 %v1702, %v1701
  %v1805 = vpack.c.b16 %v1704, %v1703
  %v1806 = vpack.c.b16 %v1706, %v1705
  %v1807 = vpack.c.b16 %v1708, %v1707
  %v1808 = vpack.c.b16 %v1710, %v1709
  %v1809 = vpack.c.b16 %v1712, %v1711
  %v1810 = vpack.c.b16 %v1714, %v1713
  %v1811 = vpack.c.b16 %v1716, %v1715
  %v1812 = vpack.c.b16 %v1718, %v1717
  %v1813 = vpack.c.b16 %v1720, %v1719
  %v1814 = vpack.c.b16 %v1722, %v1721
  %v1815 = vpack.c.b16 %v1724, %v1723
  %v1816 = vpack.c.b16 %v1726, %v1725
  %v1817 = vpack.c.b16 %v1728, %v1727
  %v1818 = vpack.c.b16 %v1730, %v1729
  %v1819 = vpack.c.b16 %v1732, %v1731
  %v1820 = vpack.c.b16 %v1734, %v1733
  %v1821 = vpack.c.b16 %v1736, %v1735
  %v1822 = vpack.c.b16 %v1738, %v1737
  %v1823 = vpack.c.b16 %v1740, %v1739
  %v1824 = vpack.c.b16 %v1742, %v1741
  %v1825 = vpack.c.b16 %v1744, %v1743
  %v1826 = vpack.c.b16 %v1746, %v1745
  %v1827 = vpack.c.b16 %v1748, %v1747
  %v1828 = vpack.c.b16 %v1750, %v1749
  %v1829 = vpack.c.b16 %v1752, %v1751
  %v1830 = vpack.c.b16 %v1754, %v1753
  %v1831 = vpack.c.b16 %v1756, %v1755
  %v1832 = vpack.c.b16 %v1758, %v1757
  %v1833 = vpack.c.b16 %v1760, %v1759
  %v1834 = vpack.c.b16 %v1762, %v1761
  %v1835 = vpack.c.b16 %v1764, %v1763
  %v1836 = vpack.c.b16 %v1766, %v1765
  %v1837 = vpack.c.b16 %v1768, %v1767
  %v1838 = vpack.c.b16 %v1770, %v1769
  %v1839 = vpack.c.b16 %v1772, %v1771
  %v1840 = vpack.c.b16 %v1774, %v1773
  %v1841 = vpack.c.b16 %v1776, %v1775
  %v1842 = vpack.c.b16 %v1778, %v1777
  %1907 = vmatpush.bf16.msra.mxu0 %v1786
  %1908 = vmatpush.bf16.msra.mxu0 %v1785
  %1909 = vmatpush.bf16.msra.mxu0 %v1784
  %1910 = vmatpush.bf16.msra.mxu0 %v1783
  %1911 = vmatpush.bf16.msra.mxu0 %v1782
  %1912 = vmatpush.bf16.msra.mxu0 %v1781
  %1913 = vmatpush.bf16.msra.mxu0 %v1780
  %1914 = vmatpush.bf16.msra.mxu0 %v1779
  %1915 = vmatmul.bf16.gmra.mxu0 %v1507
  %v1916 = vpop.f32.mrf.mxu0
  %v1917 = vadd.f32 %v1481, %v1916
  %v1918 = vpop.f32.mrf.mxu0
  %v1919 = vadd.f32 %v1481, %v1918
  %1920 = vdwg.mxu0
  %1921 = vmatpush.bf16.msra.mxu0 %v1794
  %1922 = vmatpush.bf16.msra.mxu0 %v1793
  %1923 = vmatpush.bf16.msra.mxu0 %v1792
  %1924 = vmatpush.bf16.msra.mxu0 %v1791
  %1925 = vmatpush.bf16.msra.mxu0 %v1790
  %1926 = vmatpush.bf16.msra.mxu0 %v1789
  %1927 = vmatpush.bf16.msra.mxu0 %v1788
  %1928 = vmatpush.bf16.msra.mxu0 %v1787
  %1929 = vmatmul.bf16.gmra.mxu0 %v1508
  %v1930 = vpop.f32.mrf.mxu0
  %v1931 = vadd.f32 %v1917, %v1930
  %v1932 = vpop.f32.mrf.mxu0
  %v1933 = vadd.f32 %v1919, %v1932
  %1934 = vdwg.mxu0
  %1935 = vmatpush.bf16.msra.mxu0 %v1802
  %1936 = vmatpush.bf16.msra.mxu0 %v1801
  %1937 = vmatpush.bf16.msra.mxu0 %v1800
  %1938 = vmatpush.bf16.msra.mxu0 %v1799
  %1939 = vmatpush.bf16.msra.mxu0 %v1798
  %1940 = vmatpush.bf16.msra.mxu0 %v1797
  %1941 = vmatpush.bf16.msra.mxu0 %v1796
  %1942 = vmatpush.bf16.msra.mxu0 %v1795
  %1943 = vmatmul.bf16.gmra.mxu0 %v1509
  %v1944 = vpop.f32.mrf.mxu0
  %v1945 = vadd.f32 %v1931, %v1944
  %v1946 = vpop.f32.mrf.mxu0
  %v1947 = vadd.f32 %v1933, %v1946
  %1948 = vdwg.mxu0
  %1949 = vmatpush.bf16.msra.mxu0 %v1810
  %1950 = vmatpush.bf16.msra.mxu0 %v1809
  %1951 = vmatpush.bf16.msra.mxu0 %v1808
  %1952 = vmatpush.bf16.msra.mxu0 %v1807
  %1953 = vmatpush.bf16.msra.mxu0 %v1806
  %1954 = vmatpush.bf16.msra.mxu0 %v1805
  %1955 = vmatpush.bf16.msra.mxu0 %v1804
  %1956 = vmatpush.bf16.msra.mxu0 %v1803
  %1957 = vmatmul.bf16.gmra.mxu0 %v1510
  %v1958 = vpop.f32.mrf.mxu0
  %v1959 = vadd.f32 %v1945, %v1958
  %v1960 = vpop.f32.mrf.mxu0
  %v1961 = vadd.f32 %v1947, %v1960
  %1962 = vdwg.mxu0
  %1963 = vmatpush.bf16.msra.mxu0 %v1818
  %1964 = vmatpush.bf16.msra.mxu0 %v1817
  %1965 = vmatpush.bf16.msra.mxu0 %v1816
  %1966 = vmatpush.bf16.msra.mxu0 %v1815
  %1967 = vmatpush.bf16.msra.mxu0 %v1814
  %1968 = vmatpush.bf16.msra.mxu0 %v1813
  %1969 = vmatpush.bf16.msra.mxu0 %v1812
  %1970 = vmatpush.bf16.msra.mxu0 %v1811
  %1971 = vmatmul.bf16.gmra.mxu0 %v1511
  %v1972 = vpop.f32.mrf.mxu0
  %v1973 = vadd.f32 %v1959, %v1972
  %v1974 = vpop.f32.mrf.mxu0
  %v1975 = vadd.f32 %v1961, %v1974
  %1976 = vdwg.mxu0
  %1977 = vmatpush.bf16.msra.mxu0 %v1826
  %1978 = vmatpush.bf16.msra.mxu0 %v1825
  %1979 = vmatpush.bf16.msra.mxu0 %v1824
  %1980 = vmatpush.bf16.msra.mxu0 %v1823
  %1981 = vmatpush.bf16.msra.mxu0 %v1822
  %1982 = vmatpush.bf16.msra.mxu0 %v1821
  %1983 = vmatpush.bf16.msra.mxu0 %v1820
  %1984 = vmatpush.bf16.msra.mxu0 %v1819
  %1985 = vmatmul.bf16.gmra.mxu0 %v1512
  %v1986 = vpop.f32.mrf.mxu0
  %v1987 = vadd.f32 %v1973, %v1986
  %v1988 = vpop.f32.mrf.mxu0
  %v1989 = vadd.f32 %v1975, %v1988
  %1990 = vdwg.mxu0
  %1991 = vmatpush.bf16.msra.mxu0 %v1834
  %1992 = vmatpush.bf16.msra.mxu0 %v1833
  %1993 = vmatpush.bf16.msra.mxu0 %v1832
  %1994 = vmatpush.bf16.msra.mxu0 %v1831
  %1995 = vmatpush.bf16.msra.mxu0 %v1830
  %1996 = vmatpush.bf16.msra.mxu0 %v1829
  %1997 = vmatpush.bf16.msra.mxu0 %v1828
  %1998 = vmatpush.bf16.msra.mxu0 %v1827
  %1999 = vmatmul.bf16.gmra.mxu0 %v1513
  %v2000 = vpop.f32.mrf.mxu0
  %v2001 = vadd.f32 %v1987, %v2000
  %v2002 = vpop.f32.mrf.mxu0
  %v2003 = vadd.f32 %v1989, %v2002
  %2004 = vdwg.mxu0
  %2005 = vmatpush.bf16.msra.mxu0 %v1842
  %2006 = vmatpush.bf16.msra.mxu0 %v1841
  %2007 = vmatpush.bf16.msra.mxu0 %v1840
  %2008 = vmatpush.bf16.msra.mxu0 %v1839
  %2009 = vmatpush.bf16.msra.mxu0 %v1838
  %2010 = vmatpush.bf16.msra.mxu0 %v1837
  %2011 = vmatpush.bf16.msra.mxu0 %v1836
  %2012 = vmatpush.bf16.msra.mxu0 %v1835
  %2013 = vmatmul.bf16.gmra.mxu0 %v1514
  %v2014 = vpop.f32.mrf.mxu0
  %v2015 = vadd.f32 %v2001, %v2014
  %v2016 = vpop.f32.mrf.mxu0
  %v2017 = vadd.f32 %v2003, %v2016
  %2018 = vdwg.mxu0
  %v2019 = vpack.c.bf16 %v2015, %v2015
  %v2020 = vpack.c.bf16 %v2017, %v2017
  %2021 = vst [vmem:[%s17] sm:$0xf] %v2019
  %2022 = vst [vmem:[%s17 + $0x4] sm:$0xf] %v2020
  %v2023 = vld [vmem:[%s3] sm:$0xff]
  %v2024 = vld [vmem:[%s3 + $0x8] sm:$0xff]
  %v2025 = vld [vmem:[%s3 + $0x10] sm:$0xff]
  %v2026 = vld [vmem:[%s3 + $0x18] sm:$0xff]
  %v2027 = vld [vmem:[%s3 + $0x20] sm:$0xff]
  %v2028 = vld [vmem:[%s3 + $0x28] sm:$0xff]
  %v2029 = vld [vmem:[%s3 + $0x30] sm:$0xff]
  %v2030 = vld [vmem:[%s3 + $0x38] sm:$0xff]
  %v2031 = vld [vmem:[%s3 + $0x40] sm:$0xff]
  %v2032 = vld [vmem:[%s3 + $0x48] sm:$0xff]
  %v2033 = vld [vmem:[%s3 + $0x50] sm:$0xff]
  %v2034 = vld [vmem:[%s3 + $0x58] sm:$0xff]
  %v2035 = vld [vmem:[%s3 + $0x60] sm:$0xff]
  %v2036 = vld [vmem:[%s3 + $0x68] sm:$0xff]
  %v2037 = vld [vmem:[%s3 + $0x70] sm:$0xff]
  %v2038 = vld [vmem:[%s3 + $0x78] sm:$0xff]
  %v2039 = vld [vmem:[%s3 + $0x80] sm:$0xff]
  %v2040 = vld [vmem:[%s3 + $0x88] sm:$0xff]
  %v2041 = vld [vmem:[%s3 + $0x90] sm:$0xff]
  %v2042 = vld [vmem:[%s3 + $0x98] sm:$0xff]
  %v2043 = vld [vmem:[%s3 + $0xa0] sm:$0xff]
  %v2044 = vld [vmem:[%s3 + $0xa8] sm:$0xff]
  %v2045 = vld [vmem:[%s3 + $0xb0] sm:$0xff]
  %v2046 = vld [vmem:[%s3 + $0xb8] sm:$0xff]
  %v2047 = vld [vmem:[%s3 + $0xc0] sm:$0xff]
  %v2048 = vld [vmem:[%s3 + $0xc8] sm:$0xff]
  %v2049 = vld [vmem:[%s3 + $0xd0] sm:$0xff]
  %v2050 = vld [vmem:[%s3 + $0xd8] sm:$0xff]
  %v2051 = vld [vmem:[%s3 + $0xe0] sm:$0xff]
  %v2052 = vld [vmem:[%s3 + $0xe8] sm:$0xff]
  %v2053 = vld [vmem:[%s3 + $0xf0] sm:$0xff]
  %v2054 = vld [vmem:[%s3 + $0xf8] sm:$0xff]
  %v2055 = vld [vmem:[%s8] sm:$0xf]
  %v2056 = vld [vmem:[%s8 + $0x4] sm:$0xf]
  %v2057 = vld [vmem:[%s8 + $0x8] sm:$0xf]
  %v2058 = vld [vmem:[%s8 + $0xc] sm:$0xf]
  %v2059 = vld [vmem:[%s8 + $0x10] sm:$0xf]
  %v2060 = vld [vmem:[%s8 + $0x14] sm:$0xf]
  %v2061 = vld [vmem:[%s8 + $0x18] sm:$0xf]
  %v2062 = vld [vmem:[%s8 + $0x1c] sm:$0xf]
  %v2063 = vld [vmem:[%s8 + $0x20] sm:$0xf]
  %v2064 = vld [vmem:[%s8 + $0x24] sm:$0xf]
  %v2065 = vld [vmem:[%s8 + $0x28] sm:$0xf]
  %v2066 = vld [vmem:[%s8 + $0x2c] sm:$0xf]
  %v2067 = vld [vmem:[%s8 + $0x30] sm:$0xf]
  %v2068 = vld [vmem:[%s8 + $0x34] sm:$0xf]
  %v2069 = vld [vmem:[%s8 + $0x38] sm:$0xf]
  %v2070 = vld [vmem:[%s8 + $0x3c] sm:$0xf]
  %v2071 = vld [vmem:[%s8 + $0x40] sm:$0xf]
  %v2072 = vld [vmem:[%s8 + $0x44] sm:$0xf]
  %v2073 = vld [vmem:[%s8 + $0x48] sm:$0xf]
  %v2074 = vld [vmem:[%s8 + $0x4c] sm:$0xf]
  %v2075 = vld [vmem:[%s8 + $0x50] sm:$0xf]
  %v2076 = vld [vmem:[%s8 + $0x54] sm:$0xf]
  %v2077 = vld [vmem:[%s8 + $0x58] sm:$0xf]
  %v2078 = vld [vmem:[%s8 + $0x5c] sm:$0xf]
  %v2079 = vld [vmem:[%s8 + $0x60] sm:$0xf]
  %v2080 = vld [vmem:[%s8 + $0x64] sm:$0xf]
  %v2081 = vld [vmem:[%s8 + $0x68] sm:$0xf]
  %v2082 = vld [vmem:[%s8 + $0x6c] sm:$0xf]
  %v2083 = vld [vmem:[%s8 + $0x70] sm:$0xf]
  %v2084 = vld [vmem:[%s8 + $0x74] sm:$0xf]
  %v2085 = vld [vmem:[%s8 + $0x78] sm:$0xf]
  %v2086 = vld [vmem:[%s8 + $0x7c] sm:$0xf]
  %v2087 = vld [vmem:[%s8 + $0x80] sm:$0xf]
  %v2088 = vld [vmem:[%s8 + $0x84] sm:$0xf]
  %v2089 = vld [vmem:[%s8 + $0x88] sm:$0xf]
  %v2090 = vld [vmem:[%s8 + $0x8c] sm:$0xf]
  %v2091 = vld [vmem:[%s8 + $0x90] sm:$0xf]
  %v2092 = vld [vmem:[%s8 + $0x94] sm:$0xf]
  %v2093 = vld [vmem:[%s8 + $0x98] sm:$0xf]
  %v2094 = vld [vmem:[%s8 + $0x9c] sm:$0xf]
  %v2095 = vld [vmem:[%s8 + $0xa0] sm:$0xf]
  %v2096 = vld [vmem:[%s8 + $0xa4] sm:$0xf]
  %v2097 = vld [vmem:[%s8 + $0xa8] sm:$0xf]
  %v2098 = vld [vmem:[%s8 + $0xac] sm:$0xf]
  %v2099 = vld [vmem:[%s8 + $0xb0] sm:$0xf]
  %v2100 = vld [vmem:[%s8 + $0xb4] sm:$0xf]
  %v2101 = vld [vmem:[%s8 + $0xb8] sm:$0xf]
  %v2102 = vld [vmem:[%s8 + $0xbc] sm:$0xf]
  %v2103 = vld [vmem:[%s8 + $0xc0] sm:$0xf]
  %v2104 = vld [vmem:[%s8 + $0xc4] sm:$0xf]
  %v2105 = vld [vmem:[%s8 + $0xc8] sm:$0xf]
  %v2106 = vld [vmem:[%s8 + $0xcc] sm:$0xf]
  %v2107 = vld [vmem:[%s8 + $0xd0] sm:$0xf]
  %v2108 = vld [vmem:[%s8 + $0xd4] sm:$0xf]
  %v2109 = vld [vmem:[%s8 + $0xd8] sm:$0xf]
  %v2110 = vld [vmem:[%s8 + $0xdc] sm:$0xf]
  %v2111 = vld [vmem:[%s8 + $0xe0] sm:$0xf]
  %v2112 = vld [vmem:[%s8 + $0xe4] sm:$0xf]
  %v2113 = vld [vmem:[%s8 + $0xe8] sm:$0xf]
  %v2114 = vld [vmem:[%s8 + $0xec] sm:$0xf]
  %v2115 = vld [vmem:[%s8 + $0xf0] sm:$0xf]
  %v2116 = vld [vmem:[%s8 + $0xf4] sm:$0xf]
  %v2117 = vld [vmem:[%s8 + $0xf8] sm:$0xf]
  %v2118 = vld [vmem:[%s8 + $0xfc] sm:$0xf]
  %v2119 = vld [vmem:[%s8 + $0x100] sm:$0xf]
  %v2120 = vld [vmem:[%s8 + $0x104] sm:$0xf]
  %v2121 = vld [vmem:[%s8 + $0x108] sm:$0xf]
  %v2122 = vld [vmem:[%s8 + $0x10c] sm:$0xf]
  %v2123 = vld [vmem:[%s8 + $0x110] sm:$0xf]
  %v2124 = vld [vmem:[%s8 + $0x114] sm:$0xf]
  %v2125 = vld [vmem:[%s8 + $0x118] sm:$0xf]
  %v2126 = vld [vmem:[%s8 + $0x11c] sm:$0xf]
  %v2127 = vld [vmem:[%s8 + $0x120] sm:$0xf]
  %v2128 = vld [vmem:[%s8 + $0x124] sm:$0xf]
  %v2129 = vld [vmem:[%s8 + $0x128] sm:$0xf]
  %v2130 = vld [vmem:[%s8 + $0x12c] sm:$0xf]
  %v2131 = vld [vmem:[%s8 + $0x130] sm:$0xf]
  %v2132 = vld [vmem:[%s8 + $0x134] sm:$0xf]
  %v2133 = vld [vmem:[%s8 + $0x138] sm:$0xf]
  %v2134 = vld [vmem:[%s8 + $0x13c] sm:$0xf]
  %v2135 = vld [vmem:[%s8 + $0x140] sm:$0xf]
  %v2136 = vld [vmem:[%s8 + $0x144] sm:$0xf]
  %v2137 = vld [vmem:[%s8 + $0x148] sm:$0xf]
  %v2138 = vld [vmem:[%s8 + $0x14c] sm:$0xf]
  %v2139 = vld [vmem:[%s8 + $0x150] sm:$0xf]
  %v2140 = vld [vmem:[%s8 + $0x154] sm:$0xf]
  %v2141 = vld [vmem:[%s8 + $0x158] sm:$0xf]
  %v2142 = vld [vmem:[%s8 + $0x15c] sm:$0xf]
  %v2143 = vld [vmem:[%s8 + $0x160] sm:$0xf]
  %v2144 = vld [vmem:[%s8 + $0x164] sm:$0xf]
  %v2145 = vld [vmem:[%s8 + $0x168] sm:$0xf]
  %v2146 = vld [vmem:[%s8 + $0x16c] sm:$0xf]
  %v2147 = vld [vmem:[%s8 + $0x170] sm:$0xf]
  %v2148 = vld [vmem:[%s8 + $0x174] sm:$0xf]
  %v2149 = vld [vmem:[%s8 + $0x178] sm:$0xf]
  %v2150 = vld [vmem:[%s8 + $0x17c] sm:$0xf]
  %v2151 = vld [vmem:[%s8 + $0x180] sm:$0xf]
  %v2152 = vld [vmem:[%s8 + $0x184] sm:$0xf]
  %v2153 = vld [vmem:[%s8 + $0x188] sm:$0xf]
  %v2154 = vld [vmem:[%s8 + $0x18c] sm:$0xf]
  %v2155 = vld [vmem:[%s8 + $0x190] sm:$0xf]
  %v2156 = vld [vmem:[%s8 + $0x194] sm:$0xf]
  %v2157 = vld [vmem:[%s8 + $0x198] sm:$0xf]
  %v2158 = vld [vmem:[%s8 + $0x19c] sm:$0xf]
  %v2159 = vld [vmem:[%s8 + $0x1a0] sm:$0xf]
  %v2160 = vld [vmem:[%s8 + $0x1a4] sm:$0xf]
  %v2161 = vld [vmem:[%s8 + $0x1a8] sm:$0xf]
  %v2162 = vld [vmem:[%s8 + $0x1ac] sm:$0xf]
  %v2163 = vld [vmem:[%s8 + $0x1b0] sm:$0xf]
  %v2164 = vld [vmem:[%s8 + $0x1b4] sm:$0xf]
  %v2165 = vld [vmem:[%s8 + $0x1b8] sm:$0xf]
  %v2166 = vld [vmem:[%s8 + $0x1bc] sm:$0xf]
  %v2167 = vld [vmem:[%s8 + $0x1c0] sm:$0xf]
  %v2168 = vld [vmem:[%s8 + $0x1c4] sm:$0xf]
  %v2169 = vld [vmem:[%s8 + $0x1c8] sm:$0xf]
  %v2170 = vld [vmem:[%s8 + $0x1cc] sm:$0xf]
  %v2171 = vld [vmem:[%s8 + $0x1d0] sm:$0xf]
  %v2172 = vld [vmem:[%s8 + $0x1d4] sm:$0xf]
  %v2173 = vld [vmem:[%s8 + $0x1d8] sm:$0xf]
  %v2174 = vld [vmem:[%s8 + $0x1dc] sm:$0xf]
  %v2175 = vld [vmem:[%s8 + $0x1e0] sm:$0xf]
  %v2176 = vld [vmem:[%s8 + $0x1e4] sm:$0xf]
  %v2177 = vld [vmem:[%s8 + $0x1e8] sm:$0xf]
  %v2178 = vld [vmem:[%s8 + $0x1ec] sm:$0xf]
  %v2179 = vld [vmem:[%s8 + $0x1f0] sm:$0xf]
  %v2180 = vld [vmem:[%s8 + $0x1f4] sm:$0xf]
  %v2181 = vld [vmem:[%s8 + $0x1f8] sm:$0xf]
  %v2182 = vld [vmem:[%s8 + $0x1fc] sm:$0xf]
  %v2183 = vld [vmem:[%s13] sm:$0x1]
  %v2185 = vperm.slane %v2183, 0
  %v2219 = vunpack.c.l.b16 %v2023
  %v2220 = vunpack.c.h.b16 %v2023
  %v2221 = vunpack.c.l.b16 %v2024
  %v2222 = vunpack.c.h.b16 %v2024
  %v2223 = vunpack.c.l.b16 %v2025
  %v2224 = vunpack.c.h.b16 %v2025
  %v2225 = vunpack.c.l.b16 %v2026
  %v2226 = vunpack.c.h.b16 %v2026
  %v2227 = vunpack.c.l.b16 %v2027
  %v2228 = vunpack.c.h.b16 %v2027
  %v2229 = vunpack.c.l.b16 %v2028
  %v2230 = vunpack.c.h.b16 %v2028
  %v2231 = vunpack.c.l.b16 %v2029
  %v2232 = vunpack.c.h.b16 %v2029
  %v2233 = vunpack.c.l.b16 %v2030
  %v2234 = vunpack.c.h.b16 %v2030
  %v2235 = vunpack.c.l.b16 %v2031
  %v2236 = vunpack.c.h.b16 %v2031
  %v2237 = vunpack.c.l.b16 %v2032
  %v2238 = vunpack.c.h.b16 %v2032
  %v2239 = vunpack.c.l.b16 %v2033
  %v2240 = vunpack.c.h.b16 %v2033
  %v2241 = vunpack.c.l.b16 %v2034
  %v2242 = vunpack.c.h.b16 %v2034
  %v2243 = vunpack.c.l.b16 %v2035
  %v2244 = vunpack.c.h.b16 %v2035
  %v2245 = vunpack.c.l.b16 %v2036
  %v2246 = vunpack.c.h.b16 %v2036
  %v2247 = vunpack.c.l.b16 %v2037
  %v2248 = vunpack.c.h.b16 %v2037
  %v2249 = vunpack.c.l.b16 %v2038
  %v2250 = vunpack.c.h.b16 %v2038
  %v2251 = vunpack.c.l.b16 %v2039
  %v2252 = vunpack.c.h.b16 %v2039
  %v2253 = vunpack.c.l.b16 %v2040
  %v2254 = vunpack.c.h.b16 %v2040
  %v2255 = vunpack.c.l.b16 %v2041
  %v2256 = vunpack.c.h.b16 %v2041
  %v2257 = vunpack.c.l.b16 %v2042
  %v2258 = vunpack.c.h.b16 %v2042
  %v2259 = vunpack.c.l.b16 %v2043
  %v2260 = vunpack.c.h.b16 %v2043
  %v2261 = vunpack.c.l.b16 %v2044
  %v2262 = vunpack.c.h.b16 %v2044
  %v2263 = vunpack.c.l.b16 %v2045
  %v2264 = vunpack.c.h.b16 %v2045
  %v2265 = vunpack.c.l.b16 %v2046
  %v2266 = vunpack.c.h.b16 %v2046
  %v2267 = vunpack.c.l.b16 %v2047
  %v2268 = vunpack.c.h.b16 %v2047
  %v2269 = vunpack.c.l.b16 %v2048
  %v2270 = vunpack.c.h.b16 %v2048
  %v2271 = vunpack.c.l.b16 %v2049
  %v2272 = vunpack.c.h.b16 %v2049
  %v2273 = vunpack.c.l.b16 %v2050
  %v2274 = vunpack.c.h.b16 %v2050
  %v2275 = vunpack.c.l.b16 %v2051
  %v2276 = vunpack.c.h.b16 %v2051
  %v2277 = vunpack.c.l.b16 %v2052
  %v2278 = vunpack.c.h.b16 %v2052
  %v2279 = vunpack.c.l.b16 %v2053
  %v2280 = vunpack.c.h.b16 %v2053
  %v2281 = vunpack.c.l.b16 %v2054
  %v2282 = vunpack.c.h.b16 %v2054
  %v2283 = vpack.c.b16 %v2227, %v2219
  %v2284 = vpack.c.b16 %v2228, %v2220
  %v2285 = vpack.c.b16 %v2229, %v2221
  %v2286 = vpack.c.b16 %v2230, %v2222
  %v2287 = vpack.c.b16 %v2231, %v2223
  %v2288 = vpack.c.b16 %v2232, %v2224
  %v2289 = vpack.c.b16 %v2233, %v2225
  %v2290 = vpack.c.b16 %v2234, %v2226
  %v2291 = vpack.c.b16 %v2243, %v2235
  %v2292 = vpack.c.b16 %v2244, %v2236
  %v2293 = vpack.c.b16 %v2245, %v2237
  %v2294 = vpack.c.b16 %v2246, %v2238
  %v2295 = vpack.c.b16 %v2247, %v2239
  %v2296 = vpack.c.b16 %v2248, %v2240
  %v2297 = vpack.c.b16 %v2249, %v2241
  %v2298 = vpack.c.b16 %v2250, %v2242
  %v2299 = vpack.c.b16 %v2259, %v2251
  %v2300 = vpack.c.b16 %v2260, %v2252
  %v2301 = vpack.c.b16 %v2261, %v2253
  %v2302 = vpack.c.b16 %v2262, %v2254
  %v2303 = vpack.c.b16 %v2263, %v2255
  %v2304 = vpack.c.b16 %v2264, %v2256
  %v2305 = vpack.c.b16 %v2265, %v2257
  %v2306 = vpack.c.b16 %v2266, %v2258
  %v2307 = vpack.c.b16 %v2275, %v2267
  %v2308 = vpack.c.b16 %v2276, %v2268
  %v2309 = vpack.c.b16 %v2277, %v2269
  %v2310 = vpack.c.b16 %v2278, %v2270
  %v2311 = vpack.c.b16 %v2279, %v2271
  %v2312 = vpack.c.b16 %v2280, %v2272
  %v2313 = vpack.c.b16 %v2281, %v2273
  %v2314 = vpack.c.b16 %v2282, %v2274
  %v2475 = vunpack.c.l.b16 %v2055
  %v2476 = vunpack.c.l.b16 %v2056
  %v2477 = vunpack.c.l.b16 %v2057
  %v2478 = vunpack.c.l.b16 %v2058
  %v2479 = vunpack.c.l.b16 %v2059
  %v2480 = vunpack.c.l.b16 %v2060
  %v2481 = vunpack.c.l.b16 %v2061
  %v2482 = vunpack.c.l.b16 %v2062
  %v2483 = vunpack.c.l.b16 %v2063
  %v2484 = vunpack.c.l.b16 %v2064
  %v2485 = vunpack.c.l.b16 %v2065
  %v2486 = vunpack.c.l.b16 %v2066
  %v2487 = vunpack.c.l.b16 %v2067
  %v2488 = vunpack.c.l.b16 %v2068
  %v2489 = vunpack.c.l.b16 %v2069
  %v2490 = vunpack.c.l.b16 %v2070
  %v2491 = vunpack.c.l.b16 %v2071
  %v2492 = vunpack.c.l.b16 %v2072
  %v2493 = vunpack.c.l.b16 %v2073
  %v2494 = vunpack.c.l.b16 %v2074
  %v2495 = vunpack.c.l.b16 %v2075
  %v2496 = vunpack.c.l.b16 %v2076
  %v2497 = vunpack.c.l.b16 %v2077
  %v2498 = vunpack.c.l.b16 %v2078
  %v2499 = vunpack.c.l.b16 %v2079
  %v2500 = vunpack.c.l.b16 %v2080
  %v2501 = vunpack.c.l.b16 %v2081
  %v2502 = vunpack.c.l.b16 %v2082
  %v2503 = vunpack.c.l.b16 %v2083
  %v2504 = vunpack.c.l.b16 %v2084
  %v2505 = vunpack.c.l.b16 %v2085
  %v2506 = vunpack.c.l.b16 %v2086
  %v2507 = vunpack.c.l.b16 %v2087
  %v2508 = vunpack.c.l.b16 %v2088
  %v2509 = vunpack.c.l.b16 %v2089
  %v2510 = vunpack.c.l.b16 %v2090
  %v2511 = vunpack.c.l.b16 %v2091
  %v2512 = vunpack.c.l.b16 %v2092
  %v2513 = vunpack.c.l.b16 %v2093
  %v2514 = vunpack.c.l.b16 %v2094
  %v2515 = vunpack.c.l.b16 %v2095
  %v2516 = vunpack.c.l.b16 %v2096
  %v2517 = vunpack.c.l.b16 %v2097
  %v2518 = vunpack.c.l.b16 %v2098
  %v2519 = vunpack.c.l.b16 %v2099
  %v2520 = vunpack.c.l.b16 %v2100
  %v2521 = vunpack.c.l.b16 %v2101
  %v2522 = vunpack.c.l.b16 %v2102
  %v2523 = vunpack.c.l.b16 %v2103
  %v2524 = vunpack.c.l.b16 %v2104
  %v2525 = vunpack.c.l.b16 %v2105
  %v2526 = vunpack.c.l.b16 %v2106
  %v2527 = vunpack.c.l.b16 %v2107
  %v2528 = vunpack.c.l.b16 %v2108
  %v2529 = vunpack.c.l.b16 %v2109
  %v2530 = vunpack.c.l.b16 %v2110
  %v2531 = vunpack.c.l.b16 %v2111
  %v2532 = vunpack.c.l.b16 %v2112
  %v2533 = vunpack.c.l.b16 %v2113
  %v2534 = vunpack.c.l.b16 %v2114
  %v2535 = vunpack.c.l.b16 %v2115
  %v2536 = vunpack.c.l.b16 %v2116
  %v2537 = vunpack.c.l.b16 %v2117
  %v2538 = vunpack.c.l.b16 %v2118
  %v2539 = vunpack.c.l.b16 %v2119
  %v2540 = vunpack.c.l.b16 %v2120
  %v2541 = vunpack.c.l.b16 %v2121
  %v2542 = vunpack.c.l.b16 %v2122
  %v2543 = vunpack.c.l.b16 %v2123
  %v2544 = vunpack.c.l.b16 %v2124
  %v2545 = vunpack.c.l.b16 %v2125
  %v2546 = vunpack.c.l.b16 %v2126
  %v2547 = vunpack.c.l.b16 %v2127
  %v2548 = vunpack.c.l.b16 %v2128
  %v2549 = vunpack.c.l.b16 %v2129
  %v2550 = vunpack.c.l.b16 %v2130
  %v2551 = vunpack.c.l.b16 %v2131
  %v2552 = vunpack.c.l.b16 %v2132
  %v2553 = vunpack.c.l.b16 %v2133
  %v2554 = vunpack.c.l.b16 %v2134
  %v2555 = vunpack.c.l.b16 %v2135
  %v2556 = vunpack.c.l.b16 %v2136
  %v2557 = vunpack.c.l.b16 %v2137
  %v2558 = vunpack.c.l.b16 %v2138
  %v2559 = vunpack.c.l.b16 %v2139
  %v2560 = vunpack.c.l.b16 %v2140
  %v2561 = vunpack.c.l.b16 %v2141
  %v2562 = vunpack.c.l.b16 %v2142
  %v2563 = vunpack.c.l.b16 %v2143
  %v2564 = vunpack.c.l.b16 %v2144
  %v2565 = vunpack.c.l.b16 %v2145
  %v2566 = vunpack.c.l.b16 %v2146
  %v2567 = vunpack.c.l.b16 %v2147
  %v2568 = vunpack.c.l.b16 %v2148
  %v2569 = vunpack.c.l.b16 %v2149
  %v2570 = vunpack.c.l.b16 %v2150
  %v2571 = vunpack.c.l.b16 %v2151
  %v2572 = vunpack.c.l.b16 %v2152
  %v2573 = vunpack.c.l.b16 %v2153
  %v2574 = vunpack.c.l.b16 %v2154
  %v2575 = vunpack.c.l.b16 %v2155
  %v2576 = vunpack.c.l.b16 %v2156
  %v2577 = vunpack.c.l.b16 %v2157
  %v2578 = vunpack.c.l.b16 %v2158
  %v2579 = vunpack.c.l.b16 %v2159
  %v2580 = vunpack.c.l.b16 %v2160
  %v2581 = vunpack.c.l.b16 %v2161
  %v2582 = vunpack.c.l.b16 %v2162
  %v2583 = vunpack.c.l.b16 %v2163
  %v2584 = vunpack.c.l.b16 %v2164
  %v2585 = vunpack.c.l.b16 %v2165
  %v2586 = vunpack.c.l.b16 %v2166
  %v2587 = vunpack.c.l.b16 %v2167
  %v2588 = vunpack.c.l.b16 %v2168
  %v2589 = vunpack.c.l.b16 %v2169
  %v2590 = vunpack.c.l.b16 %v2170
  %v2591 = vunpack.c.l.b16 %v2171
  %v2592 = vunpack.c.l.b16 %v2172
  %v2593 = vunpack.c.l.b16 %v2173
  %v2594 = vunpack.c.l.b16 %v2174
  %v2595 = vunpack.c.l.b16 %v2175
  %v2596 = vunpack.c.l.b16 %v2176
  %v2597 = vunpack.c.l.b16 %v2177
  %v2598 = vunpack.c.l.b16 %v2178
  %v2599 = vunpack.c.l.b16 %v2179
  %v2600 = vunpack.c.l.b16 %v2180
  %v2601 = vunpack.c.l.b16 %v2181
  %v2602 = vunpack.c.l.b16 %v2182
  %v2603 = vpack.c.b16 %v2476, %v2475
  %v2604 = vpack.c.b16 %v2478, %v2477
  %v2605 = vpack.c.b16 %v2480, %v2479
  %v2606 = vpack.c.b16 %v2482, %v2481
  %v2607 = vpack.c.b16 %v2484, %v2483
  %v2608 = vpack.c.b16 %v2486, %v2485
  %v2609 = vpack.c.b16 %v2488, %v2487
  %v2610 = vpack.c.b16 %v2490, %v2489
  %v2611 = vpack.c.b16 %v2492, %v2491
  %v2612 = vpack.c.b16 %v2494, %v2493
  %v2613 = vpack.c.b16 %v2496, %v2495
  %v2614 = vpack.c.b16 %v2498, %v2497
  %v2615 = vpack.c.b16 %v2500, %v2499
  %v2616 = vpack.c.b16 %v2502, %v2501
  %v2617 = vpack.c.b16 %v2504, %v2503
  %v2618 = vpack.c.b16 %v2506, %v2505
  %v2619 = vpack.c.b16 %v2508, %v2507
  %v2620 = vpack.c.b16 %v2510, %v2509
  %v2621 = vpack.c.b16 %v2512, %v2511
  %v2622 = vpack.c.b16 %v2514, %v2513
  %v2623 = vpack.c.b16 %v2516, %v2515
  %v2624 = vpack.c.b16 %v2518, %v2517
  %v2625 = vpack.c.b16 %v2520, %v2519
  %v2626 = vpack.c.b16 %v2522, %v2521
  %v2627 = vpack.c.b16 %v2524, %v2523
  %v2628 = vpack.c.b16 %v2526, %v2525
  %v2629 = vpack.c.b16 %v2528, %v2527
  %v2630 = vpack.c.b16 %v2530, %v2529
  %v2631 = vpack.c.b16 %v2532, %v2531
  %v2632 = vpack.c.b16 %v2534, %v2533
  %v2633 = vpack.c.b16 %v2536, %v2535
  %v2634 = vpack.c.b16 %v2538, %v2537
  %v2635 = vpack.c.b16 %v2540, %v2539
  %v2636 = vpack.c.b16 %v2542, %v2541
  %v2637 = vpack.c.b16 %v2544, %v2543
  %v2638 = vpack.c.b16 %v2546, %v2545
  %v2639 = vpack.c.b16 %v2548, %v2547
  %v2640 = vpack.c.b16 %v2550, %v2549
  %v2641 = vpack.c.b16 %v2552, %v2551
  %v2642 = vpack.c.b16 %v2554, %v2553
  %v2643 = vpack.c.b16 %v2556, %v2555
  %v2644 = vpack.c.b16 %v2558, %v2557
  %v2645 = vpack.c.b16 %v2560, %v2559
  %v2646 = vpack.c.b16 %v2562, %v2561
  %v2647 = vpack.c.b16 %v2564, %v2563
  %v2648 = vpack.c.b16 %v2566, %v2565
  %v2649 = vpack.c.b16 %v2568, %v2567
  %v2650 = vpack.c.b16 %v2570, %v2569
  %v2651 = vpack.c.b16 %v2572, %v2571
  %v2652 = vpack.c.b16 %v2574, %v2573
  %v2653 = vpack.c.b16 %v2576, %v2575
  %v2654 = vpack.c.b16 %v2578, %v2577
  %v2655 = vpack.c.b16 %v2580, %v2579
  %v2656 = vpack.c.b16 %v2582, %v2581
  %v2657 = vpack.c.b16 %v2584, %v2583
  %v2658 = vpack.c.b16 %v2586, %v2585
  %v2659 = vpack.c.b16 %v2588, %v2587
  %v2660 = vpack.c.b16 %v2590, %v2589
  %v2661 = vpack.c.b16 %v2592, %v2591
  %v2662 = vpack.c.b16 %v2594, %v2593
  %v2663 = vpack.c.b16 %v2596, %v2595
  %v2664 = vpack.c.b16 %v2598, %v2597
  %v2665 = vpack.c.b16 %v2600, %v2599
  %v2666 = vpack.c.b16 %v2602, %v2601
  %2731 = vmatpush.bf16.msra.mxu0 %v2610
  %2732 = vmatpush.bf16.msra.mxu0 %v2609
  %2733 = vmatpush.bf16.msra.mxu0 %v2608
  %2734 = vmatpush.bf16.msra.mxu0 %v2607
  %2735 = vmatpush.bf16.msra.mxu0 %v2606
  %2736 = vmatpush.bf16.msra.mxu0 %v2605
  %2737 = vmatpush.bf16.msra.mxu0 %v2604
  %2738 = vmatpush.bf16.msra.mxu0 %v2603
  %2739 = vmatmul.bf16.gmra.mxu0 %v2283
  %v2740 = vpop.f32.mrf.mxu0
  %v2741 = vadd.f32 %v2185, %v2740
  %v2742 = vpop.f32.mrf.mxu0
  %v2743 = vadd.f32 %v2185, %v2742
  %2744 = vmatmul.bf16.gmra.mxu0 %v2291
  %v2745 = vpop.f32.mrf.mxu0
  %v2746 = vadd.f32 %v2185, %v2745
  %v2747 = vpop.f32.mrf.mxu0
  %v2748 = vadd.f32 %v2185, %v2747
  %2749 = vmatmul.bf16.gmra.mxu0 %v2299
  %v2750 = vpop.f32.mrf.mxu0
  %v2751 = vadd.f32 %v2185, %v2750
  %v2752 = vpop.f32.mrf.mxu0
  %v2753 = vadd.f32 %v2185, %v2752
  %2754 = vmatmul.bf16.gmra.mxu0 %v2307
  %v2755 = vpop.f32.mrf.mxu0
  %v2756 = vadd.f32 %v2185, %v2755
  %v2757 = vpop.f32.mrf.mxu0
  %v2758 = vadd.f32 %v2185, %v2757
  %2759 = vdwg.mxu0
  %2760 = vmatpush.bf16.msra.mxu0 %v2618
  %2761 = vmatpush.bf16.msra.mxu0 %v2617
  %2762 = vmatpush.bf16.msra.mxu0 %v2616
  %2763 = vmatpush.bf16.msra.mxu0 %v2615
  %2764 = vmatpush.bf16.msra.mxu0 %v2614
  %2765 = vmatpush.bf16.msra.mxu0 %v2613
  %2766 = vmatpush.bf16.msra.mxu0 %v2612
  %2767 = vmatpush.bf16.msra.mxu0 %v2611
  %2768 = vmatmul.bf16.gmra.mxu0 %v2284
  %v2769 = vpop.f32.mrf.mxu0
  %v2770 = vadd.f32 %v2741, %v2769
  %v2771 = vpop.f32.mrf.mxu0
  %v2772 = vadd.f32 %v2743, %v2771
  %2773 = vmatmul.bf16.gmra.mxu0 %v2292
  %v2774 = vpop.f32.mrf.mxu0
  %v2775 = vadd.f32 %v2746, %v2774
  %v2776 = vpop.f32.mrf.mxu0
  %v2777 = vadd.f32 %v2748, %v2776
  %2778 = vmatmul.bf16.gmra.mxu0 %v2300
  %v2779 = vpop.f32.mrf.mxu0
  %v2780 = vadd.f32 %v2751, %v2779
  %v2781 = vpop.f32.mrf.mxu0
  %v2782 = vadd.f32 %v2753, %v2781
  %2783 = vmatmul.bf16.gmra.mxu0 %v2308
  %v2784 = vpop.f32.mrf.mxu0
  %v2785 = vadd.f32 %v2756, %v2784
  %v2786 = vpop.f32.mrf.mxu0
  %v2787 = vadd.f32 %v2758, %v2786
  %2788 = vdwg.mxu0
  %2789 = vmatpush.bf16.msra.mxu0 %v2626
  %2790 = vmatpush.bf16.msra.mxu0 %v2625
  %2791 = vmatpush.bf16.msra.mxu0 %v2624
  %2792 = vmatpush.bf16.msra.mxu0 %v2623
  %2793 = vmatpush.bf16.msra.mxu0 %v2622
  %2794 = vmatpush.bf16.msra.mxu0 %v2621
  %2795 = vmatpush.bf16.msra.mxu0 %v2620
  %2796 = vmatpush.bf16.msra.mxu0 %v2619
  %2797 = vmatmul.bf16.gmra.mxu0 %v2285
  %v2798 = vpop.f32.mrf.mxu0
  %v2799 = vadd.f32 %v2770, %v2798
  %v2800 = vpop.f32.mrf.mxu0
  %v2801 = vadd.f32 %v2772, %v2800
  %2802 = vmatmul.bf16.gmra.mxu0 %v2293
  %v2803 = vpop.f32.mrf.mxu0
  %v2804 = vadd.f32 %v2775, %v2803
  %v2805 = vpop.f32.mrf.mxu0
  %v2806 = vadd.f32 %v2777, %v2805
  %2807 = vmatmul.bf16.gmra.mxu0 %v2301
  %v2808 = vpop.f32.mrf.mxu0
  %v2809 = vadd.f32 %v2780, %v2808
  %v2810 = vpop.f32.mrf.mxu0
  %v2811 = vadd.f32 %v2782, %v2810
  %2812 = vmatmul.bf16.gmra.mxu0 %v2309
  %v2813 = vpop.f32.mrf.mxu0
  %v2814 = vadd.f32 %v2785, %v2813
  %v2815 = vpop.f32.mrf.mxu0
  %v2816 = vadd.f32 %v2787, %v2815
  %2817 = vdwg.mxu0
  %2818 = vmatpush.bf16.msra.mxu0 %v2634
  %2819 = vmatpush.bf16.msra.mxu0 %v2633
  %2820 = vmatpush.bf16.msra.mxu0 %v2632
  %2821 = vmatpush.bf16.msra.mxu0 %v2631
  %2822 = vmatpush.bf16.msra.mxu0 %v2630
  %2823 = vmatpush.bf16.msra.mxu0 %v2629
  %2824 = vmatpush.bf16.msra.mxu0 %v2628
  %2825 = vmatpush.bf16.msra.mxu0 %v2627
  %2826 = vmatmul.bf16.gmra.mxu0 %v2286
  %v2827 = vpop.f32.mrf.mxu0
  %v2828 = vadd.f32 %v2799, %v2827
  %v2829 = vpop.f32.mrf.mxu0
  %v2830 = vadd.f32 %v2801, %v2829
  %2831 = vmatmul.bf16.gmra.mxu0 %v2294
  %v2832 = vpop.f32.mrf.mxu0
  %v2833 = vadd.f32 %v2804, %v2832
  %v2834 = vpop.f32.mrf.mxu0
  %v2835 = vadd.f32 %v2806, %v2834
  %2836 = vmatmul.bf16.gmra.mxu0 %v2302
  %v2837 = vpop.f32.mrf.mxu0
  %v2838 = vadd.f32 %v2809, %v2837
  %v2839 = vpop.f32.mrf.mxu0
  %v2840 = vadd.f32 %v2811, %v2839
  %2841 = vmatmul.bf16.gmra.mxu0 %v2310
  %v2842 = vpop.f32.mrf.mxu0
  %v2843 = vadd.f32 %v2814, %v2842
  %v2844 = vpop.f32.mrf.mxu0
  %v2845 = vadd.f32 %v2816, %v2844
  %2846 = vdwg.mxu0
  %2847 = vmatpush.bf16.msra.mxu0 %v2642
  %2848 = vmatpush.bf16.msra.mxu0 %v2641
  %2849 = vmatpush.bf16.msra.mxu0 %v2640
  %2850 = vmatpush.bf16.msra.mxu0 %v2639
  %2851 = vmatpush.bf16.msra.mxu0 %v2638
  %2852 = vmatpush.bf16.msra.mxu0 %v2637
  %2853 = vmatpush.bf16.msra.mxu0 %v2636
  %2854 = vmatpush.bf16.msra.mxu0 %v2635
  %2855 = vmatmul.bf16.gmra.mxu0 %v2287
  %v2856 = vpop.f32.mrf.mxu0
  %v2857 = vadd.f32 %v2828, %v2856
  %v2858 = vpop.f32.mrf.mxu0
  %v2859 = vadd.f32 %v2830, %v2858
  %2860 = vmatmul.bf16.gmra.mxu0 %v2295
  %v2861 = vpop.f32.mrf.mxu0
  %v2862 = vadd.f32 %v2833, %v2861
  %v2863 = vpop.f32.mrf.mxu0
  %v2864 = vadd.f32 %v2835, %v2863
  %2865 = vmatmul.bf16.gmra.mxu0 %v2303
  %v2866 = vpop.f32.mrf.mxu0
  %v2867 = vadd.f32 %v2838, %v2866
  %v2868 = vpop.f32.mrf.mxu0
  %v2869 = vadd.f32 %v2840, %v2868
  %2870 = vmatmul.bf16.gmra.mxu0 %v2311
  %v2871 = vpop.f32.mrf.mxu0
  %v2872 = vadd.f32 %v2843, %v2871
  %v2873 = vpop.f32.mrf.mxu0
  %v2874 = vadd.f32 %v2845, %v2873
  %2875 = vdwg.mxu0
  %2876 = vmatpush.bf16.msra.mxu0 %v2650
  %2877 = vmatpush.bf16.msra.mxu0 %v2649
  %2878 = vmatpush.bf16.msra.mxu0 %v2648
  %2879 = vmatpush.bf16.msra.mxu0 %v2647
  %2880 = vmatpush.bf16.msra.mxu0 %v2646
  %2881 = vmatpush.bf16.msra.mxu0 %v2645
  %2882 = vmatpush.bf16.msra.mxu0 %v2644
  %2883 = vmatpush.bf16.msra.mxu0 %v2643
  %2884 = vmatmul.bf16.gmra.mxu0 %v2288
  %v2885 = vpop.f32.mrf.mxu0
  %v2886 = vadd.f32 %v2857, %v2885
  %v2887 = vpop.f32.mrf.mxu0
  %v2888 = vadd.f32 %v2859, %v2887
  %2889 = vmatmul.bf16.gmra.mxu0 %v2296
  %v2890 = vpop.f32.mrf.mxu0
  %v2891 = vadd.f32 %v2862, %v2890
  %v2892 = vpop.f32.mrf.mxu0
  %v2893 = vadd.f32 %v2864, %v2892
  %2894 = vmatmul.bf16.gmra.mxu0 %v2304
  %v2895 = vpop.f32.mrf.mxu0
  %v2896 = vadd.f32 %v2867, %v2895
  %v2897 = vpop.f32.mrf.mxu0
  %v2898 = vadd.f32 %v2869, %v2897
  %2899 = vmatmul.bf16.gmra.mxu0 %v2312
  %v2900 = vpop.f32.mrf.mxu0
  %v2901 = vadd.f32 %v2872, %v2900
  %v2902 = vpop.f32.mrf.mxu0
  %v2903 = vadd.f32 %v2874, %v2902
  %2904 = vdwg.mxu0
  %2905 = vmatpush.bf16.msra.mxu0 %v2658
  %2906 = vmatpush.bf16.msra.mxu0 %v2657
  %2907 = vmatpush.bf16.msra.mxu0 %v2656
  %2908 = vmatpush.bf16.msra.mxu0 %v2655
  %2909 = vmatpush.bf16.msra.mxu0 %v2654
  %2910 = vmatpush.bf16.msra.mxu0 %v2653
  %2911 = vmatpush.bf16.msra.mxu0 %v2652
  %2912 = vmatpush.bf16.msra.mxu0 %v2651
  %2913 = vmatmul.bf16.gmra.mxu0 %v2289
  %v2914 = vpop.f32.mrf.mxu0
  %v2915 = vadd.f32 %v2886, %v2914
  %v2916 = vpop.f32.mrf.mxu0
  %v2917 = vadd.f32 %v2888, %v2916
  %2918 = vmatmul.bf16.gmra.mxu0 %v2297
  %v2919 = vpop.f32.mrf.mxu0
  %v2920 = vadd.f32 %v2891, %v2919
  %v2921 = vpop.f32.mrf.mxu0
  %v2922 = vadd.f32 %v2893, %v2921
  %2923 = vmatmul.bf16.gmra.mxu0 %v2305
  %v2924 = vpop.f32.mrf.mxu0
  %v2925 = vadd.f32 %v2896, %v2924
  %v2926 = vpop.f32.mrf.mxu0
  %v2927 = vadd.f32 %v2898, %v2926
  %2928 = vmatmul.bf16.gmra.mxu0 %v2313
  %v2929 = vpop.f32.mrf.mxu0
  %v2930 = vadd.f32 %v2901, %v2929
  %v2931 = vpop.f32.mrf.mxu0
  %v2932 = vadd.f32 %v2903, %v2931
  %2933 = vdwg.mxu0
  %2934 = vmatpush.bf16.msra.mxu0 %v2666
  %2935 = vmatpush.bf16.msra.mxu0 %v2665
  %2936 = vmatpush.bf16.msra.mxu0 %v2664
  %2937 = vmatpush.bf16.msra.mxu0 %v2663
  %2938 = vmatpush.bf16.msra.mxu0 %v2662
  %2939 = vmatpush.bf16.msra.mxu0 %v2661
  %2940 = vmatpush.bf16.msra.mxu0 %v2660
  %2941 = vmatpush.bf16.msra.mxu0 %v2659
  %2942 = vmatmul.bf16.gmra.mxu0 %v2290
  %v2943 = vpop.f32.mrf.mxu0
  %v2944 = vadd.f32 %v2915, %v2943
  %v2945 = vpop.f32.mrf.mxu0
  %v2946 = vadd.f32 %v2917, %v2945
  %2947 = vmatmul.bf16.gmra.mxu0 %v2298
  %v2948 = vpop.f32.mrf.mxu0
  %v2949 = vadd.f32 %v2920, %v2948
  %v2950 = vpop.f32.mrf.mxu0
  %v2951 = vadd.f32 %v2922, %v2950
  %2952 = vmatmul.bf16.gmra.mxu0 %v2306
  %v2953 = vpop.f32.mrf.mxu0
  %v2954 = vadd.f32 %v2925, %v2953
  %v2955 = vpop.f32.mrf.mxu0
  %v2956 = vadd.f32 %v2927, %v2955
  %2957 = vmatmul.bf16.gmra.mxu0 %v2314
  %v2958 = vpop.f32.mrf.mxu0
  %v2959 = vadd.f32 %v2930, %v2958
  %v2960 = vpop.f32.mrf.mxu0
  %v2961 = vadd.f32 %v2932, %v2960
  %2962 = vdwg.mxu0
  %v2963 = vpack.c.bf16 %v2944, %v2944
  %v2964 = vpack.c.bf16 %v2946, %v2946
  %v2965 = vpack.c.bf16 %v2949, %v2949
  %v2966 = vpack.c.bf16 %v2951, %v2951
  %v2967 = vpack.c.bf16 %v2954, %v2954
  %v2968 = vpack.c.bf16 %v2956, %v2956
  %v2969 = vpack.c.bf16 %v2959, %v2959
  %v2970 = vpack.c.bf16 %v2961, %v2961
  %2971 = vst [vmem:[%s18] sm:$0xf] %v2963
  %2972 = vst [vmem:[%s18 + $0x4] sm:$0xf] %v2964
  %2973 = vst [vmem:[%s18 + $0x8] sm:$0xf] %v2965
  %2974 = vst [vmem:[%s18 + $0xc] sm:$0xf] %v2966
  %2975 = vst [vmem:[%s18 + $0x10] sm:$0xf] %v2967
  %2976 = vst [vmem:[%s18 + $0x14] sm:$0xf] %v2968
  %2977 = vst [vmem:[%s18 + $0x18] sm:$0xf] %v2969
  %2978 = vst [vmem:[%s18 + $0x1c] sm:$0xf] %v2970
  %v2979 = vld [vmem:[%s4] sm:$0xff]
  %v2980 = vld [vmem:[%s4 + $0x8] sm:$0xff]
  %v2981 = vld [vmem:[%s4 + $0x10] sm:$0xff]
  %v2982 = vld [vmem:[%s4 + $0x18] sm:$0xff]
  %v2983 = vld [vmem:[%s4 + $0x20] sm:$0xff]
  %v2984 = vld [vmem:[%s4 + $0x28] sm:$0xff]
  %v2985 = vld [vmem:[%s4 + $0x30] sm:$0xff]
  %v2986 = vld [vmem:[%s4 + $0x38] sm:$0xff]
  %v2987 = vld [vmem:[%s4 + $0x40] sm:$0xff]
  %v2988 = vld [vmem:[%s4 + $0x48] sm:$0xff]
  %v2989 = vld [vmem:[%s4 + $0x50] sm:$0xff]
  %v2990 = vld [vmem:[%s4 + $0x58] sm:$0xff]
  %v2991 = vld [vmem:[%s4 + $0x60] sm:$0xff]
  %v2992 = vld [vmem:[%s4 + $0x68] sm:$0xff]
  %v2993 = vld [vmem:[%s4 + $0x70] sm:$0xff]
  %v2994 = vld [vmem:[%s4 + $0x78] sm:$0xff]
  %v2995 = vld [vmem:[%s4 + $0x80] sm:$0xff]
  %v2996 = vld [vmem:[%s4 + $0x88] sm:$0xff]
  %v2997 = vld [vmem:[%s4 + $0x90] sm:$0xff]
  %v2998 = vld [vmem:[%s4 + $0x98] sm:$0xff]
  %v2999 = vld [vmem:[%s4 + $0xa0] sm:$0xff]
  %v3000 = vld [vmem:[%s4 + $0xa8] sm:$0xff]
  %v3001 = vld [vmem:[%s4 + $0xb0] sm:$0xff]
  %v3002 = vld [vmem:[%s4 + $0xb8] sm:$0xff]
  %v3003 = vld [vmem:[%s4 + $0xc0] sm:$0xff]
  %v3004 = vld [vmem:[%s4 + $0xc8] sm:$0xff]
  %v3005 = vld [vmem:[%s4 + $0xd0] sm:$0xff]
  %v3006 = vld [vmem:[%s4 + $0xd8] sm:$0xff]
  %v3007 = vld [vmem:[%s4 + $0xe0] sm:$0xff]
  %v3008 = vld [vmem:[%s4 + $0xe8] sm:$0xff]
  %v3009 = vld [vmem:[%s4 + $0xf0] sm:$0xff]
  %v3010 = vld [vmem:[%s4 + $0xf8] sm:$0xff]
  %v3011 = vld [vmem:[%s9] sm:$0xf]
  %v3012 = vld [vmem:[%s9 + $0x4] sm:$0xf]
  %v3013 = vld [vmem:[%s9 + $0x8] sm:$0xf]
  %v3014 = vld [vmem:[%s9 + $0xc] sm:$0xf]
  %v3015 = vld [vmem:[%s9 + $0x10] sm:$0xf]
  %v3016 = vld [vmem:[%s9 + $0x14] sm:$0xf]
  %v3017 = vld [vmem:[%s9 + $0x18] sm:$0xf]
  %v3018 = vld [vmem:[%s9 + $0x1c] sm:$0xf]
  %v3019 = vld [vmem:[%s9 + $0x20] sm:$0xf]
  %v3020 = vld [vmem:[%s9 + $0x24] sm:$0xf]
  %v3021 = vld [vmem:[%s9 + $0x28] sm:$0xf]
  %v3022 = vld [vmem:[%s9 + $0x2c] sm:$0xf]
  %v3023 = vld [vmem:[%s9 + $0x30] sm:$0xf]
  %v3024 = vld [vmem:[%s9 + $0x34] sm:$0xf]
  %v3025 = vld [vmem:[%s9 + $0x38] sm:$0xf]
  %v3026 = vld [vmem:[%s9 + $0x3c] sm:$0xf]
  %v3027 = vld [vmem:[%s9 + $0x40] sm:$0xf]
  %v3028 = vld [vmem:[%s9 + $0x44] sm:$0xf]
  %v3029 = vld [vmem:[%s9 + $0x48] sm:$0xf]
  %v3030 = vld [vmem:[%s9 + $0x4c] sm:$0xf]
  %v3031 = vld [vmem:[%s9 + $0x50] sm:$0xf]
  %v3032 = vld [vmem:[%s9 + $0x54] sm:$0xf]
  %v3033 = vld [vmem:[%s9 + $0x58] sm:$0xf]
  %v3034 = vld [vmem:[%s9 + $0x5c] sm:$0xf]
  %v3035 = vld [vmem:[%s9 + $0x60] sm:$0xf]
  %v3036 = vld [vmem:[%s9 + $0x64] sm:$0xf]
  %v3037 = vld [vmem:[%s9 + $0x68] sm:$0xf]
  %v3038 = vld [vmem:[%s9 + $0x6c] sm:$0xf]
  %v3039 = vld [vmem:[%s9 + $0x70] sm:$0xf]
  %v3040 = vld [vmem:[%s9 + $0x74] sm:$0xf]
  %v3041 = vld [vmem:[%s9 + $0x78] sm:$0xf]
  %v3042 = vld [vmem:[%s9 + $0x7c] sm:$0xf]
  %v3043 = vld [vmem:[%s9 + $0x80] sm:$0xf]
  %v3044 = vld [vmem:[%s9 + $0x84] sm:$0xf]
  %v3045 = vld [vmem:[%s9 + $0x88] sm:$0xf]
  %v3046 = vld [vmem:[%s9 + $0x8c] sm:$0xf]
  %v3047 = vld [vmem:[%s9 + $0x90] sm:$0xf]
  %v3048 = vld [vmem:[%s9 + $0x94] sm:$0xf]
  %v3049 = vld [vmem:[%s9 + $0x98] sm:$0xf]
  %v3050 = vld [vmem:[%s9 + $0x9c] sm:$0xf]
  %v3051 = vld [vmem:[%s9 + $0xa0] sm:$0xf]
  %v3052 = vld [vmem:[%s9 + $0xa4] sm:$0xf]
  %v3053 = vld [vmem:[%s9 + $0xa8] sm:$0xf]
  %v3054 = vld [vmem:[%s9 + $0xac] sm:$0xf]
  %v3055 = vld [vmem:[%s9 + $0xb0] sm:$0xf]
  %v3056 = vld [vmem:[%s9 + $0xb4] sm:$0xf]
  %v3057 = vld [vmem:[%s9 + $0xb8] sm:$0xf]
  %v3058 = vld [vmem:[%s9 + $0xbc] sm:$0xf]
  %v3059 = vld [vmem:[%s9 + $0xc0] sm:$0xf]
  %v3060 = vld [vmem:[%s9 + $0xc4] sm:$0xf]
  %v3061 = vld [vmem:[%s9 + $0xc8] sm:$0xf]
  %v3062 = vld [vmem:[%s9 + $0xcc] sm:$0xf]
  %v3063 = vld [vmem:[%s9 + $0xd0] sm:$0xf]
  %v3064 = vld [vmem:[%s9 + $0xd4] sm:$0xf]
  %v3065 = vld [vmem:[%s9 + $0xd8] sm:$0xf]
  %v3066 = vld [vmem:[%s9 + $0xdc] sm:$0xf]
  %v3067 = vld [vmem:[%s9 + $0xe0] sm:$0xf]
  %v3068 = vld [vmem:[%s9 + $0xe4] sm:$0xf]
  %v3069 = vld [vmem:[%s9 + $0xe8] sm:$0xf]
  %v3070 = vld [vmem:[%s9 + $0xec] sm:$0xf]
  %v3071 = vld [vmem:[%s9 + $0xf0] sm:$0xf]
  %v3072 = vld [vmem:[%s9 + $0xf4] sm:$0xf]
  %v3073 = vld [vmem:[%s9 + $0xf8] sm:$0xf]
  %v3074 = vld [vmem:[%s9 + $0xfc] sm:$0xf]
  %v3075 = vld [vmem:[%s9 + $0x100] sm:$0xf]
  %v3076 = vld [vmem:[%s9 + $0x104] sm:$0xf]
  %v3077 = vld [vmem:[%s9 + $0x108] sm:$0xf]
  %v3078 = vld [vmem:[%s9 + $0x10c] sm:$0xf]
  %v3079 = vld [vmem:[%s9 + $0x110] sm:$0xf]
  %v3080 = vld [vmem:[%s9 + $0x114] sm:$0xf]
  %v3081 = vld [vmem:[%s9 + $0x118] sm:$0xf]
  %v3082 = vld [vmem:[%s9 + $0x11c] sm:$0xf]
  %v3083 = vld [vmem:[%s9 + $0x120] sm:$0xf]
  %v3084 = vld [vmem:[%s9 + $0x124] sm:$0xf]
  %v3085 = vld [vmem:[%s9 + $0x128] sm:$0xf]
  %v3086 = vld [vmem:[%s9 + $0x12c] sm:$0xf]
  %v3087 = vld [vmem:[%s9 + $0x130] sm:$0xf]
  %v3088 = vld [vmem:[%s9 + $0x134] sm:$0xf]
  %v3089 = vld [vmem:[%s9 + $0x138] sm:$0xf]
  %v3090 = vld [vmem:[%s9 + $0x13c] sm:$0xf]
  %v3091 = vld [vmem:[%s9 + $0x140] sm:$0xf]
  %v3092 = vld [vmem:[%s9 + $0x144] sm:$0xf]
  %v3093 = vld [vmem:[%s9 + $0x148] sm:$0xf]
  %v3094 = vld [vmem:[%s9 + $0x14c] sm:$0xf]
  %v3095 = vld [vmem:[%s9 + $0x150] sm:$0xf]
  %v3096 = vld [vmem:[%s9 + $0x154] sm:$0xf]
  %v3097 = vld [vmem:[%s9 + $0x158] sm:$0xf]
  %v3098 = vld [vmem:[%s9 + $0x15c] sm:$0xf]
  %v3099 = vld [vmem:[%s9 + $0x160] sm:$0xf]
  %v3100 = vld [vmem:[%s9 + $0x164] sm:$0xf]
  %v3101 = vld [vmem:[%s9 + $0x168] sm:$0xf]
  %v3102 = vld [vmem:[%s9 + $0x16c] sm:$0xf]
  %v3103 = vld [vmem:[%s9 + $0x170] sm:$0xf]
  %v3104 = vld [vmem:[%s9 + $0x174] sm:$0xf]
  %v3105 = vld [vmem:[%s9 + $0x178] sm:$0xf]
  %v3106 = vld [vmem:[%s9 + $0x17c] sm:$0xf]
  %v3107 = vld [vmem:[%s9 + $0x180] sm:$0xf]
  %v3108 = vld [vmem:[%s9 + $0x184] sm:$0xf]
  %v3109 = vld [vmem:[%s9 + $0x188] sm:$0xf]
  %v3110 = vld [vmem:[%s9 + $0x18c] sm:$0xf]
  %v3111 = vld [vmem:[%s9 + $0x190] sm:$0xf]
  %v3112 = vld [vmem:[%s9 + $0x194] sm:$0xf]
  %v3113 = vld [vmem:[%s9 + $0x198] sm:$0xf]
  %v3114 = vld [vmem:[%s9 + $0x19c] sm:$0xf]
  %v3115 = vld [vmem:[%s9 + $0x1a0] sm:$0xf]
  %v3116 = vld [vmem:[%s9 + $0x1a4] sm:$0xf]
  %v3117 = vld [vmem:[%s9 + $0x1a8] sm:$0xf]
  %v3118 = vld [vmem:[%s9 + $0x1ac] sm:$0xf]
  %v3119 = vld [vmem:[%s9 + $0x1b0] sm:$0xf]
  %v3120 = vld [vmem:[%s9 + $0x1b4] sm:$0xf]
  %v3121 = vld [vmem:[%s9 + $0x1b8] sm:$0xf]
  %v3122 = vld [vmem:[%s9 + $0x1bc] sm:$0xf]
  %v3123 = vld [vmem:[%s9 + $0x1c0] sm:$0xf]
  %v3124 = vld [vmem:[%s9 + $0x1c4] sm:$0xf]
  %v3125 = vld [vmem:[%s9 + $0x1c8] sm:$0xf]
  %v3126 = vld [vmem:[%s9 + $0x1cc] sm:$0xf]
  %v3127 = vld [vmem:[%s9 + $0x1d0] sm:$0xf]
  %v3128 = vld [vmem:[%s9 + $0x1d4] sm:$0xf]
  %v3129 = vld [vmem:[%s9 + $0x1d8] sm:$0xf]
  %v3130 = vld [vmem:[%s9 + $0x1dc] sm:$0xf]
  %v3131 = vld [vmem:[%s9 + $0x1e0] sm:$0xf]
  %v3132 = vld [vmem:[%s9 + $0x1e4] sm:$0xf]
  %v3133 = vld [vmem:[%s9 + $0x1e8] sm:$0xf]
  %v3134 = vld [vmem:[%s9 + $0x1ec] sm:$0xf]
  %v3135 = vld [vmem:[%s9 + $0x1f0] sm:$0xf]
  %v3136 = vld [vmem:[%s9 + $0x1f4] sm:$0xf]
  %v3137 = vld [vmem:[%s9 + $0x1f8] sm:$0xf]
  %v3138 = vld [vmem:[%s9 + $0x1fc] sm:$0xf]
  %v3139 = vld [vmem:[%s14] sm:$0x1]
  %v3141 = vperm.slane %v3139, 0
  %v3175 = vunpack.c.l.b16 %v2979
  %v3176 = vunpack.c.h.b16 %v2979
  %v3177 = vunpack.c.l.b16 %v2980
  %v3178 = vunpack.c.h.b16 %v2980
  %v3179 = vunpack.c.l.b16 %v2981
  %v3180 = vunpack.c.h.b16 %v2981
  %v3181 = vunpack.c.l.b16 %v2982
  %v3182 = vunpack.c.h.b16 %v2982
  %v3183 = vunpack.c.l.b16 %v2983
  %v3184 = vunpack.c.h.b16 %v2983
  %v3185 = vunpack.c.l.b16 %v2984
  %v3186 = vunpack.c.h.b16 %v2984
  %v3187 = vunpack.c.l.b16 %v2985
  %v3188 = vunpack.c.h.b16 %v2985
  %v3189 = vunpack.c.l.b16 %v2986
  %v3190 = vunpack.c.h.b16 %v2986
  %v3191 = vunpack.c.l.b16 %v2987
  %v3192 = vunpack.c.h.b16 %v2987
  %v3193 = vunpack.c.l.b16 %v2988
  %v3194 = vunpack.c.h.b16 %v2988
  %v3195 = vunpack.c.l.b16 %v2989
  %v3196 = vunpack.c.h.b16 %v2989
  %v3197 = vunpack.c.l.b16 %v2990
  %v3198 = vunpack.c.h.b16 %v2990
  %v3199 = vunpack.c.l.b16 %v2991
  %v3200 = vunpack.c.h.b16 %v2991
  %v3201 = vunpack.c.l.b16 %v2992
  %v3202 = vunpack.c.h.b16 %v2992
  %v3203 = vunpack.c.l.b16 %v2993
  %v3204 = vunpack.c.h.b16 %v2993
  %v3205 = vunpack.c.l.b16 %v2994
  %v3206 = vunpack.c.h.b16 %v2994
  %v3207 = vunpack.c.l.b16 %v2995
  %v3208 = vunpack.c.h.b16 %v2995
  %v3209 = vunpack.c.l.b16 %v2996
  %v3210 = vunpack.c.h.b16 %v2996
  %v3211 = vunpack.c.l.b16 %v2997
  %v3212 = vunpack.c.h.b16 %v2997
  %v3213 = vunpack.c.l.b16 %v2998
  %v3214 = vunpack.c.h.b16 %v2998
  %v3215 = vunpack.c.l.b16 %v2999
  %v3216 = vunpack.c.h.b16 %v2999
  %v3217 = vunpack.c.l.b16 %v3000
  %v3218 = vunpack.c.h.b16 %v3000
  %v3219 = vunpack.c.l.b16 %v3001
  %v3220 = vunpack.c.h.b16 %v3001
  %v3221 = vunpack.c.l.b16 %v3002
  %v3222 = vunpack.c.h.b16 %v3002
  %v3223 = vunpack.c.l.b16 %v3003
  %v3224 = vunpack.c.h.b16 %v3003
  %v3225 = vunpack.c.l.b16 %v3004
  %v3226 = vunpack.c.h.b16 %v3004
  %v3227 = vunpack.c.l.b16 %v3005
  %v3228 = vunpack.c.h.b16 %v3005
  %v3229 = vunpack.c.l.b16 %v3006
  %v3230 = vunpack.c.h.b16 %v3006
  %v3231 = vunpack.c.l.b16 %v3007
  %v3232 = vunpack.c.h.b16 %v3007
  %v3233 = vunpack.c.l.b16 %v3008
  %v3234 = vunpack.c.h.b16 %v3008
  %v3235 = vunpack.c.l.b16 %v3009
  %v3236 = vunpack.c.h.b16 %v3009
  %v3237 = vunpack.c.l.b16 %v3010
  %v3238 = vunpack.c.h.b16 %v3010
  %v3239 = vpack.c.b16 %v3183, %v3175
  %v3240 = vpack.c.b16 %v3184, %v3176
  %v3241 = vpack.c.b16 %v3185, %v3177
  %v3242 = vpack.c.b16 %v3186, %v3178
  %v3243 = vpack.c.b16 %v3187, %v3179
  %v3244 = vpack.c.b16 %v3188, %v3180
  %v3245 = vpack.c.b16 %v3189, %v3181
  %v3246 = vpack.c.b16 %v3190, %v3182
  %v3247 = vpack.c.b16 %v3199, %v3191
  %v3248 = vpack.c.b16 %v3200, %v3192
  %v3249 = vpack.c.b16 %v3201, %v3193
  %v3250 = vpack.c.b16 %v3202, %v3194
  %v3251 = vpack.c.b16 %v3203, %v3195
  %v3252 = vpack.c.b16 %v3204, %v3196
  %v3253 = vpack.c.b16 %v3205, %v3197
  %v3254 = vpack.c.b16 %v3206, %v3198
  %v3255 = vpack.c.b16 %v3215, %v3207
  %v3256 = vpack.c.b16 %v3216, %v3208
  %v3257 = vpack.c.b16 %v3217, %v3209
  %v3258 = vpack.c.b16 %v3218, %v3210
  %v3259 = vpack.c.b16 %v3219, %v3211
  %v3260 = vpack.c.b16 %v3220, %v3212
  %v3261 = vpack.c.b16 %v3221, %v3213
  %v3262 = vpack.c.b16 %v3222, %v3214
  %v3263 = vpack.c.b16 %v3231, %v3223
  %v3264 = vpack.c.b16 %v3232, %v3224
  %v3265 = vpack.c.b16 %v3233, %v3225
  %v3266 = vpack.c.b16 %v3234, %v3226
  %v3267 = vpack.c.b16 %v3235, %v3227
  %v3268 = vpack.c.b16 %v3236, %v3228
  %v3269 = vpack.c.b16 %v3237, %v3229
  %v3270 = vpack.c.b16 %v3238, %v3230
  %v3431 = vunpack.c.l.b16 %v3011
  %v3432 = vunpack.c.l.b16 %v3012
  %v3433 = vunpack.c.l.b16 %v3013
  %v3434 = vunpack.c.l.b16 %v3014
  %v3435 = vunpack.c.l.b16 %v3015
  %v3436 = vunpack.c.l.b16 %v3016
  %v3437 = vunpack.c.l.b16 %v3017
  %v3438 = vunpack.c.l.b16 %v3018
  %v3439 = vunpack.c.l.b16 %v3019
  %v3440 = vunpack.c.l.b16 %v3020
  %v3441 = vunpack.c.l.b16 %v3021
  %v3442 = vunpack.c.l.b16 %v3022
  %v3443 = vunpack.c.l.b16 %v3023
  %v3444 = vunpack.c.l.b16 %v3024
  %v3445 = vunpack.c.l.b16 %v3025
  %v3446 = vunpack.c.l.b16 %v3026
  %v3447 = vunpack.c.l.b16 %v3027
  %v3448 = vunpack.c.l.b16 %v3028
  %v3449 = vunpack.c.l.b16 %v3029
  %v3450 = vunpack.c.l.b16 %v3030
  %v3451 = vunpack.c.l.b16 %v3031
  %v3452 = vunpack.c.l.b16 %v3032
  %v3453 = vunpack.c.l.b16 %v3033
  %v3454 = vunpack.c.l.b16 %v3034
  %v3455 = vunpack.c.l.b16 %v3035
  %v3456 = vunpack.c.l.b16 %v3036
  %v3457 = vunpack.c.l.b16 %v3037
  %v3458 = vunpack.c.l.b16 %v3038
  %v3459 = vunpack.c.l.b16 %v3039
  %v3460 = vunpack.c.l.b16 %v3040
  %v3461 = vunpack.c.l.b16 %v3041
  %v3462 = vunpack.c.l.b16 %v3042
  %v3463 = vunpack.c.l.b16 %v3043
  %v3464 = vunpack.c.l.b16 %v3044
  %v3465 = vunpack.c.l.b16 %v3045
  %v3466 = vunpack.c.l.b16 %v3046
  %v3467 = vunpack.c.l.b16 %v3047
  %v3468 = vunpack.c.l.b16 %v3048
  %v3469 = vunpack.c.l.b16 %v3049
  %v3470 = vunpack.c.l.b16 %v3050
  %v3471 = vunpack.c.l.b16 %v3051
  %v3472 = vunpack.c.l.b16 %v3052
  %v3473 = vunpack.c.l.b16 %v3053
  %v3474 = vunpack.c.l.b16 %v3054
  %v3475 = vunpack.c.l.b16 %v3055
  %v3476 = vunpack.c.l.b16 %v3056
  %v3477 = vunpack.c.l.b16 %v3057
  %v3478 = vunpack.c.l.b16 %v3058
  %v3479 = vunpack.c.l.b16 %v3059
  %v3480 = vunpack.c.l.b16 %v3060
  %v3481 = vunpack.c.l.b16 %v3061
  %v3482 = vunpack.c.l.b16 %v3062
  %v3483 = vunpack.c.l.b16 %v3063
  %v3484 = vunpack.c.l.b16 %v3064
  %v3485 = vunpack.c.l.b16 %v3065
  %v3486 = vunpack.c.l.b16 %v3066
  %v3487 = vunpack.c.l.b16 %v3067
  %v3488 = vunpack.c.l.b16 %v3068
  %v3489 = vunpack.c.l.b16 %v3069
  %v3490 = vunpack.c.l.b16 %v3070
  %v3491 = vunpack.c.l.b16 %v3071
  %v3492 = vunpack.c.l.b16 %v3072
  %v3493 = vunpack.c.l.b16 %v3073
  %v3494 = vunpack.c.l.b16 %v3074
  %v3495 = vunpack.c.l.b16 %v3075
  %v3496 = vunpack.c.l.b16 %v3076
  %v3497 = vunpack.c.l.b16 %v3077
  %v3498 = vunpack.c.l.b16 %v3078
  %v3499 = vunpack.c.l.b16 %v3079
  %v3500 = vunpack.c.l.b16 %v3080
  %v3501 = vunpack.c.l.b16 %v3081
  %v3502 = vunpack.c.l.b16 %v3082
  %v3503 = vunpack.c.l.b16 %v3083
  %v3504 = vunpack.c.l.b16 %v3084
  %v3505 = vunpack.c.l.b16 %v3085
  %v3506 = vunpack.c.l.b16 %v3086
  %v3507 = vunpack.c.l.b16 %v3087
  %v3508 = vunpack.c.l.b16 %v3088
  %v3509 = vunpack.c.l.b16 %v3089
  %v3510 = vunpack.c.l.b16 %v3090
  %v3511 = vunpack.c.l.b16 %v3091
  %v3512 = vunpack.c.l.b16 %v3092
  %v3513 = vunpack.c.l.b16 %v3093
  %v3514 = vunpack.c.l.b16 %v3094
  %v3515 = vunpack.c.l.b16 %v3095
  %v3516 = vunpack.c.l.b16 %v3096
  %v3517 = vunpack.c.l.b16 %v3097
  %v3518 = vunpack.c.l.b16 %v3098
  %v3519 = vunpack.c.l.b16 %v3099
  %v3520 = vunpack.c.l.b16 %v3100
  %v3521 = vunpack.c.l.b16 %v3101
  %v3522 = vunpack.c.l.b16 %v3102
  %v3523 = vunpack.c.l.b16 %v3103
  %v3524 = vunpack.c.l.b16 %v3104
  %v3525 = vunpack.c.l.b16 %v3105
  %v3526 = vunpack.c.l.b16 %v3106
  %v3527 = vunpack.c.l.b16 %v3107
  %v3528 = vunpack.c.l.b16 %v3108
  %v3529 = vunpack.c.l.b16 %v3109
  %v3530 = vunpack.c.l.b16 %v3110
  %v3531 = vunpack.c.l.b16 %v3111
  %v3532 = vunpack.c.l.b16 %v3112
  %v3533 = vunpack.c.l.b16 %v3113
  %v3534 = vunpack.c.l.b16 %v3114
  %v3535 = vunpack.c.l.b16 %v3115
  %v3536 = vunpack.c.l.b16 %v3116
  %v3537 = vunpack.c.l.b16 %v3117
  %v3538 = vunpack.c.l.b16 %v3118
  %v3539 = vunpack.c.l.b16 %v3119
  %v3540 = vunpack.c.l.b16 %v3120
  %v3541 = vunpack.c.l.b16 %v3121
  %v3542 = vunpack.c.l.b16 %v3122
  %v3543 = vunpack.c.l.b16 %v3123
  %v3544 = vunpack.c.l.b16 %v3124
  %v3545 = vunpack.c.l.b16 %v3125
  %v3546 = vunpack.c.l.b16 %v3126
  %v3547 = vunpack.c.l.b16 %v3127
  %v3548 = vunpack.c.l.b16 %v3128
  %v3549 = vunpack.c.l.b16 %v3129
  %v3550 = vunpack.c.l.b16 %v3130
  %v3551 = vunpack.c.l.b16 %v3131
  %v3552 = vunpack.c.l.b16 %v3132
  %v3553 = vunpack.c.l.b16 %v3133
  %v3554 = vunpack.c.l.b16 %v3134
  %v3555 = vunpack.c.l.b16 %v3135
  %v3556 = vunpack.c.l.b16 %v3136
  %v3557 = vunpack.c.l.b16 %v3137
  %v3558 = vunpack.c.l.b16 %v3138
  %v3559 = vpack.c.b16 %v3432, %v3431
  %v3560 = vpack.c.b16 %v3434, %v3433
  %v3561 = vpack.c.b16 %v3436, %v3435
  %v3562 = vpack.c.b16 %v3438, %v3437
  %v3563 = vpack.c.b16 %v3440, %v3439
  %v3564 = vpack.c.b16 %v3442, %v3441
  %v3565 = vpack.c.b16 %v3444, %v3443
  %v3566 = vpack.c.b16 %v3446, %v3445
  %v3567 = vpack.c.b16 %v3448, %v3447
  %v3568 = vpack.c.b16 %v3450, %v3449
  %v3569 = vpack.c.b16 %v3452, %v3451
  %v3570 = vpack.c.b16 %v3454, %v3453
  %v3571 = vpack.c.b16 %v3456, %v3455
  %v3572 = vpack.c.b16 %v3458, %v3457
  %v3573 = vpack.c.b16 %v3460, %v3459
  %v3574 = vpack.c.b16 %v3462, %v3461
  %v3575 = vpack.c.b16 %v3464, %v3463
  %v3576 = vpack.c.b16 %v3466, %v3465
  %v3577 = vpack.c.b16 %v3468, %v3467
  %v3578 = vpack.c.b16 %v3470, %v3469
  %v3579 = vpack.c.b16 %v3472, %v3471
  %v3580 = vpack.c.b16 %v3474, %v3473
  %v3581 = vpack.c.b16 %v3476, %v3475
  %v3582 = vpack.c.b16 %v3478, %v3477
  %v3583 = vpack.c.b16 %v3480, %v3479
  %v3584 = vpack.c.b16 %v3482, %v3481
  %v3585 = vpack.c.b16 %v3484, %v3483
  %v3586 = vpack.c.b16 %v3486, %v3485
  %v3587 = vpack.c.b16 %v3488, %v3487
  %v3588 = vpack.c.b16 %v3490, %v3489
  %v3589 = vpack.c.b16 %v3492, %v3491
  %v3590 = vpack.c.b16 %v3494, %v3493
  %v3591 = vpack.c.b16 %v3496, %v3495
  %v3592 = vpack.c.b16 %v3498, %v3497
  %v3593 = vpack.c.b16 %v3500, %v3499
  %v3594 = vpack.c.b16 %v3502, %v3501
  %v3595 = vpack.c.b16 %v3504, %v3503
  %v3596 = vpack.c.b16 %v3506, %v3505
  %v3597 = vpack.c.b16 %v3508, %v3507
  %v3598 = vpack.c.b16 %v3510, %v3509
  %v3599 = vpack.c.b16 %v3512, %v3511
  %v3600 = vpack.c.b16 %v3514, %v3513
  %v3601 = vpack.c.b16 %v3516, %v3515
  %v3602 = vpack.c.b16 %v3518, %v3517
  %v3603 = vpack.c.b16 %v3520, %v3519
  %v3604 = vpack.c.b16 %v3522, %v3521
  %v3605 = vpack.c.b16 %v3524, %v3523
  %v3606 = vpack.c.b16 %v3526, %v3525
  %v3607 = vpack.c.b16 %v3528, %v3527
  %v3608 = vpack.c.b16 %v3530, %v3529
  %v3609 = vpack.c.b16 %v3532, %v3531
  %v3610 = vpack.c.b16 %v3534, %v3533
  %v3611 = vpack.c.b16 %v3536, %v3535
  %v3612 = vpack.c.b16 %v3538, %v3537
  %v3613 = vpack.c.b16 %v3540, %v3539
  %v3614 = vpack.c.b16 %v3542, %v3541
  %v3615 = vpack.c.b16 %v3544, %v3543
  %v3616 = vpack.c.b16 %v3546, %v3545
  %v3617 = vpack.c.b16 %v3548, %v3547
  %v3618 = vpack.c.b16 %v3550, %v3549
  %v3619 = vpack.c.b16 %v3552, %v3551
  %v3620 = vpack.c.b16 %v3554, %v3553
  %v3621 = vpack.c.b16 %v3556, %v3555
  %v3622 = vpack.c.b16 %v3558, %v3557
  %3687 = vmatpush.bf16.msra.mxu0 %v3566
  %3688 = vmatpush.bf16.msra.mxu0 %v3565
  %3689 = vmatpush.bf16.msra.mxu0 %v3564
  %3690 = vmatpush.bf16.msra.mxu0 %v3563
  %3691 = vmatpush.bf16.msra.mxu0 %v3562
  %3692 = vmatpush.bf16.msra.mxu0 %v3561
  %3693 = vmatpush.bf16.msra.mxu0 %v3560
  %3694 = vmatpush.bf16.msra.mxu0 %v3559
  %3695 = vmatmul.bf16.gmra.mxu0 %v3239
  %v3696 = vpop.f32.mrf.mxu0
  %v3697 = vadd.f32 %v3141, %v3696
  %v3698 = vpop.f32.mrf.mxu0
  %v3699 = vadd.f32 %v3141, %v3698
  %3700 = vmatmul.bf16.gmra.mxu0 %v3247
  %v3701 = vpop.f32.mrf.mxu0
  %v3702 = vadd.f32 %v3141, %v3701
  %v3703 = vpop.f32.mrf.mxu0
  %v3704 = vadd.f32 %v3141, %v3703
  %3705 = vmatmul.bf16.gmra.mxu0 %v3255
  %v3706 = vpop.f32.mrf.mxu0
  %v3707 = vadd.f32 %v3141, %v3706
  %v3708 = vpop.f32.mrf.mxu0
  %v3709 = vadd.f32 %v3141, %v3708
  %3710 = vmatmul.bf16.gmra.mxu0 %v3263
  %v3711 = vpop.f32.mrf.mxu0
  %v3712 = vadd.f32 %v3141, %v3711
  %v3713 = vpop.f32.mrf.mxu0
  %v3714 = vadd.f32 %v3141, %v3713
  %3715 = vdwg.mxu0
  %3716 = vmatpush.bf16.msra.mxu0 %v3574
  %3717 = vmatpush.bf16.msra.mxu0 %v3573
  %3718 = vmatpush.bf16.msra.mxu0 %v3572
  %3719 = vmatpush.bf16.msra.mxu0 %v3571
  %3720 = vmatpush.bf16.msra.mxu0 %v3570
  %3721 = vmatpush.bf16.msra.mxu0 %v3569
  %3722 = vmatpush.bf16.msra.mxu0 %v3568
  %3723 = vmatpush.bf16.msra.mxu0 %v3567
  %3724 = vmatmul.bf16.gmra.mxu0 %v3240
  %v3725 = vpop.f32.mrf.mxu0
  %v3726 = vadd.f32 %v3697, %v3725
  %v3727 = vpop.f32.mrf.mxu0
  %v3728 = vadd.f32 %v3699, %v3727
  %3729 = vmatmul.bf16.gmra.mxu0 %v3248
  %v3730 = vpop.f32.mrf.mxu0
  %v3731 = vadd.f32 %v3702, %v3730
  %v3732 = vpop.f32.mrf.mxu0
  %v3733 = vadd.f32 %v3704, %v3732
  %3734 = vmatmul.bf16.gmra.mxu0 %v3256
  %v3735 = vpop.f32.mrf.mxu0
  %v3736 = vadd.f32 %v3707, %v3735
  %v3737 = vpop.f32.mrf.mxu0
  %v3738 = vadd.f32 %v3709, %v3737
  %3739 = vmatmul.bf16.gmra.mxu0 %v3264
  %v3740 = vpop.f32.mrf.mxu0
  %v3741 = vadd.f32 %v3712, %v3740
  %v3742 = vpop.f32.mrf.mxu0
  %v3743 = vadd.f32 %v3714, %v3742
  %3744 = vdwg.mxu0
  %3745 = vmatpush.bf16.msra.mxu0 %v3582
  %3746 = vmatpush.bf16.msra.mxu0 %v3581
  %3747 = vmatpush.bf16.msra.mxu0 %v3580
  %3748 = vmatpush.bf16.msra.mxu0 %v3579
  %3749 = vmatpush.bf16.msra.mxu0 %v3578
  %3750 = vmatpush.bf16.msra.mxu0 %v3577
  %3751 = vmatpush.bf16.msra.mxu0 %v3576
  %3752 = vmatpush.bf16.msra.mxu0 %v3575
  %3753 = vmatmul.bf16.gmra.mxu0 %v3241
  %v3754 = vpop.f32.mrf.mxu0
  %v3755 = vadd.f32 %v3726, %v3754
  %v3756 = vpop.f32.mrf.mxu0
  %v3757 = vadd.f32 %v3728, %v3756
  %3758 = vmatmul.bf16.gmra.mxu0 %v3249
  %v3759 = vpop.f32.mrf.mxu0
  %v3760 = vadd.f32 %v3731, %v3759
  %v3761 = vpop.f32.mrf.mxu0
  %v3762 = vadd.f32 %v3733, %v3761
  %3763 = vmatmul.bf16.gmra.mxu0 %v3257
  %v3764 = vpop.f32.mrf.mxu0
  %v3765 = vadd.f32 %v3736, %v3764
  %v3766 = vpop.f32.mrf.mxu0
  %v3767 = vadd.f32 %v3738, %v3766
  %3768 = vmatmul.bf16.gmra.mxu0 %v3265
  %v3769 = vpop.f32.mrf.mxu0
  %v3770 = vadd.f32 %v3741, %v3769
  %v3771 = vpop.f32.mrf.mxu0
  %v3772 = vadd.f32 %v3743, %v3771
  %3773 = vdwg.mxu0
  %3774 = vmatpush.bf16.msra.mxu0 %v3590
  %3775 = vmatpush.bf16.msra.mxu0 %v3589
  %3776 = vmatpush.bf16.msra.mxu0 %v3588
  %3777 = vmatpush.bf16.msra.mxu0 %v3587
  %3778 = vmatpush.bf16.msra.mxu0 %v3586
  %3779 = vmatpush.bf16.msra.mxu0 %v3585
  %3780 = vmatpush.bf16.msra.mxu0 %v3584
  %3781 = vmatpush.bf16.msra.mxu0 %v3583
  %3782 = vmatmul.bf16.gmra.mxu0 %v3242
  %v3783 = vpop.f32.mrf.mxu0
  %v3784 = vadd.f32 %v3755, %v3783
  %v3785 = vpop.f32.mrf.mxu0
  %v3786 = vadd.f32 %v3757, %v3785
  %3787 = vmatmul.bf16.gmra.mxu0 %v3250
  %v3788 = vpop.f32.mrf.mxu0
  %v3789 = vadd.f32 %v3760, %v3788
  %v3790 = vpop.f32.mrf.mxu0
  %v3791 = vadd.f32 %v3762, %v3790
  %3792 = vmatmul.bf16.gmra.mxu0 %v3258
  %v3793 = vpop.f32.mrf.mxu0
  %v3794 = vadd.f32 %v3765, %v3793
  %v3795 = vpop.f32.mrf.mxu0
  %v3796 = vadd.f32 %v3767, %v3795
  %3797 = vmatmul.bf16.gmra.mxu0 %v3266
  %v3798 = vpop.f32.mrf.mxu0
  %v3799 = vadd.f32 %v3770, %v3798
  %v3800 = vpop.f32.mrf.mxu0
  %v3801 = vadd.f32 %v3772, %v3800
  %3802 = vdwg.mxu0
  %3803 = vmatpush.bf16.msra.mxu0 %v3598
  %3804 = vmatpush.bf16.msra.mxu0 %v3597
  %3805 = vmatpush.bf16.msra.mxu0 %v3596
  %3806 = vmatpush.bf16.msra.mxu0 %v3595
  %3807 = vmatpush.bf16.msra.mxu0 %v3594
  %3808 = vmatpush.bf16.msra.mxu0 %v3593
  %3809 = vmatpush.bf16.msra.mxu0 %v3592
  %3810 = vmatpush.bf16.msra.mxu0 %v3591
  %3811 = vmatmul.bf16.gmra.mxu0 %v3243
  %v3812 = vpop.f32.mrf.mxu0
  %v3813 = vadd.f32 %v3784, %v3812
  %v3814 = vpop.f32.mrf.mxu0
  %v3815 = vadd.f32 %v3786, %v3814
  %3816 = vmatmul.bf16.gmra.mxu0 %v3251
  %v3817 = vpop.f32.mrf.mxu0
  %v3818 = vadd.f32 %v3789, %v3817
  %v3819 = vpop.f32.mrf.mxu0
  %v3820 = vadd.f32 %v3791, %v3819
  %3821 = vmatmul.bf16.gmra.mxu0 %v3259
  %v3822 = vpop.f32.mrf.mxu0
  %v3823 = vadd.f32 %v3794, %v3822
  %v3824 = vpop.f32.mrf.mxu0
  %v3825 = vadd.f32 %v3796, %v3824
  %3826 = vmatmul.bf16.gmra.mxu0 %v3267
  %v3827 = vpop.f32.mrf.mxu0
  %v3828 = vadd.f32 %v3799, %v3827
  %v3829 = vpop.f32.mrf.mxu0
  %v3830 = vadd.f32 %v3801, %v3829
  %3831 = vdwg.mxu0
  %3832 = vmatpush.bf16.msra.mxu0 %v3606
  %3833 = vmatpush.bf16.msra.mxu0 %v3605
  %3834 = vmatpush.bf16.msra.mxu0 %v3604
  %3835 = vmatpush.bf16.msra.mxu0 %v3603
  %3836 = vmatpush.bf16.msra.mxu0 %v3602
  %3837 = vmatpush.bf16.msra.mxu0 %v3601
  %3838 = vmatpush.bf16.msra.mxu0 %v3600
  %3839 = vmatpush.bf16.msra.mxu0 %v3599
  %3840 = vmatmul.bf16.gmra.mxu0 %v3244
  %v3841 = vpop.f32.mrf.mxu0
  %v3842 = vadd.f32 %v3813, %v3841
  %v3843 = vpop.f32.mrf.mxu0
  %v3844 = vadd.f32 %v3815, %v3843
  %3845 = vmatmul.bf16.gmra.mxu0 %v3252
  %v3846 = vpop.f32.mrf.mxu0
  %v3847 = vadd.f32 %v3818, %v3846
  %v3848 = vpop.f32.mrf.mxu0
  %v3849 = vadd.f32 %v3820, %v3848
  %3850 = vmatmul.bf16.gmra.mxu0 %v3260
  %v3851 = vpop.f32.mrf.mxu0
  %v3852 = vadd.f32 %v3823, %v3851
  %v3853 = vpop.f32.mrf.mxu0
  %v3854 = vadd.f32 %v3825, %v3853
  %3855 = vmatmul.bf16.gmra.mxu0 %v3268
  %v3856 = vpop.f32.mrf.mxu0
  %v3857 = vadd.f32 %v3828, %v3856
  %v3858 = vpop.f32.mrf.mxu0
  %v3859 = vadd.f32 %v3830, %v3858
  %3860 = vdwg.mxu0
  %3861 = vmatpush.bf16.msra.mxu0 %v3614
  %3862 = vmatpush.bf16.msra.mxu0 %v3613
  %3863 = vmatpush.bf16.msra.mxu0 %v3612
  %3864 = vmatpush.bf16.msra.mxu0 %v3611
  %3865 = vmatpush.bf16.msra.mxu0 %v3610
  %3866 = vmatpush.bf16.msra.mxu0 %v3609
  %3867 = vmatpush.bf16.msra.mxu0 %v3608
  %3868 = vmatpush.bf16.msra.mxu0 %v3607
  %3869 = vmatmul.bf16.gmra.mxu0 %v3245
  %v3870 = vpop.f32.mrf.mxu0
  %v3871 = vadd.f32 %v3842, %v3870
  %v3872 = vpop.f32.mrf.mxu0
  %v3873 = vadd.f32 %v3844, %v3872
  %3874 = vmatmul.bf16.gmra.mxu0 %v3253
  %v3875 = vpop.f32.mrf.mxu0
  %v3876 = vadd.f32 %v3847, %v3875
  %v3877 = vpop.f32.mrf.mxu0
  %v3878 = vadd.f32 %v3849, %v3877
  %3879 = vmatmul.bf16.gmra.mxu0 %v3261
  %v3880 = vpop.f32.mrf.mxu0
  %v3881 = vadd.f32 %v3852, %v3880
  %v3882 = vpop.f32.mrf.mxu0
  %v3883 = vadd.f32 %v3854, %v3882
  %3884 = vmatmul.bf16.gmra.mxu0 %v3269
  %v3885 = vpop.f32.mrf.mxu0
  %v3886 = vadd.f32 %v3857, %v3885
  %v3887 = vpop.f32.mrf.mxu0
  %v3888 = vadd.f32 %v3859, %v3887
  %3889 = vdwg.mxu0
  %3890 = vmatpush.bf16.msra.mxu0 %v3622
  %3891 = vmatpush.bf16.msra.mxu0 %v3621
  %3892 = vmatpush.bf16.msra.mxu0 %v3620
  %3893 = vmatpush.bf16.msra.mxu0 %v3619
  %3894 = vmatpush.bf16.msra.mxu0 %v3618
  %3895 = vmatpush.bf16.msra.mxu0 %v3617
  %3896 = vmatpush.bf16.msra.mxu0 %v3616
  %3897 = vmatpush.bf16.msra.mxu0 %v3615
  %3898 = vmatmul.bf16.gmra.mxu0 %v3246
  %v3899 = vpop.f32.mrf.mxu0
  %v3900 = vadd.f32 %v3871, %v3899
  %v3901 = vpop.f32.mrf.mxu0
  %v3902 = vadd.f32 %v3873, %v3901
  %3903 = vmatmul.bf16.gmra.mxu0 %v3254
  %v3904 = vpop.f32.mrf.mxu0
  %v3905 = vadd.f32 %v3876, %v3904
  %v3906 = vpop.f32.mrf.mxu0
  %v3907 = vadd.f32 %v3878, %v3906
  %3908 = vmatmul.bf16.gmra.mxu0 %v3262
  %v3909 = vpop.f32.mrf.mxu0
  %v3910 = vadd.f32 %v3881, %v3909
  %v3911 = vpop.f32.mrf.mxu0
  %v3912 = vadd.f32 %v3883, %v3911
  %3913 = vmatmul.bf16.gmra.mxu0 %v3270
  %v3914 = vpop.f32.mrf.mxu0
  %v3915 = vadd.f32 %v3886, %v3914
  %v3916 = vpop.f32.mrf.mxu0
  %v3917 = vadd.f32 %v3888, %v3916
  %3918 = vdwg.mxu0
  %v3919 = vpack.c.bf16 %v3900, %v3900
  %v3920 = vpack.c.bf16 %v3902, %v3902
  %v3921 = vpack.c.bf16 %v3905, %v3905
  %v3922 = vpack.c.bf16 %v3907, %v3907
  %v3923 = vpack.c.bf16 %v3910, %v3910
  %v3924 = vpack.c.bf16 %v3912, %v3912
  %v3925 = vpack.c.bf16 %v3915, %v3915
  %v3926 = vpack.c.bf16 %v3917, %v3917
  %3927 = vst [vmem:[%s19] sm:$0xf] %v3919
  %3928 = vst [vmem:[%s19 + $0x4] sm:$0xf] %v3920
  %3929 = vst [vmem:[%s19 + $0x8] sm:$0xf] %v3921
  %3930 = vst [vmem:[%s19 + $0xc] sm:$0xf] %v3922
  %3931 = vst [vmem:[%s19 + $0x10] sm:$0xf] %v3923
  %3932 = vst [vmem:[%s19 + $0x14] sm:$0xf] %v3924
  %3933 = vst [vmem:[%s19 + $0x18] sm:$0xf] %v3925
  %3934 = vst [vmem:[%s19 + $0x1c] sm:$0xf] %v3926
  // Predicated region
  $region62: #{csp_lsn_forward.11} parent=0 // pred_check
    _
  $region63: #{csp_lsn_forward.11} parent=0 // pred_check_branch
    %3936 = sbr.rel (0) target = $region65
  $region64: #{csp_lsn_forward.11} parent=0 // pred_region
    _
  $region65: #{csp_lsn_forward.11} parent=0 // pred_fallthru
    _
  // Predicated region
  $region66: #{csp_lsn_forward.11} parent=0 // pred_check
    _
  $region67: #{csp_lsn_forward.11} parent=0 // pred_check_branch
    %3938 = sbr.rel (0) target = $region69
  $region68: #{csp_lsn_forward.11} parent=0 // pred_region
    _
  $region69: #{csp_lsn_forward.11} parent=0 // pred_fallthru
    _
  // Predicated region
  $region70: #{csp_lsn_forward.11} parent=0 // pred_check
    _
  $region71: #{csp_lsn_forward.11} parent=0 // pred_check_branch
    %3940 = sbr.rel (0) target = $region73
  $region72: #{csp_lsn_forward.11} parent=0 // pred_region
    _
  $region73: #{csp_lsn_forward.11} parent=0 // pred_fallthru
    _
  // Predicated region
  $region74: #{csp_lsn_forward.11} parent=0 // pred_check
    _
  $region75: #{csp_lsn_forward.11} parent=0 // pred_check_branch
    %3942 = sbr.rel (0) target = $region77
  $region76: #{csp_lsn_forward.11} parent=0 // pred_region
    _
  $region77: #{csp_lsn_forward.11} parent=0 // pred_fallthru
    _
  // Predicated region
  $region78: #{csp_lsn_forward.11} parent=0 // pred_check
    _
  $region79: #{csp_lsn_forward.11} parent=0 // pred_check_branch
    %3944 = sbr.rel (0) target = $region81
  $region80: #{csp_lsn_forward.11} parent=0 // pred_region
    _
  $region81: #{csp_lsn_forward.11} parent=0 // pred_fallthru
    _
  // Predicated region
  $region82: #{csp_lsn_forward.11} parent=0 // pred_check
    _
  $region83: #{csp_lsn_forward.11} parent=0 // pred_check_branch
    %3946 = sbr.rel (0) target = $region85
  $region84: #{csp_lsn_forward.11} parent=0 // pred_region
    _
  $region85: #{csp_lsn_forward.11} parent=0 // pred_fallthru
    _
  // Predicated region
  $region86: #{csp_lsn_forward.11} parent=0 // pred_check
    _
  $region87: #{csp_lsn_forward.11} parent=0 // pred_check_branch
    %3948 = sbr.rel (0) target = $region89
  $region88: #{csp_lsn_forward.11} parent=0 // pred_region
    _
  $region89: #{csp_lsn_forward.11} parent=0 // pred_fallthru
    _
  // Predicated region
  $region90: #{csp_lsn_forward.11} parent=0 // pred_check
    _
  $region91: #{csp_lsn_forward.11} parent=0 // pred_check_branch
    %3950 = sbr.rel (0) target = $region93
  $region92: #{csp_lsn_forward.11} parent=0 // pred_region
    _
  $region93: #{csp_lsn_forward.11} parent=0 // pred_fallthru
    _
  // Predicated region
  $region94: #{csp_lsn_forward.11} parent=0 // pred_check
    _
  $region95: #{csp_lsn_forward.11} parent=0 // pred_check_branch
    %3952 = sbr.rel (0) target = $region97
  $region96: #{csp_lsn_forward.11} parent=0 // pred_region
    _
  $region97: #{csp_lsn_forward.11} parent=0 // pred_fallthru
    _
  // Predicated region
  $region98: #{csp_lsn_forward.11} parent=0 // pred_check
    _
  $region99: #{csp_lsn_forward.11} parent=0 // pred_check_branch
    %3954 = sbr.rel (0) target = $region101
  $region100: #{csp_lsn_forward.11} parent=0 // pred_region
    _
  $region101: #{csp_lsn_forward.11} parent=0 // pred_fallthru
    _

</llo_original>
